<compile_context>
chip_gen: v6e
topology: v6e:2x2x1
jax: 0.10.0
libtpu: 0.0.40
codegen_flags: <defaults>
</compile_context>

<pallas_src>
import functools

import numpy as np
import jax
import jax.numpy as jnp
from jax.experimental import pallas as pl
from jax.experimental.pallas import tpu as pltpu

EPS = 1e-5


def _psp_kernel(x_ref, u_ref, w_ref, p_ref, o_ref, up_ref, *,
                cin, cout, w_in, th_in, n_strips):
    # x_ref : (1, Cin, H+2, W+2)       edge-padded input image (shared by all strips)
    # u_ref : (W+2, Wo+2)              fixed column-upsample + zero-pad matrix
    # w_ref : (Cout, 9*Cin)            conv taps, column index = (dh*3 + dw)*Cin + ci
    # p_ref : (Cout, 3)                [bn_scale, bn_shift (conv bias folded), prelu_alpha]
    # o_ref : (1, Cout, TH_out*Wo)     output strip, lane-dense (reshaped to NCHW in wrapper)
    # up_ref: (Cin, TH_out+2, Wo+2)    VMEM scratch: zero-padded upsampled strip
    th_out = 2 * th_in
    wo = 2 * w_in

    # ---- input strip rows (with 1-row halo each side); static when n_strips == 1 ----
    if n_strips == 1:
        xs = x_ref[0]                                       # (cin, h+2, w+2), static window
    else:
        # th_in is a multiple of 8 by construction -> aligned dynamic sublane start
        row0 = pl.multiple_of(pl.program_id(1) * th_in, 8)
        xs = x_ref[0, :, pl.ds(row0, th_in + 2), :]

    # ---- fused 2x bilinear upsample (+ conv zero padding), built in VMEM ----
    # Columns: one small MXU matmul against the fixed upsample/zero-pad matrix.
    xw = jnp.dot(xs.reshape(cin * (th_in + 2), w_in + 2), u_ref[...],
                 preferred_element_type=jnp.float32)
    xw = xw.reshape(cin, th_in + 2, wo + 2)
    # Rows: the two bilinear row phases.  Scratch row r holds upsampled row
    # 2*row0 + r - 1, so:
    #   ph0[k] = 0.75*xpad[row0+k] + 0.25*xpad[row0+k+1]  -> scratch rows 0,2,4,...
    #            (odd upsampled rows; row 0 of the first strip is the top halo)
    #   ph1[k] = 0.25*xpad[row0+k] + 0.75*xpad[row0+k+1]  -> scratch rows 1,3,5,...
    #            (even upsampled rows)
    r0 = xw[:, 0:th_in + 1, :]
    r1 = xw[:, 1:th_in + 2, :]
    ph0 = 0.75 * r0 + 0.25 * r1
    ph1 = 0.25 * r0 + 0.75 * r1
    # Single interleave (XLU relayout) + one dense full-tile store.
    up_ref[...] = jnp.stack([ph0, ph1], axis=2).reshape(cin, th_out + 2, wo + 2)

    # conv zero padding at the image top / bottom (boundary strips only)
    @pl.when(pl.program_id(1) == 0)
    def _():
        up_ref[:, 0:1, :] = jnp.zeros((cin, 1, wo + 2), jnp.float32)

    @pl.when(pl.program_id(1) == pl.num_programs(1) - 1)
    def _():
        up_ref[:, th_out + 1:th_out + 2, :] = jnp.zeros((cin, 1, wo + 2),
                                                        jnp.float32)

    # ---- 3x3 conv as VPU broadcast-FMAs (Cin/Cout far too small for the MXU) ----
    wall = w_ref[...]                                        # (cout, 9*cin), loaded once
    # Hoisted per-tap weight broadcasts (built once, above the unrolled FMA loop).
    taps = [wall[:, i:i + 1].reshape(cout, 1, 1) for i in range(9 * cin)]
    acc = jnp.zeros((cout, th_out, wo), jnp.float32)
    for dh in range(3):
        for dw in range(3):
            slab = up_ref[:, dh:dh + th_out, dw:dw + wo]     # (cin, th_out, wo)
            for ci in range(cin):
                acc = acc + taps[(dh * 3 + dw) * cin + ci] * slab[ci:ci + 1, :, :]

    # ---- BatchNorm (inference, folded) + PReLU epilogue on lane-dense layout ----
    y = acc.reshape(cout, th_out * wo)                       # (cout, multiple of 128)
    pp = p_ref[...]                                          # (cout, 3)
    y = y * pp[:, 0:1] + pp[:, 1:2]
    y = jnp.where(y >= 0.0, y, pp[:, 2:3] * y)
    o_ref[...] = y.reshape(1, cout, th_out * wo).astype(o_ref.dtype)


def _col_upsample_matrix(w_in):
    """(W+2, 2W+2) matrix: edge-padded columns -> 2x bilinear columns + zero pad."""
    wo = 2 * w_in
    u = np.zeros((w_in + 2, wo + 2), np.float32)
    for k in range(w_in):
        u[k, 1 + 2 * k] = 0.25        # even output column 2k (padded col 1+2k)
        u[k + 1, 1 + 2 * k] = 0.75
        u[k + 1, 2 + 2 * k] = 0.75    # odd output column 2k+1 (padded col 2+2k)
        u[k + 2, 2 + 2 * k] = 0.25
    return jnp.asarray(u)


def _pick_th_in(h, w, cin, cout, budget_bytes=8 << 20):
    """Collapse strips (th_in = h) unless the VMEM footprint forces subdivision."""
    def footprint(th):
        tho, wo = 2 * th, 2 * w
        inp = 2 * cin * (h + 2) * (w + 2) * 4          # double-buffered input block
        scratch = cin * (tho + 2) * (wo + 2) * 4       # upsampled/padded strip
        outp = 2 * cout * tho * wo * 4                 # double-buffered output block
        live = (cout + cin) * tho * wo * 4             # accumulator + one slab
        return inp + scratch + outp + live

    if footprint(h) <= budget_bytes or h % 8 != 0:
        return h                                       # single strip (common / small case)
    th = h
    for cand in range(8, h, 8):                        # multiple-of-8 divisors of h
        if h % cand == 0 and footprint(cand) <= budget_bytes:
            th = cand                                  # keep the largest that fits
    return th


def psp_upsample(x_nchw, params, *, interpret=False):
    conv_w, conv_b, gamma, beta, mean, var, alpha = params
    n, cin, h, w = x_nchw.shape
    cout = conv_w.shape[0]
    ho, wo = 2 * h, 2 * w

    th_in = _pick_th_in(h, w, cin, cout)
    n_strips = h // th_in
    th_out = 2 * th_in

    # Edge-replicate pad of the (small, pre-upsample) input: with this padding the
    # align_corners=False 2x bilinear upsample becomes a fixed, unclamped 2-tap
    # stencil that the kernel applies entirely in VMEM.
    xe = jnp.pad(x_nchw.astype(jnp.float32),
                 ((0, 0), (0, 0), (1, 1), (1, 1)), mode='edge')

    u_mat = _col_upsample_matrix(w)

    # conv taps: (Cout, Cin, 3, 3) -> (Cout, 9*Cin), column = (dh*3 + dw)*Cin + ci
    w_taps = jnp.transpose(conv_w, (0, 2, 3, 1)).reshape(cout, 9 * cin)

    # Fold conv bias + BatchNorm running stats into per-channel scale/shift.
    bn_scale = gamma / jnp.sqrt(var + EPS)
    bn_shift = beta + (conv_b - mean) * bn_scale
    alpha_v = jnp.broadcast_to(jnp.asarray(alpha, jnp.float32), (cout,))
    p_tab = jnp.stack([bn_scale, bn_shift, alpha_v], axis=1)    # (Cout, 3)

    kernel = functools.partial(_psp_kernel, cin=cin, cout=cout,
                               w_in=w, th_in=th_in, n_strips=n_strips)

    out_flat = pl.pallas_call(
        kernel,
        # Lane-dense output: H*W flattened onto the lane dimension.
        out_shape=jax.ShapeDtypeStruct((n, cout, ho * wo), jnp.float32),
        grid_spec=pltpu.PrefetchScalarGridSpec(
            num_scalar_prefetch=0,
            grid=(n, n_strips),
            in_specs=[
                pl.BlockSpec((1, cin, h + 2, w + 2), lambda b, s: (b, 0, 0, 0)),
                pl.BlockSpec((w + 2, wo + 2), lambda b, s: (0, 0)),
                pl.BlockSpec((cout, 9 * cin), lambda b, s: (0, 0)),
                pl.BlockSpec((cout, 3), lambda b, s: (0, 0)),
            ],
            out_specs=pl.BlockSpec((1, cout, th_out * wo),
                                   lambda b, s: (b, 0, s)),
            scratch_shapes=[
                pltpu.VMEM((cin, th_out + 2, wo + 2), jnp.float32),
            ],
        ),
        compiler_params=pltpu.CompilerParams(
            dimension_semantics=("parallel", "parallel")),
        interpret=interpret,
    )(xe, u_mat, w_taps, p_tab)

    # Free reshape back to NCHW (same row-major bytes).
    return out_flat.reshape(n, cout, ho, wo)


# ----------------------------- pure-JAX reference -----------------------------
def _bilinear_up_2x_ref(x_nchw):
    _, _, h, w = x_nchw.shape
    ho, wo = 2 * h, 2 * w

    def coords(out_size, in_size):
        dst = jnp.arange(out_size, dtype=jnp.float32)
        src = (dst + 0.5) * (in_size / out_size) - 0.5
        src = jnp.maximum(src, 0.0)
        i0 = jnp.minimum(jnp.floor(src).astype(jnp.int32), in_size - 1)
        i1 = jnp.minimum(i0 + 1, in_size - 1)
        w1 = jnp.clip(src - i0.astype(jnp.float32), 0.0, 1.0)
        return i0, i1, 1.0 - w1, w1

    ih0, ih1, wh0, wh1 = coords(ho, h)
    iw0, iw1, ww0, ww1 = coords(wo, w)
    xh = (x_nchw[:, :, ih0, :] * wh0[None, None, :, None]
          + x_nchw[:, :, ih1, :] * wh1[None, None, :, None])
    xu = (xh[:, :, :, iw0] * ww0[None, None, None, :]
          + xh[:, :, :, iw1] * ww1[None, None, None, :])
    return xu


def reference(x_nchw, params):
    conv_w, conv_b, gamma, beta, mean, var, alpha = params
    up = _bilinear_up_2x_ref(x_nchw)
    conv = jax.lax.conv_general_dilated(
        up, conv_w, (1, 1), ((1, 1), (1, 1)),
        dimension_numbers=('NCHW', 'OIHW', 'NCHW'))
    conv = conv + conv_b[None, :, None, None]
    scale = (gamma / jnp.sqrt(var + EPS))[None, :, None, None]
    y = (conv - mean[None, :, None, None]) * scale + beta[None, :, None, None]
    return jnp.where(y >= 0.0, y, alpha * y)


if __name__ == "__main__":
    key = jax.random.PRNGKey(0)
    k_x, k_w, k_b, k_g, k_be, k_m, k_v = jax.random.split(key, 7)

    N, Cin, Hin, Win = 2, 4, 16, 16
    Cout = 8

    x = jax.random.normal(k_x, (N, Cin, Hin, Win), jnp.float32)

    # Deterministic synthetic parameters (shapes follow the module's __init__).
    conv_w = 0.1 * jax.random.normal(k_w, (Cout, Cin, 3, 3), jnp.float32)
    conv_b = 0.1 * jax.random.normal(k_b, (Cout,), jnp.float32)
    gamma = 1.0 + 0.1 * jax.random.normal(k_g, (Cout,), jnp.float32)
    beta = 0.1 * jax.random.normal(k_be, (Cout,), jnp.float32)
    run_mean = 0.1 * jax.random.normal(k_m, (Cout,), jnp.float32)
    run_var = jnp.abs(jax.random.normal(k_v, (Cout,), jnp.float32)) + 0.5
    prelu_alpha = 0.25  # nn.PReLU() default single shared parameter

    params = (conv_w, conv_b, gamma, beta, run_mean, run_var, prelu_alpha)

    out = jax.block_until_ready(psp_upsample(x, params))
    ref = jax.block_until_ready(reference(x, params))

    assert out.shape == (N, Cout, 2 * Hin, 2 * Win), out.shape
    assert jnp.allclose(out, ref, rtol=1e-3, atol=1e-3), \
        float(jnp.max(jnp.abs(out - ref)))

    print("KERNEL_OK")
</pallas_src>

<mosaic_0001>
module attributes {stable_mosaic.version = 11 : i64} {
  func.func @_psp_kernel(%arg0: i32, %arg1: i32, %arg2: memref<1x4x18x18xf32, #tpu.memory_space<vmem>>, %arg3: memref<18x34xf32, #tpu.memory_space<vmem>>, %arg4: memref<8x36xf32, #tpu.memory_space<vmem>>, %arg5: memref<8x3xf32, #tpu.memory_space<vmem>>, %arg6: memref<1x8x1024xf32, #tpu.memory_space<vmem>>, %arg7: memref<4x34x34xf32, #tpu.memory_space<vmem>>) attributes {dimension_semantics = [#tpu.dimension_semantics<parallel>, #tpu.dimension_semantics<parallel>], iteration_bounds = array<i64: 2, 1>, scalar_prefetch = 0 : i64, scratch_operands = 1 : i64, tpu.core_type = #tpu.core_type<tc>, window_params = [{transform_indices = @transform_0, window_bounds = array<i64: 1, 4, 18, 18>}, {pipeline_mode = #tpu.pipeline_mode<synchronous>, transform_indices = @transform_1, window_bounds = array<i64: 18, 34>}, {pipeline_mode = #tpu.pipeline_mode<synchronous>, transform_indices = @transform_2, window_bounds = array<i64: 8, 36>}, {pipeline_mode = #tpu.pipeline_mode<synchronous>, transform_indices = @transform_3, window_bounds = array<i64: 8, 3>}, {transform_indices = @transform_4, window_bounds = array<i64: 1, 8, 1024>}]} {
    %c0 = arith.constant 0 : index
    %c0_0 = arith.constant 0 : index
    %c0_1 = arith.constant 0 : index
    %c0_2 = arith.constant 0 : index
    %0 = vector.load %arg2[%c0, %c0_0, %c0_1, %c0_2] : memref<1x4x18x18xf32, #tpu.memory_space<vmem>>, vector<1x4x18x18xf32>
    %1 = vector.shape_cast %0 : vector<1x4x18x18xf32> to vector<4x18x18xf32>
    %2 = vector.shape_cast %1 : vector<4x18x18xf32> to vector<72x18xf32>
    %c0_3 = arith.constant 0 : index
    %c0_4 = arith.constant 0 : index
    %3 = vector.load %arg3[%c0_3, %c0_4] : memref<18x34xf32, #tpu.memory_space<vmem>>, vector<18x34xf32>
    %cst = arith.constant dense<0.000000e+00> : vector<72x34xf32>
    %4 = tpu.matmul %2, %3, %cst {dimension_numbers = #tpu.dot_dimension_numbers<[1], [0], [0], [1], [0, 0, 1, 1], [], []>} : vector<72x18xf32>, vector<18x34xf32>, vector<72x34xf32> -> vector<72x34xf32>
    %5 = vector.shape_cast %4 : vector<72x34xf32> to vector<4x18x34xf32>
    %6 = vector.extract_strided_slice %5 {offsets = [0, 0, 0], sizes = [4, 17, 34], strides = [1, 1, 1]} : vector<4x18x34xf32> to vector<4x17x34xf32>
    %7 = vector.extract_strided_slice %5 {offsets = [0, 1, 0], sizes = [4, 17, 34], strides = [1, 1, 1]} : vector<4x18x34xf32> to vector<4x17x34xf32>
    %cst_5 = arith.constant 7.500000e-01 : f32
    %8 = vector.broadcast %cst_5 : f32 to vector<4x17x34xf32>
    %9 = arith.mulf %8, %6 : vector<4x17x34xf32>
    %cst_6 = arith.constant 2.500000e-01 : f32
    %10 = vector.broadcast %cst_6 : f32 to vector<4x17x34xf32>
    %11 = arith.mulf %10, %7 : vector<4x17x34xf32>
    %12 = arith.addf %9, %11 : vector<4x17x34xf32>
    %cst_7 = arith.constant 2.500000e-01 : f32
    %13 = vector.broadcast %cst_7 : f32 to vector<4x17x34xf32>
    %14 = arith.mulf %13, %6 : vector<4x17x34xf32>
    %cst_8 = arith.constant 7.500000e-01 : f32
    %15 = vector.broadcast %cst_8 : f32 to vector<4x17x34xf32>
    %16 = arith.mulf %15, %7 : vector<4x17x34xf32>
    %17 = arith.addf %14, %16 : vector<4x17x34xf32>
    %18 = vector.shape_cast %12 : vector<4x17x34xf32> to vector<4x17x1x34xf32>
    %19 = vector.shape_cast %17 : vector<4x17x34xf32> to vector<4x17x1x34xf32>
    %20 = tpu.concatenate %18, %19 in 2 : vector<4x17x1x34xf32>, vector<4x17x1x34xf32> -> vector<4x17x2x34xf32>
    %21 = vector.shape_cast %20 : vector<4x17x2x34xf32> to vector<4x34x34xf32>
    %c0_9 = arith.constant 0 : index
    %c0_10 = arith.constant 0 : index
    %c0_11 = arith.constant 0 : index
    %22 = vector.load %arg7[%c0_9, %c0_10, %c0_11] : memref<4x34x34xf32, #tpu.memory_space<vmem>>, vector<4x34x34xf32>
    tpu.vector_store %arg7[%c0_9, %c0_10, %c0_11], %21 {strides = array<i32>} : memref<4x34x34xf32, #tpu.memory_space<vmem>>, vector<4x34x34xf32>,
    %c0_i32 = arith.constant 0 : i32
    %23 = arith.cmpi eq, %arg1, %c0_i32 : i32
    %24 = arith.extui %23 : i1 to i32
    %c0_i32_12 = arith.constant 0 : i32
    %25 = arith.cmpi ne, %24, %c0_i32_12 : i32
    scf.if %25 {
      %cst_49 = arith.constant 0.000000e+00 : f32
      %308 = vector.broadcast %cst_49 : f32 to vector<4x1x34xf32>
      %c0_50 = arith.constant 0 : index
      %c0_51 = arith.constant 0 : index
      %c0_52 = arith.constant 0 : index
      %309 = vector.load %arg7[%c0_50, %c0_51, %c0_52] : memref<4x34x34xf32, #tpu.memory_space<vmem>>, vector<4x1x34xf32>
      tpu.vector_store %arg7[%c0_50, %c0_51, %c0_52], %308 {strides = array<i32>} : memref<4x34x34xf32, #tpu.memory_space<vmem>>, vector<4x1x34xf32>,
    } else {
    }
    %c0_i32_13 = arith.constant 0 : i32
    %26 = arith.cmpi eq, %arg1, %c0_i32_13 : i32
    %27 = arith.extui %26 : i1 to i32
    %c0_i32_14 = arith.constant 0 : i32
    %28 = arith.cmpi ne, %27, %c0_i32_14 : i32
    scf.if %28 {
      %cst_49 = arith.constant 0.000000e+00 : f32
      %308 = vector.broadcast %cst_49 : f32 to vector<4x1x34xf32>
      %c0_50 = arith.constant 0 : index
      %c33 = arith.constant 33 : index
      %c0_51 = arith.constant 0 : index
      %309 = vector.load %arg7[%c0_50, %c33, %c0_51] : memref<4x34x34xf32, #tpu.memory_space<vmem>>, vector<4x1x34xf32>
      tpu.vector_store %arg7[%c0_50, %c33, %c0_51], %308 {strides = array<i32>} : memref<4x34x34xf32, #tpu.memory_space<vmem>>, vector<4x1x34xf32>,
    } else {
    }
    %c0_15 = arith.constant 0 : index
    %c0_16 = arith.constant 0 : index
    %29 = vector.load %arg4[%c0_15, %c0_16] : memref<8x36xf32, #tpu.memory_space<vmem>>, vector<8x36xf32>
    %30 = vector.extract_strided_slice %29 {offsets = [0, 0], sizes = [8, 1], strides = [1, 1]} : vector<8x36xf32> to vector<8x1xf32>
    %31 = vector.shape_cast %30 : vector<8x1xf32> to vector<8x1x1xf32>
    %32 = vector.extract_strided_slice %29 {offsets = [0, 1], sizes = [8, 1], strides = [1, 1]} : vector<8x36xf32> to vector<8x1xf32>
    %33 = vector.shape_cast %32 : vector<8x1xf32> to vector<8x1x1xf32>
    %34 = vector.extract_strided_slice %29 {offsets = [0, 2], sizes = [8, 1], strides = [1, 1]} : vector<8x36xf32> to vector<8x1xf32>
    %35 = vector.shape_cast %34 : vector<8x1xf32> to vector<8x1x1xf32>
    %36 = vector.extract_strided_slice %29 {offsets = [0, 3], sizes = [8, 1], strides = [1, 1]} : vector<8x36xf32> to vector<8x1xf32>
    %37 = vector.shape_cast %36 : vector<8x1xf32> to vector<8x1x1xf32>
    %38 = vector.extract_strided_slice %29 {offsets = [0, 4], sizes = [8, 1], strides = [1, 1]} : vector<8x36xf32> to vector<8x1xf32>
    %39 = vector.shape_cast %38 : vector<8x1xf32> to vector<8x1x1xf32>
    %40 = vector.extract_strided_slice %29 {offsets = [0, 5], sizes = [8, 1], strides = [1, 1]} : vector<8x36xf32> to vector<8x1xf32>
    %41 = vector.shape_cast %40 : vector<8x1xf32> to vector<8x1x1xf32>
    %42 = vector.extract_strided_slice %29 {offsets = [0, 6], sizes = [8, 1], strides = [1, 1]} : vector<8x36xf32> to vector<8x1xf32>
    %43 = vector.shape_cast %42 : vector<8x1xf32> to vector<8x1x1xf32>
    %44 = vector.extract_strided_slice %29 {offsets = [0, 7], sizes = [8, 1], strides = [1, 1]} : vector<8x36xf32> to vector<8x1xf32>
    %45 = vector.shape_cast %44 : vector<8x1xf32> to vector<8x1x1xf32>
    %46 = vector.extract_strided_slice %29 {offsets = [0, 8], sizes = [8, 1], strides = [1, 1]} : vector<8x36xf32> to vector<8x1xf32>
    %47 = vector.shape_cast %46 : vector<8x1xf32> to vector<8x1x1xf32>
    %48 = vector.extract_strided_slice %29 {offsets = [0, 9], sizes = [8, 1], strides = [1, 1]} : vector<8x36xf32> to vector<8x1xf32>
    %49 = vector.shape_cast %48 : vector<8x1xf32> to vector<8x1x1xf32>
    %50 = vector.extract_strided_slice %29 {offsets = [0, 10], sizes = [8, 1], strides = [1, 1]} : vector<8x36xf32> to vector<8x1xf32>
    %51 = vector.shape_cast %50 : vector<8x1xf32> to vector<8x1x1xf32>
    %52 = vector.extract_strided_slice %29 {offsets = [0, 11], sizes = [8, 1], strides = [1, 1]} : vector<8x36xf32> to vector<8x1xf32>
    %53 = vector.shape_cast %52 : vector<8x1xf32> to vector<8x1x1xf32>
    %54 = vector.extract_strided_slice %29 {offsets = [0, 12], sizes = [8, 1], strides = [1, 1]} : vector<8x36xf32> to vector<8x1xf32>
    %55 = vector.shape_cast %54 : vector<8x1xf32> to vector<8x1x1xf32>
    %56 = vector.extract_strided_slice %29 {offsets = [0, 13], sizes = [8, 1], strides = [1, 1]} : vector<8x36xf32> to vector<8x1xf32>
    %57 = vector.shape_cast %56 : vector<8x1xf32> to vector<8x1x1xf32>
    %58 = vector.extract_strided_slice %29 {offsets = [0, 14], sizes = [8, 1], strides = [1, 1]} : vector<8x36xf32> to vector<8x1xf32>
    %59 = vector.shape_cast %58 : vector<8x1xf32> to vector<8x1x1xf32>
    %60 = vector.extract_strided_slice %29 {offsets = [0, 15], sizes = [8, 1], strides = [1, 1]} : vector<8x36xf32> to vector<8x1xf32>
    %61 = vector.shape_cast %60 : vector<8x1xf32> to vector<8x1x1xf32>
    %62 = vector.extract_strided_slice %29 {offsets = [0, 16], sizes = [8, 1], strides = [1, 1]} : vector<8x36xf32> to vector<8x1xf32>
    %63 = vector.shape_cast %62 : vector<8x1xf32> to vector<8x1x1xf32>
    %64 = vector.extract_strided_slice %29 {offsets = [0, 17], sizes = [8, 1], strides = [1, 1]} : vector<8x36xf32> to vector<8x1xf32>
    %65 = vector.shape_cast %64 : vector<8x1xf32> to vector<8x1x1xf32>
    %66 = vector.extract_strided_slice %29 {offsets = [0, 18], sizes = [8, 1], strides = [1, 1]} : vector<8x36xf32> to vector<8x1xf32>
    %67 = vector.shape_cast %66 : vector<8x1xf32> to vector<8x1x1xf32>
    %68 = vector.extract_strided_slice %29 {offsets = [0, 19], sizes = [8, 1], strides = [1, 1]} : vector<8x36xf32> to vector<8x1xf32>
    %69 = vector.shape_cast %68 : vector<8x1xf32> to vector<8x1x1xf32>
    %70 = vector.extract_strided_slice %29 {offsets = [0, 20], sizes = [8, 1], strides = [1, 1]} : vector<8x36xf32> to vector<8x1xf32>
    %71 = vector.shape_cast %70 : vector<8x1xf32> to vector<8x1x1xf32>
    %72 = vector.extract_strided_slice %29 {offsets = [0, 21], sizes = [8, 1], strides = [1, 1]} : vector<8x36xf32> to vector<8x1xf32>
    %73 = vector.shape_cast %72 : vector<8x1xf32> to vector<8x1x1xf32>
    %74 = vector.extract_strided_slice %29 {offsets = [0, 22], sizes = [8, 1], strides = [1, 1]} : vector<8x36xf32> to vector<8x1xf32>
    %75 = vector.shape_cast %74 : vector<8x1xf32> to vector<8x1x1xf32>
    %76 = vector.extract_strided_slice %29 {offsets = [0, 23], sizes = [8, 1], strides = [1, 1]} : vector<8x36xf32> to vector<8x1xf32>
    %77 = vector.shape_cast %76 : vector<8x1xf32> to vector<8x1x1xf32>
    %78 = vector.extract_strided_slice %29 {offsets = [0, 24], sizes = [8, 1], strides = [1, 1]} : vector<8x36xf32> to vector<8x1xf32>
    %79 = vector.shape_cast %78 : vector<8x1xf32> to vector<8x1x1xf32>
    %80 = vector.extract_strided_slice %29 {offsets = [0, 25], sizes = [8, 1], strides = [1, 1]} : vector<8x36xf32> to vector<8x1xf32>
    %81 = vector.shape_cast %80 : vector<8x1xf32> to vector<8x1x1xf32>
    %82 = vector.extract_strided_slice %29 {offsets = [0, 26], sizes = [8, 1], strides = [1, 1]} : vector<8x36xf32> to vector<8x1xf32>
    %83 = vector.shape_cast %82 : vector<8x1xf32> to vector<8x1x1xf32>
    %84 = vector.extract_strided_slice %29 {offsets = [0, 27], sizes = [8, 1], strides = [1, 1]} : vector<8x36xf32> to vector<8x1xf32>
    %85 = vector.shape_cast %84 : vector<8x1xf32> to vector<8x1x1xf32>
    %86 = vector.extract_strided_slice %29 {offsets = [0, 28], sizes = [8, 1], strides = [1, 1]} : vector<8x36xf32> to vector<8x1xf32>
    %87 = vector.shape_cast %86 : vector<8x1xf32> to vector<8x1x1xf32>
    %88 = vector.extract_strided_slice %29 {offsets = [0, 29], sizes = [8, 1], strides = [1, 1]} : vector<8x36xf32> to vector<8x1xf32>
    %89 = vector.shape_cast %88 : vector<8x1xf32> to vector<8x1x1xf32>
    %90 = vector.extract_strided_slice %29 {offsets = [0, 30], sizes = [8, 1], strides = [1, 1]} : vector<8x36xf32> to vector<8x1xf32>
    %91 = vector.shape_cast %90 : vector<8x1xf32> to vector<8x1x1xf32>
    %92 = vector.extract_strided_slice %29 {offsets = [0, 31], sizes = [8, 1], strides = [1, 1]} : vector<8x36xf32> to vector<8x1xf32>
    %93 = vector.shape_cast %92 : vector<8x1xf32> to vector<8x1x1xf32>
    %94 = vector.extract_strided_slice %29 {offsets = [0, 32], sizes = [8, 1], strides = [1, 1]} : vector<8x36xf32> to vector<8x1xf32>
    %95 = vector.shape_cast %94 : vector<8x1xf32> to vector<8x1x1xf32>
    %96 = vector.extract_strided_slice %29 {offsets = [0, 33], sizes = [8, 1], strides = [1, 1]} : vector<8x36xf32> to vector<8x1xf32>
    %97 = vector.shape_cast %96 : vector<8x1xf32> to vector<8x1x1xf32>
    %98 = vector.extract_strided_slice %29 {offsets = [0, 34], sizes = [8, 1], strides = [1, 1]} : vector<8x36xf32> to vector<8x1xf32>
    %99 = vector.shape_cast %98 : vector<8x1xf32> to vector<8x1x1xf32>
    %100 = vector.extract_strided_slice %29 {offsets = [0, 35], sizes = [8, 1], strides = [1, 1]} : vector<8x36xf32> to vector<8x1xf32>
    %101 = vector.shape_cast %100 : vector<8x1xf32> to vector<8x1x1xf32>
    %cst_17 = arith.constant 0.000000e+00 : f32
    %102 = vector.broadcast %cst_17 : f32 to vector<8x32x32xf32>
    %c0_18 = arith.constant 0 : index
    %c0_19 = arith.constant 0 : index
    %c0_20 = arith.constant 0 : index
    %103 = vector.load %arg7[%c0_18, %c0_19, %c0_20] : memref<4x34x34xf32, #tpu.memory_space<vmem>>, vector<4x32x32xf32>
    %104 = vector.extract_strided_slice %103 {offsets = [0, 0, 0], sizes = [1, 32, 32], strides = [1, 1, 1]} : vector<4x32x32xf32> to vector<1x32x32xf32>
    %105 = vector.broadcast %31 : vector<8x1x1xf32> to vector<8x32x32xf32>
    %106 = vector.broadcast %104 : vector<1x32x32xf32> to vector<8x32x32xf32>
    %107 = arith.mulf %105, %106 : vector<8x32x32xf32>
    %108 = arith.addf %102, %107 : vector<8x32x32xf32>
    %109 = vector.extract_strided_slice %103 {offsets = [1, 0, 0], sizes = [1, 32, 32], strides = [1, 1, 1]} : vector<4x32x32xf32> to vector<1x32x32xf32>
    %110 = vector.broadcast %33 : vector<8x1x1xf32> to vector<8x32x32xf32>
    %111 = vector.broadcast %109 : vector<1x32x32xf32> to vector<8x32x32xf32>
    %112 = arith.mulf %110, %111 : vector<8x32x32xf32>
    %113 = arith.addf %108, %112 : vector<8x32x32xf32>
    %114 = vector.extract_strided_slice %103 {offsets = [2, 0, 0], sizes = [1, 32, 32], strides = [1, 1, 1]} : vector<4x32x32xf32> to vector<1x32x32xf32>
    %115 = vector.broadcast %35 : vector<8x1x1xf32> to vector<8x32x32xf32>
    %116 = vector.broadcast %114 : vector<1x32x32xf32> to vector<8x32x32xf32>
    %117 = arith.mulf %115, %116 : vector<8x32x32xf32>
    %118 = arith.addf %113, %117 : vector<8x32x32xf32>
    %119 = vector.extract_strided_slice %103 {offsets = [3, 0, 0], sizes = [1, 32, 32], strides = [1, 1, 1]} : vector<4x32x32xf32> to vector<1x32x32xf32>
    %120 = vector.broadcast %37 : vector<8x1x1xf32> to vector<8x32x32xf32>
    %121 = vector.broadcast %119 : vector<1x32x32xf32> to vector<8x32x32xf32>
    %122 = arith.mulf %120, %121 : vector<8x32x32xf32>
    %123 = arith.addf %118, %122 : vector<8x32x32xf32>
    %c0_21 = arith.constant 0 : index
    %c0_22 = arith.constant 0 : index
    %c1 = arith.constant 1 : index
    %124 = vector.load %arg7[%c0_21, %c0_22, %c1] : memref<4x34x34xf32, #tpu.memory_space<vmem>>, vector<4x32x32xf32>
    %125 = vector.extract_strided_slice %124 {offsets = [0, 0, 0], sizes = [1, 32, 32], strides = [1, 1, 1]} : vector<4x32x32xf32> to vector<1x32x32xf32>
    %126 = vector.broadcast %39 : vector<8x1x1xf32> to vector<8x32x32xf32>
    %127 = vector.broadcast %125 : vector<1x32x32xf32> to vector<8x32x32xf32>
    %128 = arith.mulf %126, %127 : vector<8x32x32xf32>
    %129 = arith.addf %123, %128 : vector<8x32x32xf32>
    %130 = vector.extract_strided_slice %124 {offsets = [1, 0, 0], sizes = [1, 32, 32], strides = [1, 1, 1]} : vector<4x32x32xf32> to vector<1x32x32xf32>
    %131 = vector.broadcast %41 : vector<8x1x1xf32> to vector<8x32x32xf32>
    %132 = vector.broadcast %130 : vector<1x32x32xf32> to vector<8x32x32xf32>
    %133 = arith.mulf %131, %132 : vector<8x32x32xf32>
    %134 = arith.addf %129, %133 : vector<8x32x32xf32>
    %135 = vector.extract_strided_slice %124 {offsets = [2, 0, 0], sizes = [1, 32, 32], strides = [1, 1, 1]} : vector<4x32x32xf32> to vector<1x32x32xf32>
    %136 = vector.broadcast %43 : vector<8x1x1xf32> to vector<8x32x32xf32>
    %137 = vector.broadcast %135 : vector<1x32x32xf32> to vector<8x32x32xf32>
    %138 = arith.mulf %136, %137 : vector<8x32x32xf32>
    %139 = arith.addf %134, %138 : vector<8x32x32xf32>
    %140 = vector.extract_strided_slice %124 {offsets = [3, 0, 0], sizes = [1, 32, 32], strides = [1, 1, 1]} : vector<4x32x32xf32> to vector<1x32x32xf32>
    %141 = vector.broadcast %45 : vector<8x1x1xf32> to vector<8x32x32xf32>
    %142 = vector.broadcast %140 : vector<1x32x32xf32> to vector<8x32x32xf32>
    %143 = arith.mulf %141, %142 : vector<8x32x32xf32>
    %144 = arith.addf %139, %143 : vector<8x32x32xf32>
    %c0_23 = arith.constant 0 : index
    %c0_24 = arith.constant 0 : index
    %c2 = arith.constant 2 : index
    %145 = vector.load %arg7[%c0_23, %c0_24, %c2] : memref<4x34x34xf32, #tpu.memory_space<vmem>>, vector<4x32x32xf32>
    %146 = vector.extract_strided_slice %145 {offsets = [0, 0, 0], sizes = [1, 32, 32], strides = [1, 1, 1]} : vector<4x32x32xf32> to vector<1x32x32xf32>
    %147 = vector.broadcast %47 : vector<8x1x1xf32> to vector<8x32x32xf32>
    %148 = vector.broadcast %146 : vector<1x32x32xf32> to vector<8x32x32xf32>
    %149 = arith.mulf %147, %148 : vector<8x32x32xf32>
    %150 = arith.addf %144, %149 : vector<8x32x32xf32>
    %151 = vector.extract_strided_slice %145 {offsets = [1, 0, 0], sizes = [1, 32, 32], strides = [1, 1, 1]} : vector<4x32x32xf32> to vector<1x32x32xf32>
    %152 = vector.broadcast %49 : vector<8x1x1xf32> to vector<8x32x32xf32>
    %153 = vector.broadcast %151 : vector<1x32x32xf32> to vector<8x32x32xf32>
    %154 = arith.mulf %152, %153 : vector<8x32x32xf32>
    %155 = arith.addf %150, %154 : vector<8x32x32xf32>
    %156 = vector.extract_strided_slice %145 {offsets = [2, 0, 0], sizes = [1, 32, 32], strides = [1, 1, 1]} : vector<4x32x32xf32> to vector<1x32x32xf32>
    %157 = vector.broadcast %51 : vector<8x1x1xf32> to vector<8x32x32xf32>
    %158 = vector.broadcast %156 : vector<1x32x32xf32> to vector<8x32x32xf32>
    %159 = arith.mulf %157, %158 : vector<8x32x32xf32>
    %160 = arith.addf %155, %159 : vector<8x32x32xf32>
    %161 = vector.extract_strided_slice %145 {offsets = [3, 0, 0], sizes = [1, 32, 32], strides = [1, 1, 1]} : vector<4x32x32xf32> to vector<1x32x32xf32>
    %162 = vector.broadcast %53 : vector<8x1x1xf32> to vector<8x32x32xf32>
    %163 = vector.broadcast %161 : vector<1x32x32xf32> to vector<8x32x32xf32>
    %164 = arith.mulf %162, %163 : vector<8x32x32xf32>
    %165 = arith.addf %160, %164 : vector<8x32x32xf32>
    %c0_25 = arith.constant 0 : index
    %c1_26 = arith.constant 1 : index
    %c0_27 = arith.constant 0 : index
    %166 = vector.load %arg7[%c0_25, %c1_26, %c0_27] : memref<4x34x34xf32, #tpu.memory_space<vmem>>, vector<4x32x32xf32>
    %167 = vector.extract_strided_slice %166 {offsets = [0, 0, 0], sizes = [1, 32, 32], strides = [1, 1, 1]} : vector<4x32x32xf32> to vector<1x32x32xf32>
    %168 = vector.broadcast %55 : vector<8x1x1xf32> to vector<8x32x32xf32>
    %169 = vector.broadcast %167 : vector<1x32x32xf32> to vector<8x32x32xf32>
    %170 = arith.mulf %168, %169 : vector<8x32x32xf32>
    %171 = arith.addf %165, %170 : vector<8x32x32xf32>
    %172 = vector.extract_strided_slice %166 {offsets = [1, 0, 0], sizes = [1, 32, 32], strides = [1, 1, 1]} : vector<4x32x32xf32> to vector<1x32x32xf32>
    %173 = vector.broadcast %57 : vector<8x1x1xf32> to vector<8x32x32xf32>
    %174 = vector.broadcast %172 : vector<1x32x32xf32> to vector<8x32x32xf32>
    %175 = arith.mulf %173, %174 : vector<8x32x32xf32>
    %176 = arith.addf %171, %175 : vector<8x32x32xf32>
    %177 = vector.extract_strided_slice %166 {offsets = [2, 0, 0], sizes = [1, 32, 32], strides = [1, 1, 1]} : vector<4x32x32xf32> to vector<1x32x32xf32>
    %178 = vector.broadcast %59 : vector<8x1x1xf32> to vector<8x32x32xf32>
    %179 = vector.broadcast %177 : vector<1x32x32xf32> to vector<8x32x32xf32>
    %180 = arith.mulf %178, %179 : vector<8x32x32xf32>
    %181 = arith.addf %176, %180 : vector<8x32x32xf32>
    %182 = vector.extract_strided_slice %166 {offsets = [3, 0, 0], sizes = [1, 32, 32], strides = [1, 1, 1]} : vector<4x32x32xf32> to vector<1x32x32xf32>
    %183 = vector.broadcast %61 : vector<8x1x1xf32> to vector<8x32x32xf32>
    %184 = vector.broadcast %182 : vector<1x32x32xf32> to vector<8x32x32xf32>
    %185 = arith.mulf %183, %184 : vector<8x32x32xf32>
    %186 = arith.addf %181, %185 : vector<8x32x32xf32>
    %c0_28 = arith.constant 0 : index
    %c1_29 = arith.constant 1 : index
    %c1_30 = arith.constant 1 : index
    %187 = vector.load %arg7[%c0_28, %c1_29, %c1_30] : memref<4x34x34xf32, #tpu.memory_space<vmem>>, vector<4x32x32xf32>
    %188 = vector.extract_strided_slice %187 {offsets = [0, 0, 0], sizes = [1, 32, 32], strides = [1, 1, 1]} : vector<4x32x32xf32> to vector<1x32x32xf32>
    %189 = vector.broadcast %63 : vector<8x1x1xf32> to vector<8x32x32xf32>
    %190 = vector.broadcast %188 : vector<1x32x32xf32> to vector<8x32x32xf32>
    %191 = arith.mulf %189, %190 : vector<8x32x32xf32>
    %192 = arith.addf %186, %191 : vector<8x32x32xf32>
    %193 = vector.extract_strided_slice %187 {offsets = [1, 0, 0], sizes = [1, 32, 32], strides = [1, 1, 1]} : vector<4x32x32xf32> to vector<1x32x32xf32>
    %194 = vector.broadcast %65 : vector<8x1x1xf32> to vector<8x32x32xf32>
    %195 = vector.broadcast %193 : vector<1x32x32xf32> to vector<8x32x32xf32>
    %196 = arith.mulf %194, %195 : vector<8x32x32xf32>
    %197 = arith.addf %192, %196 : vector<8x32x32xf32>
    %198 = vector.extract_strided_slice %187 {offsets = [2, 0, 0], sizes = [1, 32, 32], strides = [1, 1, 1]} : vector<4x32x32xf32> to vector<1x32x32xf32>
    %199 = vector.broadcast %67 : vector<8x1x1xf32> to vector<8x32x32xf32>
    %200 = vector.broadcast %198 : vector<1x32x32xf32> to vector<8x32x32xf32>
    %201 = arith.mulf %199, %200 : vector<8x32x32xf32>
    %202 = arith.addf %197, %201 : vector<8x32x32xf32>
    %203 = vector.extract_strided_slice %187 {offsets = [3, 0, 0], sizes = [1, 32, 32], strides = [1, 1, 1]} : vector<4x32x32xf32> to vector<1x32x32xf32>
    %204 = vector.broadcast %69 : vector<8x1x1xf32> to vector<8x32x32xf32>
    %205 = vector.broadcast %203 : vector<1x32x32xf32> to vector<8x32x32xf32>
    %206 = arith.mulf %204, %205 : vector<8x32x32xf32>
    %207 = arith.addf %202, %206 : vector<8x32x32xf32>
    %c0_31 = arith.constant 0 : index
    %c1_32 = arith.constant 1 : index
    %c2_33 = arith.constant 2 : index
    %208 = vector.load %arg7[%c0_31, %c1_32, %c2_33] : memref<4x34x34xf32, #tpu.memory_space<vmem>>, vector<4x32x32xf32>
    %209 = vector.extract_strided_slice %208 {offsets = [0, 0, 0], sizes = [1, 32, 32], strides = [1, 1, 1]} : vector<4x32x32xf32> to vector<1x32x32xf32>
    %210 = vector.broadcast %71 : vector<8x1x1xf32> to vector<8x32x32xf32>
    %211 = vector.broadcast %209 : vector<1x32x32xf32> to vector<8x32x32xf32>
    %212 = arith.mulf %210, %211 : vector<8x32x32xf32>
    %213 = arith.addf %207, %212 : vector<8x32x32xf32>
    %214 = vector.extract_strided_slice %208 {offsets = [1, 0, 0], sizes = [1, 32, 32], strides = [1, 1, 1]} : vector<4x32x32xf32> to vector<1x32x32xf32>
    %215 = vector.broadcast %73 : vector<8x1x1xf32> to vector<8x32x32xf32>
    %216 = vector.broadcast %214 : vector<1x32x32xf32> to vector<8x32x32xf32>
    %217 = arith.mulf %215, %216 : vector<8x32x32xf32>
    %218 = arith.addf %213, %217 : vector<8x32x32xf32>
    %219 = vector.extract_strided_slice %208 {offsets = [2, 0, 0], sizes = [1, 32, 32], strides = [1, 1, 1]} : vector<4x32x32xf32> to vector<1x32x32xf32>
    %220 = vector.broadcast %75 : vector<8x1x1xf32> to vector<8x32x32xf32>
    %221 = vector.broadcast %219 : vector<1x32x32xf32> to vector<8x32x32xf32>
    %222 = arith.mulf %220, %221 : vector<8x32x32xf32>
    %223 = arith.addf %218, %222 : vector<8x32x32xf32>
    %224 = vector.extract_strided_slice %208 {offsets = [3, 0, 0], sizes = [1, 32, 32], strides = [1, 1, 1]} : vector<4x32x32xf32> to vector<1x32x32xf32>
    %225 = vector.broadcast %77 : vector<8x1x1xf32> to vector<8x32x32xf32>
    %226 = vector.broadcast %224 : vector<1x32x32xf32> to vector<8x32x32xf32>
    %227 = arith.mulf %225, %226 : vector<8x32x32xf32>
    %228 = arith.addf %223, %227 : vector<8x32x32xf32>
    %c0_34 = arith.constant 0 : index
    %c2_35 = arith.constant 2 : index
    %c0_36 = arith.constant 0 : index
    %229 = vector.load %arg7[%c0_34, %c2_35, %c0_36] : memref<4x34x34xf32, #tpu.memory_space<vmem>>, vector<4x32x32xf32>
    %230 = vector.extract_strided_slice %229 {offsets = [0, 0, 0], sizes = [1, 32, 32], strides = [1, 1, 1]} : vector<4x32x32xf32> to vector<1x32x32xf32>
    %231 = vector.broadcast %79 : vector<8x1x1xf32> to vector<8x32x32xf32>
    %232 = vector.broadcast %230 : vector<1x32x32xf32> to vector<8x32x32xf32>
    %233 = arith.mulf %231, %232 : vector<8x32x32xf32>
    %234 = arith.addf %228, %233 : vector<8x32x32xf32>
    %235 = vector.extract_strided_slice %229 {offsets = [1, 0, 0], sizes = [1, 32, 32], strides = [1, 1, 1]} : vector<4x32x32xf32> to vector<1x32x32xf32>
    %236 = vector.broadcast %81 : vector<8x1x1xf32> to vector<8x32x32xf32>
    %237 = vector.broadcast %235 : vector<1x32x32xf32> to vector<8x32x32xf32>
    %238 = arith.mulf %236, %237 : vector<8x32x32xf32>
    %239 = arith.addf %234, %238 : vector<8x32x32xf32>
    %240 = vector.extract_strided_slice %229 {offsets = [2, 0, 0], sizes = [1, 32, 32], strides = [1, 1, 1]} : vector<4x32x32xf32> to vector<1x32x32xf32>
    %241 = vector.broadcast %83 : vector<8x1x1xf32> to vector<8x32x32xf32>
    %242 = vector.broadcast %240 : vector<1x32x32xf32> to vector<8x32x32xf32>
    %243 = arith.mulf %241, %242 : vector<8x32x32xf32>
    %244 = arith.addf %239, %243 : vector<8x32x32xf32>
    %245 = vector.extract_strided_slice %229 {offsets = [3, 0, 0], sizes = [1, 32, 32], strides = [1, 1, 1]} : vector<4x32x32xf32> to vector<1x32x32xf32>
    %246 = vector.broadcast %85 : vector<8x1x1xf32> to vector<8x32x32xf32>
    %247 = vector.broadcast %245 : vector<1x32x32xf32> to vector<8x32x32xf32>
    %248 = arith.mulf %246, %247 : vector<8x32x32xf32>
    %249 = arith.addf %244, %248 : vector<8x32x32xf32>
    %c0_37 = arith.constant 0 : index
    %c2_38 = arith.constant 2 : index
    %c1_39 = arith.constant 1 : index
    %250 = vector.load %arg7[%c0_37, %c2_38, %c1_39] : memref<4x34x34xf32, #tpu.memory_space<vmem>>, vector<4x32x32xf32>
    %251 = vector.extract_strided_slice %250 {offsets = [0, 0, 0], sizes = [1, 32, 32], strides = [1, 1, 1]} : vector<4x32x32xf32> to vector<1x32x32xf32>
    %252 = vector.broadcast %87 : vector<8x1x1xf32> to vector<8x32x32xf32>
    %253 = vector.broadcast %251 : vector<1x32x32xf32> to vector<8x32x32xf32>
    %254 = arith.mulf %252, %253 : vector<8x32x32xf32>
    %255 = arith.addf %249, %254 : vector<8x32x32xf32>
    %256 = vector.extract_strided_slice %250 {offsets = [1, 0, 0], sizes = [1, 32, 32], strides = [1, 1, 1]} : vector<4x32x32xf32> to vector<1x32x32xf32>
    %257 = vector.broadcast %89 : vector<8x1x1xf32> to vector<8x32x32xf32>
    %258 = vector.broadcast %256 : vector<1x32x32xf32> to vector<8x32x32xf32>
    %259 = arith.mulf %257, %258 : vector<8x32x32xf32>
    %260 = arith.addf %255, %259 : vector<8x32x32xf32>
    %261 = vector.extract_strided_slice %250 {offsets = [2, 0, 0], sizes = [1, 32, 32], strides = [1, 1, 1]} : vector<4x32x32xf32> to vector<1x32x32xf32>
    %262 = vector.broadcast %91 : vector<8x1x1xf32> to vector<8x32x32xf32>
    %263 = vector.broadcast %261 : vector<1x32x32xf32> to vector<8x32x32xf32>
    %264 = arith.mulf %262, %263 : vector<8x32x32xf32>
    %265 = arith.addf %260, %264 : vector<8x32x32xf32>
    %266 = vector.extract_strided_slice %250 {offsets = [3, 0, 0], sizes = [1, 32, 32], strides = [1, 1, 1]} : vector<4x32x32xf32> to vector<1x32x32xf32>
    %267 = vector.broadcast %93 : vector<8x1x1xf32> to vector<8x32x32xf32>
    %268 = vector.broadcast %266 : vector<1x32x32xf32> to vector<8x32x32xf32>
    %269 = arith.mulf %267, %268 : vector<8x32x32xf32>
    %270 = arith.addf %265, %269 : vector<8x32x32xf32>
    %c0_40 = arith.constant 0 : index
    %c2_41 = arith.constant 2 : index
    %c2_42 = arith.constant 2 : index
    %271 = vector.load %arg7[%c0_40, %c2_41, %c2_42] : memref<4x34x34xf32, #tpu.memory_space<vmem>>, vector<4x32x32xf32>
    %272 = vector.extract_strided_slice %271 {offsets = [0, 0, 0], sizes = [1, 32, 32], strides = [1, 1, 1]} : vector<4x32x32xf32> to vector<1x32x32xf32>
    %273 = vector.broadcast %95 : vector<8x1x1xf32> to vector<8x32x32xf32>
    %274 = vector.broadcast %272 : vector<1x32x32xf32> to vector<8x32x32xf32>
    %275 = arith.mulf %273, %274 : vector<8x32x32xf32>
    %276 = arith.addf %270, %275 : vector<8x32x32xf32>
    %277 = vector.extract_strided_slice %271 {offsets = [1, 0, 0], sizes = [1, 32, 32], strides = [1, 1, 1]} : vector<4x32x32xf32> to vector<1x32x32xf32>
    %278 = vector.broadcast %97 : vector<8x1x1xf32> to vector<8x32x32xf32>
    %279 = vector.broadcast %277 : vector<1x32x32xf32> to vector<8x32x32xf32>
    %280 = arith.mulf %278, %279 : vector<8x32x32xf32>
    %281 = arith.addf %276, %280 : vector<8x32x32xf32>
    %282 = vector.extract_strided_slice %271 {offsets = [2, 0, 0], sizes = [1, 32, 32], strides = [1, 1, 1]} : vector<4x32x32xf32> to vector<1x32x32xf32>
    %283 = vector.broadcast %99 : vector<8x1x1xf32> to vector<8x32x32xf32>
    %284 = vector.broadcast %282 : vector<1x32x32xf32> to vector<8x32x32xf32>
    %285 = arith.mulf %283, %284 : vector<8x32x32xf32>
    %286 = arith.addf %281, %285 : vector<8x32x32xf32>
    %287 = vector.extract_strided_slice %271 {offsets = [3, 0, 0], sizes = [1, 32, 32], strides = [1, 1, 1]} : vector<4x32x32xf32> to vector<1x32x32xf32>
    %288 = vector.broadcast %101 : vector<8x1x1xf32> to vector<8x32x32xf32>
    %289 = vector.broadcast %287 : vector<1x32x32xf32> to vector<8x32x32xf32>
    %290 = arith.mulf %288, %289 : vector<8x32x32xf32>
    %291 = arith.addf %286, %290 : vector<8x32x32xf32>
    %292 = vector.shape_cast %291 : vector<8x32x32xf32> to vector<8x1024xf32>
    %c0_43 = arith.constant 0 : index
    %c0_44 = arith.constant 0 : index
    %293 = vector.load %arg5[%c0_43, %c0_44] : memref<8x3xf32, #tpu.memory_space<vmem>>, vector<8x3xf32>
    %294 = vector.extract_strided_slice %293 {offsets = [0, 0], sizes = [8, 1], strides = [1, 1]} : vector<8x3xf32> to vector<8x1xf32>
    %295 = vector.broadcast %294 : vector<8x1xf32> to vector<8x1024xf32>
    %296 = arith.mulf %292, %295 : vector<8x1024xf32>
    %297 = vector.extract_strided_slice %293 {offsets = [0, 1], sizes = [8, 1], strides = [1, 1]} : vector<8x3xf32> to vector<8x1xf32>
    %298 = vector.broadcast %297 : vector<8x1xf32> to vector<8x1024xf32>
    %299 = arith.addf %296, %298 : vector<8x1024xf32>
    %cst_45 = arith.constant 0.000000e+00 : f32
    %300 = vector.broadcast %cst_45 : f32 to vector<8x1024xf32>
    %301 = arith.cmpf oge, %299, %300 : vector<8x1024xf32>
    %302 = vector.extract_strided_slice %293 {offsets = [0, 2], sizes = [8, 1], strides = [1, 1]} : vector<8x3xf32> to vector<8x1xf32>
    %303 = vector.broadcast %302 : vector<8x1xf32> to vector<8x1024xf32>
    %304 = arith.mulf %303, %299 : vector<8x1024xf32>
    %305 = arith.select %301, %299, %304 : vector<8x1024xi1>, vector<8x1024xf32>
    %306 = vector.shape_cast %305 : vector<8x1024xf32> to vector<1x8x1024xf32>
    %c0_46 = arith.constant 0 : index
    %c0_47 = arith.constant 0 : index
    %c0_48 = arith.constant 0 : index
    %307 = vector.load %arg6[%c0_46, %c0_47, %c0_48] : memref<1x8x1024xf32, #tpu.memory_space<vmem>>, vector<1x8x1024xf32>
    tpu.vector_store %arg6[%c0_46, %c0_47, %c0_48], %306 {strides = array<i32>} : memref<1x8x1024xf32, #tpu.memory_space<vmem>>, vector<1x8x1024xf32>,
    return
  }
  func.func @transform_0(%arg0: i32, %arg1: i32) -> (i32, i32, i32, i32) {
    %c0_i32 = arith.constant 0 : i32
    %c0_i32_0 = arith.constant 0 : i32
    %c0_i32_1 = arith.constant 0 : i32
    %c0_i32_2 = arith.constant 0 : i32
    return %arg0, %c0_i32, %c0_i32_0, %c0_i32_1 : i32, i32, i32, i32
  }
  func.func @transform_1(%arg0: i32, %arg1: i32) -> (i32, i32) {
    %c0_i32 = arith.constant 0 : i32
    %c0_i32_0 = arith.constant 0 : i32
    %c0_i32_1 = arith.constant 0 : i32
    return %c0_i32, %c0_i32_0 : i32, i32
  }
  func.func @transform_2(%arg0: i32, %arg1: i32) -> (i32, i32) {
    %c0_i32 = arith.constant 0 : i32
    %c0_i32_0 = arith.constant 0 : i32
    %c0_i32_1 = arith.constant 0 : i32
    return %c0_i32, %c0_i32_0 : i32, i32
  }
  func.func @transform_3(%arg0: i32, %arg1: i32) -> (i32, i32) {
    %c0_i32 = arith.constant 0 : i32
    %c0_i32_0 = arith.constant 0 : i32
    %c0_i32_1 = arith.constant 0 : i32
    return %c0_i32, %c0_i32_0 : i32, i32
  }
  func.func @transform_4(%arg0: i32, %arg1: i32) -> (i32, i32, i32) {
    %c0_i32 = arith.constant 0 : i32
    %c0_i32_0 = arith.constant 0 : i32
    return %arg0, %c0_i32, %arg1 : i32, i32, i32
  }
}

</mosaic_0001>

<llo_original>
// kernel: tpu_custom_call.1
$region0: #{tpu_custom_call.1}
  #allocation0 [shape = 'u32[]', space=smem, size = 0x4, offset = 0x4, fixed_abs, tag = 'smem constant byte address 0x4 - core index']
  #allocation1 [shape = 'u32[144,128]{1,0:T(1,128)}', space=vmem, size = 0x12000, scoped, tag = 'internal scratch']
  #allocation2 [shape = 'f32[4,34,34]{2,1,0:T(8,128)}', space=vmem, size = 0x14000, scoped, tag = 'scratch operand']
  %s0 = inlined_call_operand.vmem [shape: f32[2,4,18,18], index: 0, kind: input, shape index: {}]
  %s1 = inlined_call_operand.vmem [shape: f32[18,34], index: 1, kind: input, shape index: {}]
  %s2 = inlined_call_operand.vmem [shape: f32[8,36], index: 2, kind: input, shape index: {}]
  %s3 = inlined_call_operand.vmem [shape: f32[8,3], index: 3, kind: input, shape index: {}]
  %s4 = inlined_call_operand.hbm [shape: f32[2,8,1024], index: 4, kind: output, shape index: {}]
  %s5 = sld [smem:[#allocation0]]
  $region53: #{tpu_custom_call.1} parent=0
    _
  %s7 = ssub.s32 1, %s5
  %s8 = scalar_select 0, %s7, %s5
  $region1: #{tpu_custom_call.1} parent=0
    #allocation3 [shape = 'u8[65536]{0}', space=vmem, size = 0x10000, scoped, tag = 'output window, operand 0']
    #allocation4 [shape = 's32[2]{0}', space=sflag, size = 0x8, scoped, tag = 'scoped memory for tpu_custom_call.1']
    %9 = vsyncpa [#allocation4], 0
    %s10 = scalar_lea.sflag [#allocation4], 1
    %11 = vsyncpa %s10, 0
    loop: start=0, step=1, limit=4
    $region2: #{tpu_custom_call.1} parent=1 // loop_pre_header
      _
    $region3: #{tpu_custom_call.1} parent=1 // loop_header
      %s13 = sphi 0, %s17
      %p14 = scmp.ge.s32.totalorder %s13, 4
      %s20 = sphi 0, %s32
      %s21 = sphi 0, %s28
      %s22 = sphi 0, %s20
      %s23 = sphi 0, %s21
      %s24 = sphi 0, %s22
      %s25 = sphi 0, %s23
      %s35 = sphi 0, %s37
      %s38 = sphi 0, %s35
      %s39 = sphi 0, %s38
      %s55 = sphi 0, %s39
      %s59 = sphi 0, %s59
      %s61 = sphi 0, %s59
      %s62 = sphi 0, %s61
      %s76 = sphi 0, %s62
      %s80 = sphi 0, %s80
      %s82 = sphi 0, %s80
      %s83 = sphi 0, %s82
      %s97 = sphi 0, %s83
      %s101 = sphi 0, %s101
      %s103 = sphi 0, %s101
      %s104 = sphi 0, %s103
      %s118 = sphi 0, %s104
      %s126 = sphi 0, %s128
      %s129 = sphi 0, %s126
      %s130 = sphi 0, %s129
      %s146 = sphi 0, %s130
    $region4: #{tpu_custom_call.1} parent=1 // loop_header_branch
      %16 = sbr.rel (%p14) target = $region8
    $region5: #{tpu_custom_call.1} parent=1 // loop_body
      %s18 = ssub.s32 %s13, 1
      %s19 = ssub.s32 %s13, 2
      %s26 = sadd.s32 1, %s21
      %p27 = scmp.ge.s32.totalorder %s26, 1
      %s28 = scalar_select %p27, 0, %s26
      %s29 = sadd.s32 1, %s20
      %s30 = scalar_select %p27, %s29, %s20
      %p31 = scmp.ge.s32.totalorder %s30, 2
      %s32 = scalar_select %p31, 0, %s30
      %s33 = ssub.s32 %s20, %s32
      %p34 = scmp.eq.s32.totalorder %s33, 0
      %s36 = sadd.s32 %s35, 1
      %s37 = scalar_select %p34, %s35, %s36
      %p40 = pneg %p34
      %p41 = scmp.eq.s32.totalorder %s13, 1
      %p42 = por %p40, %p41
      %p43 = scmp.ne.s32.totalorder %s35, %s38
      %p44 = scmp.eq.s32.totalorder %s13, 0
      %p45 = por %p43, %p44
      %p46 = scmp.ne.s32.totalorder %s35, %s38
      %p47 = scmp.eq.s32.totalorder %s18, 1
      %p48 = por %p46, %p47
      %p49 = scmp.ne.s32.totalorder %s38, %s39
      %p50 = scmp.eq.s32.totalorder %s18, 0
      %p51 = por %p49, %p50
      %p52 = scmp.ne.s32.totalorder %s38, %s39
      %p53 = scmp.eq.s32.totalorder %s19, 1
      %p54 = por %p52, %p53
      %p56 = scmp.ne.s32.totalorder %s39, %s55
      %p57 = scmp.eq.s32.totalorder %s19, 0
      %p58 = por %p56, %p57
      %s60 = sadd.s32 %s59, 1
      %p63 = scmp.eq.s32.totalorder %s13, 1
      %p64 = scmp.ne.s32.totalorder %s59, %s61
      %p65 = scmp.eq.s32.totalorder %s13, 0
      %p66 = por %p64, %p65
      %p67 = scmp.ne.s32.totalorder %s59, %s61
      %p68 = scmp.eq.s32.totalorder %s18, 1
      %p69 = por %p67, %p68
      %p70 = scmp.ne.s32.totalorder %s61, %s62
      %p71 = scmp.eq.s32.totalorder %s18, 0
      %p72 = por %p70, %p71
      %p73 = scmp.ne.s32.totalorder %s61, %s62
      %p74 = scmp.eq.s32.totalorder %s19, 1
      %p75 = por %p73, %p74
      %p77 = scmp.ne.s32.totalorder %s62, %s76
      %p78 = scmp.eq.s32.totalorder %s19, 0
      %p79 = por %p77, %p78
      %s81 = sadd.s32 %s80, 1
      %p84 = scmp.eq.s32.totalorder %s13, 1
      %p85 = scmp.ne.s32.totalorder %s80, %s82
      %p86 = scmp.eq.s32.totalorder %s13, 0
      %p87 = por %p85, %p86
      %p88 = scmp.ne.s32.totalorder %s80, %s82
      %p89 = scmp.eq.s32.totalorder %s18, 1
      %p90 = por %p88, %p89
      %p91 = scmp.ne.s32.totalorder %s82, %s83
      %p92 = scmp.eq.s32.totalorder %s18, 0
      %p93 = por %p91, %p92
      %p94 = scmp.ne.s32.totalorder %s82, %s83
      %p95 = scmp.eq.s32.totalorder %s19, 1
      %p96 = por %p94, %p95
      %p98 = scmp.ne.s32.totalorder %s83, %s97
      %p99 = scmp.eq.s32.totalorder %s19, 0
      %p100 = por %p98, %p99
      %s102 = sadd.s32 %s101, 1
      %p105 = scmp.eq.s32.totalorder %s13, 1
      %p106 = scmp.ne.s32.totalorder %s101, %s103
      %p107 = scmp.eq.s32.totalorder %s13, 0
      %p108 = por %p106, %p107
      %p109 = scmp.ne.s32.totalorder %s101, %s103
      %p110 = scmp.eq.s32.totalorder %s18, 1
      %p111 = por %p109, %p110
      %p112 = scmp.ne.s32.totalorder %s103, %s104
      %p113 = scmp.eq.s32.totalorder %s18, 0
      %p114 = por %p112, %p113
      %p115 = scmp.ne.s32.totalorder %s103, %s104
      %p116 = scmp.eq.s32.totalorder %s19, 1
      %p117 = por %p115, %p116
      %p119 = scmp.ne.s32.totalorder %s104, %s118
      %p120 = scmp.eq.s32.totalorder %s19, 0
      %p121 = por %p119, %p120
      %s122 = ssub.s32 %s20, %s32
      %s123 = ssub.s32 %s21, %s28
      %s124 = sor.u32 %s122, %s123
      %p125 = scmp.eq.s32.totalorder %s124, 0
      %s127 = sadd.s32 %s126, 1
      %s128 = scalar_select %p125, %s126, %s127
      %p131 = pneg %p125
      %p132 = scmp.eq.s32.totalorder %s13, 1
      %p133 = por %p131, %p132
      %p134 = scmp.ne.s32.totalorder %s126, %s129
      %p135 = scmp.eq.s32.totalorder %s13, 0
      %p136 = por %p134, %p135
      %p137 = scmp.ne.s32.totalorder %s126, %s129
      %p138 = scmp.eq.s32.totalorder %s18, 1
      %p139 = por %p137, %p138
      %p140 = scmp.ne.s32.totalorder %s129, %s130
      %p141 = scmp.eq.s32.totalorder %s18, 0
      %p142 = por %p140, %p141
      %p143 = scmp.ne.s32.totalorder %s129, %s130
      %p144 = scmp.eq.s32.totalorder %s19, 1
      %p145 = por %p143, %p144
      %p147 = scmp.ne.s32.totalorder %s130, %s146
      %p148 = scmp.eq.s32.totalorder %s19, 0
      %p149 = por %p147, %p148
      %p150 = scmp.le.s32.totalorder 1, %s13
      %p151 = scmp.lt.s32.totalorder %s13, 3
      %p152 = pnand %p150, %p151
      %p153 = pneg %p152
      // Predicated region
      $region9: #{tpu_custom_call.1} parent=5 // pred_check
        _
      $region10: #{tpu_custom_call.1} parent=5 // pred_check_branch
        %155 = sbr.rel (%p152) target = $region12
      $region11: #{tpu_custom_call.1} parent=5 // pred_region
        %s156 = ssub.s32 %s13, 1
        // Predicated region
        $region13: #{tpu_custom_call.1} parent=11 // pred_check
          %p157 = pneg %p72
        $region14: #{tpu_custom_call.1} parent=11 // pred_check_branch
          %159 = sbr.rel (%p157) target = $region16
        $region15: #{tpu_custom_call.1} parent=11 // pred_region
          _
        $region16: #{tpu_custom_call.1} parent=11 // pred_fallthru
          _
        // Predicated region
        $region17: #{tpu_custom_call.1} parent=11 // pred_check
          %p160 = pneg %p93
        $region18: #{tpu_custom_call.1} parent=11 // pred_check_branch
          %162 = sbr.rel (%p160) target = $region20
        $region19: #{tpu_custom_call.1} parent=11 // pred_region
          _
        $region20: #{tpu_custom_call.1} parent=11 // pred_fallthru
          _
        // Predicated region
        $region21: #{tpu_custom_call.1} parent=11 // pred_check
          %p163 = pneg %p114
        $region22: #{tpu_custom_call.1} parent=11 // pred_check_branch
          %165 = sbr.rel (%p163) target = $region24
        $region23: #{tpu_custom_call.1} parent=11 // pred_region
          _
        $region24: #{tpu_custom_call.1} parent=11 // pred_fallthru
          _
      $region12: #{tpu_custom_call.1} parent=5 // pred_fallthru
        _
      %p166 = scmp.lt.s32.totalorder %s13, 2
      // Predicated region
      $region25: #{tpu_custom_call.1} parent=5 // pred_check
        %p167 = pneg %p166
      $region26: #{tpu_custom_call.1} parent=5 // pred_check_branch
        %169 = sbr.rel (%p167) target = $region28
      $region27: #{tpu_custom_call.1} parent=5 // pred_region
        // Predicated region
        $region29: #{tpu_custom_call.1} parent=27 // pred_check
          %p170 = pneg %p45
        $region30: #{tpu_custom_call.1} parent=27 // pred_check_branch
          %172 = sbr.rel (%p170) target = $region32
        $region31: #{tpu_custom_call.1} parent=27 // pred_region
          %p173 = scmp.lt.s32.totalorder %s20, 1
          %s174 = scalar_select %p173, %s20, 1
          %s175 = smul.addr %s174, 12
          %s176 = smul.addr %s175, 8
          %s177 = scalar_lea.vmem %s0, %s176
        $region32: #{tpu_custom_call.1} parent=27 // pred_fallthru
          _
      $region28: #{tpu_custom_call.1} parent=5 // pred_fallthru
        _
      %p178 = scmp.le.s32.totalorder 1, %s13
      %p179 = scmp.lt.s32.totalorder %s13, 3
      %p180 = pnand %p178, %p179
      %p181 = pneg %p180
      // Predicated region
      $region33: #{tpu_custom_call.1} parent=5 // pred_check
        _
      $region34: #{tpu_custom_call.1} parent=5 // pred_check_branch
        %183 = sbr.rel (%p180) target = $region36
      $region35: #{tpu_custom_call.1} parent=5 // pred_region
        %s184 = ssub.s32 %s13, 1
        %p185 = scmp.lt.s32.totalorder %s22, 1
        %s186 = scalar_select %p185, %s22, 1
        %s187 = smul.addr %s186, 12
        %s188 = smul.addr %s187, 8
        %s189 = scalar_lea.vmem %s0, %s188
        %p190 = pneg %p51
        %p191 = pneg %p48
        %p192 = pneg %p72
        %p193 = pneg %p69
        %p194 = pneg %p93
        %p195 = pneg %p90
        %p196 = pneg %p114
        %p197 = pneg %p111
        %p198 = pneg %p142
        %p199 = pneg %p139
        %s200 = sand.u32 %s129, 1
        %s201 = scalar_lea.sflag [#allocation4], %s200
        %s202 = sand.u32 %s129, 1
        %s203 = smul.addr %s202, 64
        %s204 = scalar_lea.vmem [#allocation3], %s203
        %p205 = scmp.lt.s32.totalorder %s22, 1
        %s206 = scalar_select %p205, %s22, 1
        %s207 = smul.addr %s206, 12
        %s208 = smul.addr %s207, 8
        %s209 = scalar_lea.vmem %s0, %s208
        %s210 = smul.u32 8, %s23
        %v211 = vld [vmem:[%s209] sm:$0xff]
        %v212 = vld [vmem:[%s209 + $0x8] sm:$0xff]
        %v213 = vld [vmem:[%s209 + $0x10] sm:$0x3]
        %v214 = vld [vmem:[%s209 + $0x18] sm:$0xff]
        %v215 = vld [vmem:[%s209 + $0x20] sm:$0xff]
        %v216 = vld [vmem:[%s209 + $0x28] sm:$0x3]
        %v217 = vld [vmem:[%s209 + $0x30] sm:$0xff]
        %v218 = vld [vmem:[%s209 + $0x38] sm:$0xff]
        %v219 = vld [vmem:[%s209 + $0x40] sm:$0x3]
        %v220 = vld [vmem:[%s209 + $0x48] sm:$0xff]
        %v221 = vld [vmem:[%s209 + $0x50] sm:$0xff]
        %v222 = vld [vmem:[%s209 + $0x58] sm:$0x3]
        %v235 = vcombine.high %v211, %v211
        %v237 = vunpack.c.l.s4 1983009808
        %v238 = vunpack.c.0.s8 %v237
        %v239 = vlaneseq
        %v240 = vshrl.u32 %v239, 7
        %v241 = vsub.s32 %v238, %v240
        %v242 = vrot.slane %v211, %v241
        %v244 = vunpack.c.l.s4 1983009808
        %v245 = vunpack.c.0.s8 %v244
        %v246 = vlaneseq
        %v247 = vshrl.u32 %v246, 7
        %v248 = vsub.s32 %v245, %v247
        %v249 = vrot.slane %v235, %v248
        %v250 = vcombine.high %v242, %v242
        %v251 = vcombine.high %v249, %v249
        %v252 = vcombine.high %v212, %v212
        %v254 = vunpack.c.l.s4 1983009808
        %v255 = vunpack.c.0.s8 %v254
        %v256 = vlaneseq
        %v257 = vshrl.u32 %v256, 7
        %v258 = vsub.s32 %v255, %v257
        %v259 = vrot.slane %v212, %v258
        %v261 = vunpack.c.l.s4 1983009808
        %v262 = vunpack.c.0.s8 %v261
        %v263 = vlaneseq
        %v264 = vshrl.u32 %v263, 7
        %v265 = vsub.s32 %v262, %v264
        %v266 = vrot.slane %v252, %v265
        %v267 = vcombine.high %v259, %v259
        %v268 = vcombine.high %v266, %v266
        %v270 = vunpack.c.l.s4 1983009808
        %v271 = vunpack.c.0.s8 %v270
        %v272 = vlaneseq
        %v273 = vshrl.u32 %v272, 7
        %v274 = vsub.s32 %v271, %v273
        %v275 = vrot.slane %v213, %v274
        %v276 = vcombine.high %v214, %v214
        %v278 = vunpack.c.l.s4 1983009808
        %v279 = vunpack.c.0.s8 %v278
        %v280 = vlaneseq
        %v281 = vshrl.u32 %v280, 7
        %v282 = vsub.s32 %v279, %v281
        %v283 = vrot.slane %v214, %v282
        %v285 = vunpack.c.l.s4 1983009808
        %v286 = vunpack.c.0.s8 %v285
        %v287 = vlaneseq
        %v288 = vshrl.u32 %v287, 7
        %v289 = vsub.s32 %v286, %v288
        %v290 = vrot.slane %v276, %v289
        %v291 = vcombine.high %v283, %v283
        %v292 = vcombine.high %v290, %v290
        %v293 = vcombine.high %v215, %v215
        %v295 = vunpack.c.l.s4 1983009808
        %v296 = vunpack.c.0.s8 %v295
        %v297 = vlaneseq
        %v298 = vshrl.u32 %v297, 7
        %v299 = vsub.s32 %v296, %v298
        %v300 = vrot.slane %v215, %v299
        %v302 = vunpack.c.l.s4 1983009808
        %v303 = vunpack.c.0.s8 %v302
        %v304 = vlaneseq
        %v305 = vshrl.u32 %v304, 7
        %v306 = vsub.s32 %v303, %v305
        %v307 = vrot.slane %v293, %v306
        %v308 = vcombine.high %v300, %v300
        %v309 = vcombine.high %v307, %v307
        %v311 = vunpack.c.l.s4 1983009808
        %v312 = vunpack.c.0.s8 %v311
        %v313 = vlaneseq
        %v314 = vshrl.u32 %v313, 7
        %v315 = vsub.s32 %v312, %v314
        %v316 = vrot.slane %v216, %v315
        %v317 = vcombine.high %v217, %v217
        %v319 = vunpack.c.l.s4 1983009808
        %v320 = vunpack.c.0.s8 %v319
        %v321 = vlaneseq
        %v322 = vshrl.u32 %v321, 7
        %v323 = vsub.s32 %v320, %v322
        %v324 = vrot.slane %v217, %v323
        %v326 = vunpack.c.l.s4 1983009808
        %v327 = vunpack.c.0.s8 %v326
        %v328 = vlaneseq
        %v329 = vshrl.u32 %v328, 7
        %v330 = vsub.s32 %v327, %v329
        %v331 = vrot.slane %v317, %v330
        %v332 = vcombine.high %v324, %v324
        %v333 = vcombine.high %v331, %v331
        %v334 = vcombine.high %v218, %v218
        %v336 = vunpack.c.l.s4 1983009808
        %v337 = vunpack.c.0.s8 %v336
        %v338 = vlaneseq
        %v339 = vshrl.u32 %v338, 7
        %v340 = vsub.s32 %v337, %v339
        %v341 = vrot.slane %v218, %v340
        %v343 = vunpack.c.l.s4 1983009808
        %v344 = vunpack.c.0.s8 %v343
        %v345 = vlaneseq
        %v346 = vshrl.u32 %v345, 7
        %v347 = vsub.s32 %v344, %v346
        %v348 = vrot.slane %v334, %v347
        %v349 = vcombine.high %v341, %v341
        %v350 = vcombine.high %v348, %v348
        %v352 = vunpack.c.l.s4 1983009808
        %v353 = vunpack.c.0.s8 %v352
        %v354 = vlaneseq
        %v355 = vshrl.u32 %v354, 7
        %v356 = vsub.s32 %v353, %v355
        %v357 = vrot.slane %v219, %v356
        %v358 = vcombine.high %v220, %v220
        %v360 = vunpack.c.l.s4 1983009808
        %v361 = vunpack.c.0.s8 %v360
        %v362 = vlaneseq
        %v363 = vshrl.u32 %v362, 7
        %v364 = vsub.s32 %v361, %v363
        %v365 = vrot.slane %v220, %v364
        %v367 = vunpack.c.l.s4 1983009808
        %v368 = vunpack.c.0.s8 %v367
        %v369 = vlaneseq
        %v370 = vshrl.u32 %v369, 7
        %v371 = vsub.s32 %v368, %v370
        %v372 = vrot.slane %v358, %v371
        %v373 = vcombine.high %v365, %v365
        %v374 = vcombine.high %v372, %v372
        %v375 = vcombine.high %v221, %v221
        %v377 = vunpack.c.l.s4 1983009808
        %v378 = vunpack.c.0.s8 %v377
        %v379 = vlaneseq
        %v380 = vshrl.u32 %v379, 7
        %v381 = vsub.s32 %v378, %v380
        %v382 = vrot.slane %v221, %v381
        %v384 = vunpack.c.l.s4 1983009808
        %v385 = vunpack.c.0.s8 %v384
        %v386 = vlaneseq
        %v387 = vshrl.u32 %v386, 7
        %v388 = vsub.s32 %v385, %v387
        %v389 = vrot.slane %v375, %v388
        %v390 = vcombine.high %v382, %v382
        %v391 = vcombine.high %v389, %v389
        %v393 = vunpack.c.l.s4 1983009808
        %v394 = vunpack.c.0.s8 %v393
        %v395 = vlaneseq
        %v396 = vshrl.u32 %v395, 7
        %v397 = vsub.s32 %v394, %v396
        %v398 = vrot.slane %v222, %v397
        %v399 = vld [vmem:[%s1] sm:$0xff]
        %v400 = vld [vmem:[%s1 + $0x8] sm:$0xff]
        %v401 = vld [vmem:[%s1 + $0x10] sm:$0x3]
        %v402 = vcombine.low %v242, %v250
        %v403 = vcombine.low %v249, %v251
        %v405 = vunpack.c.l.s4 1983009808
        %v406 = vunpack.c.0.s8 %v405
        %v407 = vlaneseq
        %v408 = vshrl.u32 %v407, 7
        %v409 = vsub.s32 %v406, %v408
        %v410 = vrot.slane %v402, %v409
        %v412 = vunpack.c.l.s4 1983009808
        %v413 = vunpack.c.0.s8 %v412
        %v414 = vlaneseq
        %v415 = vshrl.u32 %v414, 7
        %v416 = vsub.s32 %v413, %v415
        %v417 = vrot.slane %v403, %v416
        %v418 = vcombine.low %v410, %v417
        %v419 = vcombine.low %v259, %v267
        %v420 = vcombine.low %v266, %v268
        %v422 = vunpack.c.l.s4 1983009808
        %v423 = vunpack.c.0.s8 %v422
        %v424 = vlaneseq
        %v425 = vshrl.u32 %v424, 7
        %v426 = vsub.s32 %v423, %v425
        %v427 = vrot.slane %v419, %v426
        %v429 = vunpack.c.l.s4 1983009808
        %v430 = vunpack.c.0.s8 %v429
        %v431 = vlaneseq
        %v432 = vshrl.u32 %v431, 7
        %v433 = vsub.s32 %v430, %v432
        %v434 = vrot.slane %v420, %v433
        %v435 = vcombine.low %v427, %v434
        %v436 = vcombine.low %v275, %v283
        %v437 = vcombine.low %v291, %v290
        %v439 = vunpack.c.l.s4 1983009808
        %v440 = vunpack.c.0.s8 %v439
        %v441 = vlaneseq
        %v442 = vshrl.u32 %v441, 7
        %v443 = vsub.s32 %v440, %v442
        %v444 = vrot.slane %v436, %v443
        %v446 = vunpack.c.l.s4 1983009808
        %v447 = vunpack.c.0.s8 %v446
        %v448 = vlaneseq
        %v449 = vshrl.u32 %v448, 7
        %v450 = vsub.s32 %v447, %v449
        %v451 = vrot.slane %v437, %v450
        %v452 = vcombine.low %v444, %v451
        %v453 = vcombine.low %v292, %v300
        %v454 = vcombine.low %v308, %v307
        %v456 = vunpack.c.l.s4 1983009808
        %v457 = vunpack.c.0.s8 %v456
        %v458 = vlaneseq
        %v459 = vshrl.u32 %v458, 7
        %v460 = vsub.s32 %v457, %v459
        %v461 = vrot.slane %v453, %v460
        %v463 = vunpack.c.l.s4 1983009808
        %v464 = vunpack.c.0.s8 %v463
        %v465 = vlaneseq
        %v466 = vshrl.u32 %v465, 7
        %v467 = vsub.s32 %v464, %v466
        %v468 = vrot.slane %v454, %v467
        %v469 = vcombine.low %v461, %v468
        %v470 = vcombine.low %v309, %v316
        %v471 = vcombine.low %v324, %v332
        %v473 = vunpack.c.l.s4 1983009808
        %v474 = vunpack.c.0.s8 %v473
        %v475 = vlaneseq
        %v476 = vshrl.u32 %v475, 7
        %v477 = vsub.s32 %v474, %v476
        %v478 = vrot.slane %v470, %v477
        %v480 = vunpack.c.l.s4 1983009808
        %v481 = vunpack.c.0.s8 %v480
        %v482 = vlaneseq
        %v483 = vshrl.u32 %v482, 7
        %v484 = vsub.s32 %v481, %v483
        %v485 = vrot.slane %v471, %v484
        %v486 = vcombine.low %v478, %v485
        %v487 = vcombine.low %v331, %v333
        %v488 = vcombine.low %v341, %v349
        %v490 = vunpack.c.l.s4 1983009808
        %v491 = vunpack.c.0.s8 %v490
        %v492 = vlaneseq
        %v493 = vshrl.u32 %v492, 7
        %v494 = vsub.s32 %v491, %v493
        %v495 = vrot.slane %v487, %v494
        %v497 = vunpack.c.l.s4 1983009808
        %v498 = vunpack.c.0.s8 %v497
        %v499 = vlaneseq
        %v500 = vshrl.u32 %v499, 7
        %v501 = vsub.s32 %v498, %v500
        %v502 = vrot.slane %v488, %v501
        %v503 = vcombine.low %v495, %v502
        %v504 = vcombine.low %v348, %v350
        %v505 = vcombine.low %v357, %v365
        %v507 = vunpack.c.l.s4 1983009808
        %v508 = vunpack.c.0.s8 %v507
        %v509 = vlaneseq
        %v510 = vshrl.u32 %v509, 7
        %v511 = vsub.s32 %v508, %v510
        %v512 = vrot.slane %v504, %v511
        %v514 = vunpack.c.l.s4 1983009808
        %v515 = vunpack.c.0.s8 %v514
        %v516 = vlaneseq
        %v517 = vshrl.u32 %v516, 7
        %v518 = vsub.s32 %v515, %v517
        %v519 = vrot.slane %v505, %v518
        %v520 = vcombine.low %v512, %v519
        %v521 = vcombine.low %v373, %v372
        %v522 = vcombine.low %v374, %v382
        %v524 = vunpack.c.l.s4 1983009808
        %v525 = vunpack.c.0.s8 %v524
        %v526 = vlaneseq
        %v527 = vshrl.u32 %v526, 7
        %v528 = vsub.s32 %v525, %v527
        %v529 = vrot.slane %v521, %v528
        %v531 = vunpack.c.l.s4 1983009808
        %v532 = vunpack.c.0.s8 %v531
        %v533 = vlaneseq
        %v534 = vshrl.u32 %v533, 7
        %v535 = vsub.s32 %v532, %v534
        %v536 = vrot.slane %v522, %v535
        %v537 = vcombine.low %v529, %v536
        %v538 = vcombine.low %v390, %v389
        %v539 = vcombine.low %v391, %v398
        %v541 = vunpack.c.l.s4 1983009808
        %v542 = vunpack.c.0.s8 %v541
        %v543 = vlaneseq
        %v544 = vshrl.u32 %v543, 7
        %v545 = vsub.s32 %v542, %v544
        %v546 = vrot.slane %v538, %v545
        %v548 = vunpack.c.l.s4 1983009808
        %v549 = vunpack.c.0.s8 %v548
        %v550 = vlaneseq
        %v551 = vshrl.u32 %v550, 7
        %v552 = vsub.s32 %v549, %v551
        %v553 = vrot.slane %v539, %v552
        %v554 = vcombine.low %v546, %v553
        %vm555 = vcmask 146432
        %v556 = vsel %vm555, %v418, 0
        %v558 = vsel %vm555, %v435, 0
        %v560 = vsel %vm555, %v452, 0
        %v562 = vsel %vm555, %v469, 0
        %v564 = vsel %vm555, %v486, 0
        %v566 = vsel %vm555, %v503, 0
        %v568 = vsel %vm555, %v520, 0
        %v570 = vsel %vm555, %v537, 0
        %v572 = vsel %vm555, %v554, 0
        %vm574 = vcmask 1041408
        %v576 = vsel %vm574, %v401, 0
        %578 = vmatprep.subr.mxu0 0.0
        %579 = vmatpush1.msra.mxu0 0.0
        %580 = vmatprep.subr.mxu0 0.0
        %581 = vmatpush1.msra.mxu0 0.0
        %582 = vmatprep.subr.mxu0 0.0
        %583 = vmatpush1.msra.mxu0 0.0
        %584 = vmatprep.subr.mxu0 0.0
        %585 = vmatpush1.msra.mxu0 0.0
        %586 = vmatprep.subr.mxu0 0.0
        %587 = vmatpush1.msra.mxu0 0.0
        %588 = vmatprep.subr.mxu0 0.0
        %589 = vmatpush1.msra.mxu0 0.0
        %590 = vmatprep.subr.mxu0 0.0
        %591 = vmatpush1.msra.mxu0 0.0
        %592 = vmatprep.subr.mxu0 0.0
        %593 = vmatpush1.msra.mxu0 0.0
        %594 = vmatprep.subr.mxu0 0.0
        %595 = vmatpush1.msra.mxu0 0.0
        %596 = vmatprep.subr.mxu0 0.0
        %597 = vmatpush1.msra.mxu0 0.0
        %598 = vmatprep.subr.mxu0 0.0
        %599 = vmatpush1.msra.mxu0 0.0
        %600 = vmatprep.subr.mxu0 0.0
        %601 = vmatpush1.msra.mxu0 0.0
        %602 = vmatprep.subr.mxu0 0.0
        %603 = vmatpush1.msra.mxu0 0.0
        %604 = vmatprep.subr.mxu0 0.0
        %605 = vmatpush1.msra.mxu0 %v576
        %606 = vmatprep.subr.mxu0 0.0
        %607 = vmatpush1.msra.mxu0 %v400
        %608 = vmatprep.subr.mxu0 0.0
        %609 = vmatpush1.msra.mxu0 %v399
        %610 = vmatprep.subr.mxu0 0.0
        %611 = vmatpush2.msra.mxu0 0.0
        %612 = vmatprep.subr.mxu0 0.0
        %613 = vmatpush2.msra.mxu0 0.0
        %614 = vmatprep.subr.mxu0 0.0
        %615 = vmatpush2.msra.mxu0 0.0
        %616 = vmatprep.subr.mxu0 0.0
        %617 = vmatpush2.msra.mxu0 0.0
        %618 = vmatprep.subr.mxu0 0.0
        %619 = vmatpush2.msra.mxu0 0.0
        %620 = vmatprep.subr.mxu0 0.0
        %621 = vmatpush2.msra.mxu0 0.0
        %622 = vmatprep.subr.mxu0 0.0
        %623 = vmatpush2.msra.mxu0 0.0
        %624 = vmatprep.subr.mxu0 0.0
        %625 = vmatpush2.msra.mxu0 0.0
        %626 = vmatprep.subr.mxu0 0.0
        %627 = vmatpush2.msra.mxu0 0.0
        %628 = vmatprep.subr.mxu0 0.0
        %629 = vmatpush2.msra.mxu0 0.0
        %630 = vmatprep.subr.mxu0 0.0
        %631 = vmatpush2.msra.mxu0 0.0
        %632 = vmatprep.subr.mxu0 0.0
        %633 = vmatpush2.msra.mxu0 0.0
        %634 = vmatprep.subr.mxu0 0.0
        %635 = vmatpush2.msra.mxu0 0.0
        %636 = vmatprep.subr.mxu0 0.0
        %637 = vmatpush2.msra.mxu0 0.0
        %638 = vmatprep.subr.mxu0 0.0
        %639 = vmatpush2.msra.mxu0 0.0
        %640 = vmatprep.subr.mxu0 0.0
        %641 = vmatpush2.msra.mxu0 0.0
        %642 = vmatprep.mubr.f32.mxu0 0.0
        %643 = vmatmul.mubr.f32.gmra.mxu0 %v556
        %v644 = vpop.f32.mrf.mxu0
        %v645 = vadd.f32 0.0, %v644
        %v646 = vpop.f32.mrf.mxu0
        %647 = vmatprep.mubr.f32.mxu0 0.0
        %648 = vmatmul.mubr.f32.gmra.mxu0 %v558
        %v649 = vpop.f32.mrf.mxu0
        %v650 = vadd.f32 0.0, %v649
        %v651 = vpop.f32.mrf.mxu0
        %652 = vmatprep.mubr.f32.mxu0 0.0
        %653 = vmatmul.mubr.f32.gmra.mxu0 %v560
        %v654 = vpop.f32.mrf.mxu0
        %v655 = vadd.f32 0.0, %v654
        %v656 = vpop.f32.mrf.mxu0
        %657 = vmatprep.mubr.f32.mxu0 0.0
        %658 = vmatmul.mubr.f32.gmra.mxu0 %v562
        %v659 = vpop.f32.mrf.mxu0
        %v660 = vadd.f32 0.0, %v659
        %v661 = vpop.f32.mrf.mxu0
        %662 = vmatprep.mubr.f32.mxu0 0.0
        %663 = vmatmul.mubr.f32.gmra.mxu0 %v564
        %v664 = vpop.f32.mrf.mxu0
        %v665 = vadd.f32 0.0, %v664
        %v666 = vpop.f32.mrf.mxu0
        %667 = vmatprep.mubr.f32.mxu0 0.0
        %668 = vmatmul.mubr.f32.gmra.mxu0 %v566
        %v669 = vpop.f32.mrf.mxu0
        %v670 = vadd.f32 0.0, %v669
        %v671 = vpop.f32.mrf.mxu0
        %672 = vmatprep.mubr.f32.mxu0 0.0
        %673 = vmatmul.mubr.f32.gmra.mxu0 %v568
        %v674 = vpop.f32.mrf.mxu0
        %v675 = vadd.f32 0.0, %v674
        %v676 = vpop.f32.mrf.mxu0
        %677 = vmatprep.mubr.f32.mxu0 0.0
        %678 = vmatmul.mubr.f32.gmra.mxu0 %v570
        %v679 = vpop.f32.mrf.mxu0
        %v680 = vadd.f32 0.0, %v679
        %v681 = vpop.f32.mrf.mxu0
        %682 = vmatprep.mubr.f32.mxu0 0.0
        %683 = vmatmul.mubr.f32.gmra.mxu0 %v572
        %v684 = vpop.f32.mrf.mxu0
        %v685 = vadd.f32 0.0, %v684
        %v686 = vpop.f32.mrf.mxu0
        %687 = vdwg.mxu0
        %v697 = vcombine.high %v645, %v645
        %v699 = vunpack.c.l.s4 1983009808
        %v700 = vunpack.c.0.s8 %v699
        %v701 = vlaneseq
        %v702 = vshrl.u32 %v701, 7
        %v703 = vsub.s32 %v700, %v702
        %v704 = vrot.slane %v645, %v703
        %v706 = vunpack.c.l.s4 1983009808
        %v707 = vunpack.c.0.s8 %v706
        %v708 = vlaneseq
        %v709 = vshrl.u32 %v708, 7
        %v710 = vsub.s32 %v707, %v709
        %v711 = vrot.slane %v697, %v710
        %v712 = vcombine.high %v704, %v704
        %v713 = vcombine.high %v711, %v711
        %v714 = vcombine.high %v650, %v650
        %v716 = vunpack.c.l.s4 1983009808
        %v717 = vunpack.c.0.s8 %v716
        %v718 = vlaneseq
        %v719 = vshrl.u32 %v718, 7
        %v720 = vsub.s32 %v717, %v719
        %v721 = vrot.slane %v650, %v720
        %v723 = vunpack.c.l.s4 1983009808
        %v724 = vunpack.c.0.s8 %v723
        %v725 = vlaneseq
        %v726 = vshrl.u32 %v725, 7
        %v727 = vsub.s32 %v724, %v726
        %v728 = vrot.slane %v714, %v727
        %v729 = vcombine.high %v721, %v721
        %v730 = vcombine.high %v728, %v728
        %v731 = vcombine.high %v655, %v655
        %v733 = vunpack.c.l.s4 1983009808
        %v734 = vunpack.c.0.s8 %v733
        %v735 = vlaneseq
        %v736 = vshrl.u32 %v735, 7
        %v737 = vsub.s32 %v734, %v736
        %v738 = vrot.slane %v655, %v737
        %v740 = vunpack.c.l.s4 1983009808
        %v741 = vunpack.c.0.s8 %v740
        %v742 = vlaneseq
        %v743 = vshrl.u32 %v742, 7
        %v744 = vsub.s32 %v741, %v743
        %v745 = vrot.slane %v731, %v744
        %v746 = vcombine.high %v738, %v738
        %v747 = vcombine.high %v745, %v745
        %v748 = vcombine.high %v660, %v660
        %v750 = vunpack.c.l.s4 1983009808
        %v751 = vunpack.c.0.s8 %v750
        %v752 = vlaneseq
        %v753 = vshrl.u32 %v752, 7
        %v754 = vsub.s32 %v751, %v753
        %v755 = vrot.slane %v660, %v754
        %v757 = vunpack.c.l.s4 1983009808
        %v758 = vunpack.c.0.s8 %v757
        %v759 = vlaneseq
        %v760 = vshrl.u32 %v759, 7
        %v761 = vsub.s32 %v758, %v760
        %v762 = vrot.slane %v748, %v761
        %v763 = vcombine.high %v755, %v755
        %v764 = vcombine.high %v762, %v762
        %v765 = vcombine.high %v665, %v665
        %v767 = vunpack.c.l.s4 1983009808
        %v768 = vunpack.c.0.s8 %v767
        %v769 = vlaneseq
        %v770 = vshrl.u32 %v769, 7
        %v771 = vsub.s32 %v768, %v770
        %v772 = vrot.slane %v665, %v771
        %v774 = vunpack.c.l.s4 1983009808
        %v775 = vunpack.c.0.s8 %v774
        %v776 = vlaneseq
        %v777 = vshrl.u32 %v776, 7
        %v778 = vsub.s32 %v775, %v777
        %v779 = vrot.slane %v765, %v778
        %v780 = vcombine.high %v772, %v772
        %v781 = vcombine.high %v779, %v779
        %v782 = vcombine.high %v670, %v670
        %v784 = vunpack.c.l.s4 1983009808
        %v785 = vunpack.c.0.s8 %v784
        %v786 = vlaneseq
        %v787 = vshrl.u32 %v786, 7
        %v788 = vsub.s32 %v785, %v787
        %v789 = vrot.slane %v670, %v788
        %v791 = vunpack.c.l.s4 1983009808
        %v792 = vunpack.c.0.s8 %v791
        %v793 = vlaneseq
        %v794 = vshrl.u32 %v793, 7
        %v795 = vsub.s32 %v792, %v794
        %v796 = vrot.slane %v782, %v795
        %v797 = vcombine.high %v789, %v789
        %v798 = vcombine.high %v796, %v796
        %v799 = vcombine.high %v675, %v675
        %v801 = vunpack.c.l.s4 1983009808
        %v802 = vunpack.c.0.s8 %v801
        %v803 = vlaneseq
        %v804 = vshrl.u32 %v803, 7
        %v805 = vsub.s32 %v802, %v804
        %v806 = vrot.slane %v675, %v805
        %v808 = vunpack.c.l.s4 1983009808
        %v809 = vunpack.c.0.s8 %v808
        %v810 = vlaneseq
        %v811 = vshrl.u32 %v810, 7
        %v812 = vsub.s32 %v809, %v811
        %v813 = vrot.slane %v799, %v812
        %v814 = vcombine.high %v806, %v806
        %v815 = vcombine.high %v813, %v813
        %v816 = vcombine.high %v680, %v680
        %v818 = vunpack.c.l.s4 1983009808
        %v819 = vunpack.c.0.s8 %v818
        %v820 = vlaneseq
        %v821 = vshrl.u32 %v820, 7
        %v822 = vsub.s32 %v819, %v821
        %v823 = vrot.slane %v680, %v822
        %v825 = vunpack.c.l.s4 1983009808
        %v826 = vunpack.c.0.s8 %v825
        %v827 = vlaneseq
        %v828 = vshrl.u32 %v827, 7
        %v829 = vsub.s32 %v826, %v828
        %v830 = vrot.slane %v816, %v829
        %v831 = vcombine.high %v823, %v823
        %v832 = vcombine.high %v830, %v830
        %v833 = vcombine.high %v685, %v685
        %v835 = vunpack.c.l.s4 1983009808
        %v836 = vunpack.c.0.s8 %v835
        %v837 = vlaneseq
        %v838 = vshrl.u32 %v837, 7
        %v839 = vsub.s32 %v836, %v838
        %v840 = vrot.slane %v685, %v839
        %v842 = vunpack.c.l.s4 1983009808
        %v843 = vunpack.c.0.s8 %v842
        %v844 = vlaneseq
        %v845 = vshrl.u32 %v844, 7
        %v846 = vsub.s32 %v843, %v845
        %v847 = vrot.slane %v833, %v846
        %v848 = vcombine.high %v840, %v840
        %v849 = vcombine.high %v847, %v847
        %v886 = vmul.f32 %v704, 0.75
        %v887 = vmul.f32 %v712, 0.75
        %v888 = vmul.f32 %v711, 0.75
        %v889 = vmul.f32 %v713, 0.75
        %v890 = vmul.f32 %v721, 0.75
        %v891 = vmul.f32 %v729, 0.75
        %v892 = vmul.f32 %v728, 0.75
        %v893 = vmul.f32 %v730, 0.75
        %v894 = vmul.f32 %v738, 0.75
        %v895 = vmul.f32 %v746, 0.75
        %v896 = vmul.f32 %v745, 0.75
        %v897 = vmul.f32 %v747, 0.75
        %v898 = vmul.f32 %v755, 0.75
        %v899 = vmul.f32 %v763, 0.75
        %v900 = vmul.f32 %v762, 0.75
        %v901 = vmul.f32 %v764, 0.75
        %v902 = vmul.f32 %v772, 0.75
        %v903 = vmul.f32 %v780, 0.75
        %v904 = vmul.f32 %v779, 0.75
        %v905 = vmul.f32 %v781, 0.75
        %v906 = vmul.f32 %v789, 0.75
        %v907 = vmul.f32 %v797, 0.75
        %v908 = vmul.f32 %v796, 0.75
        %v909 = vmul.f32 %v798, 0.75
        %v910 = vmul.f32 %v806, 0.75
        %v911 = vmul.f32 %v814, 0.75
        %v912 = vmul.f32 %v813, 0.75
        %v913 = vmul.f32 %v815, 0.75
        %v914 = vmul.f32 %v823, 0.75
        %v915 = vmul.f32 %v831, 0.75
        %v916 = vmul.f32 %v830, 0.75
        %v917 = vmul.f32 %v832, 0.75
        %v918 = vmul.f32 %v840, 0.75
        %v919 = vmul.f32 %v848, 0.75
        %v920 = vmul.f32 %v847, 0.75
        %v921 = vmul.f32 %v849, 0.75
        %v922 = vmul.f32 %v704, 0.25
        %v923 = vmul.f32 %v712, 0.25
        %v924 = vmul.f32 %v711, 0.25
        %v925 = vmul.f32 %v713, 0.25
        %v926 = vmul.f32 %v721, 0.25
        %v927 = vmul.f32 %v729, 0.25
        %v928 = vmul.f32 %v728, 0.25
        %v929 = vmul.f32 %v730, 0.25
        %v930 = vmul.f32 %v738, 0.25
        %v931 = vmul.f32 %v746, 0.25
        %v932 = vmul.f32 %v745, 0.25
        %v933 = vmul.f32 %v747, 0.25
        %v934 = vmul.f32 %v755, 0.25
        %v935 = vmul.f32 %v763, 0.25
        %v936 = vmul.f32 %v762, 0.25
        %v937 = vmul.f32 %v764, 0.25
        %v938 = vmul.f32 %v772, 0.25
        %v939 = vmul.f32 %v780, 0.25
        %v940 = vmul.f32 %v779, 0.25
        %v941 = vmul.f32 %v781, 0.25
        %v942 = vmul.f32 %v789, 0.25
        %v943 = vmul.f32 %v797, 0.25
        %v944 = vmul.f32 %v796, 0.25
        %v945 = vmul.f32 %v798, 0.25
        %v946 = vmul.f32 %v806, 0.25
        %v947 = vmul.f32 %v814, 0.25
        %v948 = vmul.f32 %v813, 0.25
        %v949 = vmul.f32 %v815, 0.25
        %v950 = vmul.f32 %v823, 0.25
        %v951 = vmul.f32 %v831, 0.25
        %v952 = vmul.f32 %v830, 0.25
        %v953 = vmul.f32 %v832, 0.25
        %v954 = vmul.f32 %v840, 0.25
        %v955 = vmul.f32 %v848, 0.25
        %v956 = vmul.f32 %v847, 0.25
        %v957 = vmul.f32 %v849, 0.25
        %vm994 = vcmask 1040384
        %vm995 = vcmask 1042434
        %vm996 = vmor %vm994, %vm995
        %vm997 = vcmask 1044484
        %vm998 = vmor %vm996, %vm997
        %vm999 = vcmask 1046534
        %vm1000 = vmor %vm998, %vm999
        %v1001 = vrot.slane %v922, 7
        %v1002 = vrot.slane %v1001, 2
        %v1003 = vrot.slane %v923, 7
        %v1004 = vsel %vm1000, %v1002, %v1003
        %v1005 = vrot.slane %v1003, 2
        %v1006 = vrot.slane %v924, 7
        %v1007 = vsel %vm1000, %v1005, %v1006
        %v1008 = vrot.slane %v1006, 2
        %v1009 = vrot.slane %v925, 7
        %v1010 = vsel %vm1000, %v1008, %v1009
        %v1011 = vrot.slane %v1009, 2
        %v1012 = vrot.slane %v926, 7
        %v1013 = vsel %vm1000, %v1011, %v1012
        %v1014 = vrot.slane %v1012, 2
        %v1015 = vrot.slane %v927, 7
        %v1016 = vsel %vm1000, %v1014, %v1015
        %v1017 = vrot.slane %v1015, 2
        %v1018 = vrot.slane %v928, 7
        %v1019 = vsel %vm1000, %v1017, %v1018
        %v1020 = vrot.slane %v1018, 2
        %v1021 = vrot.slane %v929, 7
        %v1022 = vsel %vm1000, %v1020, %v1021
        %v1023 = vrot.slane %v1021, 2
        %v1024 = vrot.slane %v930, 7
        %v1025 = vsel %vm1000, %v1023, %v1024
        %v1026 = vrot.slane %v1024, 2
        %v1027 = vrot.slane %v931, 7
        %v1028 = vrot.slane %v1027, 2
        %v1029 = vrot.slane %v932, 7
        %v1030 = vsel %vm1000, %v1028, %v1029
        %v1031 = vrot.slane %v1029, 2
        %v1032 = vrot.slane %v933, 7
        %v1033 = vsel %vm1000, %v1031, %v1032
        %v1034 = vrot.slane %v1032, 2
        %v1035 = vrot.slane %v934, 7
        %v1036 = vsel %vm1000, %v1034, %v1035
        %v1037 = vrot.slane %v1035, 2
        %v1038 = vrot.slane %v935, 7
        %v1039 = vsel %vm1000, %v1037, %v1038
        %v1040 = vrot.slane %v1038, 2
        %v1041 = vrot.slane %v936, 7
        %v1042 = vsel %vm1000, %v1040, %v1041
        %v1043 = vrot.slane %v1041, 2
        %v1044 = vrot.slane %v937, 7
        %v1045 = vsel %vm1000, %v1043, %v1044
        %v1046 = vrot.slane %v1044, 2
        %v1047 = vrot.slane %v938, 7
        %v1048 = vsel %vm1000, %v1046, %v1047
        %v1049 = vrot.slane %v1047, 2
        %v1050 = vrot.slane %v939, 7
        %v1051 = vsel %vm1000, %v1049, %v1050
        %v1052 = vrot.slane %v1050, 2
        %v1053 = vrot.slane %v940, 7
        %v1054 = vrot.slane %v1053, 2
        %v1055 = vrot.slane %v941, 7
        %v1056 = vsel %vm1000, %v1054, %v1055
        %v1057 = vrot.slane %v1055, 2
        %v1058 = vrot.slane %v942, 7
        %v1059 = vsel %vm1000, %v1057, %v1058
        %v1060 = vrot.slane %v1058, 2
        %v1061 = vrot.slane %v943, 7
        %v1062 = vsel %vm1000, %v1060, %v1061
        %v1063 = vrot.slane %v1061, 2
        %v1064 = vrot.slane %v944, 7
        %v1065 = vsel %vm1000, %v1063, %v1064
        %v1066 = vrot.slane %v1064, 2
        %v1067 = vrot.slane %v945, 7
        %v1068 = vsel %vm1000, %v1066, %v1067
        %v1069 = vrot.slane %v1067, 2
        %v1070 = vrot.slane %v946, 7
        %v1071 = vsel %vm1000, %v1069, %v1070
        %v1072 = vrot.slane %v1070, 2
        %v1073 = vrot.slane %v947, 7
        %v1074 = vsel %vm1000, %v1072, %v1073
        %v1075 = vrot.slane %v1073, 2
        %v1076 = vrot.slane %v948, 7
        %v1077 = vsel %vm1000, %v1075, %v1076
        %v1078 = vrot.slane %v1076, 2
        %v1079 = vrot.slane %v949, 7
        %v1080 = vrot.slane %v1079, 2
        %v1081 = vrot.slane %v950, 7
        %v1082 = vsel %vm1000, %v1080, %v1081
        %v1083 = vrot.slane %v1081, 2
        %v1084 = vrot.slane %v951, 7
        %v1085 = vsel %vm1000, %v1083, %v1084
        %v1086 = vrot.slane %v1084, 2
        %v1087 = vrot.slane %v952, 7
        %v1088 = vsel %vm1000, %v1086, %v1087
        %v1089 = vrot.slane %v1087, 2
        %v1090 = vrot.slane %v953, 7
        %v1091 = vsel %vm1000, %v1089, %v1090
        %v1092 = vrot.slane %v1090, 2
        %v1093 = vrot.slane %v954, 7
        %v1094 = vsel %vm1000, %v1092, %v1093
        %v1095 = vrot.slane %v1093, 2
        %v1096 = vrot.slane %v955, 7
        %v1097 = vsel %vm1000, %v1095, %v1096
        %v1098 = vrot.slane %v1096, 2
        %v1099 = vrot.slane %v956, 7
        %v1100 = vsel %vm1000, %v1098, %v1099
        %v1101 = vrot.slane %v1099, 2
        %v1102 = vrot.slane %v957, 7
        %v1103 = vsel %vm1000, %v1101, %v1102
        %v1104 = vrot.slane %v1102, 2
        %v1141 = vadd.f32 %v886, %v1004
        %v1142 = vadd.f32 %v887, %v1007
        %v1143 = vadd.f32 %v888, %v1010
        %v1144 = vadd.f32 %v889, %v1013
        %v1145 = vadd.f32 %v890, %v1016
        %v1146 = vadd.f32 %v891, %v1019
        %v1147 = vadd.f32 %v892, %v1022
        %v1148 = vadd.f32 %v893, %v1025
        %v1149 = vadd.f32 %v894, %v1026
        %v1150 = vadd.f32 %v895, %v1030
        %v1151 = vadd.f32 %v896, %v1033
        %v1152 = vadd.f32 %v897, %v1036
        %v1153 = vadd.f32 %v898, %v1039
        %v1154 = vadd.f32 %v899, %v1042
        %v1155 = vadd.f32 %v900, %v1045
        %v1156 = vadd.f32 %v901, %v1048
        %v1157 = vadd.f32 %v902, %v1051
        %v1158 = vadd.f32 %v903, %v1052
        %v1159 = vadd.f32 %v904, %v1056
        %v1160 = vadd.f32 %v905, %v1059
        %v1161 = vadd.f32 %v906, %v1062
        %v1162 = vadd.f32 %v907, %v1065
        %v1163 = vadd.f32 %v908, %v1068
        %v1164 = vadd.f32 %v909, %v1071
        %v1165 = vadd.f32 %v910, %v1074
        %v1166 = vadd.f32 %v911, %v1077
        %v1167 = vadd.f32 %v912, %v1078
        %v1168 = vadd.f32 %v913, %v1082
        %v1169 = vadd.f32 %v914, %v1085
        %v1170 = vadd.f32 %v915, %v1088
        %v1171 = vadd.f32 %v916, %v1091
        %v1172 = vadd.f32 %v917, %v1094
        %v1173 = vadd.f32 %v918, %v1097
        %v1174 = vadd.f32 %v919, %v1100
        %v1175 = vadd.f32 %v920, %v1103
        %v1176 = vadd.f32 %v921, %v1104
        %v1213 = vrot.slane %v886, 7
        %v1214 = vrot.slane %v1213, 2
        %v1215 = vrot.slane %v887, 7
        %v1216 = vsel %vm1000, %v1214, %v1215
        %v1217 = vrot.slane %v1215, 2
        %v1218 = vrot.slane %v888, 7
        %v1219 = vsel %vm1000, %v1217, %v1218
        %v1220 = vrot.slane %v1218, 2
        %v1221 = vrot.slane %v889, 7
        %v1222 = vsel %vm1000, %v1220, %v1221
        %v1223 = vrot.slane %v1221, 2
        %v1224 = vrot.slane %v890, 7
        %v1225 = vsel %vm1000, %v1223, %v1224
        %v1226 = vrot.slane %v1224, 2
        %v1227 = vrot.slane %v891, 7
        %v1228 = vsel %vm1000, %v1226, %v1227
        %v1229 = vrot.slane %v1227, 2
        %v1230 = vrot.slane %v892, 7
        %v1231 = vsel %vm1000, %v1229, %v1230
        %v1232 = vrot.slane %v1230, 2
        %v1233 = vrot.slane %v893, 7
        %v1234 = vsel %vm1000, %v1232, %v1233
        %v1235 = vrot.slane %v1233, 2
        %v1236 = vrot.slane %v894, 7
        %v1237 = vsel %vm1000, %v1235, %v1236
        %v1238 = vrot.slane %v1236, 2
        %v1239 = vrot.slane %v895, 7
        %v1240 = vrot.slane %v1239, 2
        %v1241 = vrot.slane %v896, 7
        %v1242 = vsel %vm1000, %v1240, %v1241
        %v1243 = vrot.slane %v1241, 2
        %v1244 = vrot.slane %v897, 7
        %v1245 = vsel %vm1000, %v1243, %v1244
        %v1246 = vrot.slane %v1244, 2
        %v1247 = vrot.slane %v898, 7
        %v1248 = vsel %vm1000, %v1246, %v1247
        %v1249 = vrot.slane %v1247, 2
        %v1250 = vrot.slane %v899, 7
        %v1251 = vsel %vm1000, %v1249, %v1250
        %v1252 = vrot.slane %v1250, 2
        %v1253 = vrot.slane %v900, 7
        %v1254 = vsel %vm1000, %v1252, %v1253
        %v1255 = vrot.slane %v1253, 2
        %v1256 = vrot.slane %v901, 7
        %v1257 = vsel %vm1000, %v1255, %v1256
        %v1258 = vrot.slane %v1256, 2
        %v1259 = vrot.slane %v902, 7
        %v1260 = vsel %vm1000, %v1258, %v1259
        %v1261 = vrot.slane %v1259, 2
        %v1262 = vrot.slane %v903, 7
        %v1263 = vsel %vm1000, %v1261, %v1262
        %v1264 = vrot.slane %v1262, 2
        %v1265 = vrot.slane %v904, 7
        %v1266 = vrot.slane %v1265, 2
        %v1267 = vrot.slane %v905, 7
        %v1268 = vsel %vm1000, %v1266, %v1267
        %v1269 = vrot.slane %v1267, 2
        %v1270 = vrot.slane %v906, 7
        %v1271 = vsel %vm1000, %v1269, %v1270
        %v1272 = vrot.slane %v1270, 2
        %v1273 = vrot.slane %v907, 7
        %v1274 = vsel %vm1000, %v1272, %v1273
        %v1275 = vrot.slane %v1273, 2
        %v1276 = vrot.slane %v908, 7
        %v1277 = vsel %vm1000, %v1275, %v1276
        %v1278 = vrot.slane %v1276, 2
        %v1279 = vrot.slane %v909, 7
        %v1280 = vsel %vm1000, %v1278, %v1279
        %v1281 = vrot.slane %v1279, 2
        %v1282 = vrot.slane %v910, 7
        %v1283 = vsel %vm1000, %v1281, %v1282
        %v1284 = vrot.slane %v1282, 2
        %v1285 = vrot.slane %v911, 7
        %v1286 = vsel %vm1000, %v1284, %v1285
        %v1287 = vrot.slane %v1285, 2
        %v1288 = vrot.slane %v912, 7
        %v1289 = vsel %vm1000, %v1287, %v1288
        %v1290 = vrot.slane %v1288, 2
        %v1291 = vrot.slane %v913, 7
        %v1292 = vrot.slane %v1291, 2
        %v1293 = vrot.slane %v914, 7
        %v1294 = vsel %vm1000, %v1292, %v1293
        %v1295 = vrot.slane %v1293, 2
        %v1296 = vrot.slane %v915, 7
        %v1297 = vsel %vm1000, %v1295, %v1296
        %v1298 = vrot.slane %v1296, 2
        %v1299 = vrot.slane %v916, 7
        %v1300 = vsel %vm1000, %v1298, %v1299
        %v1301 = vrot.slane %v1299, 2
        %v1302 = vrot.slane %v917, 7
        %v1303 = vsel %vm1000, %v1301, %v1302
        %v1304 = vrot.slane %v1302, 2
        %v1305 = vrot.slane %v918, 7
        %v1306 = vsel %vm1000, %v1304, %v1305
        %v1307 = vrot.slane %v1305, 2
        %v1308 = vrot.slane %v919, 7
        %v1309 = vsel %vm1000, %v1307, %v1308
        %v1310 = vrot.slane %v1308, 2
        %v1311 = vrot.slane %v920, 7
        %v1312 = vsel %vm1000, %v1310, %v1311
        %v1313 = vrot.slane %v1311, 2
        %v1314 = vrot.slane %v921, 7
        %v1315 = vsel %vm1000, %v1313, %v1314
        %v1316 = vrot.slane %v1314, 2
        %v1353 = vadd.f32 %v922, %v1216
        %v1354 = vadd.f32 %v923, %v1219
        %v1355 = vadd.f32 %v924, %v1222
        %v1356 = vadd.f32 %v925, %v1225
        %v1357 = vadd.f32 %v926, %v1228
        %v1358 = vadd.f32 %v927, %v1231
        %v1359 = vadd.f32 %v928, %v1234
        %v1360 = vadd.f32 %v929, %v1237
        %v1361 = vadd.f32 %v930, %v1238
        %v1362 = vadd.f32 %v931, %v1242
        %v1363 = vadd.f32 %v932, %v1245
        %v1364 = vadd.f32 %v933, %v1248
        %v1365 = vadd.f32 %v934, %v1251
        %v1366 = vadd.f32 %v935, %v1254
        %v1367 = vadd.f32 %v936, %v1257
        %v1368 = vadd.f32 %v937, %v1260
        %v1369 = vadd.f32 %v938, %v1263
        %v1370 = vadd.f32 %v939, %v1264
        %v1371 = vadd.f32 %v940, %v1268
        %v1372 = vadd.f32 %v941, %v1271
        %v1373 = vadd.f32 %v942, %v1274
        %v1374 = vadd.f32 %v943, %v1277
        %v1375 = vadd.f32 %v944, %v1280
        %v1376 = vadd.f32 %v945, %v1283
        %v1377 = vadd.f32 %v946, %v1286
        %v1378 = vadd.f32 %v947, %v1289
        %v1379 = vadd.f32 %v948, %v1290
        %v1380 = vadd.f32 %v949, %v1294
        %v1381 = vadd.f32 %v950, %v1297
        %v1382 = vadd.f32 %v951, %v1300
        %v1383 = vadd.f32 %v952, %v1303
        %v1384 = vadd.f32 %v953, %v1306
        %v1385 = vadd.f32 %v954, %v1309
        %v1386 = vadd.f32 %v955, %v1312
        %v1387 = vadd.f32 %v956, %v1315
        %v1388 = vadd.f32 %v957, %v1316
        %v1426 = vunpack.c.l.s4 1966171168
        %v1427 = vunpack.c.0.s8 %v1426
        %v1428 = vlaneseq
        %v1429 = vshrl.u32 %v1428, 7
        %v1430 = vsub.s32 %v1427, %v1429
        %v1431 = vrot.slane %v1141, %v1430
        %v1432 = vcombine.high %v1431, %v1431
        %v1434 = vunpack.c.l.s4 1966171168
        %v1435 = vunpack.c.0.s8 %v1434
        %v1436 = vlaneseq
        %v1437 = vshrl.u32 %v1436, 7
        %v1438 = vsub.s32 %v1435, %v1437
        %v1439 = vrot.slane %v1142, %v1438
        %v1440 = vcombine.high %v1439, %v1439
        %v1442 = vunpack.c.l.s4 1966171168
        %v1443 = vunpack.c.0.s8 %v1442
        %v1444 = vlaneseq
        %v1445 = vshrl.u32 %v1444, 7
        %v1446 = vsub.s32 %v1443, %v1445
        %v1447 = vrot.slane %v1143, %v1446
        %v1448 = vcombine.high %v1447, %v1447
        %v1450 = vunpack.c.l.s4 1966171168
        %v1451 = vunpack.c.0.s8 %v1450
        %v1452 = vlaneseq
        %v1453 = vshrl.u32 %v1452, 7
        %v1454 = vsub.s32 %v1451, %v1453
        %v1455 = vrot.slane %v1144, %v1454
        %v1456 = vcombine.high %v1455, %v1455
        %v1458 = vunpack.c.l.s4 1966171168
        %v1459 = vunpack.c.0.s8 %v1458
        %v1460 = vlaneseq
        %v1461 = vshrl.u32 %v1460, 7
        %v1462 = vsub.s32 %v1459, %v1461
        %v1463 = vrot.slane %v1145, %v1462
        %v1464 = vcombine.high %v1463, %v1463
        %v1466 = vunpack.c.l.s4 1966171168
        %v1467 = vunpack.c.0.s8 %v1466
        %v1468 = vlaneseq
        %v1469 = vshrl.u32 %v1468, 7
        %v1470 = vsub.s32 %v1467, %v1469
        %v1471 = vrot.slane %v1146, %v1470
        %v1472 = vcombine.high %v1471, %v1471
        %v1474 = vunpack.c.l.s4 1966171168
        %v1475 = vunpack.c.0.s8 %v1474
        %v1476 = vlaneseq
        %v1477 = vshrl.u32 %v1476, 7
        %v1478 = vsub.s32 %v1475, %v1477
        %v1479 = vrot.slane %v1147, %v1478
        %v1480 = vcombine.high %v1479, %v1479
        %v1482 = vunpack.c.l.s4 1966171168
        %v1483 = vunpack.c.0.s8 %v1482
        %v1484 = vlaneseq
        %v1485 = vshrl.u32 %v1484, 7
        %v1486 = vsub.s32 %v1483, %v1485
        %v1487 = vrot.slane %v1148, %v1486
        %v1488 = vcombine.high %v1487, %v1487
        %v1490 = vunpack.c.l.s4 1966171168
        %v1491 = vunpack.c.0.s8 %v1490
        %v1492 = vlaneseq
        %v1493 = vshrl.u32 %v1492, 7
        %v1494 = vsub.s32 %v1491, %v1493
        %v1495 = vrot.slane %v1149, %v1494
        %v1497 = vunpack.c.l.s4 1966171168
        %v1498 = vunpack.c.0.s8 %v1497
        %v1499 = vlaneseq
        %v1500 = vshrl.u32 %v1499, 7
        %v1501 = vsub.s32 %v1498, %v1500
        %v1502 = vrot.slane %v1150, %v1501
        %v1503 = vcombine.high %v1502, %v1502
        %v1505 = vunpack.c.l.s4 1966171168
        %v1506 = vunpack.c.0.s8 %v1505
        %v1507 = vlaneseq
        %v1508 = vshrl.u32 %v1507, 7
        %v1509 = vsub.s32 %v1506, %v1508
        %v1510 = vrot.slane %v1151, %v1509
        %v1511 = vcombine.high %v1510, %v1510
        %v1513 = vunpack.c.l.s4 1966171168
        %v1514 = vunpack.c.0.s8 %v1513
        %v1515 = vlaneseq
        %v1516 = vshrl.u32 %v1515, 7
        %v1517 = vsub.s32 %v1514, %v1516
        %v1518 = vrot.slane %v1152, %v1517
        %v1519 = vcombine.high %v1518, %v1518
        %v1521 = vunpack.c.l.s4 1966171168
        %v1522 = vunpack.c.0.s8 %v1521
        %v1523 = vlaneseq
        %v1524 = vshrl.u32 %v1523, 7
        %v1525 = vsub.s32 %v1522, %v1524
        %v1526 = vrot.slane %v1153, %v1525
        %v1527 = vcombine.high %v1526, %v1526
        %v1529 = vunpack.c.l.s4 1966171168
        %v1530 = vunpack.c.0.s8 %v1529
        %v1531 = vlaneseq
        %v1532 = vshrl.u32 %v1531, 7
        %v1533 = vsub.s32 %v1530, %v1532
        %v1534 = vrot.slane %v1154, %v1533
        %v1535 = vcombine.high %v1534, %v1534
        %v1537 = vunpack.c.l.s4 1966171168
        %v1538 = vunpack.c.0.s8 %v1537
        %v1539 = vlaneseq
        %v1540 = vshrl.u32 %v1539, 7
        %v1541 = vsub.s32 %v1538, %v1540
        %v1542 = vrot.slane %v1155, %v1541
        %v1543 = vcombine.high %v1542, %v1542
        %v1545 = vunpack.c.l.s4 1966171168
        %v1546 = vunpack.c.0.s8 %v1545
        %v1547 = vlaneseq
        %v1548 = vshrl.u32 %v1547, 7
        %v1549 = vsub.s32 %v1546, %v1548
        %v1550 = vrot.slane %v1156, %v1549
        %v1551 = vcombine.high %v1550, %v1550
        %v1553 = vunpack.c.l.s4 1966171168
        %v1554 = vunpack.c.0.s8 %v1553
        %v1555 = vlaneseq
        %v1556 = vshrl.u32 %v1555, 7
        %v1557 = vsub.s32 %v1554, %v1556
        %v1558 = vrot.slane %v1157, %v1557
        %v1559 = vcombine.high %v1558, %v1558
        %v1561 = vunpack.c.l.s4 1966171168
        %v1562 = vunpack.c.0.s8 %v1561
        %v1563 = vlaneseq
        %v1564 = vshrl.u32 %v1563, 7
        %v1565 = vsub.s32 %v1562, %v1564
        %v1566 = vrot.slane %v1158, %v1565
        %v1568 = vunpack.c.l.s4 1966171168
        %v1569 = vunpack.c.0.s8 %v1568
        %v1570 = vlaneseq
        %v1571 = vshrl.u32 %v1570, 7
        %v1572 = vsub.s32 %v1569, %v1571
        %v1573 = vrot.slane %v1159, %v1572
        %v1574 = vcombine.high %v1573, %v1573
        %v1576 = vunpack.c.l.s4 1966171168
        %v1577 = vunpack.c.0.s8 %v1576
        %v1578 = vlaneseq
        %v1579 = vshrl.u32 %v1578, 7
        %v1580 = vsub.s32 %v1577, %v1579
        %v1581 = vrot.slane %v1160, %v1580
        %v1582 = vcombine.high %v1581, %v1581
        %v1584 = vunpack.c.l.s4 1966171168
        %v1585 = vunpack.c.0.s8 %v1584
        %v1586 = vlaneseq
        %v1587 = vshrl.u32 %v1586, 7
        %v1588 = vsub.s32 %v1585, %v1587
        %v1589 = vrot.slane %v1161, %v1588
        %v1590 = vcombine.high %v1589, %v1589
        %v1592 = vunpack.c.l.s4 1966171168
        %v1593 = vunpack.c.0.s8 %v1592
        %v1594 = vlaneseq
        %v1595 = vshrl.u32 %v1594, 7
        %v1596 = vsub.s32 %v1593, %v1595
        %v1597 = vrot.slane %v1162, %v1596
        %v1598 = vcombine.high %v1597, %v1597
        %v1600 = vunpack.c.l.s4 1966171168
        %v1601 = vunpack.c.0.s8 %v1600
        %v1602 = vlaneseq
        %v1603 = vshrl.u32 %v1602, 7
        %v1604 = vsub.s32 %v1601, %v1603
        %v1605 = vrot.slane %v1163, %v1604
        %v1606 = vcombine.high %v1605, %v1605
        %v1608 = vunpack.c.l.s4 1966171168
        %v1609 = vunpack.c.0.s8 %v1608
        %v1610 = vlaneseq
        %v1611 = vshrl.u32 %v1610, 7
        %v1612 = vsub.s32 %v1609, %v1611
        %v1613 = vrot.slane %v1164, %v1612
        %v1614 = vcombine.high %v1613, %v1613
        %v1616 = vunpack.c.l.s4 1966171168
        %v1617 = vunpack.c.0.s8 %v1616
        %v1618 = vlaneseq
        %v1619 = vshrl.u32 %v1618, 7
        %v1620 = vsub.s32 %v1617, %v1619
        %v1621 = vrot.slane %v1165, %v1620
        %v1622 = vcombine.high %v1621, %v1621
        %v1624 = vunpack.c.l.s4 1966171168
        %v1625 = vunpack.c.0.s8 %v1624
        %v1626 = vlaneseq
        %v1627 = vshrl.u32 %v1626, 7
        %v1628 = vsub.s32 %v1625, %v1627
        %v1629 = vrot.slane %v1166, %v1628
        %v1630 = vcombine.high %v1629, %v1629
        %v1632 = vunpack.c.l.s4 1966171168
        %v1633 = vunpack.c.0.s8 %v1632
        %v1634 = vlaneseq
        %v1635 = vshrl.u32 %v1634, 7
        %v1636 = vsub.s32 %v1633, %v1635
        %v1637 = vrot.slane %v1167, %v1636
        %v1639 = vunpack.c.l.s4 1966171168
        %v1640 = vunpack.c.0.s8 %v1639
        %v1641 = vlaneseq
        %v1642 = vshrl.u32 %v1641, 7
        %v1643 = vsub.s32 %v1640, %v1642
        %v1644 = vrot.slane %v1168, %v1643
        %v1645 = vcombine.high %v1644, %v1644
        %v1647 = vunpack.c.l.s4 1966171168
        %v1648 = vunpack.c.0.s8 %v1647
        %v1649 = vlaneseq
        %v1650 = vshrl.u32 %v1649, 7
        %v1651 = vsub.s32 %v1648, %v1650
        %v1652 = vrot.slane %v1169, %v1651
        %v1653 = vcombine.high %v1652, %v1652
        %v1655 = vunpack.c.l.s4 1966171168
        %v1656 = vunpack.c.0.s8 %v1655
        %v1657 = vlaneseq
        %v1658 = vshrl.u32 %v1657, 7
        %v1659 = vsub.s32 %v1656, %v1658
        %v1660 = vrot.slane %v1170, %v1659
        %v1661 = vcombine.high %v1660, %v1660
        %v1663 = vunpack.c.l.s4 1966171168
        %v1664 = vunpack.c.0.s8 %v1663
        %v1665 = vlaneseq
        %v1666 = vshrl.u32 %v1665, 7
        %v1667 = vsub.s32 %v1664, %v1666
        %v1668 = vrot.slane %v1171, %v1667
        %v1669 = vcombine.high %v1668, %v1668
        %v1671 = vunpack.c.l.s4 1966171168
        %v1672 = vunpack.c.0.s8 %v1671
        %v1673 = vlaneseq
        %v1674 = vshrl.u32 %v1673, 7
        %v1675 = vsub.s32 %v1672, %v1674
        %v1676 = vrot.slane %v1172, %v1675
        %v1677 = vcombine.high %v1676, %v1676
        %v1679 = vunpack.c.l.s4 1966171168
        %v1680 = vunpack.c.0.s8 %v1679
        %v1681 = vlaneseq
        %v1682 = vshrl.u32 %v1681, 7
        %v1683 = vsub.s32 %v1680, %v1682
        %v1684 = vrot.slane %v1173, %v1683
        %v1685 = vcombine.high %v1684, %v1684
        %v1687 = vunpack.c.l.s4 1966171168
        %v1688 = vunpack.c.0.s8 %v1687
        %v1689 = vlaneseq
        %v1690 = vshrl.u32 %v1689, 7
        %v1691 = vsub.s32 %v1688, %v1690
        %v1692 = vrot.slane %v1174, %v1691
        %v1693 = vcombine.high %v1692, %v1692
        %v1695 = vunpack.c.l.s4 1966171168
        %v1696 = vunpack.c.0.s8 %v1695
        %v1697 = vlaneseq
        %v1698 = vshrl.u32 %v1697, 7
        %v1699 = vsub.s32 %v1696, %v1698
        %v1700 = vrot.slane %v1175, %v1699
        %v1701 = vcombine.high %v1700, %v1700
        %v1703 = vunpack.c.l.s4 1966171168
        %v1704 = vunpack.c.0.s8 %v1703
        %v1705 = vlaneseq
        %v1706 = vshrl.u32 %v1705, 7
        %v1707 = vsub.s32 %v1704, %v1706
        %v1708 = vrot.slane %v1176, %v1707
        %v1814 = vunpack.c.l.s4 1966171168
        %v1815 = vunpack.c.0.s8 %v1814
        %v1816 = vlaneseq
        %v1817 = vshrl.u32 %v1816, 7
        %v1818 = vsub.s32 %v1815, %v1817
        %v1819 = vrot.slane %v1353, %v1818
        %v1820 = vcombine.high %v1819, %v1819
        %v1822 = vunpack.c.l.s4 1966171168
        %v1823 = vunpack.c.0.s8 %v1822
        %v1824 = vlaneseq
        %v1825 = vshrl.u32 %v1824, 7
        %v1826 = vsub.s32 %v1823, %v1825
        %v1827 = vrot.slane %v1354, %v1826
        %v1828 = vcombine.high %v1827, %v1827
        %v1830 = vunpack.c.l.s4 1966171168
        %v1831 = vunpack.c.0.s8 %v1830
        %v1832 = vlaneseq
        %v1833 = vshrl.u32 %v1832, 7
        %v1834 = vsub.s32 %v1831, %v1833
        %v1835 = vrot.slane %v1355, %v1834
        %v1836 = vcombine.high %v1835, %v1835
        %v1838 = vunpack.c.l.s4 1966171168
        %v1839 = vunpack.c.0.s8 %v1838
        %v1840 = vlaneseq
        %v1841 = vshrl.u32 %v1840, 7
        %v1842 = vsub.s32 %v1839, %v1841
        %v1843 = vrot.slane %v1356, %v1842
        %v1844 = vcombine.high %v1843, %v1843
        %v1846 = vunpack.c.l.s4 1966171168
        %v1847 = vunpack.c.0.s8 %v1846
        %v1848 = vlaneseq
        %v1849 = vshrl.u32 %v1848, 7
        %v1850 = vsub.s32 %v1847, %v1849
        %v1851 = vrot.slane %v1357, %v1850
        %v1852 = vcombine.high %v1851, %v1851
        %v1854 = vunpack.c.l.s4 1966171168
        %v1855 = vunpack.c.0.s8 %v1854
        %v1856 = vlaneseq
        %v1857 = vshrl.u32 %v1856, 7
        %v1858 = vsub.s32 %v1855, %v1857
        %v1859 = vrot.slane %v1358, %v1858
        %v1860 = vcombine.high %v1859, %v1859
        %v1862 = vunpack.c.l.s4 1966171168
        %v1863 = vunpack.c.0.s8 %v1862
        %v1864 = vlaneseq
        %v1865 = vshrl.u32 %v1864, 7
        %v1866 = vsub.s32 %v1863, %v1865
        %v1867 = vrot.slane %v1359, %v1866
        %v1868 = vcombine.high %v1867, %v1867
        %v1870 = vunpack.c.l.s4 1966171168
        %v1871 = vunpack.c.0.s8 %v1870
        %v1872 = vlaneseq
        %v1873 = vshrl.u32 %v1872, 7
        %v1874 = vsub.s32 %v1871, %v1873
        %v1875 = vrot.slane %v1360, %v1874
        %v1876 = vcombine.high %v1875, %v1875
        %v1878 = vunpack.c.l.s4 1966171168
        %v1879 = vunpack.c.0.s8 %v1878
        %v1880 = vlaneseq
        %v1881 = vshrl.u32 %v1880, 7
        %v1882 = vsub.s32 %v1879, %v1881
        %v1883 = vrot.slane %v1361, %v1882
        %v1885 = vunpack.c.l.s4 1966171168
        %v1886 = vunpack.c.0.s8 %v1885
        %v1887 = vlaneseq
        %v1888 = vshrl.u32 %v1887, 7
        %v1889 = vsub.s32 %v1886, %v1888
        %v1890 = vrot.slane %v1362, %v1889
        %v1891 = vcombine.high %v1890, %v1890
        %v1893 = vunpack.c.l.s4 1966171168
        %v1894 = vunpack.c.0.s8 %v1893
        %v1895 = vlaneseq
        %v1896 = vshrl.u32 %v1895, 7
        %v1897 = vsub.s32 %v1894, %v1896
        %v1898 = vrot.slane %v1363, %v1897
        %v1899 = vcombine.high %v1898, %v1898
        %v1901 = vunpack.c.l.s4 1966171168
        %v1902 = vunpack.c.0.s8 %v1901
        %v1903 = vlaneseq
        %v1904 = vshrl.u32 %v1903, 7
        %v1905 = vsub.s32 %v1902, %v1904
        %v1906 = vrot.slane %v1364, %v1905
        %v1907 = vcombine.high %v1906, %v1906
        %v1909 = vunpack.c.l.s4 1966171168
        %v1910 = vunpack.c.0.s8 %v1909
        %v1911 = vlaneseq
        %v1912 = vshrl.u32 %v1911, 7
        %v1913 = vsub.s32 %v1910, %v1912
        %v1914 = vrot.slane %v1365, %v1913
        %v1915 = vcombine.high %v1914, %v1914
        %v1917 = vunpack.c.l.s4 1966171168
        %v1918 = vunpack.c.0.s8 %v1917
        %v1919 = vlaneseq
        %v1920 = vshrl.u32 %v1919, 7
        %v1921 = vsub.s32 %v1918, %v1920
        %v1922 = vrot.slane %v1366, %v1921
        %v1923 = vcombine.high %v1922, %v1922
        %v1925 = vunpack.c.l.s4 1966171168
        %v1926 = vunpack.c.0.s8 %v1925
        %v1927 = vlaneseq
        %v1928 = vshrl.u32 %v1927, 7
        %v1929 = vsub.s32 %v1926, %v1928
        %v1930 = vrot.slane %v1367, %v1929
        %v1931 = vcombine.high %v1930, %v1930
        %v1933 = vunpack.c.l.s4 1966171168
        %v1934 = vunpack.c.0.s8 %v1933
        %v1935 = vlaneseq
        %v1936 = vshrl.u32 %v1935, 7
        %v1937 = vsub.s32 %v1934, %v1936
        %v1938 = vrot.slane %v1368, %v1937
        %v1939 = vcombine.high %v1938, %v1938
        %v1941 = vunpack.c.l.s4 1966171168
        %v1942 = vunpack.c.0.s8 %v1941
        %v1943 = vlaneseq
        %v1944 = vshrl.u32 %v1943, 7
        %v1945 = vsub.s32 %v1942, %v1944
        %v1946 = vrot.slane %v1369, %v1945
        %v1947 = vcombine.high %v1946, %v1946
        %v1949 = vunpack.c.l.s4 1966171168
        %v1950 = vunpack.c.0.s8 %v1949
        %v1951 = vlaneseq
        %v1952 = vshrl.u32 %v1951, 7
        %v1953 = vsub.s32 %v1950, %v1952
        %v1954 = vrot.slane %v1370, %v1953
        %v1956 = vunpack.c.l.s4 1966171168
        %v1957 = vunpack.c.0.s8 %v1956
        %v1958 = vlaneseq
        %v1959 = vshrl.u32 %v1958, 7
        %v1960 = vsub.s32 %v1957, %v1959
        %v1961 = vrot.slane %v1371, %v1960
        %v1962 = vcombine.high %v1961, %v1961
        %v1964 = vunpack.c.l.s4 1966171168
        %v1965 = vunpack.c.0.s8 %v1964
        %v1966 = vlaneseq
        %v1967 = vshrl.u32 %v1966, 7
        %v1968 = vsub.s32 %v1965, %v1967
        %v1969 = vrot.slane %v1372, %v1968
        %v1970 = vcombine.high %v1969, %v1969
        %v1972 = vunpack.c.l.s4 1966171168
        %v1973 = vunpack.c.0.s8 %v1972
        %v1974 = vlaneseq
        %v1975 = vshrl.u32 %v1974, 7
        %v1976 = vsub.s32 %v1973, %v1975
        %v1977 = vrot.slane %v1373, %v1976
        %v1978 = vcombine.high %v1977, %v1977
        %v1980 = vunpack.c.l.s4 1966171168
        %v1981 = vunpack.c.0.s8 %v1980
        %v1982 = vlaneseq
        %v1983 = vshrl.u32 %v1982, 7
        %v1984 = vsub.s32 %v1981, %v1983
        %v1985 = vrot.slane %v1374, %v1984
        %v1986 = vcombine.high %v1985, %v1985
        %v1988 = vunpack.c.l.s4 1966171168
        %v1989 = vunpack.c.0.s8 %v1988
        %v1990 = vlaneseq
        %v1991 = vshrl.u32 %v1990, 7
        %v1992 = vsub.s32 %v1989, %v1991
        %v1993 = vrot.slane %v1375, %v1992
        %v1994 = vcombine.high %v1993, %v1993
        %v1996 = vunpack.c.l.s4 1966171168
        %v1997 = vunpack.c.0.s8 %v1996
        %v1998 = vlaneseq
        %v1999 = vshrl.u32 %v1998, 7
        %v2000 = vsub.s32 %v1997, %v1999
        %v2001 = vrot.slane %v1376, %v2000
        %v2002 = vcombine.high %v2001, %v2001
        %v2004 = vunpack.c.l.s4 1966171168
        %v2005 = vunpack.c.0.s8 %v2004
        %v2006 = vlaneseq
        %v2007 = vshrl.u32 %v2006, 7
        %v2008 = vsub.s32 %v2005, %v2007
        %v2009 = vrot.slane %v1377, %v2008
        %v2010 = vcombine.high %v2009, %v2009
        %v2012 = vunpack.c.l.s4 1966171168
        %v2013 = vunpack.c.0.s8 %v2012
        %v2014 = vlaneseq
        %v2015 = vshrl.u32 %v2014, 7
        %v2016 = vsub.s32 %v2013, %v2015
        %v2017 = vrot.slane %v1378, %v2016
        %v2018 = vcombine.high %v2017, %v2017
        %v2020 = vunpack.c.l.s4 1966171168
        %v2021 = vunpack.c.0.s8 %v2020
        %v2022 = vlaneseq
        %v2023 = vshrl.u32 %v2022, 7
        %v2024 = vsub.s32 %v2021, %v2023
        %v2025 = vrot.slane %v1379, %v2024
        %v2027 = vunpack.c.l.s4 1966171168
        %v2028 = vunpack.c.0.s8 %v2027
        %v2029 = vlaneseq
        %v2030 = vshrl.u32 %v2029, 7
        %v2031 = vsub.s32 %v2028, %v2030
        %v2032 = vrot.slane %v1380, %v2031
        %v2033 = vcombine.high %v2032, %v2032
        %v2035 = vunpack.c.l.s4 1966171168
        %v2036 = vunpack.c.0.s8 %v2035
        %v2037 = vlaneseq
        %v2038 = vshrl.u32 %v2037, 7
        %v2039 = vsub.s32 %v2036, %v2038
        %v2040 = vrot.slane %v1381, %v2039
        %v2041 = vcombine.high %v2040, %v2040
        %v2043 = vunpack.c.l.s4 1966171168
        %v2044 = vunpack.c.0.s8 %v2043
        %v2045 = vlaneseq
        %v2046 = vshrl.u32 %v2045, 7
        %v2047 = vsub.s32 %v2044, %v2046
        %v2048 = vrot.slane %v1382, %v2047
        %v2049 = vcombine.high %v2048, %v2048
        %v2051 = vunpack.c.l.s4 1966171168
        %v2052 = vunpack.c.0.s8 %v2051
        %v2053 = vlaneseq
        %v2054 = vshrl.u32 %v2053, 7
        %v2055 = vsub.s32 %v2052, %v2054
        %v2056 = vrot.slane %v1383, %v2055
        %v2057 = vcombine.high %v2056, %v2056
        %v2059 = vunpack.c.l.s4 1966171168
        %v2060 = vunpack.c.0.s8 %v2059
        %v2061 = vlaneseq
        %v2062 = vshrl.u32 %v2061, 7
        %v2063 = vsub.s32 %v2060, %v2062
        %v2064 = vrot.slane %v1384, %v2063
        %v2065 = vcombine.high %v2064, %v2064
        %v2067 = vunpack.c.l.s4 1966171168
        %v2068 = vunpack.c.0.s8 %v2067
        %v2069 = vlaneseq
        %v2070 = vshrl.u32 %v2069, 7
        %v2071 = vsub.s32 %v2068, %v2070
        %v2072 = vrot.slane %v1385, %v2071
        %v2073 = vcombine.high %v2072, %v2072
        %v2075 = vunpack.c.l.s4 1966171168
        %v2076 = vunpack.c.0.s8 %v2075
        %v2077 = vlaneseq
        %v2078 = vshrl.u32 %v2077, 7
        %v2079 = vsub.s32 %v2076, %v2078
        %v2080 = vrot.slane %v1386, %v2079
        %v2081 = vcombine.high %v2080, %v2080
        %v2083 = vunpack.c.l.s4 1966171168
        %v2084 = vunpack.c.0.s8 %v2083
        %v2085 = vlaneseq
        %v2086 = vshrl.u32 %v2085, 7
        %v2087 = vsub.s32 %v2084, %v2086
        %v2088 = vrot.slane %v1387, %v2087
        %v2089 = vcombine.high %v2088, %v2088
        %v2091 = vunpack.c.l.s4 1966171168
        %v2092 = vunpack.c.0.s8 %v2091
        %v2093 = vlaneseq
        %v2094 = vshrl.u32 %v2093, 7
        %v2095 = vsub.s32 %v2092, %v2094
        %v2096 = vrot.slane %v1388, %v2095
        %v2097 = vlaneseq
        %v2098 = vshrl.u32 %v2097, 7
        %v2099 = vsub.s32 0, %v2098
        %v2100 = vrot.slane %v1819, %v2099
        %v2101 = vlaneseq
        %v2102 = vshrl.u32 %v2101, 7
        %v2103 = vsub.s32 0, %v2102
        %v2104 = vrot.slane %v1820, %v2103
        %v2105 = vlaneseq
        %v2106 = vshrl.u32 %v2105, 7
        %v2107 = vsub.s32 0, %v2106
        %v2108 = vrot.slane %v1827, %v2107
        %v2109 = vlaneseq
        %v2110 = vshrl.u32 %v2109, 7
        %v2111 = vsub.s32 0, %v2110
        %v2112 = vrot.slane %v1828, %v2111
        %v2113 = vlaneseq
        %v2114 = vshrl.u32 %v2113, 7
        %v2115 = vsub.s32 0, %v2114
        %v2116 = vrot.slane %v1835, %v2115
        %v2117 = vlaneseq
        %v2118 = vshrl.u32 %v2117, 7
        %v2119 = vsub.s32 0, %v2118
        %v2120 = vrot.slane %v1836, %v2119
        %v2121 = vlaneseq
        %v2122 = vshrl.u32 %v2121, 7
        %v2123 = vsub.s32 0, %v2122
        %v2124 = vrot.slane %v1843, %v2123
        %v2125 = vlaneseq
        %v2126 = vshrl.u32 %v2125, 7
        %v2127 = vsub.s32 0, %v2126
        %v2128 = vrot.slane %v1844, %v2127
        %v2129 = vlaneseq
        %v2130 = vshrl.u32 %v2129, 7
        %v2131 = vsub.s32 0, %v2130
        %v2132 = vrot.slane %v1851, %v2131
        %v2133 = vlaneseq
        %v2134 = vshrl.u32 %v2133, 7
        %v2135 = vsub.s32 0, %v2134
        %v2136 = vrot.slane %v1852, %v2135
        %v2137 = vlaneseq
        %v2138 = vshrl.u32 %v2137, 7
        %v2139 = vsub.s32 0, %v2138
        %v2140 = vrot.slane %v1859, %v2139
        %v2141 = vlaneseq
        %v2142 = vshrl.u32 %v2141, 7
        %v2143 = vsub.s32 0, %v2142
        %v2144 = vrot.slane %v1860, %v2143
        %v2145 = vlaneseq
        %v2146 = vshrl.u32 %v2145, 7
        %v2147 = vsub.s32 0, %v2146
        %v2148 = vrot.slane %v1867, %v2147
        %v2149 = vlaneseq
        %v2150 = vshrl.u32 %v2149, 7
        %v2151 = vsub.s32 0, %v2150
        %v2152 = vrot.slane %v1868, %v2151
        %v2153 = vlaneseq
        %v2154 = vshrl.u32 %v2153, 7
        %v2155 = vsub.s32 0, %v2154
        %v2156 = vrot.slane %v1875, %v2155
        %v2157 = vlaneseq
        %v2158 = vshrl.u32 %v2157, 7
        %v2159 = vsub.s32 0, %v2158
        %v2160 = vrot.slane %v1876, %v2159
        %v2161 = vlaneseq
        %v2162 = vshrl.u32 %v2161, 7
        %v2163 = vsub.s32 0, %v2162
        %v2164 = vrot.slane %v1883, %v2163
        %v2165 = vlaneseq
        %v2166 = vshrl.u32 %v2165, 7
        %v2167 = vsub.s32 0, %v2166
        %v2168 = vrot.slane %v1890, %v2167
        %v2169 = vlaneseq
        %v2170 = vshrl.u32 %v2169, 7
        %v2171 = vsub.s32 0, %v2170
        %v2172 = vrot.slane %v1891, %v2171
        %v2173 = vlaneseq
        %v2174 = vshrl.u32 %v2173, 7
        %v2175 = vsub.s32 0, %v2174
        %v2176 = vrot.slane %v1898, %v2175
        %v2177 = vlaneseq
        %v2178 = vshrl.u32 %v2177, 7
        %v2179 = vsub.s32 0, %v2178
        %v2180 = vrot.slane %v1899, %v2179
        %v2181 = vlaneseq
        %v2182 = vshrl.u32 %v2181, 7
        %v2183 = vsub.s32 0, %v2182
        %v2184 = vrot.slane %v1906, %v2183
        %v2185 = vlaneseq
        %v2186 = vshrl.u32 %v2185, 7
        %v2187 = vsub.s32 0, %v2186
        %v2188 = vrot.slane %v1907, %v2187
        %v2189 = vlaneseq
        %v2190 = vshrl.u32 %v2189, 7
        %v2191 = vsub.s32 0, %v2190
        %v2192 = vrot.slane %v1914, %v2191
        %v2193 = vlaneseq
        %v2194 = vshrl.u32 %v2193, 7
        %v2195 = vsub.s32 0, %v2194
        %v2196 = vrot.slane %v1915, %v2195
        %v2197 = vlaneseq
        %v2198 = vshrl.u32 %v2197, 7
        %v2199 = vsub.s32 0, %v2198
        %v2200 = vrot.slane %v1922, %v2199
        %v2201 = vlaneseq
        %v2202 = vshrl.u32 %v2201, 7
        %v2203 = vsub.s32 0, %v2202
        %v2204 = vrot.slane %v1923, %v2203
        %v2205 = vlaneseq
        %v2206 = vshrl.u32 %v2205, 7
        %v2207 = vsub.s32 0, %v2206
        %v2208 = vrot.slane %v1930, %v2207
        %v2209 = vlaneseq
        %v2210 = vshrl.u32 %v2209, 7
        %v2211 = vsub.s32 0, %v2210
        %v2212 = vrot.slane %v1931, %v2211
        %v2213 = vlaneseq
        %v2214 = vshrl.u32 %v2213, 7
        %v2215 = vsub.s32 0, %v2214
        %v2216 = vrot.slane %v1938, %v2215
        %v2217 = vlaneseq
        %v2218 = vshrl.u32 %v2217, 7
        %v2219 = vsub.s32 0, %v2218
        %v2220 = vrot.slane %v1939, %v2219
        %v2221 = vlaneseq
        %v2222 = vshrl.u32 %v2221, 7
        %v2223 = vsub.s32 0, %v2222
        %v2224 = vrot.slane %v1946, %v2223
        %v2225 = vlaneseq
        %v2226 = vshrl.u32 %v2225, 7
        %v2227 = vsub.s32 0, %v2226
        %v2228 = vrot.slane %v1947, %v2227
        %v2229 = vlaneseq
        %v2230 = vshrl.u32 %v2229, 7
        %v2231 = vsub.s32 0, %v2230
        %v2232 = vrot.slane %v1954, %v2231
        %v2233 = vlaneseq
        %v2234 = vshrl.u32 %v2233, 7
        %v2235 = vsub.s32 0, %v2234
        %v2236 = vrot.slane %v1961, %v2235
        %v2237 = vlaneseq
        %v2238 = vshrl.u32 %v2237, 7
        %v2239 = vsub.s32 0, %v2238
        %v2240 = vrot.slane %v1962, %v2239
        %v2241 = vlaneseq
        %v2242 = vshrl.u32 %v2241, 7
        %v2243 = vsub.s32 0, %v2242
        %v2244 = vrot.slane %v1969, %v2243
        %v2245 = vlaneseq
        %v2246 = vshrl.u32 %v2245, 7
        %v2247 = vsub.s32 0, %v2246
        %v2248 = vrot.slane %v1970, %v2247
        %v2249 = vlaneseq
        %v2250 = vshrl.u32 %v2249, 7
        %v2251 = vsub.s32 0, %v2250
        %v2252 = vrot.slane %v1977, %v2251
        %v2253 = vlaneseq
        %v2254 = vshrl.u32 %v2253, 7
        %v2255 = vsub.s32 0, %v2254
        %v2256 = vrot.slane %v1978, %v2255
        %v2257 = vlaneseq
        %v2258 = vshrl.u32 %v2257, 7
        %v2259 = vsub.s32 0, %v2258
        %v2260 = vrot.slane %v1985, %v2259
        %v2261 = vlaneseq
        %v2262 = vshrl.u32 %v2261, 7
        %v2263 = vsub.s32 0, %v2262
        %v2264 = vrot.slane %v1986, %v2263
        %v2265 = vlaneseq
        %v2266 = vshrl.u32 %v2265, 7
        %v2267 = vsub.s32 0, %v2266
        %v2268 = vrot.slane %v1993, %v2267
        %v2269 = vlaneseq
        %v2270 = vshrl.u32 %v2269, 7
        %v2271 = vsub.s32 0, %v2270
        %v2272 = vrot.slane %v1994, %v2271
        %v2273 = vlaneseq
        %v2274 = vshrl.u32 %v2273, 7
        %v2275 = vsub.s32 0, %v2274
        %v2276 = vrot.slane %v2001, %v2275
        %v2277 = vlaneseq
        %v2278 = vshrl.u32 %v2277, 7
        %v2279 = vsub.s32 0, %v2278
        %v2280 = vrot.slane %v2002, %v2279
        %v2281 = vlaneseq
        %v2282 = vshrl.u32 %v2281, 7
        %v2283 = vsub.s32 0, %v2282
        %v2284 = vrot.slane %v2009, %v2283
        %v2285 = vlaneseq
        %v2286 = vshrl.u32 %v2285, 7
        %v2287 = vsub.s32 0, %v2286
        %v2288 = vrot.slane %v2010, %v2287
        %v2289 = vlaneseq
        %v2290 = vshrl.u32 %v2289, 7
        %v2291 = vsub.s32 0, %v2290
        %v2292 = vrot.slane %v2017, %v2291
        %v2293 = vlaneseq
        %v2294 = vshrl.u32 %v2293, 7
        %v2295 = vsub.s32 0, %v2294
        %v2296 = vrot.slane %v2018, %v2295
        %v2297 = vlaneseq
        %v2298 = vshrl.u32 %v2297, 7
        %v2299 = vsub.s32 0, %v2298
        %v2300 = vrot.slane %v2025, %v2299
        %v2301 = vlaneseq
        %v2302 = vshrl.u32 %v2301, 7
        %v2303 = vsub.s32 0, %v2302
        %v2304 = vrot.slane %v2032, %v2303
        %v2305 = vlaneseq
        %v2306 = vshrl.u32 %v2305, 7
        %v2307 = vsub.s32 0, %v2306
        %v2308 = vrot.slane %v2033, %v2307
        %v2309 = vlaneseq
        %v2310 = vshrl.u32 %v2309, 7
        %v2311 = vsub.s32 0, %v2310
        %v2312 = vrot.slane %v2040, %v2311
        %v2313 = vlaneseq
        %v2314 = vshrl.u32 %v2313, 7
        %v2315 = vsub.s32 0, %v2314
        %v2316 = vrot.slane %v2041, %v2315
        %v2317 = vlaneseq
        %v2318 = vshrl.u32 %v2317, 7
        %v2319 = vsub.s32 0, %v2318
        %v2320 = vrot.slane %v2048, %v2319
        %v2321 = vlaneseq
        %v2322 = vshrl.u32 %v2321, 7
        %v2323 = vsub.s32 0, %v2322
        %v2324 = vrot.slane %v2049, %v2323
        %v2325 = vlaneseq
        %v2326 = vshrl.u32 %v2325, 7
        %v2327 = vsub.s32 0, %v2326
        %v2328 = vrot.slane %v2056, %v2327
        %v2329 = vlaneseq
        %v2330 = vshrl.u32 %v2329, 7
        %v2331 = vsub.s32 0, %v2330
        %v2332 = vrot.slane %v2057, %v2331
        %v2333 = vlaneseq
        %v2334 = vshrl.u32 %v2333, 7
        %v2335 = vsub.s32 0, %v2334
        %v2336 = vrot.slane %v2064, %v2335
        %v2337 = vlaneseq
        %v2338 = vshrl.u32 %v2337, 7
        %v2339 = vsub.s32 0, %v2338
        %v2340 = vrot.slane %v2065, %v2339
        %v2341 = vlaneseq
        %v2342 = vshrl.u32 %v2341, 7
        %v2343 = vsub.s32 0, %v2342
        %v2344 = vrot.slane %v2072, %v2343
        %v2345 = vlaneseq
        %v2346 = vshrl.u32 %v2345, 7
        %v2347 = vsub.s32 0, %v2346
        %v2348 = vrot.slane %v2073, %v2347
        %v2349 = vlaneseq
        %v2350 = vshrl.u32 %v2349, 7
        %v2351 = vsub.s32 0, %v2350
        %v2352 = vrot.slane %v2080, %v2351
        %v2353 = vlaneseq
        %v2354 = vshrl.u32 %v2353, 7
        %v2355 = vsub.s32 0, %v2354
        %v2356 = vrot.slane %v2081, %v2355
        %v2357 = vlaneseq
        %v2358 = vshrl.u32 %v2357, 7
        %v2359 = vsub.s32 0, %v2358
        %v2360 = vrot.slane %v2088, %v2359
        %v2361 = vlaneseq
        %v2362 = vshrl.u32 %v2361, 7
        %v2363 = vsub.s32 0, %v2362
        %v2364 = vrot.slane %v2089, %v2363
        %v2365 = vlaneseq
        %v2366 = vshrl.u32 %v2365, 7
        %v2367 = vsub.s32 0, %v2366
        %v2368 = vrot.slane %v2096, %v2367
        %v2437 = vsel %vm994, %v1431, %v2100
        %v2438 = vsel %vm994, %v1432, %v2104
        %v2439 = vsel %vm994, %v1439, %v2108
        %v2440 = vsel %vm994, %v1440, %v2112
        %v2441 = vsel %vm994, %v1447, %v2116
        %v2442 = vsel %vm994, %v1448, %v2120
        %v2443 = vsel %vm994, %v1455, %v2124
        %v2444 = vsel %vm994, %v1456, %v2128
        %v2445 = vsel %vm994, %v1463, %v2132
        %v2446 = vsel %vm994, %v1464, %v2136
        %v2447 = vsel %vm994, %v1471, %v2140
        %v2448 = vsel %vm994, %v1472, %v2144
        %v2449 = vsel %vm994, %v1479, %v2148
        %v2450 = vsel %vm994, %v1480, %v2152
        %v2451 = vsel %vm994, %v1487, %v2156
        %v2452 = vsel %vm994, %v1488, %v2160
        %v2453 = vsel %vm994, %v1495, %v2164
        %v2454 = vsel %vm994, %v1502, %v2168
        %v2455 = vsel %vm994, %v1503, %v2172
        %v2456 = vsel %vm994, %v1510, %v2176
        %v2457 = vsel %vm994, %v1511, %v2180
        %v2458 = vsel %vm994, %v1518, %v2184
        %v2459 = vsel %vm994, %v1519, %v2188
        %v2460 = vsel %vm994, %v1526, %v2192
        %v2461 = vsel %vm994, %v1527, %v2196
        %v2462 = vsel %vm994, %v1534, %v2200
        %v2463 = vsel %vm994, %v1535, %v2204
        %v2464 = vsel %vm994, %v1542, %v2208
        %v2465 = vsel %vm994, %v1543, %v2212
        %v2466 = vsel %vm994, %v1550, %v2216
        %v2467 = vsel %vm994, %v1551, %v2220
        %v2468 = vsel %vm994, %v1558, %v2224
        %v2469 = vsel %vm994, %v1559, %v2228
        %v2470 = vsel %vm994, %v1566, %v2232
        %v2471 = vsel %vm994, %v1573, %v2236
        %v2472 = vsel %vm994, %v1574, %v2240
        %v2473 = vsel %vm994, %v1581, %v2244
        %v2474 = vsel %vm994, %v1582, %v2248
        %v2475 = vsel %vm994, %v1589, %v2252
        %v2476 = vsel %vm994, %v1590, %v2256
        %v2477 = vsel %vm994, %v1597, %v2260
        %v2478 = vsel %vm994, %v1598, %v2264
        %v2479 = vsel %vm994, %v1605, %v2268
        %v2480 = vsel %vm994, %v1606, %v2272
        %v2481 = vsel %vm994, %v1613, %v2276
        %v2482 = vsel %vm994, %v1614, %v2280
        %v2483 = vsel %vm994, %v1621, %v2284
        %v2484 = vsel %vm994, %v1622, %v2288
        %v2485 = vsel %vm994, %v1629, %v2292
        %v2486 = vsel %vm994, %v1630, %v2296
        %v2487 = vsel %vm994, %v1637, %v2300
        %v2488 = vsel %vm994, %v1644, %v2304
        %v2489 = vsel %vm994, %v1645, %v2308
        %v2490 = vsel %vm994, %v1652, %v2312
        %v2491 = vsel %vm994, %v1653, %v2316
        %v2492 = vsel %vm994, %v1660, %v2320
        %v2493 = vsel %vm994, %v1661, %v2324
        %v2494 = vsel %vm994, %v1668, %v2328
        %v2495 = vsel %vm994, %v1669, %v2332
        %v2496 = vsel %vm994, %v1676, %v2336
        %v2497 = vsel %vm994, %v1677, %v2340
        %v2498 = vsel %vm994, %v1684, %v2344
        %v2499 = vsel %vm994, %v1685, %v2348
        %v2500 = vsel %vm994, %v1692, %v2352
        %v2501 = vsel %vm994, %v1693, %v2356
        %v2502 = vsel %vm994, %v1700, %v2360
        %v2503 = vsel %vm994, %v1701, %v2364
        %v2504 = vsel %vm994, %v1708, %v2368
        %v2573 = vcombine.low %v2437, %v2438
        %v2574 = vcombine.low %v2439, %v2440
        %v2576 = vunpack.c.l.s4 1983009808
        %v2577 = vunpack.c.0.s8 %v2576
        %v2578 = vlaneseq
        %v2579 = vshrl.u32 %v2578, 7
        %v2580 = vsub.s32 %v2577, %v2579
        %v2581 = vrot.slane %v2573, %v2580
        %v2583 = vunpack.c.l.s4 1983009808
        %v2584 = vunpack.c.0.s8 %v2583
        %v2585 = vlaneseq
        %v2586 = vshrl.u32 %v2585, 7
        %v2587 = vsub.s32 %v2584, %v2586
        %v2588 = vrot.slane %v2574, %v2587
        %v2589 = vcombine.low %v2581, %v2588
        %v2590 = vcombine.low %v2441, %v2442
        %v2591 = vcombine.low %v2443, %v2444
        %v2593 = vunpack.c.l.s4 1983009808
        %v2594 = vunpack.c.0.s8 %v2593
        %v2595 = vlaneseq
        %v2596 = vshrl.u32 %v2595, 7
        %v2597 = vsub.s32 %v2594, %v2596
        %v2598 = vrot.slane %v2590, %v2597
        %v2600 = vunpack.c.l.s4 1983009808
        %v2601 = vunpack.c.0.s8 %v2600
        %v2602 = vlaneseq
        %v2603 = vshrl.u32 %v2602, 7
        %v2604 = vsub.s32 %v2601, %v2603
        %v2605 = vrot.slane %v2591, %v2604
        %v2606 = vcombine.low %v2598, %v2605
        %v2607 = vcombine.low %v2445, %v2446
        %v2608 = vcombine.low %v2447, %v2448
        %v2610 = vunpack.c.l.s4 1983009808
        %v2611 = vunpack.c.0.s8 %v2610
        %v2612 = vlaneseq
        %v2613 = vshrl.u32 %v2612, 7
        %v2614 = vsub.s32 %v2611, %v2613
        %v2615 = vrot.slane %v2607, %v2614
        %v2617 = vunpack.c.l.s4 1983009808
        %v2618 = vunpack.c.0.s8 %v2617
        %v2619 = vlaneseq
        %v2620 = vshrl.u32 %v2619, 7
        %v2621 = vsub.s32 %v2618, %v2620
        %v2622 = vrot.slane %v2608, %v2621
        %v2623 = vcombine.low %v2615, %v2622
        %v2624 = vcombine.low %v2449, %v2450
        %v2625 = vcombine.low %v2451, %v2452
        %v2627 = vunpack.c.l.s4 1983009808
        %v2628 = vunpack.c.0.s8 %v2627
        %v2629 = vlaneseq
        %v2630 = vshrl.u32 %v2629, 7
        %v2631 = vsub.s32 %v2628, %v2630
        %v2632 = vrot.slane %v2624, %v2631
        %v2634 = vunpack.c.l.s4 1983009808
        %v2635 = vunpack.c.0.s8 %v2634
        %v2636 = vlaneseq
        %v2637 = vshrl.u32 %v2636, 7
        %v2638 = vsub.s32 %v2635, %v2637
        %v2639 = vrot.slane %v2625, %v2638
        %v2640 = vcombine.low %v2632, %v2639
        %v2642 = vunpack.c.l.s4 1983009808
        %v2643 = vunpack.c.0.s8 %v2642
        %v2644 = vlaneseq
        %v2645 = vshrl.u32 %v2644, 7
        %v2646 = vsub.s32 %v2643, %v2645
        %v2647 = vrot.slane %v2453, %v2646
        %v2648 = vcombine.low %v2454, %v2455
        %v2649 = vcombine.low %v2456, %v2457
        %v2651 = vunpack.c.l.s4 1983009808
        %v2652 = vunpack.c.0.s8 %v2651
        %v2653 = vlaneseq
        %v2654 = vshrl.u32 %v2653, 7
        %v2655 = vsub.s32 %v2652, %v2654
        %v2656 = vrot.slane %v2648, %v2655
        %v2658 = vunpack.c.l.s4 1983009808
        %v2659 = vunpack.c.0.s8 %v2658
        %v2660 = vlaneseq
        %v2661 = vshrl.u32 %v2660, 7
        %v2662 = vsub.s32 %v2659, %v2661
        %v2663 = vrot.slane %v2649, %v2662
        %v2664 = vcombine.low %v2656, %v2663
        %v2665 = vcombine.low %v2458, %v2459
        %v2666 = vcombine.low %v2460, %v2461
        %v2668 = vunpack.c.l.s4 1983009808
        %v2669 = vunpack.c.0.s8 %v2668
        %v2670 = vlaneseq
        %v2671 = vshrl.u32 %v2670, 7
        %v2672 = vsub.s32 %v2669, %v2671
        %v2673 = vrot.slane %v2665, %v2672
        %v2675 = vunpack.c.l.s4 1983009808
        %v2676 = vunpack.c.0.s8 %v2675
        %v2677 = vlaneseq
        %v2678 = vshrl.u32 %v2677, 7
        %v2679 = vsub.s32 %v2676, %v2678
        %v2680 = vrot.slane %v2666, %v2679
        %v2681 = vcombine.low %v2673, %v2680
        %v2682 = vcombine.low %v2462, %v2463
        %v2683 = vcombine.low %v2464, %v2465
        %v2685 = vunpack.c.l.s4 1983009808
        %v2686 = vunpack.c.0.s8 %v2685
        %v2687 = vlaneseq
        %v2688 = vshrl.u32 %v2687, 7
        %v2689 = vsub.s32 %v2686, %v2688
        %v2690 = vrot.slane %v2682, %v2689
        %v2692 = vunpack.c.l.s4 1983009808
        %v2693 = vunpack.c.0.s8 %v2692
        %v2694 = vlaneseq
        %v2695 = vshrl.u32 %v2694, 7
        %v2696 = vsub.s32 %v2693, %v2695
        %v2697 = vrot.slane %v2683, %v2696
        %v2698 = vcombine.low %v2690, %v2697
        %v2699 = vcombine.low %v2466, %v2467
        %v2700 = vcombine.low %v2468, %v2469
        %v2702 = vunpack.c.l.s4 1983009808
        %v2703 = vunpack.c.0.s8 %v2702
        %v2704 = vlaneseq
        %v2705 = vshrl.u32 %v2704, 7
        %v2706 = vsub.s32 %v2703, %v2705
        %v2707 = vrot.slane %v2699, %v2706
        %v2709 = vunpack.c.l.s4 1983009808
        %v2710 = vunpack.c.0.s8 %v2709
        %v2711 = vlaneseq
        %v2712 = vshrl.u32 %v2711, 7
        %v2713 = vsub.s32 %v2710, %v2712
        %v2714 = vrot.slane %v2700, %v2713
        %v2715 = vcombine.low %v2707, %v2714
        %v2717 = vunpack.c.l.s4 1983009808
        %v2718 = vunpack.c.0.s8 %v2717
        %v2719 = vlaneseq
        %v2720 = vshrl.u32 %v2719, 7
        %v2721 = vsub.s32 %v2718, %v2720
        %v2722 = vrot.slane %v2470, %v2721
        %v2723 = vcombine.low %v2471, %v2472
        %v2724 = vcombine.low %v2473, %v2474
        %v2726 = vunpack.c.l.s4 1983009808
        %v2727 = vunpack.c.0.s8 %v2726
        %v2728 = vlaneseq
        %v2729 = vshrl.u32 %v2728, 7
        %v2730 = vsub.s32 %v2727, %v2729
        %v2731 = vrot.slane %v2723, %v2730
        %v2733 = vunpack.c.l.s4 1983009808
        %v2734 = vunpack.c.0.s8 %v2733
        %v2735 = vlaneseq
        %v2736 = vshrl.u32 %v2735, 7
        %v2737 = vsub.s32 %v2734, %v2736
        %v2738 = vrot.slane %v2724, %v2737
        %v2739 = vcombine.low %v2731, %v2738
        %v2740 = vcombine.low %v2475, %v2476
        %v2741 = vcombine.low %v2477, %v2478
        %v2743 = vunpack.c.l.s4 1983009808
        %v2744 = vunpack.c.0.s8 %v2743
        %v2745 = vlaneseq
        %v2746 = vshrl.u32 %v2745, 7
        %v2747 = vsub.s32 %v2744, %v2746
        %v2748 = vrot.slane %v2740, %v2747
        %v2750 = vunpack.c.l.s4 1983009808
        %v2751 = vunpack.c.0.s8 %v2750
        %v2752 = vlaneseq
        %v2753 = vshrl.u32 %v2752, 7
        %v2754 = vsub.s32 %v2751, %v2753
        %v2755 = vrot.slane %v2741, %v2754
        %v2756 = vcombine.low %v2748, %v2755
        %v2757 = vcombine.low %v2479, %v2480
        %v2758 = vcombine.low %v2481, %v2482
        %v2760 = vunpack.c.l.s4 1983009808
        %v2761 = vunpack.c.0.s8 %v2760
        %v2762 = vlaneseq
        %v2763 = vshrl.u32 %v2762, 7
        %v2764 = vsub.s32 %v2761, %v2763
        %v2765 = vrot.slane %v2757, %v2764
        %v2767 = vunpack.c.l.s4 1983009808
        %v2768 = vunpack.c.0.s8 %v2767
        %v2769 = vlaneseq
        %v2770 = vshrl.u32 %v2769, 7
        %v2771 = vsub.s32 %v2768, %v2770
        %v2772 = vrot.slane %v2758, %v2771
        %v2773 = vcombine.low %v2765, %v2772
        %v2774 = vcombine.low %v2483, %v2484
        %v2775 = vcombine.low %v2485, %v2486
        %v2777 = vunpack.c.l.s4 1983009808
        %v2778 = vunpack.c.0.s8 %v2777
        %v2779 = vlaneseq
        %v2780 = vshrl.u32 %v2779, 7
        %v2781 = vsub.s32 %v2778, %v2780
        %v2782 = vrot.slane %v2774, %v2781
        %v2784 = vunpack.c.l.s4 1983009808
        %v2785 = vunpack.c.0.s8 %v2784
        %v2786 = vlaneseq
        %v2787 = vshrl.u32 %v2786, 7
        %v2788 = vsub.s32 %v2785, %v2787
        %v2789 = vrot.slane %v2775, %v2788
        %v2790 = vcombine.low %v2782, %v2789
        %v2792 = vunpack.c.l.s4 1983009808
        %v2793 = vunpack.c.0.s8 %v2792
        %v2794 = vlaneseq
        %v2795 = vshrl.u32 %v2794, 7
        %v2796 = vsub.s32 %v2793, %v2795
        %v2797 = vrot.slane %v2487, %v2796
        %v2798 = vcombine.low %v2488, %v2489
        %v2799 = vcombine.low %v2490, %v2491
        %v2801 = vunpack.c.l.s4 1983009808
        %v2802 = vunpack.c.0.s8 %v2801
        %v2803 = vlaneseq
        %v2804 = vshrl.u32 %v2803, 7
        %v2805 = vsub.s32 %v2802, %v2804
        %v2806 = vrot.slane %v2798, %v2805
        %v2808 = vunpack.c.l.s4 1983009808
        %v2809 = vunpack.c.0.s8 %v2808
        %v2810 = vlaneseq
        %v2811 = vshrl.u32 %v2810, 7
        %v2812 = vsub.s32 %v2809, %v2811
        %v2813 = vrot.slane %v2799, %v2812
        %v2814 = vcombine.low %v2806, %v2813
        %v2815 = vcombine.low %v2492, %v2493
        %v2816 = vcombine.low %v2494, %v2495
        %v2818 = vunpack.c.l.s4 1983009808
        %v2819 = vunpack.c.0.s8 %v2818
        %v2820 = vlaneseq
        %v2821 = vshrl.u32 %v2820, 7
        %v2822 = vsub.s32 %v2819, %v2821
        %v2823 = vrot.slane %v2815, %v2822
        %v2825 = vunpack.c.l.s4 1983009808
        %v2826 = vunpack.c.0.s8 %v2825
        %v2827 = vlaneseq
        %v2828 = vshrl.u32 %v2827, 7
        %v2829 = vsub.s32 %v2826, %v2828
        %v2830 = vrot.slane %v2816, %v2829
        %v2831 = vcombine.low %v2823, %v2830
        %v2832 = vcombine.low %v2496, %v2497
        %v2833 = vcombine.low %v2498, %v2499
        %v2835 = vunpack.c.l.s4 1983009808
        %v2836 = vunpack.c.0.s8 %v2835
        %v2837 = vlaneseq
        %v2838 = vshrl.u32 %v2837, 7
        %v2839 = vsub.s32 %v2836, %v2838
        %v2840 = vrot.slane %v2832, %v2839
        %v2842 = vunpack.c.l.s4 1983009808
        %v2843 = vunpack.c.0.s8 %v2842
        %v2844 = vlaneseq
        %v2845 = vshrl.u32 %v2844, 7
        %v2846 = vsub.s32 %v2843, %v2845
        %v2847 = vrot.slane %v2833, %v2846
        %v2848 = vcombine.low %v2840, %v2847
        %v2849 = vcombine.low %v2500, %v2501
        %v2850 = vcombine.low %v2502, %v2503
        %v2852 = vunpack.c.l.s4 1983009808
        %v2853 = vunpack.c.0.s8 %v2852
        %v2854 = vlaneseq
        %v2855 = vshrl.u32 %v2854, 7
        %v2856 = vsub.s32 %v2853, %v2855
        %v2857 = vrot.slane %v2849, %v2856
        %v2859 = vunpack.c.l.s4 1983009808
        %v2860 = vunpack.c.0.s8 %v2859
        %v2861 = vlaneseq
        %v2862 = vshrl.u32 %v2861, 7
        %v2863 = vsub.s32 %v2860, %v2862
        %v2864 = vrot.slane %v2850, %v2863
        %v2865 = vcombine.low %v2857, %v2864
        %v2867 = vunpack.c.l.s4 1983009808
        %v2868 = vunpack.c.0.s8 %v2867
        %v2869 = vlaneseq
        %v2870 = vshrl.u32 %v2869, 7
        %v2871 = vsub.s32 %v2868, %v2870
        %v2872 = vrot.slane %v2504, %v2871
        %vm2893 = vcmask 277504
        %2894 = vst.msk [vmem:[#allocation2] sm:$0xff] %vm2893, %v2589
        %2895 = vst.msk [vmem:[#allocation2 + $0x8] sm:$0xff] %vm2893, %v2606
        %2896 = vst.msk [vmem:[#allocation2 + $0x10] sm:$0xff] %vm2893, %v2623
        %2897 = vst.msk [vmem:[#allocation2 + $0x18] sm:$0xff] %vm2893, %v2640
        %vm2898 = vcmask 271360
        %2899 = vst.msk [vmem:[#allocation2 + $0x20] sm:$0x3] %vm2898, %v2647
        %2900 = vst.msk [vmem:[#allocation2 + $0x28] sm:$0xff] %vm2893, %v2664
        %2901 = vst.msk [vmem:[#allocation2 + $0x30] sm:$0xff] %vm2893, %v2681
        %2902 = vst.msk [vmem:[#allocation2 + $0x38] sm:$0xff] %vm2893, %v2698
        %2903 = vst.msk [vmem:[#allocation2 + $0x40] sm:$0xff] %vm2893, %v2715
        %2904 = vst.msk [vmem:[#allocation2 + $0x48] sm:$0x3] %vm2898, %v2722
        %2905 = vst.msk [vmem:[#allocation2 + $0x50] sm:$0xff] %vm2893, %v2739
        %2906 = vst.msk [vmem:[#allocation2 + $0x58] sm:$0xff] %vm2893, %v2756
        %2907 = vst.msk [vmem:[#allocation2 + $0x60] sm:$0xff] %vm2893, %v2773
        %2908 = vst.msk [vmem:[#allocation2 + $0x68] sm:$0xff] %vm2893, %v2790
        %2909 = vst.msk [vmem:[#allocation2 + $0x70] sm:$0x3] %vm2898, %v2797
        %2910 = vst.msk [vmem:[#allocation2 + $0x78] sm:$0xff] %vm2893, %v2814
        %2911 = vst.msk [vmem:[#allocation2 + $0x80] sm:$0xff] %vm2893, %v2831
        %2912 = vst.msk [vmem:[#allocation2 + $0x88] sm:$0xff] %vm2893, %v2848
        %2913 = vst.msk [vmem:[#allocation2 + $0x90] sm:$0xff] %vm2893, %v2865
        %2914 = vst.msk [vmem:[#allocation2 + $0x98] sm:$0x3] %vm2898, %v2872
        %p2915 = scmp.eq.s32.totalorder %s23, 0
        // Predicated region
        $region37: #{tpu_custom_call.1} parent=35 // pred_check
          %p2916 = pneg %p2915
        $region38: #{tpu_custom_call.1} parent=35 // pred_check_branch
          %2918 = sbr.rel (%p2916) target = $region40
        $region39: #{tpu_custom_call.1} parent=35 // pred_region
          %vm2919 = vcmask 270336
          %2920 = vst.msk [vmem:[#allocation2] sm:$0x1] %vm2919, 0.0
          %2921 = vst.msk [vmem:[#allocation2 + $0x28] sm:$0x1] %vm2919, 0.0
          %2922 = vst.msk [vmem:[#allocation2 + $0x50] sm:$0x1] %vm2919, 0.0
          %2923 = vst.msk [vmem:[#allocation2 + $0x78] sm:$0x1] %vm2919, 0.0
          %2924 = vst.msk [vmem:[#allocation2 + $0x21] sm:$0x1] %vm2919, 0.0
          %2925 = vst.msk [vmem:[#allocation2 + $0x49] sm:$0x1] %vm2919, 0.0
          %2926 = vst.msk [vmem:[#allocation2 + $0x71] sm:$0x1] %vm2919, 0.0
          %2927 = vst.msk [vmem:[#allocation2 + $0x99] sm:$0x1] %vm2919, 0.0
        $region40: #{tpu_custom_call.1} parent=35 // pred_fallthru
          _
        %v2928 = vld [vmem:[%s2] sm:$0xff]
        %v2930 = vcombine.high %v2928, %v2928
        %v2932 = vunpack.c.l.s4 1966171168
        %v2933 = vunpack.c.0.s8 %v2932
        %v2934 = vlaneseq
        %v2935 = vshrl.u32 %v2934, 7
        %v2936 = vsub.s32 %v2933, %v2935
        %v2937 = vrot.slane %v2928, %v2936
        %v2939 = vunpack.c.l.s4 1966171168
        %v2940 = vunpack.c.0.s8 %v2939
        %v2941 = vlaneseq
        %v2942 = vshrl.u32 %v2941, 7
        %v2943 = vsub.s32 %v2940, %v2942
        %v2944 = vrot.slane %v2930, %v2943
        %v2945 = vcombine.high %v2937, %v2937
        %v2946 = vcombine.high %v2944, %v2944
        %v2948 = vunpack.c.l.s4 1966171168
        %v2949 = vunpack.c.0.s8 %v2948
        %v2950 = vlaneseq
        %v2951 = vshrl.u32 %v2950, 7
        %v2952 = vsub.s32 %v2949, %v2951
        %v2953 = vrot.slane %v2937, %v2952
        %v2955 = vunpack.c.l.s4 1966171168
        %v2956 = vunpack.c.0.s8 %v2955
        %v2957 = vlaneseq
        %v2958 = vshrl.u32 %v2957, 7
        %v2959 = vsub.s32 %v2956, %v2958
        %v2960 = vrot.slane %v2944, %v2959
        %v2962 = vunpack.c.l.s4 1966171168
        %v2963 = vunpack.c.0.s8 %v2962
        %v2964 = vlaneseq
        %v2965 = vshrl.u32 %v2964, 7
        %v2966 = vsub.s32 %v2963, %v2965
        %v2967 = vrot.slane %v2945, %v2966
        %v2969 = vunpack.c.l.s4 1966171168
        %v2970 = vunpack.c.0.s8 %v2969
        %v2971 = vlaneseq
        %v2972 = vshrl.u32 %v2971, 7
        %v2973 = vsub.s32 %v2970, %v2972
        %v2974 = vrot.slane %v2946, %v2973
        %v2975 = vcombine.high %v2953, %v2953
        %v2976 = vcombine.high %v2960, %v2960
        %v2977 = vcombine.high %v2967, %v2967
        %v2978 = vcombine.high %v2974, %v2974
        %v2979 = vld [vmem:[#allocation2] sm:$0xff]
        %v2980 = vld [vmem:[#allocation2 + $0x8] sm:$0xff]
        %v2981 = vld [vmem:[#allocation2 + $0x10] sm:$0xff]
        %v2982 = vld [vmem:[#allocation2 + $0x18] sm:$0xff]
        %v2983 = vld [vmem:[#allocation2 + $0x28] sm:$0xff]
        %v2984 = vld [vmem:[#allocation2 + $0x30] sm:$0xff]
        %v2985 = vld [vmem:[#allocation2 + $0x38] sm:$0xff]
        %v2986 = vld [vmem:[#allocation2 + $0x40] sm:$0xff]
        %v2987 = vld [vmem:[#allocation2 + $0x50] sm:$0xff]
        %v2988 = vld [vmem:[#allocation2 + $0x58] sm:$0xff]
        %v2989 = vld [vmem:[#allocation2 + $0x60] sm:$0xff]
        %v2990 = vld [vmem:[#allocation2 + $0x68] sm:$0xff]
        %v2991 = vld [vmem:[#allocation2 + $0x78] sm:$0xff]
        %v2992 = vld [vmem:[#allocation2 + $0x80] sm:$0xff]
        %v2993 = vld [vmem:[#allocation2 + $0x88] sm:$0xff]
        %v2994 = vld [vmem:[#allocation2 + $0x90] sm:$0xff]
        %v2995 = vlaneseq
        %v2996 = vshrl.u32 %v2995, 7
        %v2997 = vsub.s32 0, %v2996
        %v2998 = vrot.slane %v2953, %v2997
        %v2999 = vlaneseq
        %v3000 = vshrl.u32 %v2999, 7
        %v3001 = vsub.s32 0, %v3000
        %v3002 = vrot.slane %v2967, %v3001
        %v3003 = vlaneseq
        %v3004 = vshrl.u32 %v3003, 7
        %v3005 = vsub.s32 0, %v3004
        %v3006 = vrot.slane %v2975, %v3005
        %v3007 = vlaneseq
        %v3008 = vshrl.u32 %v3007, 7
        %v3009 = vsub.s32 0, %v3008
        %v3010 = vrot.slane %v2977, %v3009
        %v3011 = vlaneseq
        %v3012 = vshrl.u32 %v3011, 7
        %v3013 = vsub.s32 0, %v3012
        %v3014 = vrot.slane %v2960, %v3013
        %v3015 = vlaneseq
        %v3016 = vshrl.u32 %v3015, 7
        %v3017 = vsub.s32 0, %v3016
        %v3018 = vrot.slane %v2974, %v3017
        %v3019 = vlaneseq
        %v3020 = vshrl.u32 %v3019, 7
        %v3021 = vsub.s32 0, %v3020
        %v3022 = vrot.slane %v2976, %v3021
        %v3023 = vlaneseq
        %v3024 = vshrl.u32 %v3023, 7
        %v3025 = vsub.s32 0, %v3024
        %v3026 = vrot.slane %v2978, %v3025
        %3027 = vset.pattern.permute.xlu0 0
        %3028 = vperm.xlu0 %3027, %v2998
        %v3029 = vpop.permute.xlu0 %3028
        %3031 = vset.pattern.permute.xlu0 0
        %3032 = vperm.xlu0 %3031, %v3002
        %v3033 = vpop.permute.xlu0 %3032
        %3035 = vset.pattern.permute.xlu0 0
        %3036 = vperm.xlu0 %3035, %v3006
        %v3037 = vpop.permute.xlu0 %3036
        %3039 = vset.pattern.permute.xlu0 0
        %3040 = vperm.xlu0 %3039, %v3010
        %v3041 = vpop.permute.xlu0 %3040
        %3043 = vset.pattern.permute.xlu0 0
        %3044 = vperm.xlu0 %3043, %v3014
        %v3045 = vpop.permute.xlu0 %3044
        %3047 = vset.pattern.permute.xlu0 0
        %3048 = vperm.xlu0 %3047, %v3018
        %v3049 = vpop.permute.xlu0 %3048
        %3051 = vset.pattern.permute.xlu0 0
        %3052 = vperm.xlu0 %3051, %v3022
        %v3053 = vpop.permute.xlu0 %3052
        %3055 = vset.pattern.permute.xlu0 0
        %3056 = vperm.xlu0 %3055, %v3026
        %v3057 = vpop.permute.xlu0 %3056
        %v3059 = vmul.f32 %v3029, %v2979
        %v3060 = vmul.f32 %v3029, %v2980
        %v3061 = vmul.f32 %v3029, %v2981
        %v3062 = vmul.f32 %v3029, %v2982
        %v3063 = vmul.f32 %v3033, %v2979
        %v3064 = vmul.f32 %v3033, %v2980
        %v3065 = vmul.f32 %v3033, %v2981
        %v3066 = vmul.f32 %v3033, %v2982
        %v3067 = vmul.f32 %v3037, %v2979
        %v3068 = vmul.f32 %v3037, %v2980
        %v3069 = vmul.f32 %v3037, %v2981
        %v3070 = vmul.f32 %v3037, %v2982
        %v3071 = vmul.f32 %v3041, %v2979
        %v3072 = vmul.f32 %v3041, %v2980
        %v3073 = vmul.f32 %v3041, %v2981
        %v3074 = vmul.f32 %v3041, %v2982
        %v3075 = vmul.f32 %v3045, %v2979
        %v3076 = vmul.f32 %v3045, %v2980
        %v3077 = vmul.f32 %v3045, %v2981
        %v3078 = vmul.f32 %v3045, %v2982
        %v3079 = vmul.f32 %v3049, %v2979
        %v3080 = vmul.f32 %v3049, %v2980
        %v3081 = vmul.f32 %v3049, %v2981
        %v3082 = vmul.f32 %v3049, %v2982
        %v3083 = vmul.f32 %v3053, %v2979
        %v3084 = vmul.f32 %v3053, %v2980
        %v3085 = vmul.f32 %v3053, %v2981
        %v3086 = vmul.f32 %v3053, %v2982
        %v3087 = vmul.f32 %v3057, %v2979
        %v3088 = vmul.f32 %v3057, %v2980
        %v3089 = vmul.f32 %v3057, %v2981
        %v3090 = vmul.f32 %v3057, %v2982
        %v3091 = vadd.f32 %v3059, 0.0
        %v3092 = vadd.f32 %v3060, 0.0
        %v3093 = vadd.f32 %v3061, 0.0
        %v3094 = vadd.f32 %v3062, 0.0
        %v3095 = vadd.f32 %v3063, 0.0
        %v3096 = vadd.f32 %v3064, 0.0
        %v3097 = vadd.f32 %v3065, 0.0
        %v3098 = vadd.f32 %v3066, 0.0
        %v3099 = vadd.f32 %v3067, 0.0
        %v3100 = vadd.f32 %v3068, 0.0
        %v3101 = vadd.f32 %v3069, 0.0
        %v3102 = vadd.f32 %v3070, 0.0
        %v3103 = vadd.f32 %v3071, 0.0
        %v3104 = vadd.f32 %v3072, 0.0
        %v3105 = vadd.f32 %v3073, 0.0
        %v3106 = vadd.f32 %v3074, 0.0
        %v3107 = vadd.f32 %v3075, 0.0
        %v3108 = vadd.f32 %v3076, 0.0
        %v3109 = vadd.f32 %v3077, 0.0
        %v3110 = vadd.f32 %v3078, 0.0
        %v3111 = vadd.f32 %v3079, 0.0
        %v3112 = vadd.f32 %v3080, 0.0
        %v3113 = vadd.f32 %v3081, 0.0
        %v3114 = vadd.f32 %v3082, 0.0
        %v3115 = vadd.f32 %v3083, 0.0
        %v3116 = vadd.f32 %v3084, 0.0
        %v3117 = vadd.f32 %v3085, 0.0
        %v3118 = vadd.f32 %v3086, 0.0
        %v3119 = vadd.f32 %v3087, 0.0
        %v3120 = vadd.f32 %v3088, 0.0
        %v3121 = vadd.f32 %v3089, 0.0
        %v3122 = vadd.f32 %v3090, 0.0
        %3123 = vset.pattern.permute.xlu0 1
        %3124 = vperm.xlu0 %3123, %v2998
        %v3125 = vpop.permute.xlu0 %3124
        %3127 = vset.pattern.permute.xlu0 1
        %3128 = vperm.xlu0 %3127, %v3002
        %v3129 = vpop.permute.xlu0 %3128
        %3131 = vset.pattern.permute.xlu0 1
        %3132 = vperm.xlu0 %3131, %v3006
        %v3133 = vpop.permute.xlu0 %3132
        %3135 = vset.pattern.permute.xlu0 1
        %3136 = vperm.xlu0 %3135, %v3010
        %v3137 = vpop.permute.xlu0 %3136
        %3139 = vset.pattern.permute.xlu0 1
        %3140 = vperm.xlu0 %3139, %v3014
        %v3141 = vpop.permute.xlu0 %3140
        %3143 = vset.pattern.permute.xlu0 1
        %3144 = vperm.xlu0 %3143, %v3018
        %v3145 = vpop.permute.xlu0 %3144
        %3147 = vset.pattern.permute.xlu0 1
        %3148 = vperm.xlu0 %3147, %v3022
        %v3149 = vpop.permute.xlu0 %3148
        %3151 = vset.pattern.permute.xlu0 1
        %3152 = vperm.xlu0 %3151, %v3026
        %v3153 = vpop.permute.xlu0 %3152
        %v3155 = vmul.f32 %v3125, %v2983
        %v3156 = vmul.f32 %v3125, %v2984
        %v3157 = vmul.f32 %v3125, %v2985
        %v3158 = vmul.f32 %v3125, %v2986
        %v3159 = vmul.f32 %v3129, %v2983
        %v3160 = vmul.f32 %v3129, %v2984
        %v3161 = vmul.f32 %v3129, %v2985
        %v3162 = vmul.f32 %v3129, %v2986
        %v3163 = vmul.f32 %v3133, %v2983
        %v3164 = vmul.f32 %v3133, %v2984
        %v3165 = vmul.f32 %v3133, %v2985
        %v3166 = vmul.f32 %v3133, %v2986
        %v3167 = vmul.f32 %v3137, %v2983
        %v3168 = vmul.f32 %v3137, %v2984
        %v3169 = vmul.f32 %v3137, %v2985
        %v3170 = vmul.f32 %v3137, %v2986
        %v3171 = vmul.f32 %v3141, %v2983
        %v3172 = vmul.f32 %v3141, %v2984
        %v3173 = vmul.f32 %v3141, %v2985
        %v3174 = vmul.f32 %v3141, %v2986
        %v3175 = vmul.f32 %v3145, %v2983
        %v3176 = vmul.f32 %v3145, %v2984
        %v3177 = vmul.f32 %v3145, %v2985
        %v3178 = vmul.f32 %v3145, %v2986
        %v3179 = vmul.f32 %v3149, %v2983
        %v3180 = vmul.f32 %v3149, %v2984
        %v3181 = vmul.f32 %v3149, %v2985
        %v3182 = vmul.f32 %v3149, %v2986
        %v3183 = vmul.f32 %v3153, %v2983
        %v3184 = vmul.f32 %v3153, %v2984
        %v3185 = vmul.f32 %v3153, %v2985
        %v3186 = vmul.f32 %v3153, %v2986
        %v3187 = vadd.f32 %v3091, %v3155
        %v3188 = vadd.f32 %v3092, %v3156
        %v3189 = vadd.f32 %v3093, %v3157
        %v3190 = vadd.f32 %v3094, %v3158
        %v3191 = vadd.f32 %v3095, %v3159
        %v3192 = vadd.f32 %v3096, %v3160
        %v3193 = vadd.f32 %v3097, %v3161
        %v3194 = vadd.f32 %v3098, %v3162
        %v3195 = vadd.f32 %v3099, %v3163
        %v3196 = vadd.f32 %v3100, %v3164
        %v3197 = vadd.f32 %v3101, %v3165
        %v3198 = vadd.f32 %v3102, %v3166
        %v3199 = vadd.f32 %v3103, %v3167
        %v3200 = vadd.f32 %v3104, %v3168
        %v3201 = vadd.f32 %v3105, %v3169
        %v3202 = vadd.f32 %v3106, %v3170
        %v3203 = vadd.f32 %v3107, %v3171
        %v3204 = vadd.f32 %v3108, %v3172
        %v3205 = vadd.f32 %v3109, %v3173
        %v3206 = vadd.f32 %v3110, %v3174
        %v3207 = vadd.f32 %v3111, %v3175
        %v3208 = vadd.f32 %v3112, %v3176
        %v3209 = vadd.f32 %v3113, %v3177
        %v3210 = vadd.f32 %v3114, %v3178
        %v3211 = vadd.f32 %v3115, %v3179
        %v3212 = vadd.f32 %v3116, %v3180
        %v3213 = vadd.f32 %v3117, %v3181
        %v3214 = vadd.f32 %v3118, %v3182
        %v3215 = vadd.f32 %v3119, %v3183
        %v3216 = vadd.f32 %v3120, %v3184
        %v3217 = vadd.f32 %v3121, %v3185
        %v3218 = vadd.f32 %v3122, %v3186
        %3219 = vset.pattern.permute.xlu0 2
        %3220 = vperm.xlu0 %3219, %v2998
        %v3221 = vpop.permute.xlu0 %3220
        %3223 = vset.pattern.permute.xlu0 2
        %3224 = vperm.xlu0 %3223, %v3002
        %v3225 = vpop.permute.xlu0 %3224
        %3227 = vset.pattern.permute.xlu0 2
        %3228 = vperm.xlu0 %3227, %v3006
        %v3229 = vpop.permute.xlu0 %3228
        %3231 = vset.pattern.permute.xlu0 2
        %3232 = vperm.xlu0 %3231, %v3010
        %v3233 = vpop.permute.xlu0 %3232
        %3235 = vset.pattern.permute.xlu0 2
        %3236 = vperm.xlu0 %3235, %v3014
        %v3237 = vpop.permute.xlu0 %3236
        %3239 = vset.pattern.permute.xlu0 2
        %3240 = vperm.xlu0 %3239, %v3018
        %v3241 = vpop.permute.xlu0 %3240
        %3243 = vset.pattern.permute.xlu0 2
        %3244 = vperm.xlu0 %3243, %v3022
        %v3245 = vpop.permute.xlu0 %3244
        %3247 = vset.pattern.permute.xlu0 2
        %3248 = vperm.xlu0 %3247, %v3026
        %v3249 = vpop.permute.xlu0 %3248
        %v3251 = vmul.f32 %v3221, %v2987
        %v3252 = vmul.f32 %v3221, %v2988
        %v3253 = vmul.f32 %v3221, %v2989
        %v3254 = vmul.f32 %v3221, %v2990
        %v3255 = vmul.f32 %v3225, %v2987
        %v3256 = vmul.f32 %v3225, %v2988
        %v3257 = vmul.f32 %v3225, %v2989
        %v3258 = vmul.f32 %v3225, %v2990
        %v3259 = vmul.f32 %v3229, %v2987
        %v3260 = vmul.f32 %v3229, %v2988
        %v3261 = vmul.f32 %v3229, %v2989
        %v3262 = vmul.f32 %v3229, %v2990
        %v3263 = vmul.f32 %v3233, %v2987
        %v3264 = vmul.f32 %v3233, %v2988
        %v3265 = vmul.f32 %v3233, %v2989
        %v3266 = vmul.f32 %v3233, %v2990
        %v3267 = vmul.f32 %v3237, %v2987
        %v3268 = vmul.f32 %v3237, %v2988
        %v3269 = vmul.f32 %v3237, %v2989
        %v3270 = vmul.f32 %v3237, %v2990
        %v3271 = vmul.f32 %v3241, %v2987
        %v3272 = vmul.f32 %v3241, %v2988
        %v3273 = vmul.f32 %v3241, %v2989
        %v3274 = vmul.f32 %v3241, %v2990
        %v3275 = vmul.f32 %v3245, %v2987
        %v3276 = vmul.f32 %v3245, %v2988
        %v3277 = vmul.f32 %v3245, %v2989
        %v3278 = vmul.f32 %v3245, %v2990
        %v3279 = vmul.f32 %v3249, %v2987
        %v3280 = vmul.f32 %v3249, %v2988
        %v3281 = vmul.f32 %v3249, %v2989
        %v3282 = vmul.f32 %v3249, %v2990
        %v3283 = vadd.f32 %v3187, %v3251
        %v3284 = vadd.f32 %v3188, %v3252
        %v3285 = vadd.f32 %v3189, %v3253
        %v3286 = vadd.f32 %v3190, %v3254
        %v3287 = vadd.f32 %v3191, %v3255
        %v3288 = vadd.f32 %v3192, %v3256
        %v3289 = vadd.f32 %v3193, %v3257
        %v3290 = vadd.f32 %v3194, %v3258
        %v3291 = vadd.f32 %v3195, %v3259
        %v3292 = vadd.f32 %v3196, %v3260
        %v3293 = vadd.f32 %v3197, %v3261
        %v3294 = vadd.f32 %v3198, %v3262
        %v3295 = vadd.f32 %v3199, %v3263
        %v3296 = vadd.f32 %v3200, %v3264
        %v3297 = vadd.f32 %v3201, %v3265
        %v3298 = vadd.f32 %v3202, %v3266
        %v3299 = vadd.f32 %v3203, %v3267
        %v3300 = vadd.f32 %v3204, %v3268
        %v3301 = vadd.f32 %v3205, %v3269
        %v3302 = vadd.f32 %v3206, %v3270
        %v3303 = vadd.f32 %v3207, %v3271
        %v3304 = vadd.f32 %v3208, %v3272
        %v3305 = vadd.f32 %v3209, %v3273
        %v3306 = vadd.f32 %v3210, %v3274
        %v3307 = vadd.f32 %v3211, %v3275
        %v3308 = vadd.f32 %v3212, %v3276
        %v3309 = vadd.f32 %v3213, %v3277
        %v3310 = vadd.f32 %v3214, %v3278
        %v3311 = vadd.f32 %v3215, %v3279
        %v3312 = vadd.f32 %v3216, %v3280
        %v3313 = vadd.f32 %v3217, %v3281
        %v3314 = vadd.f32 %v3218, %v3282
        %3315 = vset.pattern.permute.xlu0 3
        %3316 = vperm.xlu0 %3315, %v2998
        %v3317 = vpop.permute.xlu0 %3316
        %3319 = vset.pattern.permute.xlu0 3
        %3320 = vperm.xlu0 %3319, %v3002
        %v3321 = vpop.permute.xlu0 %3320
        %3323 = vset.pattern.permute.xlu0 3
        %3324 = vperm.xlu0 %3323, %v3006
        %v3325 = vpop.permute.xlu0 %3324
        %3327 = vset.pattern.permute.xlu0 3
        %3328 = vperm.xlu0 %3327, %v3010
        %v3329 = vpop.permute.xlu0 %3328
        %3331 = vset.pattern.permute.xlu0 3
        %3332 = vperm.xlu0 %3331, %v3014
        %v3333 = vpop.permute.xlu0 %3332
        %3335 = vset.pattern.permute.xlu0 3
        %3336 = vperm.xlu0 %3335, %v3018
        %v3337 = vpop.permute.xlu0 %3336
        %3339 = vset.pattern.permute.xlu0 3
        %3340 = vperm.xlu0 %3339, %v3022
        %v3341 = vpop.permute.xlu0 %3340
        %3343 = vset.pattern.permute.xlu0 3
        %3344 = vperm.xlu0 %3343, %v3026
        %v3345 = vpop.permute.xlu0 %3344
        %v3347 = vmul.f32 %v3317, %v2991
        %v3348 = vmul.f32 %v3317, %v2992
        %v3349 = vmul.f32 %v3317, %v2993
        %v3350 = vmul.f32 %v3317, %v2994
        %v3351 = vmul.f32 %v3321, %v2991
        %v3352 = vmul.f32 %v3321, %v2992
        %v3353 = vmul.f32 %v3321, %v2993
        %v3354 = vmul.f32 %v3321, %v2994
        %v3355 = vmul.f32 %v3325, %v2991
        %v3356 = vmul.f32 %v3325, %v2992
        %v3357 = vmul.f32 %v3325, %v2993
        %v3358 = vmul.f32 %v3325, %v2994
        %v3359 = vmul.f32 %v3329, %v2991
        %v3360 = vmul.f32 %v3329, %v2992
        %v3361 = vmul.f32 %v3329, %v2993
        %v3362 = vmul.f32 %v3329, %v2994
        %v3363 = vmul.f32 %v3333, %v2991
        %v3364 = vmul.f32 %v3333, %v2992
        %v3365 = vmul.f32 %v3333, %v2993
        %v3366 = vmul.f32 %v3333, %v2994
        %v3367 = vmul.f32 %v3337, %v2991
        %v3368 = vmul.f32 %v3337, %v2992
        %v3369 = vmul.f32 %v3337, %v2993
        %v3370 = vmul.f32 %v3337, %v2994
        %v3371 = vmul.f32 %v3341, %v2991
        %v3372 = vmul.f32 %v3341, %v2992
        %v3373 = vmul.f32 %v3341, %v2993
        %v3374 = vmul.f32 %v3341, %v2994
        %v3375 = vmul.f32 %v3345, %v2991
        %v3376 = vmul.f32 %v3345, %v2992
        %v3377 = vmul.f32 %v3345, %v2993
        %v3378 = vmul.f32 %v3345, %v2994
        %v3379 = vadd.f32 %v3283, %v3347
        %v3380 = vadd.f32 %v3284, %v3348
        %v3381 = vadd.f32 %v3285, %v3349
        %v3382 = vadd.f32 %v3286, %v3350
        %v3383 = vadd.f32 %v3287, %v3351
        %v3384 = vadd.f32 %v3288, %v3352
        %v3385 = vadd.f32 %v3289, %v3353
        %v3386 = vadd.f32 %v3290, %v3354
        %v3387 = vadd.f32 %v3291, %v3355
        %v3388 = vadd.f32 %v3292, %v3356
        %v3389 = vadd.f32 %v3293, %v3357
        %v3390 = vadd.f32 %v3294, %v3358
        %v3391 = vadd.f32 %v3295, %v3359
        %v3392 = vadd.f32 %v3296, %v3360
        %v3393 = vadd.f32 %v3297, %v3361
        %v3394 = vadd.f32 %v3298, %v3362
        %v3395 = vadd.f32 %v3299, %v3363
        %v3396 = vadd.f32 %v3300, %v3364
        %v3397 = vadd.f32 %v3301, %v3365
        %v3398 = vadd.f32 %v3302, %v3366
        %v3399 = vadd.f32 %v3303, %v3367
        %v3400 = vadd.f32 %v3304, %v3368
        %v3401 = vadd.f32 %v3305, %v3369
        %v3402 = vadd.f32 %v3306, %v3370
        %v3403 = vadd.f32 %v3307, %v3371
        %v3404 = vadd.f32 %v3308, %v3372
        %v3405 = vadd.f32 %v3309, %v3373
        %v3406 = vadd.f32 %v3310, %v3374
        %v3407 = vadd.f32 %v3311, %v3375
        %v3408 = vadd.f32 %v3312, %v3376
        %v3409 = vadd.f32 %v3313, %v3377
        %v3410 = vadd.f32 %v3314, %v3378
        %3411 = vset.pattern.permute.xlu0 4
        %3412 = vperm.xlu0 %3411, %v2998
        %v3413 = vpop.permute.xlu0 %3412
        %3415 = vset.pattern.permute.xlu0 4
        %3416 = vperm.xlu0 %3415, %v3002
        %v3417 = vpop.permute.xlu0 %3416
        %3419 = vset.pattern.permute.xlu0 4
        %3420 = vperm.xlu0 %3419, %v3006
        %v3421 = vpop.permute.xlu0 %3420
        %3423 = vset.pattern.permute.xlu0 4
        %3424 = vperm.xlu0 %3423, %v3010
        %v3425 = vpop.permute.xlu0 %3424
        %3427 = vset.pattern.permute.xlu0 4
        %3428 = vperm.xlu0 %3427, %v3014
        %v3429 = vpop.permute.xlu0 %3428
        %3431 = vset.pattern.permute.xlu0 4
        %3432 = vperm.xlu0 %3431, %v3018
        %v3433 = vpop.permute.xlu0 %3432
        %3435 = vset.pattern.permute.xlu0 4
        %3436 = vperm.xlu0 %3435, %v3022
        %v3437 = vpop.permute.xlu0 %3436
        %3439 = vset.pattern.permute.xlu0 4
        %3440 = vperm.xlu0 %3439, %v3026
        %v3441 = vpop.permute.xlu0 %3440
        %v3443 = vmul.f32 %v3413, %v2979
        %v3444 = vmul.f32 %v3413, %v2980
        %v3445 = vmul.f32 %v3413, %v2981
        %v3446 = vmul.f32 %v3413, %v2982
        %v3447 = vmul.f32 %v3417, %v2979
        %v3448 = vmul.f32 %v3417, %v2980
        %v3449 = vmul.f32 %v3417, %v2981
        %v3450 = vmul.f32 %v3417, %v2982
        %v3451 = vmul.f32 %v3421, %v2979
        %v3452 = vmul.f32 %v3421, %v2980
        %v3453 = vmul.f32 %v3421, %v2981
        %v3454 = vmul.f32 %v3421, %v2982
        %v3455 = vmul.f32 %v3425, %v2979
        %v3456 = vmul.f32 %v3425, %v2980
        %v3457 = vmul.f32 %v3425, %v2981
        %v3458 = vmul.f32 %v3425, %v2982
        %v3459 = vmul.f32 %v3429, %v2979
        %v3460 = vmul.f32 %v3429, %v2980
        %v3461 = vmul.f32 %v3429, %v2981
        %v3462 = vmul.f32 %v3429, %v2982
        %v3463 = vmul.f32 %v3433, %v2979
        %v3464 = vmul.f32 %v3433, %v2980
        %v3465 = vmul.f32 %v3433, %v2981
        %v3466 = vmul.f32 %v3433, %v2982
        %v3467 = vmul.f32 %v3437, %v2979
        %v3468 = vmul.f32 %v3437, %v2980
        %v3469 = vmul.f32 %v3437, %v2981
        %v3470 = vmul.f32 %v3437, %v2982
        %v3471 = vmul.f32 %v3441, %v2979
        %v3472 = vmul.f32 %v3441, %v2980
        %v3473 = vmul.f32 %v3441, %v2981
        %v3474 = vmul.f32 %v3441, %v2982
        %3507 = vrot.lane.b32.xlu0 %v3443, 127
        %v3508 = vpop.permute.xlu0 %3507
        %3509 = vrot.lane.b32.xlu0 %v3444, 127
        %v3510 = vpop.permute.xlu0 %3509
        %3511 = vrot.lane.b32.xlu0 %v3445, 127
        %v3512 = vpop.permute.xlu0 %3511
        %3513 = vrot.lane.b32.xlu0 %v3446, 127
        %v3514 = vpop.permute.xlu0 %3513
        %3515 = vrot.lane.b32.xlu0 %v3447, 127
        %v3516 = vpop.permute.xlu0 %3515
        %3517 = vrot.lane.b32.xlu0 %v3448, 127
        %v3518 = vpop.permute.xlu0 %3517
        %3519 = vrot.lane.b32.xlu0 %v3449, 127
        %v3520 = vpop.permute.xlu0 %3519
        %3521 = vrot.lane.b32.xlu0 %v3450, 127
        %v3522 = vpop.permute.xlu0 %3521
        %3523 = vrot.lane.b32.xlu0 %v3451, 127
        %v3524 = vpop.permute.xlu0 %3523
        %3525 = vrot.lane.b32.xlu0 %v3452, 127
        %v3526 = vpop.permute.xlu0 %3525
        %3527 = vrot.lane.b32.xlu0 %v3453, 127
        %v3528 = vpop.permute.xlu0 %3527
        %3529 = vrot.lane.b32.xlu0 %v3454, 127
        %v3530 = vpop.permute.xlu0 %3529
        %3531 = vrot.lane.b32.xlu0 %v3455, 127
        %v3532 = vpop.permute.xlu0 %3531
        %3533 = vrot.lane.b32.xlu0 %v3456, 127
        %v3534 = vpop.permute.xlu0 %3533
        %3535 = vrot.lane.b32.xlu0 %v3457, 127
        %v3536 = vpop.permute.xlu0 %3535
        %3537 = vrot.lane.b32.xlu0 %v3458, 127
        %v3538 = vpop.permute.xlu0 %3537
        %3539 = vrot.lane.b32.xlu0 %v3459, 127
        %v3540 = vpop.permute.xlu0 %3539
        %3541 = vrot.lane.b32.xlu0 %v3460, 127
        %v3542 = vpop.permute.xlu0 %3541
        %3543 = vrot.lane.b32.xlu0 %v3461, 127
        %v3544 = vpop.permute.xlu0 %3543
        %3545 = vrot.lane.b32.xlu0 %v3462, 127
        %v3546 = vpop.permute.xlu0 %3545
        %3547 = vrot.lane.b32.xlu0 %v3463, 127
        %v3548 = vpop.permute.xlu0 %3547
        %3549 = vrot.lane.b32.xlu0 %v3464, 127
        %v3550 = vpop.permute.xlu0 %3549
        %3551 = vrot.lane.b32.xlu0 %v3465, 127
        %v3552 = vpop.permute.xlu0 %3551
        %3553 = vrot.lane.b32.xlu0 %v3466, 127
        %v3554 = vpop.permute.xlu0 %3553
        %3555 = vrot.lane.b32.xlu0 %v3467, 127
        %v3556 = vpop.permute.xlu0 %3555
        %3557 = vrot.lane.b32.xlu0 %v3468, 127
        %v3558 = vpop.permute.xlu0 %3557
        %3559 = vrot.lane.b32.xlu0 %v3469, 127
        %v3560 = vpop.permute.xlu0 %3559
        %3561 = vrot.lane.b32.xlu0 %v3470, 127
        %v3562 = vpop.permute.xlu0 %3561
        %3563 = vrot.lane.b32.xlu0 %v3471, 127
        %v3564 = vpop.permute.xlu0 %3563
        %3565 = vrot.lane.b32.xlu0 %v3472, 127
        %v3566 = vpop.permute.xlu0 %3565
        %3567 = vrot.lane.b32.xlu0 %v3473, 127
        %v3568 = vpop.permute.xlu0 %3567
        %3569 = vrot.lane.b32.xlu0 %v3474, 127
        %v3570 = vpop.permute.xlu0 %3569
        %v3603 = vadd.f32 %v3379, %v3508
        %v3604 = vadd.f32 %v3380, %v3510
        %v3605 = vadd.f32 %v3381, %v3512
        %v3606 = vadd.f32 %v3382, %v3514
        %v3607 = vadd.f32 %v3383, %v3516
        %v3608 = vadd.f32 %v3384, %v3518
        %v3609 = vadd.f32 %v3385, %v3520
        %v3610 = vadd.f32 %v3386, %v3522
        %v3611 = vadd.f32 %v3387, %v3524
        %v3612 = vadd.f32 %v3388, %v3526
        %v3613 = vadd.f32 %v3389, %v3528
        %v3614 = vadd.f32 %v3390, %v3530
        %v3615 = vadd.f32 %v3391, %v3532
        %v3616 = vadd.f32 %v3392, %v3534
        %v3617 = vadd.f32 %v3393, %v3536
        %v3618 = vadd.f32 %v3394, %v3538
        %v3619 = vadd.f32 %v3395, %v3540
        %v3620 = vadd.f32 %v3396, %v3542
        %v3621 = vadd.f32 %v3397, %v3544
        %v3622 = vadd.f32 %v3398, %v3546
        %v3623 = vadd.f32 %v3399, %v3548
        %v3624 = vadd.f32 %v3400, %v3550
        %v3625 = vadd.f32 %v3401, %v3552
        %v3626 = vadd.f32 %v3402, %v3554
        %v3627 = vadd.f32 %v3403, %v3556
        %v3628 = vadd.f32 %v3404, %v3558
        %v3629 = vadd.f32 %v3405, %v3560
        %v3630 = vadd.f32 %v3406, %v3562
        %v3631 = vadd.f32 %v3407, %v3564
        %v3632 = vadd.f32 %v3408, %v3566
        %v3633 = vadd.f32 %v3409, %v3568
        %v3634 = vadd.f32 %v3410, %v3570
        %3635 = vset.pattern.permute.xlu0 5
        %3636 = vperm.xlu0 %3635, %v2998
        %v3637 = vpop.permute.xlu0 %3636
        %3639 = vset.pattern.permute.xlu0 5
        %3640 = vperm.xlu0 %3639, %v3002
        %v3641 = vpop.permute.xlu0 %3640
        %3643 = vset.pattern.permute.xlu0 5
        %3644 = vperm.xlu0 %3643, %v3006
        %v3645 = vpop.permute.xlu0 %3644
        %3647 = vset.pattern.permute.xlu0 5
        %3648 = vperm.xlu0 %3647, %v3010
        %v3649 = vpop.permute.xlu0 %3648
        %3651 = vset.pattern.permute.xlu0 5
        %3652 = vperm.xlu0 %3651, %v3014
        %v3653 = vpop.permute.xlu0 %3652
        %3655 = vset.pattern.permute.xlu0 5
        %3656 = vperm.xlu0 %3655, %v3018
        %v3657 = vpop.permute.xlu0 %3656
        %3659 = vset.pattern.permute.xlu0 5
        %3660 = vperm.xlu0 %3659, %v3022
        %v3661 = vpop.permute.xlu0 %3660
        %3663 = vset.pattern.permute.xlu0 5
        %3664 = vperm.xlu0 %3663, %v3026
        %v3665 = vpop.permute.xlu0 %3664
        %v3667 = vmul.f32 %v3637, %v2983
        %v3668 = vmul.f32 %v3637, %v2984
        %v3669 = vmul.f32 %v3637, %v2985
        %v3670 = vmul.f32 %v3637, %v2986
        %v3671 = vmul.f32 %v3641, %v2983
        %v3672 = vmul.f32 %v3641, %v2984
        %v3673 = vmul.f32 %v3641, %v2985
        %v3674 = vmul.f32 %v3641, %v2986
        %v3675 = vmul.f32 %v3645, %v2983
        %v3676 = vmul.f32 %v3645, %v2984
        %v3677 = vmul.f32 %v3645, %v2985
        %v3678 = vmul.f32 %v3645, %v2986
        %v3679 = vmul.f32 %v3649, %v2983
        %v3680 = vmul.f32 %v3649, %v2984
        %v3681 = vmul.f32 %v3649, %v2985
        %v3682 = vmul.f32 %v3649, %v2986
        %v3683 = vmul.f32 %v3653, %v2983
        %v3684 = vmul.f32 %v3653, %v2984
        %v3685 = vmul.f32 %v3653, %v2985
        %v3686 = vmul.f32 %v3653, %v2986
        %v3687 = vmul.f32 %v3657, %v2983
        %v3688 = vmul.f32 %v3657, %v2984
        %v3689 = vmul.f32 %v3657, %v2985
        %v3690 = vmul.f32 %v3657, %v2986
        %v3691 = vmul.f32 %v3661, %v2983
        %v3692 = vmul.f32 %v3661, %v2984
        %v3693 = vmul.f32 %v3661, %v2985
        %v3694 = vmul.f32 %v3661, %v2986
        %v3695 = vmul.f32 %v3665, %v2983
        %v3696 = vmul.f32 %v3665, %v2984
        %v3697 = vmul.f32 %v3665, %v2985
        %v3698 = vmul.f32 %v3665, %v2986
        %3731 = vrot.lane.b32.xlu0 %v3667, 127
        %v3732 = vpop.permute.xlu0 %3731
        %3733 = vrot.lane.b32.xlu0 %v3668, 127
        %v3734 = vpop.permute.xlu0 %3733
        %3735 = vrot.lane.b32.xlu0 %v3669, 127
        %v3736 = vpop.permute.xlu0 %3735
        %3737 = vrot.lane.b32.xlu0 %v3670, 127
        %v3738 = vpop.permute.xlu0 %3737
        %3739 = vrot.lane.b32.xlu0 %v3671, 127
        %v3740 = vpop.permute.xlu0 %3739
        %3741 = vrot.lane.b32.xlu0 %v3672, 127
        %v3742 = vpop.permute.xlu0 %3741
        %3743 = vrot.lane.b32.xlu0 %v3673, 127
        %v3744 = vpop.permute.xlu0 %3743
        %3745 = vrot.lane.b32.xlu0 %v3674, 127
        %v3746 = vpop.permute.xlu0 %3745
        %3747 = vrot.lane.b32.xlu0 %v3675, 127
        %v3748 = vpop.permute.xlu0 %3747
        %3749 = vrot.lane.b32.xlu0 %v3676, 127
        %v3750 = vpop.permute.xlu0 %3749
        %3751 = vrot.lane.b32.xlu0 %v3677, 127
        %v3752 = vpop.permute.xlu0 %3751
        %3753 = vrot.lane.b32.xlu0 %v3678, 127
        %v3754 = vpop.permute.xlu0 %3753
        %3755 = vrot.lane.b32.xlu0 %v3679, 127
        %v3756 = vpop.permute.xlu0 %3755
        %3757 = vrot.lane.b32.xlu0 %v3680, 127
        %v3758 = vpop.permute.xlu0 %3757
        %3759 = vrot.lane.b32.xlu0 %v3681, 127
        %v3760 = vpop.permute.xlu0 %3759
        %3761 = vrot.lane.b32.xlu0 %v3682, 127
        %v3762 = vpop.permute.xlu0 %3761
        %3763 = vrot.lane.b32.xlu0 %v3683, 127
        %v3764 = vpop.permute.xlu0 %3763
        %3765 = vrot.lane.b32.xlu0 %v3684, 127
        %v3766 = vpop.permute.xlu0 %3765
        %3767 = vrot.lane.b32.xlu0 %v3685, 127
        %v3768 = vpop.permute.xlu0 %3767
        %3769 = vrot.lane.b32.xlu0 %v3686, 127
        %v3770 = vpop.permute.xlu0 %3769
        %3771 = vrot.lane.b32.xlu0 %v3687, 127
        %v3772 = vpop.permute.xlu0 %3771
        %3773 = vrot.lane.b32.xlu0 %v3688, 127
        %v3774 = vpop.permute.xlu0 %3773
        %3775 = vrot.lane.b32.xlu0 %v3689, 127
        %v3776 = vpop.permute.xlu0 %3775
        %3777 = vrot.lane.b32.xlu0 %v3690, 127
        %v3778 = vpop.permute.xlu0 %3777
        %3779 = vrot.lane.b32.xlu0 %v3691, 127
        %v3780 = vpop.permute.xlu0 %3779
        %3781 = vrot.lane.b32.xlu0 %v3692, 127
        %v3782 = vpop.permute.xlu0 %3781
        %3783 = vrot.lane.b32.xlu0 %v3693, 127
        %v3784 = vpop.permute.xlu0 %3783
        %3785 = vrot.lane.b32.xlu0 %v3694, 127
        %v3786 = vpop.permute.xlu0 %3785
        %3787 = vrot.lane.b32.xlu0 %v3695, 127
        %v3788 = vpop.permute.xlu0 %3787
        %3789 = vrot.lane.b32.xlu0 %v3696, 127
        %v3790 = vpop.permute.xlu0 %3789
        %3791 = vrot.lane.b32.xlu0 %v3697, 127
        %v3792 = vpop.permute.xlu0 %3791
        %3793 = vrot.lane.b32.xlu0 %v3698, 127
        %v3794 = vpop.permute.xlu0 %3793
        %v3827 = vadd.f32 %v3603, %v3732
        %v3828 = vadd.f32 %v3604, %v3734
        %v3829 = vadd.f32 %v3605, %v3736
        %v3830 = vadd.f32 %v3606, %v3738
        %v3831 = vadd.f32 %v3607, %v3740
        %v3832 = vadd.f32 %v3608, %v3742
        %v3833 = vadd.f32 %v3609, %v3744
        %v3834 = vadd.f32 %v3610, %v3746
        %v3835 = vadd.f32 %v3611, %v3748
        %v3836 = vadd.f32 %v3612, %v3750
        %v3837 = vadd.f32 %v3613, %v3752
        %v3838 = vadd.f32 %v3614, %v3754
        %v3839 = vadd.f32 %v3615, %v3756
        %v3840 = vadd.f32 %v3616, %v3758
        %v3841 = vadd.f32 %v3617, %v3760
        %v3842 = vadd.f32 %v3618, %v3762
        %v3843 = vadd.f32 %v3619, %v3764
        %v3844 = vadd.f32 %v3620, %v3766
        %v3845 = vadd.f32 %v3621, %v3768
        %v3846 = vadd.f32 %v3622, %v3770
        %v3847 = vadd.f32 %v3623, %v3772
        %v3848 = vadd.f32 %v3624, %v3774
        %v3849 = vadd.f32 %v3625, %v3776
        %v3850 = vadd.f32 %v3626, %v3778
        %v3851 = vadd.f32 %v3627, %v3780
        %v3852 = vadd.f32 %v3628, %v3782
        %v3853 = vadd.f32 %v3629, %v3784
        %v3854 = vadd.f32 %v3630, %v3786
        %v3855 = vadd.f32 %v3631, %v3788
        %v3856 = vadd.f32 %v3632, %v3790
        %v3857 = vadd.f32 %v3633, %v3792
        %v3858 = vadd.f32 %v3634, %v3794
        %3859 = vset.pattern.permute.xlu0 6
        %3860 = vperm.xlu0 %3859, %v2998
        %v3861 = vpop.permute.xlu0 %3860
        %3863 = vset.pattern.permute.xlu0 6
        %3864 = vperm.xlu0 %3863, %v3002
        %v3865 = vpop.permute.xlu0 %3864
        %3867 = vset.pattern.permute.xlu0 6
        %3868 = vperm.xlu0 %3867, %v3006
        %v3869 = vpop.permute.xlu0 %3868
        %3871 = vset.pattern.permute.xlu0 6
        %3872 = vperm.xlu0 %3871, %v3010
        %v3873 = vpop.permute.xlu0 %3872
        %3875 = vset.pattern.permute.xlu0 6
        %3876 = vperm.xlu0 %3875, %v3014
        %v3877 = vpop.permute.xlu0 %3876
        %3879 = vset.pattern.permute.xlu0 6
        %3880 = vperm.xlu0 %3879, %v3018
        %v3881 = vpop.permute.xlu0 %3880
        %3883 = vset.pattern.permute.xlu0 6
        %3884 = vperm.xlu0 %3883, %v3022
        %v3885 = vpop.permute.xlu0 %3884
        %3887 = vset.pattern.permute.xlu0 6
        %3888 = vperm.xlu0 %3887, %v3026
        %v3889 = vpop.permute.xlu0 %3888
        %v3891 = vmul.f32 %v3861, %v2987
        %v3892 = vmul.f32 %v3861, %v2988
        %v3893 = vmul.f32 %v3861, %v2989
        %v3894 = vmul.f32 %v3861, %v2990
        %v3895 = vmul.f32 %v3865, %v2987
        %v3896 = vmul.f32 %v3865, %v2988
        %v3897 = vmul.f32 %v3865, %v2989
        %v3898 = vmul.f32 %v3865, %v2990
        %v3899 = vmul.f32 %v3869, %v2987
        %v3900 = vmul.f32 %v3869, %v2988
        %v3901 = vmul.f32 %v3869, %v2989
        %v3902 = vmul.f32 %v3869, %v2990
        %v3903 = vmul.f32 %v3873, %v2987
        %v3904 = vmul.f32 %v3873, %v2988
        %v3905 = vmul.f32 %v3873, %v2989
        %v3906 = vmul.f32 %v3873, %v2990
        %v3907 = vmul.f32 %v3877, %v2987
        %v3908 = vmul.f32 %v3877, %v2988
        %v3909 = vmul.f32 %v3877, %v2989
        %v3910 = vmul.f32 %v3877, %v2990
        %v3911 = vmul.f32 %v3881, %v2987
        %v3912 = vmul.f32 %v3881, %v2988
        %v3913 = vmul.f32 %v3881, %v2989
        %v3914 = vmul.f32 %v3881, %v2990
        %v3915 = vmul.f32 %v3885, %v2987
        %v3916 = vmul.f32 %v3885, %v2988
        %v3917 = vmul.f32 %v3885, %v2989
        %v3918 = vmul.f32 %v3885, %v2990
        %v3919 = vmul.f32 %v3889, %v2987
        %v3920 = vmul.f32 %v3889, %v2988
        %v3921 = vmul.f32 %v3889, %v2989
        %v3922 = vmul.f32 %v3889, %v2990
        %3955 = vrot.lane.b32.xlu0 %v3891, 127
        %v3956 = vpop.permute.xlu0 %3955
        %3957 = vrot.lane.b32.xlu0 %v3892, 127
        %v3958 = vpop.permute.xlu0 %3957
        %3959 = vrot.lane.b32.xlu0 %v3893, 127
        %v3960 = vpop.permute.xlu0 %3959
        %3961 = vrot.lane.b32.xlu0 %v3894, 127
        %v3962 = vpop.permute.xlu0 %3961
        %3963 = vrot.lane.b32.xlu0 %v3895, 127
        %v3964 = vpop.permute.xlu0 %3963
        %3965 = vrot.lane.b32.xlu0 %v3896, 127
        %v3966 = vpop.permute.xlu0 %3965
        %3967 = vrot.lane.b32.xlu0 %v3897, 127
        %v3968 = vpop.permute.xlu0 %3967
        %3969 = vrot.lane.b32.xlu0 %v3898, 127
        %v3970 = vpop.permute.xlu0 %3969
        %3971 = vrot.lane.b32.xlu0 %v3899, 127
        %v3972 = vpop.permute.xlu0 %3971
        %3973 = vrot.lane.b32.xlu0 %v3900, 127
        %v3974 = vpop.permute.xlu0 %3973
        %3975 = vrot.lane.b32.xlu0 %v3901, 127
        %v3976 = vpop.permute.xlu0 %3975
        %3977 = vrot.lane.b32.xlu0 %v3902, 127
        %v3978 = vpop.permute.xlu0 %3977
        %3979 = vrot.lane.b32.xlu0 %v3903, 127
        %v3980 = vpop.permute.xlu0 %3979
        %3981 = vrot.lane.b32.xlu0 %v3904, 127
        %v3982 = vpop.permute.xlu0 %3981
        %3983 = vrot.lane.b32.xlu0 %v3905, 127
        %v3984 = vpop.permute.xlu0 %3983
        %3985 = vrot.lane.b32.xlu0 %v3906, 127
        %v3986 = vpop.permute.xlu0 %3985
        %3987 = vrot.lane.b32.xlu0 %v3907, 127
        %v3988 = vpop.permute.xlu0 %3987
        %3989 = vrot.lane.b32.xlu0 %v3908, 127
        %v3990 = vpop.permute.xlu0 %3989
        %3991 = vrot.lane.b32.xlu0 %v3909, 127
        %v3992 = vpop.permute.xlu0 %3991
        %3993 = vrot.lane.b32.xlu0 %v3910, 127
        %v3994 = vpop.permute.xlu0 %3993
        %3995 = vrot.lane.b32.xlu0 %v3911, 127
        %v3996 = vpop.permute.xlu0 %3995
        %3997 = vrot.lane.b32.xlu0 %v3912, 127
        %v3998 = vpop.permute.xlu0 %3997
        %3999 = vrot.lane.b32.xlu0 %v3913, 127
        %v4000 = vpop.permute.xlu0 %3999
        %4001 = vrot.lane.b32.xlu0 %v3914, 127
        %v4002 = vpop.permute.xlu0 %4001
        %4003 = vrot.lane.b32.xlu0 %v3915, 127
        %v4004 = vpop.permute.xlu0 %4003
        %4005 = vrot.lane.b32.xlu0 %v3916, 127
        %v4006 = vpop.permute.xlu0 %4005
        %4007 = vrot.lane.b32.xlu0 %v3917, 127
        %v4008 = vpop.permute.xlu0 %4007
        %4009 = vrot.lane.b32.xlu0 %v3918, 127
        %v4010 = vpop.permute.xlu0 %4009
        %4011 = vrot.lane.b32.xlu0 %v3919, 127
        %v4012 = vpop.permute.xlu0 %4011
        %4013 = vrot.lane.b32.xlu0 %v3920, 127
        %v4014 = vpop.permute.xlu0 %4013
        %4015 = vrot.lane.b32.xlu0 %v3921, 127
        %v4016 = vpop.permute.xlu0 %4015
        %4017 = vrot.lane.b32.xlu0 %v3922, 127
        %v4018 = vpop.permute.xlu0 %4017
        %v4051 = vadd.f32 %v3827, %v3956
        %v4052 = vadd.f32 %v3828, %v3958
        %v4053 = vadd.f32 %v3829, %v3960
        %v4054 = vadd.f32 %v3830, %v3962
        %v4055 = vadd.f32 %v3831, %v3964
        %v4056 = vadd.f32 %v3832, %v3966
        %v4057 = vadd.f32 %v3833, %v3968
        %v4058 = vadd.f32 %v3834, %v3970
        %v4059 = vadd.f32 %v3835, %v3972
        %v4060 = vadd.f32 %v3836, %v3974
        %v4061 = vadd.f32 %v3837, %v3976
        %v4062 = vadd.f32 %v3838, %v3978
        %v4063 = vadd.f32 %v3839, %v3980
        %v4064 = vadd.f32 %v3840, %v3982
        %v4065 = vadd.f32 %v3841, %v3984
        %v4066 = vadd.f32 %v3842, %v3986
        %v4067 = vadd.f32 %v3843, %v3988
        %v4068 = vadd.f32 %v3844, %v3990
        %v4069 = vadd.f32 %v3845, %v3992
        %v4070 = vadd.f32 %v3846, %v3994
        %v4071 = vadd.f32 %v3847, %v3996
        %v4072 = vadd.f32 %v3848, %v3998
        %v4073 = vadd.f32 %v3849, %v4000
        %v4074 = vadd.f32 %v3850, %v4002
        %v4075 = vadd.f32 %v3851, %v4004
        %v4076 = vadd.f32 %v3852, %v4006
        %v4077 = vadd.f32 %v3853, %v4008
        %v4078 = vadd.f32 %v3854, %v4010
        %v4079 = vadd.f32 %v3855, %v4012
        %v4080 = vadd.f32 %v3856, %v4014
        %v4081 = vadd.f32 %v3857, %v4016
        %v4082 = vadd.f32 %v3858, %v4018
        %4083 = vset.pattern.permute.xlu0 7
        %4084 = vperm.xlu0 %4083, %v2998
        %v4085 = vpop.permute.xlu0 %4084
        %4087 = vset.pattern.permute.xlu0 7
        %4088 = vperm.xlu0 %4087, %v3002
        %v4089 = vpop.permute.xlu0 %4088
        %4091 = vset.pattern.permute.xlu0 7
        %4092 = vperm.xlu0 %4091, %v3006
        %v4093 = vpop.permute.xlu0 %4092
        %4095 = vset.pattern.permute.xlu0 7
        %4096 = vperm.xlu0 %4095, %v3010
        %v4097 = vpop.permute.xlu0 %4096
        %4099 = vset.pattern.permute.xlu0 7
        %4100 = vperm.xlu0 %4099, %v3014
        %v4101 = vpop.permute.xlu0 %4100
        %4103 = vset.pattern.permute.xlu0 7
        %4104 = vperm.xlu0 %4103, %v3018
        %v4105 = vpop.permute.xlu0 %4104
        %4107 = vset.pattern.permute.xlu0 7
        %4108 = vperm.xlu0 %4107, %v3022
        %v4109 = vpop.permute.xlu0 %4108
        %4111 = vset.pattern.permute.xlu0 7
        %4112 = vperm.xlu0 %4111, %v3026
        %v4113 = vpop.permute.xlu0 %4112
        %v4115 = vmul.f32 %v4085, %v2991
        %v4116 = vmul.f32 %v4085, %v2992
        %v4117 = vmul.f32 %v4085, %v2993
        %v4118 = vmul.f32 %v4085, %v2994
        %v4119 = vmul.f32 %v4089, %v2991
        %v4120 = vmul.f32 %v4089, %v2992
        %v4121 = vmul.f32 %v4089, %v2993
        %v4122 = vmul.f32 %v4089, %v2994
        %v4123 = vmul.f32 %v4093, %v2991
        %v4124 = vmul.f32 %v4093, %v2992
        %v4125 = vmul.f32 %v4093, %v2993
        %v4126 = vmul.f32 %v4093, %v2994
        %v4127 = vmul.f32 %v4097, %v2991
        %v4128 = vmul.f32 %v4097, %v2992
        %v4129 = vmul.f32 %v4097, %v2993
        %v4130 = vmul.f32 %v4097, %v2994
        %v4131 = vmul.f32 %v4101, %v2991
        %v4132 = vmul.f32 %v4101, %v2992
        %v4133 = vmul.f32 %v4101, %v2993
        %v4134 = vmul.f32 %v4101, %v2994
        %v4135 = vmul.f32 %v4105, %v2991
        %v4136 = vmul.f32 %v4105, %v2992
        %v4137 = vmul.f32 %v4105, %v2993
        %v4138 = vmul.f32 %v4105, %v2994
        %v4139 = vmul.f32 %v4109, %v2991
        %v4140 = vmul.f32 %v4109, %v2992
        %v4141 = vmul.f32 %v4109, %v2993
        %v4142 = vmul.f32 %v4109, %v2994
        %v4143 = vmul.f32 %v4113, %v2991
        %v4144 = vmul.f32 %v4113, %v2992
        %v4145 = vmul.f32 %v4113, %v2993
        %v4146 = vmul.f32 %v4113, %v2994
        %4179 = vrot.lane.b32.xlu0 %v4115, 127
        %v4180 = vpop.permute.xlu0 %4179
        %4181 = vrot.lane.b32.xlu0 %v4116, 127
        %v4182 = vpop.permute.xlu0 %4181
        %4183 = vrot.lane.b32.xlu0 %v4117, 127
        %v4184 = vpop.permute.xlu0 %4183
        %4185 = vrot.lane.b32.xlu0 %v4118, 127
        %v4186 = vpop.permute.xlu0 %4185
        %4187 = vrot.lane.b32.xlu0 %v4119, 127
        %v4188 = vpop.permute.xlu0 %4187
        %4189 = vrot.lane.b32.xlu0 %v4120, 127
        %v4190 = vpop.permute.xlu0 %4189
        %4191 = vrot.lane.b32.xlu0 %v4121, 127
        %v4192 = vpop.permute.xlu0 %4191
        %4193 = vrot.lane.b32.xlu0 %v4122, 127
        %v4194 = vpop.permute.xlu0 %4193
        %4195 = vrot.lane.b32.xlu0 %v4123, 127
        %v4196 = vpop.permute.xlu0 %4195
        %4197 = vrot.lane.b32.xlu0 %v4124, 127
        %v4198 = vpop.permute.xlu0 %4197
        %4199 = vrot.lane.b32.xlu0 %v4125, 127
        %v4200 = vpop.permute.xlu0 %4199
        %4201 = vrot.lane.b32.xlu0 %v4126, 127
        %v4202 = vpop.permute.xlu0 %4201
        %4203 = vrot.lane.b32.xlu0 %v4127, 127
        %v4204 = vpop.permute.xlu0 %4203
        %4205 = vrot.lane.b32.xlu0 %v4128, 127
        %v4206 = vpop.permute.xlu0 %4205
        %4207 = vrot.lane.b32.xlu0 %v4129, 127
        %v4208 = vpop.permute.xlu0 %4207
        %4209 = vrot.lane.b32.xlu0 %v4130, 127
        %v4210 = vpop.permute.xlu0 %4209
        %4211 = vrot.lane.b32.xlu0 %v4131, 127
        %v4212 = vpop.permute.xlu0 %4211
        %4213 = vrot.lane.b32.xlu0 %v4132, 127
        %v4214 = vpop.permute.xlu0 %4213
        %4215 = vrot.lane.b32.xlu0 %v4133, 127
        %v4216 = vpop.permute.xlu0 %4215
        %4217 = vrot.lane.b32.xlu0 %v4134, 127
        %v4218 = vpop.permute.xlu0 %4217
        %4219 = vrot.lane.b32.xlu0 %v4135, 127
        %v4220 = vpop.permute.xlu0 %4219
        %4221 = vrot.lane.b32.xlu0 %v4136, 127
        %v4222 = vpop.permute.xlu0 %4221
        %4223 = vrot.lane.b32.xlu0 %v4137, 127
        %v4224 = vpop.permute.xlu0 %4223
        %4225 = vrot.lane.b32.xlu0 %v4138, 127
        %v4226 = vpop.permute.xlu0 %4225
        %4227 = vrot.lane.b32.xlu0 %v4139, 127
        %v4228 = vpop.permute.xlu0 %4227
        %4229 = vrot.lane.b32.xlu0 %v4140, 127
        %v4230 = vpop.permute.xlu0 %4229
        %4231 = vrot.lane.b32.xlu0 %v4141, 127
        %v4232 = vpop.permute.xlu0 %4231
        %4233 = vrot.lane.b32.xlu0 %v4142, 127
        %v4234 = vpop.permute.xlu0 %4233
        %4235 = vrot.lane.b32.xlu0 %v4143, 127
        %v4236 = vpop.permute.xlu0 %4235
        %4237 = vrot.lane.b32.xlu0 %v4144, 127
        %v4238 = vpop.permute.xlu0 %4237
        %4239 = vrot.lane.b32.xlu0 %v4145, 127
        %v4240 = vpop.permute.xlu0 %4239
        %4241 = vrot.lane.b32.xlu0 %v4146, 127
        %v4242 = vpop.permute.xlu0 %4241
        %v4275 = vadd.f32 %v4051, %v4180
        %v4276 = vadd.f32 %v4052, %v4182
        %v4277 = vadd.f32 %v4053, %v4184
        %v4278 = vadd.f32 %v4054, %v4186
        %v4279 = vadd.f32 %v4055, %v4188
        %v4280 = vadd.f32 %v4056, %v4190
        %v4281 = vadd.f32 %v4057, %v4192
        %v4282 = vadd.f32 %v4058, %v4194
        %v4283 = vadd.f32 %v4059, %v4196
        %v4284 = vadd.f32 %v4060, %v4198
        %v4285 = vadd.f32 %v4061, %v4200
        %v4286 = vadd.f32 %v4062, %v4202
        %v4287 = vadd.f32 %v4063, %v4204
        %v4288 = vadd.f32 %v4064, %v4206
        %v4289 = vadd.f32 %v4065, %v4208
        %v4290 = vadd.f32 %v4066, %v4210
        %v4291 = vadd.f32 %v4067, %v4212
        %v4292 = vadd.f32 %v4068, %v4214
        %v4293 = vadd.f32 %v4069, %v4216
        %v4294 = vadd.f32 %v4070, %v4218
        %v4295 = vadd.f32 %v4071, %v4220
        %v4296 = vadd.f32 %v4072, %v4222
        %v4297 = vadd.f32 %v4073, %v4224
        %v4298 = vadd.f32 %v4074, %v4226
        %v4299 = vadd.f32 %v4075, %v4228
        %v4300 = vadd.f32 %v4076, %v4230
        %v4301 = vadd.f32 %v4077, %v4232
        %v4302 = vadd.f32 %v4078, %v4234
        %v4303 = vadd.f32 %v4079, %v4236
        %v4304 = vadd.f32 %v4080, %v4238
        %v4305 = vadd.f32 %v4081, %v4240
        %v4306 = vadd.f32 %v4082, %v4242
        %4307 = vset.pattern.permute.xlu0 8
        %4308 = vperm.xlu0 %4307, %v2998
        %v4309 = vpop.permute.xlu0 %4308
        %4311 = vset.pattern.permute.xlu0 8
        %4312 = vperm.xlu0 %4311, %v3002
        %v4313 = vpop.permute.xlu0 %4312
        %4315 = vset.pattern.permute.xlu0 8
        %4316 = vperm.xlu0 %4315, %v3006
        %v4317 = vpop.permute.xlu0 %4316
        %4319 = vset.pattern.permute.xlu0 8
        %4320 = vperm.xlu0 %4319, %v3010
        %v4321 = vpop.permute.xlu0 %4320
        %4323 = vset.pattern.permute.xlu0 8
        %4324 = vperm.xlu0 %4323, %v3014
        %v4325 = vpop.permute.xlu0 %4324
        %4327 = vset.pattern.permute.xlu0 8
        %4328 = vperm.xlu0 %4327, %v3018
        %v4329 = vpop.permute.xlu0 %4328
        %4331 = vset.pattern.permute.xlu0 8
        %4332 = vperm.xlu0 %4331, %v3022
        %v4333 = vpop.permute.xlu0 %4332
        %4335 = vset.pattern.permute.xlu0 8
        %4336 = vperm.xlu0 %4335, %v3026
        %v4337 = vpop.permute.xlu0 %4336
        %v4339 = vmul.f32 %v4309, %v2979
        %v4340 = vmul.f32 %v4309, %v2980
        %v4341 = vmul.f32 %v4309, %v2981
        %v4342 = vmul.f32 %v4309, %v2982
        %v4343 = vmul.f32 %v4313, %v2979
        %v4344 = vmul.f32 %v4313, %v2980
        %v4345 = vmul.f32 %v4313, %v2981
        %v4346 = vmul.f32 %v4313, %v2982
        %v4347 = vmul.f32 %v4317, %v2979
        %v4348 = vmul.f32 %v4317, %v2980
        %v4349 = vmul.f32 %v4317, %v2981
        %v4350 = vmul.f32 %v4317, %v2982
        %v4351 = vmul.f32 %v4321, %v2979
        %v4352 = vmul.f32 %v4321, %v2980
        %v4353 = vmul.f32 %v4321, %v2981
        %v4354 = vmul.f32 %v4321, %v2982
        %v4355 = vmul.f32 %v4325, %v2979
        %v4356 = vmul.f32 %v4325, %v2980
        %v4357 = vmul.f32 %v4325, %v2981
        %v4358 = vmul.f32 %v4325, %v2982
        %v4359 = vmul.f32 %v4329, %v2979
        %v4360 = vmul.f32 %v4329, %v2980
        %v4361 = vmul.f32 %v4329, %v2981
        %v4362 = vmul.f32 %v4329, %v2982
        %v4363 = vmul.f32 %v4333, %v2979
        %v4364 = vmul.f32 %v4333, %v2980
        %v4365 = vmul.f32 %v4333, %v2981
        %v4366 = vmul.f32 %v4333, %v2982
        %v4367 = vmul.f32 %v4337, %v2979
        %v4368 = vmul.f32 %v4337, %v2980
        %v4369 = vmul.f32 %v4337, %v2981
        %v4370 = vmul.f32 %v4337, %v2982
        %4403 = vrot.lane.b32.xlu0 %v4339, 126
        %v4404 = vpop.permute.xlu0 %4403
        %4405 = vrot.lane.b32.xlu0 %v4340, 126
        %v4406 = vpop.permute.xlu0 %4405
        %4407 = vrot.lane.b32.xlu0 %v4341, 126
        %v4408 = vpop.permute.xlu0 %4407
        %4409 = vrot.lane.b32.xlu0 %v4342, 126
        %v4410 = vpop.permute.xlu0 %4409
        %4411 = vrot.lane.b32.xlu0 %v4343, 126
        %v4412 = vpop.permute.xlu0 %4411
        %4413 = vrot.lane.b32.xlu0 %v4344, 126
        %v4414 = vpop.permute.xlu0 %4413
        %4415 = vrot.lane.b32.xlu0 %v4345, 126
        %v4416 = vpop.permute.xlu0 %4415
        %4417 = vrot.lane.b32.xlu0 %v4346, 126
        %v4418 = vpop.permute.xlu0 %4417
        %4419 = vrot.lane.b32.xlu0 %v4347, 126
        %v4420 = vpop.permute.xlu0 %4419
        %4421 = vrot.lane.b32.xlu0 %v4348, 126
        %v4422 = vpop.permute.xlu0 %4421
        %4423 = vrot.lane.b32.xlu0 %v4349, 126
        %v4424 = vpop.permute.xlu0 %4423
        %4425 = vrot.lane.b32.xlu0 %v4350, 126
        %v4426 = vpop.permute.xlu0 %4425
        %4427 = vrot.lane.b32.xlu0 %v4351, 126
        %v4428 = vpop.permute.xlu0 %4427
        %4429 = vrot.lane.b32.xlu0 %v4352, 126
        %v4430 = vpop.permute.xlu0 %4429
        %4431 = vrot.lane.b32.xlu0 %v4353, 126
        %v4432 = vpop.permute.xlu0 %4431
        %4433 = vrot.lane.b32.xlu0 %v4354, 126
        %v4434 = vpop.permute.xlu0 %4433
        %4435 = vrot.lane.b32.xlu0 %v4355, 126
        %v4436 = vpop.permute.xlu0 %4435
        %4437 = vrot.lane.b32.xlu0 %v4356, 126
        %v4438 = vpop.permute.xlu0 %4437
        %4439 = vrot.lane.b32.xlu0 %v4357, 126
        %v4440 = vpop.permute.xlu0 %4439
        %4441 = vrot.lane.b32.xlu0 %v4358, 126
        %v4442 = vpop.permute.xlu0 %4441
        %4443 = vrot.lane.b32.xlu0 %v4359, 126
        %v4444 = vpop.permute.xlu0 %4443
        %4445 = vrot.lane.b32.xlu0 %v4360, 126
        %v4446 = vpop.permute.xlu0 %4445
        %4447 = vrot.lane.b32.xlu0 %v4361, 126
        %v4448 = vpop.permute.xlu0 %4447
        %4449 = vrot.lane.b32.xlu0 %v4362, 126
        %v4450 = vpop.permute.xlu0 %4449
        %4451 = vrot.lane.b32.xlu0 %v4363, 126
        %v4452 = vpop.permute.xlu0 %4451
        %4453 = vrot.lane.b32.xlu0 %v4364, 126
        %v4454 = vpop.permute.xlu0 %4453
        %4455 = vrot.lane.b32.xlu0 %v4365, 126
        %v4456 = vpop.permute.xlu0 %4455
        %4457 = vrot.lane.b32.xlu0 %v4366, 126
        %v4458 = vpop.permute.xlu0 %4457
        %4459 = vrot.lane.b32.xlu0 %v4367, 126
        %v4460 = vpop.permute.xlu0 %4459
        %4461 = vrot.lane.b32.xlu0 %v4368, 126
        %v4462 = vpop.permute.xlu0 %4461
        %4463 = vrot.lane.b32.xlu0 %v4369, 126
        %v4464 = vpop.permute.xlu0 %4463
        %4465 = vrot.lane.b32.xlu0 %v4370, 126
        %v4466 = vpop.permute.xlu0 %4465
        %v4499 = vadd.f32 %v4275, %v4404
        %v4500 = vadd.f32 %v4276, %v4406
        %v4501 = vadd.f32 %v4277, %v4408
        %v4502 = vadd.f32 %v4278, %v4410
        %v4503 = vadd.f32 %v4279, %v4412
        %v4504 = vadd.f32 %v4280, %v4414
        %v4505 = vadd.f32 %v4281, %v4416
        %v4506 = vadd.f32 %v4282, %v4418
        %v4507 = vadd.f32 %v4283, %v4420
        %v4508 = vadd.f32 %v4284, %v4422
        %v4509 = vadd.f32 %v4285, %v4424
        %v4510 = vadd.f32 %v4286, %v4426
        %v4511 = vadd.f32 %v4287, %v4428
        %v4512 = vadd.f32 %v4288, %v4430
        %v4513 = vadd.f32 %v4289, %v4432
        %v4514 = vadd.f32 %v4290, %v4434
        %v4515 = vadd.f32 %v4291, %v4436
        %v4516 = vadd.f32 %v4292, %v4438
        %v4517 = vadd.f32 %v4293, %v4440
        %v4518 = vadd.f32 %v4294, %v4442
        %v4519 = vadd.f32 %v4295, %v4444
        %v4520 = vadd.f32 %v4296, %v4446
        %v4521 = vadd.f32 %v4297, %v4448
        %v4522 = vadd.f32 %v4298, %v4450
        %v4523 = vadd.f32 %v4299, %v4452
        %v4524 = vadd.f32 %v4300, %v4454
        %v4525 = vadd.f32 %v4301, %v4456
        %v4526 = vadd.f32 %v4302, %v4458
        %v4527 = vadd.f32 %v4303, %v4460
        %v4528 = vadd.f32 %v4304, %v4462
        %v4529 = vadd.f32 %v4305, %v4464
        %v4530 = vadd.f32 %v4306, %v4466
        %4531 = vset.pattern.permute.xlu0 9
        %4532 = vperm.xlu0 %4531, %v2998
        %v4533 = vpop.permute.xlu0 %4532
        %4535 = vset.pattern.permute.xlu0 9
        %4536 = vperm.xlu0 %4535, %v3002
        %v4537 = vpop.permute.xlu0 %4536
        %4539 = vset.pattern.permute.xlu0 9
        %4540 = vperm.xlu0 %4539, %v3006
        %v4541 = vpop.permute.xlu0 %4540
        %4543 = vset.pattern.permute.xlu0 9
        %4544 = vperm.xlu0 %4543, %v3010
        %v4545 = vpop.permute.xlu0 %4544
        %4547 = vset.pattern.permute.xlu0 9
        %4548 = vperm.xlu0 %4547, %v3014
        %v4549 = vpop.permute.xlu0 %4548
        %4551 = vset.pattern.permute.xlu0 9
        %4552 = vperm.xlu0 %4551, %v3018
        %v4553 = vpop.permute.xlu0 %4552
        %4555 = vset.pattern.permute.xlu0 9
        %4556 = vperm.xlu0 %4555, %v3022
        %v4557 = vpop.permute.xlu0 %4556
        %4559 = vset.pattern.permute.xlu0 9
        %4560 = vperm.xlu0 %4559, %v3026
        %v4561 = vpop.permute.xlu0 %4560
        %v4563 = vmul.f32 %v4533, %v2983
        %v4564 = vmul.f32 %v4533, %v2984
        %v4565 = vmul.f32 %v4533, %v2985
        %v4566 = vmul.f32 %v4533, %v2986
        %v4567 = vmul.f32 %v4537, %v2983
        %v4568 = vmul.f32 %v4537, %v2984
        %v4569 = vmul.f32 %v4537, %v2985
        %v4570 = vmul.f32 %v4537, %v2986
        %v4571 = vmul.f32 %v4541, %v2983
        %v4572 = vmul.f32 %v4541, %v2984
        %v4573 = vmul.f32 %v4541, %v2985
        %v4574 = vmul.f32 %v4541, %v2986
        %v4575 = vmul.f32 %v4545, %v2983
        %v4576 = vmul.f32 %v4545, %v2984
        %v4577 = vmul.f32 %v4545, %v2985
        %v4578 = vmul.f32 %v4545, %v2986
        %v4579 = vmul.f32 %v4549, %v2983
        %v4580 = vmul.f32 %v4549, %v2984
        %v4581 = vmul.f32 %v4549, %v2985
        %v4582 = vmul.f32 %v4549, %v2986
        %v4583 = vmul.f32 %v4553, %v2983
        %v4584 = vmul.f32 %v4553, %v2984
        %v4585 = vmul.f32 %v4553, %v2985
        %v4586 = vmul.f32 %v4553, %v2986
        %v4587 = vmul.f32 %v4557, %v2983
        %v4588 = vmul.f32 %v4557, %v2984
        %v4589 = vmul.f32 %v4557, %v2985
        %v4590 = vmul.f32 %v4557, %v2986
        %v4591 = vmul.f32 %v4561, %v2983
        %v4592 = vmul.f32 %v4561, %v2984
        %v4593 = vmul.f32 %v4561, %v2985
        %v4594 = vmul.f32 %v4561, %v2986
        %4627 = vrot.lane.b32.xlu0 %v4563, 126
        %v4628 = vpop.permute.xlu0 %4627
        %4629 = vrot.lane.b32.xlu0 %v4564, 126
        %v4630 = vpop.permute.xlu0 %4629
        %4631 = vrot.lane.b32.xlu0 %v4565, 126
        %v4632 = vpop.permute.xlu0 %4631
        %4633 = vrot.lane.b32.xlu0 %v4566, 126
        %v4634 = vpop.permute.xlu0 %4633
        %4635 = vrot.lane.b32.xlu0 %v4567, 126
        %v4636 = vpop.permute.xlu0 %4635
        %4637 = vrot.lane.b32.xlu0 %v4568, 126
        %v4638 = vpop.permute.xlu0 %4637
        %4639 = vrot.lane.b32.xlu0 %v4569, 126
        %v4640 = vpop.permute.xlu0 %4639
        %4641 = vrot.lane.b32.xlu0 %v4570, 126
        %v4642 = vpop.permute.xlu0 %4641
        %4643 = vrot.lane.b32.xlu0 %v4571, 126
        %v4644 = vpop.permute.xlu0 %4643
        %4645 = vrot.lane.b32.xlu0 %v4572, 126
        %v4646 = vpop.permute.xlu0 %4645
        %4647 = vrot.lane.b32.xlu0 %v4573, 126
        %v4648 = vpop.permute.xlu0 %4647
        %4649 = vrot.lane.b32.xlu0 %v4574, 126
        %v4650 = vpop.permute.xlu0 %4649
        %4651 = vrot.lane.b32.xlu0 %v4575, 126
        %v4652 = vpop.permute.xlu0 %4651
        %4653 = vrot.lane.b32.xlu0 %v4576, 126
        %v4654 = vpop.permute.xlu0 %4653
        %4655 = vrot.lane.b32.xlu0 %v4577, 126
        %v4656 = vpop.permute.xlu0 %4655
        %4657 = vrot.lane.b32.xlu0 %v4578, 126
        %v4658 = vpop.permute.xlu0 %4657
        %4659 = vrot.lane.b32.xlu0 %v4579, 126
        %v4660 = vpop.permute.xlu0 %4659
        %4661 = vrot.lane.b32.xlu0 %v4580, 126
        %v4662 = vpop.permute.xlu0 %4661
        %4663 = vrot.lane.b32.xlu0 %v4581, 126
        %v4664 = vpop.permute.xlu0 %4663
        %4665 = vrot.lane.b32.xlu0 %v4582, 126
        %v4666 = vpop.permute.xlu0 %4665
        %4667 = vrot.lane.b32.xlu0 %v4583, 126
        %v4668 = vpop.permute.xlu0 %4667
        %4669 = vrot.lane.b32.xlu0 %v4584, 126
        %v4670 = vpop.permute.xlu0 %4669
        %4671 = vrot.lane.b32.xlu0 %v4585, 126
        %v4672 = vpop.permute.xlu0 %4671
        %4673 = vrot.lane.b32.xlu0 %v4586, 126
        %v4674 = vpop.permute.xlu0 %4673
        %4675 = vrot.lane.b32.xlu0 %v4587, 126
        %v4676 = vpop.permute.xlu0 %4675
        %4677 = vrot.lane.b32.xlu0 %v4588, 126
        %v4678 = vpop.permute.xlu0 %4677
        %4679 = vrot.lane.b32.xlu0 %v4589, 126
        %v4680 = vpop.permute.xlu0 %4679
        %4681 = vrot.lane.b32.xlu0 %v4590, 126
        %v4682 = vpop.permute.xlu0 %4681
        %4683 = vrot.lane.b32.xlu0 %v4591, 126
        %v4684 = vpop.permute.xlu0 %4683
        %4685 = vrot.lane.b32.xlu0 %v4592, 126
        %v4686 = vpop.permute.xlu0 %4685
        %4687 = vrot.lane.b32.xlu0 %v4593, 126
        %v4688 = vpop.permute.xlu0 %4687
        %4689 = vrot.lane.b32.xlu0 %v4594, 126
        %v4690 = vpop.permute.xlu0 %4689
        %v4723 = vadd.f32 %v4499, %v4628
        %v4724 = vadd.f32 %v4500, %v4630
        %v4725 = vadd.f32 %v4501, %v4632
        %v4726 = vadd.f32 %v4502, %v4634
        %v4727 = vadd.f32 %v4503, %v4636
        %v4728 = vadd.f32 %v4504, %v4638
        %v4729 = vadd.f32 %v4505, %v4640
        %v4730 = vadd.f32 %v4506, %v4642
        %v4731 = vadd.f32 %v4507, %v4644
        %v4732 = vadd.f32 %v4508, %v4646
        %v4733 = vadd.f32 %v4509, %v4648
        %v4734 = vadd.f32 %v4510, %v4650
        %v4735 = vadd.f32 %v4511, %v4652
        %v4736 = vadd.f32 %v4512, %v4654
        %v4737 = vadd.f32 %v4513, %v4656
        %v4738 = vadd.f32 %v4514, %v4658
        %v4739 = vadd.f32 %v4515, %v4660
        %v4740 = vadd.f32 %v4516, %v4662
        %v4741 = vadd.f32 %v4517, %v4664
        %v4742 = vadd.f32 %v4518, %v4666
        %v4743 = vadd.f32 %v4519, %v4668
        %v4744 = vadd.f32 %v4520, %v4670
        %v4745 = vadd.f32 %v4521, %v4672
        %v4746 = vadd.f32 %v4522, %v4674
        %v4747 = vadd.f32 %v4523, %v4676
        %v4748 = vadd.f32 %v4524, %v4678
        %v4749 = vadd.f32 %v4525, %v4680
        %v4750 = vadd.f32 %v4526, %v4682
        %v4751 = vadd.f32 %v4527, %v4684
        %v4752 = vadd.f32 %v4528, %v4686
        %v4753 = vadd.f32 %v4529, %v4688
        %v4754 = vadd.f32 %v4530, %v4690
        %4755 = vset.pattern.permute.xlu0 10
        %4756 = vperm.xlu0 %4755, %v2998
        %v4757 = vpop.permute.xlu0 %4756
        %4759 = vset.pattern.permute.xlu0 10
        %4760 = vperm.xlu0 %4759, %v3002
        %v4761 = vpop.permute.xlu0 %4760
        %4763 = vset.pattern.permute.xlu0 10
        %4764 = vperm.xlu0 %4763, %v3006
        %v4765 = vpop.permute.xlu0 %4764
        %4767 = vset.pattern.permute.xlu0 10
        %4768 = vperm.xlu0 %4767, %v3010
        %v4769 = vpop.permute.xlu0 %4768
        %4771 = vset.pattern.permute.xlu0 10
        %4772 = vperm.xlu0 %4771, %v3014
        %v4773 = vpop.permute.xlu0 %4772
        %4775 = vset.pattern.permute.xlu0 10
        %4776 = vperm.xlu0 %4775, %v3018
        %v4777 = vpop.permute.xlu0 %4776
        %4779 = vset.pattern.permute.xlu0 10
        %4780 = vperm.xlu0 %4779, %v3022
        %v4781 = vpop.permute.xlu0 %4780
        %4783 = vset.pattern.permute.xlu0 10
        %4784 = vperm.xlu0 %4783, %v3026
        %v4785 = vpop.permute.xlu0 %4784
        %v4787 = vmul.f32 %v4757, %v2987
        %v4788 = vmul.f32 %v4757, %v2988
        %v4789 = vmul.f32 %v4757, %v2989
        %v4790 = vmul.f32 %v4757, %v2990
        %v4791 = vmul.f32 %v4761, %v2987
        %v4792 = vmul.f32 %v4761, %v2988
        %v4793 = vmul.f32 %v4761, %v2989
        %v4794 = vmul.f32 %v4761, %v2990
        %v4795 = vmul.f32 %v4765, %v2987
        %v4796 = vmul.f32 %v4765, %v2988
        %v4797 = vmul.f32 %v4765, %v2989
        %v4798 = vmul.f32 %v4765, %v2990
        %v4799 = vmul.f32 %v4769, %v2987
        %v4800 = vmul.f32 %v4769, %v2988
        %v4801 = vmul.f32 %v4769, %v2989
        %v4802 = vmul.f32 %v4769, %v2990
        %v4803 = vmul.f32 %v4773, %v2987
        %v4804 = vmul.f32 %v4773, %v2988
        %v4805 = vmul.f32 %v4773, %v2989
        %v4806 = vmul.f32 %v4773, %v2990
        %v4807 = vmul.f32 %v4777, %v2987
        %v4808 = vmul.f32 %v4777, %v2988
        %v4809 = vmul.f32 %v4777, %v2989
        %v4810 = vmul.f32 %v4777, %v2990
        %v4811 = vmul.f32 %v4781, %v2987
        %v4812 = vmul.f32 %v4781, %v2988
        %v4813 = vmul.f32 %v4781, %v2989
        %v4814 = vmul.f32 %v4781, %v2990
        %v4815 = vmul.f32 %v4785, %v2987
        %v4816 = vmul.f32 %v4785, %v2988
        %v4817 = vmul.f32 %v4785, %v2989
        %v4818 = vmul.f32 %v4785, %v2990
        %4851 = vrot.lane.b32.xlu0 %v4787, 126
        %v4852 = vpop.permute.xlu0 %4851
        %4853 = vrot.lane.b32.xlu0 %v4788, 126
        %v4854 = vpop.permute.xlu0 %4853
        %4855 = vrot.lane.b32.xlu0 %v4789, 126
        %v4856 = vpop.permute.xlu0 %4855
        %4857 = vrot.lane.b32.xlu0 %v4790, 126
        %v4858 = vpop.permute.xlu0 %4857
        %4859 = vrot.lane.b32.xlu0 %v4791, 126
        %v4860 = vpop.permute.xlu0 %4859
        %4861 = vrot.lane.b32.xlu0 %v4792, 126
        %v4862 = vpop.permute.xlu0 %4861
        %4863 = vrot.lane.b32.xlu0 %v4793, 126
        %v4864 = vpop.permute.xlu0 %4863
        %4865 = vrot.lane.b32.xlu0 %v4794, 126
        %v4866 = vpop.permute.xlu0 %4865
        %4867 = vrot.lane.b32.xlu0 %v4795, 126
        %v4868 = vpop.permute.xlu0 %4867
        %4869 = vrot.lane.b32.xlu0 %v4796, 126
        %v4870 = vpop.permute.xlu0 %4869
        %4871 = vrot.lane.b32.xlu0 %v4797, 126
        %v4872 = vpop.permute.xlu0 %4871
        %4873 = vrot.lane.b32.xlu0 %v4798, 126
        %v4874 = vpop.permute.xlu0 %4873
        %4875 = vrot.lane.b32.xlu0 %v4799, 126
        %v4876 = vpop.permute.xlu0 %4875
        %4877 = vrot.lane.b32.xlu0 %v4800, 126
        %v4878 = vpop.permute.xlu0 %4877
        %4879 = vrot.lane.b32.xlu0 %v4801, 126
        %v4880 = vpop.permute.xlu0 %4879
        %4881 = vrot.lane.b32.xlu0 %v4802, 126
        %v4882 = vpop.permute.xlu0 %4881
        %4883 = vrot.lane.b32.xlu0 %v4803, 126
        %v4884 = vpop.permute.xlu0 %4883
        %4885 = vrot.lane.b32.xlu0 %v4804, 126
        %v4886 = vpop.permute.xlu0 %4885
        %4887 = vrot.lane.b32.xlu0 %v4805, 126
        %v4888 = vpop.permute.xlu0 %4887
        %4889 = vrot.lane.b32.xlu0 %v4806, 126
        %v4890 = vpop.permute.xlu0 %4889
        %4891 = vrot.lane.b32.xlu0 %v4807, 126
        %v4892 = vpop.permute.xlu0 %4891
        %4893 = vrot.lane.b32.xlu0 %v4808, 126
        %v4894 = vpop.permute.xlu0 %4893
        %4895 = vrot.lane.b32.xlu0 %v4809, 126
        %v4896 = vpop.permute.xlu0 %4895
        %4897 = vrot.lane.b32.xlu0 %v4810, 126
        %v4898 = vpop.permute.xlu0 %4897
        %4899 = vrot.lane.b32.xlu0 %v4811, 126
        %v4900 = vpop.permute.xlu0 %4899
        %4901 = vrot.lane.b32.xlu0 %v4812, 126
        %v4902 = vpop.permute.xlu0 %4901
        %4903 = vrot.lane.b32.xlu0 %v4813, 126
        %v4904 = vpop.permute.xlu0 %4903
        %4905 = vrot.lane.b32.xlu0 %v4814, 126
        %v4906 = vpop.permute.xlu0 %4905
        %4907 = vrot.lane.b32.xlu0 %v4815, 126
        %v4908 = vpop.permute.xlu0 %4907
        %4909 = vrot.lane.b32.xlu0 %v4816, 126
        %v4910 = vpop.permute.xlu0 %4909
        %4911 = vrot.lane.b32.xlu0 %v4817, 126
        %v4912 = vpop.permute.xlu0 %4911
        %4913 = vrot.lane.b32.xlu0 %v4818, 126
        %v4914 = vpop.permute.xlu0 %4913
        %v4947 = vadd.f32 %v4723, %v4852
        %v4948 = vadd.f32 %v4724, %v4854
        %v4949 = vadd.f32 %v4725, %v4856
        %v4950 = vadd.f32 %v4726, %v4858
        %v4951 = vadd.f32 %v4727, %v4860
        %v4952 = vadd.f32 %v4728, %v4862
        %v4953 = vadd.f32 %v4729, %v4864
        %v4954 = vadd.f32 %v4730, %v4866
        %v4955 = vadd.f32 %v4731, %v4868
        %v4956 = vadd.f32 %v4732, %v4870
        %v4957 = vadd.f32 %v4733, %v4872
        %v4958 = vadd.f32 %v4734, %v4874
        %v4959 = vadd.f32 %v4735, %v4876
        %v4960 = vadd.f32 %v4736, %v4878
        %v4961 = vadd.f32 %v4737, %v4880
        %v4962 = vadd.f32 %v4738, %v4882
        %v4963 = vadd.f32 %v4739, %v4884
        %v4964 = vadd.f32 %v4740, %v4886
        %v4965 = vadd.f32 %v4741, %v4888
        %v4966 = vadd.f32 %v4742, %v4890
        %v4967 = vadd.f32 %v4743, %v4892
        %v4968 = vadd.f32 %v4744, %v4894
        %v4969 = vadd.f32 %v4745, %v4896
        %v4970 = vadd.f32 %v4746, %v4898
        %v4971 = vadd.f32 %v4747, %v4900
        %v4972 = vadd.f32 %v4748, %v4902
        %v4973 = vadd.f32 %v4749, %v4904
        %v4974 = vadd.f32 %v4750, %v4906
        %v4975 = vadd.f32 %v4751, %v4908
        %v4976 = vadd.f32 %v4752, %v4910
        %v4977 = vadd.f32 %v4753, %v4912
        %v4978 = vadd.f32 %v4754, %v4914
        %4979 = vset.pattern.permute.xlu0 11
        %4980 = vperm.xlu0 %4979, %v2998
        %v4981 = vpop.permute.xlu0 %4980
        %4983 = vset.pattern.permute.xlu0 11
        %4984 = vperm.xlu0 %4983, %v3002
        %v4985 = vpop.permute.xlu0 %4984
        %4987 = vset.pattern.permute.xlu0 11
        %4988 = vperm.xlu0 %4987, %v3006
        %v4989 = vpop.permute.xlu0 %4988
        %4991 = vset.pattern.permute.xlu0 11
        %4992 = vperm.xlu0 %4991, %v3010
        %v4993 = vpop.permute.xlu0 %4992
        %4995 = vset.pattern.permute.xlu0 11
        %4996 = vperm.xlu0 %4995, %v3014
        %v4997 = vpop.permute.xlu0 %4996
        %4999 = vset.pattern.permute.xlu0 11
        %5000 = vperm.xlu0 %4999, %v3018
        %v5001 = vpop.permute.xlu0 %5000
        %5003 = vset.pattern.permute.xlu0 11
        %5004 = vperm.xlu0 %5003, %v3022
        %v5005 = vpop.permute.xlu0 %5004
        %5007 = vset.pattern.permute.xlu0 11
        %5008 = vperm.xlu0 %5007, %v3026
        %v5009 = vpop.permute.xlu0 %5008
        %v5011 = vmul.f32 %v4981, %v2991
        %v5012 = vmul.f32 %v4981, %v2992
        %v5013 = vmul.f32 %v4981, %v2993
        %v5014 = vmul.f32 %v4981, %v2994
        %v5015 = vmul.f32 %v4985, %v2991
        %v5016 = vmul.f32 %v4985, %v2992
        %v5017 = vmul.f32 %v4985, %v2993
        %v5018 = vmul.f32 %v4985, %v2994
        %v5019 = vmul.f32 %v4989, %v2991
        %v5020 = vmul.f32 %v4989, %v2992
        %v5021 = vmul.f32 %v4989, %v2993
        %v5022 = vmul.f32 %v4989, %v2994
        %v5023 = vmul.f32 %v4993, %v2991
        %v5024 = vmul.f32 %v4993, %v2992
        %v5025 = vmul.f32 %v4993, %v2993
        %v5026 = vmul.f32 %v4993, %v2994
        %v5027 = vmul.f32 %v4997, %v2991
        %v5028 = vmul.f32 %v4997, %v2992
        %v5029 = vmul.f32 %v4997, %v2993
        %v5030 = vmul.f32 %v4997, %v2994
        %v5031 = vmul.f32 %v5001, %v2991
        %v5032 = vmul.f32 %v5001, %v2992
        %v5033 = vmul.f32 %v5001, %v2993
        %v5034 = vmul.f32 %v5001, %v2994
        %v5035 = vmul.f32 %v5005, %v2991
        %v5036 = vmul.f32 %v5005, %v2992
        %v5037 = vmul.f32 %v5005, %v2993
        %v5038 = vmul.f32 %v5005, %v2994
        %v5039 = vmul.f32 %v5009, %v2991
        %v5040 = vmul.f32 %v5009, %v2992
        %v5041 = vmul.f32 %v5009, %v2993
        %v5042 = vmul.f32 %v5009, %v2994
        %5075 = vrot.lane.b32.xlu0 %v5011, 126
        %v5076 = vpop.permute.xlu0 %5075
        %5077 = vrot.lane.b32.xlu0 %v5012, 126
        %v5078 = vpop.permute.xlu0 %5077
        %5079 = vrot.lane.b32.xlu0 %v5013, 126
        %v5080 = vpop.permute.xlu0 %5079
        %5081 = vrot.lane.b32.xlu0 %v5014, 126
        %v5082 = vpop.permute.xlu0 %5081
        %5083 = vrot.lane.b32.xlu0 %v5015, 126
        %v5084 = vpop.permute.xlu0 %5083
        %5085 = vrot.lane.b32.xlu0 %v5016, 126
        %v5086 = vpop.permute.xlu0 %5085
        %5087 = vrot.lane.b32.xlu0 %v5017, 126
        %v5088 = vpop.permute.xlu0 %5087
        %5089 = vrot.lane.b32.xlu0 %v5018, 126
        %v5090 = vpop.permute.xlu0 %5089
        %5091 = vrot.lane.b32.xlu0 %v5019, 126
        %v5092 = vpop.permute.xlu0 %5091
        %5093 = vrot.lane.b32.xlu0 %v5020, 126
        %v5094 = vpop.permute.xlu0 %5093
        %5095 = vrot.lane.b32.xlu0 %v5021, 126
        %v5096 = vpop.permute.xlu0 %5095
        %5097 = vrot.lane.b32.xlu0 %v5022, 126
        %v5098 = vpop.permute.xlu0 %5097
        %5099 = vrot.lane.b32.xlu0 %v5023, 126
        %v5100 = vpop.permute.xlu0 %5099
        %5101 = vrot.lane.b32.xlu0 %v5024, 126
        %v5102 = vpop.permute.xlu0 %5101
        %5103 = vrot.lane.b32.xlu0 %v5025, 126
        %v5104 = vpop.permute.xlu0 %5103
        %5105 = vrot.lane.b32.xlu0 %v5026, 126
        %v5106 = vpop.permute.xlu0 %5105
        %5107 = vrot.lane.b32.xlu0 %v5027, 126
        %v5108 = vpop.permute.xlu0 %5107
        %5109 = vrot.lane.b32.xlu0 %v5028, 126
        %v5110 = vpop.permute.xlu0 %5109
        %5111 = vrot.lane.b32.xlu0 %v5029, 126
        %v5112 = vpop.permute.xlu0 %5111
        %5113 = vrot.lane.b32.xlu0 %v5030, 126
        %v5114 = vpop.permute.xlu0 %5113
        %5115 = vrot.lane.b32.xlu0 %v5031, 126
        %v5116 = vpop.permute.xlu0 %5115
        %5117 = vrot.lane.b32.xlu0 %v5032, 126
        %v5118 = vpop.permute.xlu0 %5117
        %5119 = vrot.lane.b32.xlu0 %v5033, 126
        %v5120 = vpop.permute.xlu0 %5119
        %5121 = vrot.lane.b32.xlu0 %v5034, 126
        %v5122 = vpop.permute.xlu0 %5121
        %5123 = vrot.lane.b32.xlu0 %v5035, 126
        %v5124 = vpop.permute.xlu0 %5123
        %5125 = vrot.lane.b32.xlu0 %v5036, 126
        %v5126 = vpop.permute.xlu0 %5125
        %5127 = vrot.lane.b32.xlu0 %v5037, 126
        %v5128 = vpop.permute.xlu0 %5127
        %5129 = vrot.lane.b32.xlu0 %v5038, 126
        %v5130 = vpop.permute.xlu0 %5129
        %5131 = vrot.lane.b32.xlu0 %v5039, 126
        %v5132 = vpop.permute.xlu0 %5131
        %5133 = vrot.lane.b32.xlu0 %v5040, 126
        %v5134 = vpop.permute.xlu0 %5133
        %5135 = vrot.lane.b32.xlu0 %v5041, 126
        %v5136 = vpop.permute.xlu0 %5135
        %5137 = vrot.lane.b32.xlu0 %v5042, 126
        %v5138 = vpop.permute.xlu0 %5137
        %v5171 = vadd.f32 %v4947, %v5076
        %v5172 = vadd.f32 %v4948, %v5078
        %v5173 = vadd.f32 %v4949, %v5080
        %v5174 = vadd.f32 %v4950, %v5082
        %v5175 = vadd.f32 %v4951, %v5084
        %v5176 = vadd.f32 %v4952, %v5086
        %v5177 = vadd.f32 %v4953, %v5088
        %v5178 = vadd.f32 %v4954, %v5090
        %v5179 = vadd.f32 %v4955, %v5092
        %v5180 = vadd.f32 %v4956, %v5094
        %v5181 = vadd.f32 %v4957, %v5096
        %v5182 = vadd.f32 %v4958, %v5098
        %v5183 = vadd.f32 %v4959, %v5100
        %v5184 = vadd.f32 %v4960, %v5102
        %v5185 = vadd.f32 %v4961, %v5104
        %v5186 = vadd.f32 %v4962, %v5106
        %v5187 = vadd.f32 %v4963, %v5108
        %v5188 = vadd.f32 %v4964, %v5110
        %v5189 = vadd.f32 %v4965, %v5112
        %v5190 = vadd.f32 %v4966, %v5114
        %v5191 = vadd.f32 %v4967, %v5116
        %v5192 = vadd.f32 %v4968, %v5118
        %v5193 = vadd.f32 %v4969, %v5120
        %v5194 = vadd.f32 %v4970, %v5122
        %v5195 = vadd.f32 %v4971, %v5124
        %v5196 = vadd.f32 %v4972, %v5126
        %v5197 = vadd.f32 %v4973, %v5128
        %v5198 = vadd.f32 %v4974, %v5130
        %v5199 = vadd.f32 %v4975, %v5132
        %v5200 = vadd.f32 %v4976, %v5134
        %v5201 = vadd.f32 %v4977, %v5136
        %v5202 = vadd.f32 %v4978, %v5138
        %v5203 = vld [vmem:[#allocation2 + $0x1] sm:$0xff]
        %v5204 = vld [vmem:[#allocation2 + $0x9] sm:$0xff]
        %v5205 = vld [vmem:[#allocation2 + $0x11] sm:$0xff]
        %v5206 = vld [vmem:[#allocation2 + $0x19] sm:$0xff]
        %v5207 = vld [vmem:[#allocation2 + $0x29] sm:$0xff]
        %v5208 = vld [vmem:[#allocation2 + $0x31] sm:$0xff]
        %v5209 = vld [vmem:[#allocation2 + $0x39] sm:$0xff]
        %v5210 = vld [vmem:[#allocation2 + $0x41] sm:$0xff]
        %v5211 = vld [vmem:[#allocation2 + $0x51] sm:$0xff]
        %v5212 = vld [vmem:[#allocation2 + $0x59] sm:$0xff]
        %v5213 = vld [vmem:[#allocation2 + $0x61] sm:$0xff]
        %v5214 = vld [vmem:[#allocation2 + $0x69] sm:$0xff]
        %v5215 = vld [vmem:[#allocation2 + $0x79] sm:$0xff]
        %v5216 = vld [vmem:[#allocation2 + $0x81] sm:$0xff]
        %v5217 = vld [vmem:[#allocation2 + $0x89] sm:$0xff]
        %v5218 = vld [vmem:[#allocation2 + $0x91] sm:$0xff]
        %5219 = vset.pattern.permute.xlu0 12
        %5220 = vperm.xlu0 %5219, %v2998
        %v5221 = vpop.permute.xlu0 %5220
        %5223 = vset.pattern.permute.xlu0 12
        %5224 = vperm.xlu0 %5223, %v3002
        %v5225 = vpop.permute.xlu0 %5224
        %5227 = vset.pattern.permute.xlu0 12
        %5228 = vperm.xlu0 %5227, %v3006
        %v5229 = vpop.permute.xlu0 %5228
        %5231 = vset.pattern.permute.xlu0 12
        %5232 = vperm.xlu0 %5231, %v3010
        %v5233 = vpop.permute.xlu0 %5232
        %5235 = vset.pattern.permute.xlu0 12
        %5236 = vperm.xlu0 %5235, %v3014
        %v5237 = vpop.permute.xlu0 %5236
        %5239 = vset.pattern.permute.xlu0 12
        %5240 = vperm.xlu0 %5239, %v3018
        %v5241 = vpop.permute.xlu0 %5240
        %5243 = vset.pattern.permute.xlu0 12
        %5244 = vperm.xlu0 %5243, %v3022
        %v5245 = vpop.permute.xlu0 %5244
        %5247 = vset.pattern.permute.xlu0 12
        %5248 = vperm.xlu0 %5247, %v3026
        %v5249 = vpop.permute.xlu0 %5248
        %v5251 = vmul.f32 %v5221, %v5203
        %v5252 = vmul.f32 %v5221, %v5204
        %v5253 = vmul.f32 %v5221, %v5205
        %v5254 = vmul.f32 %v5221, %v5206
        %v5255 = vmul.f32 %v5225, %v5203
        %v5256 = vmul.f32 %v5225, %v5204
        %v5257 = vmul.f32 %v5225, %v5205
        %v5258 = vmul.f32 %v5225, %v5206
        %v5259 = vmul.f32 %v5229, %v5203
        %v5260 = vmul.f32 %v5229, %v5204
        %v5261 = vmul.f32 %v5229, %v5205
        %v5262 = vmul.f32 %v5229, %v5206
        %v5263 = vmul.f32 %v5233, %v5203
        %v5264 = vmul.f32 %v5233, %v5204
        %v5265 = vmul.f32 %v5233, %v5205
        %v5266 = vmul.f32 %v5233, %v5206
        %v5267 = vmul.f32 %v5237, %v5203
        %v5268 = vmul.f32 %v5237, %v5204
        %v5269 = vmul.f32 %v5237, %v5205
        %v5270 = vmul.f32 %v5237, %v5206
        %v5271 = vmul.f32 %v5241, %v5203
        %v5272 = vmul.f32 %v5241, %v5204
        %v5273 = vmul.f32 %v5241, %v5205
        %v5274 = vmul.f32 %v5241, %v5206
        %v5275 = vmul.f32 %v5245, %v5203
        %v5276 = vmul.f32 %v5245, %v5204
        %v5277 = vmul.f32 %v5245, %v5205
        %v5278 = vmul.f32 %v5245, %v5206
        %v5279 = vmul.f32 %v5249, %v5203
        %v5280 = vmul.f32 %v5249, %v5204
        %v5281 = vmul.f32 %v5249, %v5205
        %v5282 = vmul.f32 %v5249, %v5206
        %v5283 = vadd.f32 %v5171, %v5251
        %v5284 = vadd.f32 %v5172, %v5252
        %v5285 = vadd.f32 %v5173, %v5253
        %v5286 = vadd.f32 %v5174, %v5254
        %v5287 = vadd.f32 %v5175, %v5255
        %v5288 = vadd.f32 %v5176, %v5256
        %v5289 = vadd.f32 %v5177, %v5257
        %v5290 = vadd.f32 %v5178, %v5258
        %v5291 = vadd.f32 %v5179, %v5259
        %v5292 = vadd.f32 %v5180, %v5260
        %v5293 = vadd.f32 %v5181, %v5261
        %v5294 = vadd.f32 %v5182, %v5262
        %v5295 = vadd.f32 %v5183, %v5263
        %v5296 = vadd.f32 %v5184, %v5264
        %v5297 = vadd.f32 %v5185, %v5265
        %v5298 = vadd.f32 %v5186, %v5266
        %v5299 = vadd.f32 %v5187, %v5267
        %v5300 = vadd.f32 %v5188, %v5268
        %v5301 = vadd.f32 %v5189, %v5269
        %v5302 = vadd.f32 %v5190, %v5270
        %v5303 = vadd.f32 %v5191, %v5271
        %v5304 = vadd.f32 %v5192, %v5272
        %v5305 = vadd.f32 %v5193, %v5273
        %v5306 = vadd.f32 %v5194, %v5274
        %v5307 = vadd.f32 %v5195, %v5275
        %v5308 = vadd.f32 %v5196, %v5276
        %v5309 = vadd.f32 %v5197, %v5277
        %v5310 = vadd.f32 %v5198, %v5278
        %v5311 = vadd.f32 %v5199, %v5279
        %v5312 = vadd.f32 %v5200, %v5280
        %v5313 = vadd.f32 %v5201, %v5281
        %v5314 = vadd.f32 %v5202, %v5282
        %5315 = vset.pattern.permute.xlu0 13
        %5316 = vperm.xlu0 %5315, %v2998
        %v5317 = vpop.permute.xlu0 %5316
        %5319 = vset.pattern.permute.xlu0 13
        %5320 = vperm.xlu0 %5319, %v3002
        %v5321 = vpop.permute.xlu0 %5320
        %5323 = vset.pattern.permute.xlu0 13
        %5324 = vperm.xlu0 %5323, %v3006
        %v5325 = vpop.permute.xlu0 %5324
        %5327 = vset.pattern.permute.xlu0 13
        %5328 = vperm.xlu0 %5327, %v3010
        %v5329 = vpop.permute.xlu0 %5328
        %5331 = vset.pattern.permute.xlu0 13
        %5332 = vperm.xlu0 %5331, %v3014
        %v5333 = vpop.permute.xlu0 %5332
        %5335 = vset.pattern.permute.xlu0 13
        %5336 = vperm.xlu0 %5335, %v3018
        %v5337 = vpop.permute.xlu0 %5336
        %5339 = vset.pattern.permute.xlu0 13
        %5340 = vperm.xlu0 %5339, %v3022
        %v5341 = vpop.permute.xlu0 %5340
        %5343 = vset.pattern.permute.xlu0 13
        %5344 = vperm.xlu0 %5343, %v3026
        %v5345 = vpop.permute.xlu0 %5344
        %v5347 = vmul.f32 %v5317, %v5207
        %v5348 = vmul.f32 %v5317, %v5208
        %v5349 = vmul.f32 %v5317, %v5209
        %v5350 = vmul.f32 %v5317, %v5210
        %v5351 = vmul.f32 %v5321, %v5207
        %v5352 = vmul.f32 %v5321, %v5208
        %v5353 = vmul.f32 %v5321, %v5209
        %v5354 = vmul.f32 %v5321, %v5210
        %v5355 = vmul.f32 %v5325, %v5207
        %v5356 = vmul.f32 %v5325, %v5208
        %v5357 = vmul.f32 %v5325, %v5209
        %v5358 = vmul.f32 %v5325, %v5210
        %v5359 = vmul.f32 %v5329, %v5207
        %v5360 = vmul.f32 %v5329, %v5208
        %v5361 = vmul.f32 %v5329, %v5209
        %v5362 = vmul.f32 %v5329, %v5210
        %v5363 = vmul.f32 %v5333, %v5207
        %v5364 = vmul.f32 %v5333, %v5208
        %v5365 = vmul.f32 %v5333, %v5209
        %v5366 = vmul.f32 %v5333, %v5210
        %v5367 = vmul.f32 %v5337, %v5207
        %v5368 = vmul.f32 %v5337, %v5208
        %v5369 = vmul.f32 %v5337, %v5209
        %v5370 = vmul.f32 %v5337, %v5210
        %v5371 = vmul.f32 %v5341, %v5207
        %v5372 = vmul.f32 %v5341, %v5208
        %v5373 = vmul.f32 %v5341, %v5209
        %v5374 = vmul.f32 %v5341, %v5210
        %v5375 = vmul.f32 %v5345, %v5207
        %v5376 = vmul.f32 %v5345, %v5208
        %v5377 = vmul.f32 %v5345, %v5209
        %v5378 = vmul.f32 %v5345, %v5210
        %v5379 = vadd.f32 %v5283, %v5347
        %v5380 = vadd.f32 %v5284, %v5348
        %v5381 = vadd.f32 %v5285, %v5349
        %v5382 = vadd.f32 %v5286, %v5350
        %v5383 = vadd.f32 %v5287, %v5351
        %v5384 = vadd.f32 %v5288, %v5352
        %v5385 = vadd.f32 %v5289, %v5353
        %v5386 = vadd.f32 %v5290, %v5354
        %v5387 = vadd.f32 %v5291, %v5355
        %v5388 = vadd.f32 %v5292, %v5356
        %v5389 = vadd.f32 %v5293, %v5357
        %v5390 = vadd.f32 %v5294, %v5358
        %v5391 = vadd.f32 %v5295, %v5359
        %v5392 = vadd.f32 %v5296, %v5360
        %v5393 = vadd.f32 %v5297, %v5361
        %v5394 = vadd.f32 %v5298, %v5362
        %v5395 = vadd.f32 %v5299, %v5363
        %v5396 = vadd.f32 %v5300, %v5364
        %v5397 = vadd.f32 %v5301, %v5365
        %v5398 = vadd.f32 %v5302, %v5366
        %v5399 = vadd.f32 %v5303, %v5367
        %v5400 = vadd.f32 %v5304, %v5368
        %v5401 = vadd.f32 %v5305, %v5369
        %v5402 = vadd.f32 %v5306, %v5370
        %v5403 = vadd.f32 %v5307, %v5371
        %v5404 = vadd.f32 %v5308, %v5372
        %v5405 = vadd.f32 %v5309, %v5373
        %v5406 = vadd.f32 %v5310, %v5374
        %v5407 = vadd.f32 %v5311, %v5375
        %v5408 = vadd.f32 %v5312, %v5376
        %v5409 = vadd.f32 %v5313, %v5377
        %v5410 = vadd.f32 %v5314, %v5378
        %5411 = vset.pattern.permute.xlu0 14
        %5412 = vperm.xlu0 %5411, %v2998
        %v5413 = vpop.permute.xlu0 %5412
        %5415 = vset.pattern.permute.xlu0 14
        %5416 = vperm.xlu0 %5415, %v3002
        %v5417 = vpop.permute.xlu0 %5416
        %5419 = vset.pattern.permute.xlu0 14
        %5420 = vperm.xlu0 %5419, %v3006
        %v5421 = vpop.permute.xlu0 %5420
        %5423 = vset.pattern.permute.xlu0 14
        %5424 = vperm.xlu0 %5423, %v3010
        %v5425 = vpop.permute.xlu0 %5424
        %5427 = vset.pattern.permute.xlu0 14
        %5428 = vperm.xlu0 %5427, %v3014
        %v5429 = vpop.permute.xlu0 %5428
        %5431 = vset.pattern.permute.xlu0 14
        %5432 = vperm.xlu0 %5431, %v3018
        %v5433 = vpop.permute.xlu0 %5432
        %5435 = vset.pattern.permute.xlu0 14
        %5436 = vperm.xlu0 %5435, %v3022
        %v5437 = vpop.permute.xlu0 %5436
        %5439 = vset.pattern.permute.xlu0 14
        %5440 = vperm.xlu0 %5439, %v3026
        %v5441 = vpop.permute.xlu0 %5440
        %v5443 = vmul.f32 %v5413, %v5211
        %v5444 = vmul.f32 %v5413, %v5212
        %v5445 = vmul.f32 %v5413, %v5213
        %v5446 = vmul.f32 %v5413, %v5214
        %v5447 = vmul.f32 %v5417, %v5211
        %v5448 = vmul.f32 %v5417, %v5212
        %v5449 = vmul.f32 %v5417, %v5213
        %v5450 = vmul.f32 %v5417, %v5214
        %v5451 = vmul.f32 %v5421, %v5211
        %v5452 = vmul.f32 %v5421, %v5212
        %v5453 = vmul.f32 %v5421, %v5213
        %v5454 = vmul.f32 %v5421, %v5214
        %v5455 = vmul.f32 %v5425, %v5211
        %v5456 = vmul.f32 %v5425, %v5212
        %v5457 = vmul.f32 %v5425, %v5213
        %v5458 = vmul.f32 %v5425, %v5214
        %v5459 = vmul.f32 %v5429, %v5211
        %v5460 = vmul.f32 %v5429, %v5212
        %v5461 = vmul.f32 %v5429, %v5213
        %v5462 = vmul.f32 %v5429, %v5214
        %v5463 = vmul.f32 %v5433, %v5211
        %v5464 = vmul.f32 %v5433, %v5212
        %v5465 = vmul.f32 %v5433, %v5213
        %v5466 = vmul.f32 %v5433, %v5214
        %v5467 = vmul.f32 %v5437, %v5211
        %v5468 = vmul.f32 %v5437, %v5212
        %v5469 = vmul.f32 %v5437, %v5213
        %v5470 = vmul.f32 %v5437, %v5214
        %v5471 = vmul.f32 %v5441, %v5211
        %v5472 = vmul.f32 %v5441, %v5212
        %v5473 = vmul.f32 %v5441, %v5213
        %v5474 = vmul.f32 %v5441, %v5214
        %v5475 = vadd.f32 %v5379, %v5443
        %v5476 = vadd.f32 %v5380, %v5444
        %v5477 = vadd.f32 %v5381, %v5445
        %v5478 = vadd.f32 %v5382, %v5446
        %v5479 = vadd.f32 %v5383, %v5447
        %v5480 = vadd.f32 %v5384, %v5448
        %v5481 = vadd.f32 %v5385, %v5449
        %v5482 = vadd.f32 %v5386, %v5450
        %v5483 = vadd.f32 %v5387, %v5451
        %v5484 = vadd.f32 %v5388, %v5452
        %v5485 = vadd.f32 %v5389, %v5453
        %v5486 = vadd.f32 %v5390, %v5454
        %v5487 = vadd.f32 %v5391, %v5455
        %v5488 = vadd.f32 %v5392, %v5456
        %v5489 = vadd.f32 %v5393, %v5457
        %v5490 = vadd.f32 %v5394, %v5458
        %v5491 = vadd.f32 %v5395, %v5459
        %v5492 = vadd.f32 %v5396, %v5460
        %v5493 = vadd.f32 %v5397, %v5461
        %v5494 = vadd.f32 %v5398, %v5462
        %v5495 = vadd.f32 %v5399, %v5463
        %v5496 = vadd.f32 %v5400, %v5464
        %v5497 = vadd.f32 %v5401, %v5465
        %v5498 = vadd.f32 %v5402, %v5466
        %v5499 = vadd.f32 %v5403, %v5467
        %v5500 = vadd.f32 %v5404, %v5468
        %v5501 = vadd.f32 %v5405, %v5469
        %v5502 = vadd.f32 %v5406, %v5470
        %v5503 = vadd.f32 %v5407, %v5471
        %v5504 = vadd.f32 %v5408, %v5472
        %v5505 = vadd.f32 %v5409, %v5473
        %v5506 = vadd.f32 %v5410, %v5474
        %5507 = vset.pattern.permute.xlu0 15
        %5508 = vperm.xlu0 %5507, %v2998
        %v5509 = vpop.permute.xlu0 %5508
        %5511 = vset.pattern.permute.xlu0 15
        %5512 = vperm.xlu0 %5511, %v3002
        %v5513 = vpop.permute.xlu0 %5512
        %5515 = vset.pattern.permute.xlu0 15
        %5516 = vperm.xlu0 %5515, %v3006
        %v5517 = vpop.permute.xlu0 %5516
        %5519 = vset.pattern.permute.xlu0 15
        %5520 = vperm.xlu0 %5519, %v3010
        %v5521 = vpop.permute.xlu0 %5520
        %5523 = vset.pattern.permute.xlu0 15
        %5524 = vperm.xlu0 %5523, %v3014
        %v5525 = vpop.permute.xlu0 %5524
        %5527 = vset.pattern.permute.xlu0 15
        %5528 = vperm.xlu0 %5527, %v3018
        %v5529 = vpop.permute.xlu0 %5528
        %5531 = vset.pattern.permute.xlu0 15
        %5532 = vperm.xlu0 %5531, %v3022
        %v5533 = vpop.permute.xlu0 %5532
        %5535 = vset.pattern.permute.xlu0 15
        %5536 = vperm.xlu0 %5535, %v3026
        %v5537 = vpop.permute.xlu0 %5536
        %v5539 = vmul.f32 %v5509, %v5215
        %v5540 = vmul.f32 %v5509, %v5216
        %v5541 = vmul.f32 %v5509, %v5217
        %v5542 = vmul.f32 %v5509, %v5218
        %v5543 = vmul.f32 %v5513, %v5215
        %v5544 = vmul.f32 %v5513, %v5216
        %v5545 = vmul.f32 %v5513, %v5217
        %v5546 = vmul.f32 %v5513, %v5218
        %v5547 = vmul.f32 %v5517, %v5215
        %v5548 = vmul.f32 %v5517, %v5216
        %v5549 = vmul.f32 %v5517, %v5217
        %v5550 = vmul.f32 %v5517, %v5218
        %v5551 = vmul.f32 %v5521, %v5215
        %v5552 = vmul.f32 %v5521, %v5216
        %v5553 = vmul.f32 %v5521, %v5217
        %v5554 = vmul.f32 %v5521, %v5218
        %v5555 = vmul.f32 %v5525, %v5215
        %v5556 = vmul.f32 %v5525, %v5216
        %v5557 = vmul.f32 %v5525, %v5217
        %v5558 = vmul.f32 %v5525, %v5218
        %v5559 = vmul.f32 %v5529, %v5215
        %v5560 = vmul.f32 %v5529, %v5216
        %v5561 = vmul.f32 %v5529, %v5217
        %v5562 = vmul.f32 %v5529, %v5218
        %v5563 = vmul.f32 %v5533, %v5215
        %v5564 = vmul.f32 %v5533, %v5216
        %v5565 = vmul.f32 %v5533, %v5217
        %v5566 = vmul.f32 %v5533, %v5218
        %v5567 = vmul.f32 %v5537, %v5215
        %v5568 = vmul.f32 %v5537, %v5216
        %v5569 = vmul.f32 %v5537, %v5217
        %v5570 = vmul.f32 %v5537, %v5218
        %v5571 = vadd.f32 %v5475, %v5539
        %v5572 = vadd.f32 %v5476, %v5540
        %v5573 = vadd.f32 %v5477, %v5541
        %v5574 = vadd.f32 %v5478, %v5542
        %v5575 = vadd.f32 %v5479, %v5543
        %v5576 = vadd.f32 %v5480, %v5544
        %v5577 = vadd.f32 %v5481, %v5545
        %v5578 = vadd.f32 %v5482, %v5546
        %v5579 = vadd.f32 %v5483, %v5547
        %v5580 = vadd.f32 %v5484, %v5548
        %v5581 = vadd.f32 %v5485, %v5549
        %v5582 = vadd.f32 %v5486, %v5550
        %v5583 = vadd.f32 %v5487, %v5551
        %v5584 = vadd.f32 %v5488, %v5552
        %v5585 = vadd.f32 %v5489, %v5553
        %v5586 = vadd.f32 %v5490, %v5554
        %v5587 = vadd.f32 %v5491, %v5555
        %v5588 = vadd.f32 %v5492, %v5556
        %v5589 = vadd.f32 %v5493, %v5557
        %v5590 = vadd.f32 %v5494, %v5558
        %v5591 = vadd.f32 %v5495, %v5559
        %v5592 = vadd.f32 %v5496, %v5560
        %v5593 = vadd.f32 %v5497, %v5561
        %v5594 = vadd.f32 %v5498, %v5562
        %v5595 = vadd.f32 %v5499, %v5563
        %v5596 = vadd.f32 %v5500, %v5564
        %v5597 = vadd.f32 %v5501, %v5565
        %v5598 = vadd.f32 %v5502, %v5566
        %v5599 = vadd.f32 %v5503, %v5567
        %v5600 = vadd.f32 %v5504, %v5568
        %v5601 = vadd.f32 %v5505, %v5569
        %v5602 = vadd.f32 %v5506, %v5570
        %5603 = vset.pattern.permute.xlu0 16
        %5604 = vperm.xlu0 %5603, %v2998
        %v5605 = vpop.permute.xlu0 %5604
        %5607 = vset.pattern.permute.xlu0 16
        %5608 = vperm.xlu0 %5607, %v3002
        %v5609 = vpop.permute.xlu0 %5608
        %5611 = vset.pattern.permute.xlu0 16
        %5612 = vperm.xlu0 %5611, %v3006
        %v5613 = vpop.permute.xlu0 %5612
        %5615 = vset.pattern.permute.xlu0 16
        %5616 = vperm.xlu0 %5615, %v3010
        %v5617 = vpop.permute.xlu0 %5616
        %5619 = vset.pattern.permute.xlu0 16
        %5620 = vperm.xlu0 %5619, %v3014
        %v5621 = vpop.permute.xlu0 %5620
        %5623 = vset.pattern.permute.xlu0 16
        %5624 = vperm.xlu0 %5623, %v3018
        %v5625 = vpop.permute.xlu0 %5624
        %5627 = vset.pattern.permute.xlu0 16
        %5628 = vperm.xlu0 %5627, %v3022
        %v5629 = vpop.permute.xlu0 %5628
        %5631 = vset.pattern.permute.xlu0 16
        %5632 = vperm.xlu0 %5631, %v3026
        %v5633 = vpop.permute.xlu0 %5632
        %v5635 = vmul.f32 %v5605, %v5203
        %v5636 = vmul.f32 %v5605, %v5204
        %v5637 = vmul.f32 %v5605, %v5205
        %v5638 = vmul.f32 %v5605, %v5206
        %v5639 = vmul.f32 %v5609, %v5203
        %v5640 = vmul.f32 %v5609, %v5204
        %v5641 = vmul.f32 %v5609, %v5205
        %v5642 = vmul.f32 %v5609, %v5206
        %v5643 = vmul.f32 %v5613, %v5203
        %v5644 = vmul.f32 %v5613, %v5204
        %v5645 = vmul.f32 %v5613, %v5205
        %v5646 = vmul.f32 %v5613, %v5206
        %v5647 = vmul.f32 %v5617, %v5203
        %v5648 = vmul.f32 %v5617, %v5204
        %v5649 = vmul.f32 %v5617, %v5205
        %v5650 = vmul.f32 %v5617, %v5206
        %v5651 = vmul.f32 %v5621, %v5203
        %v5652 = vmul.f32 %v5621, %v5204
        %v5653 = vmul.f32 %v5621, %v5205
        %v5654 = vmul.f32 %v5621, %v5206
        %v5655 = vmul.f32 %v5625, %v5203
        %v5656 = vmul.f32 %v5625, %v5204
        %v5657 = vmul.f32 %v5625, %v5205
        %v5658 = vmul.f32 %v5625, %v5206
        %v5659 = vmul.f32 %v5629, %v5203
        %v5660 = vmul.f32 %v5629, %v5204
        %v5661 = vmul.f32 %v5629, %v5205
        %v5662 = vmul.f32 %v5629, %v5206
        %v5663 = vmul.f32 %v5633, %v5203
        %v5664 = vmul.f32 %v5633, %v5204
        %v5665 = vmul.f32 %v5633, %v5205
        %v5666 = vmul.f32 %v5633, %v5206
        %5699 = vrot.lane.b32.xlu0 %v5635, 127
        %v5700 = vpop.permute.xlu0 %5699
        %5701 = vrot.lane.b32.xlu0 %v5636, 127
        %v5702 = vpop.permute.xlu0 %5701
        %5703 = vrot.lane.b32.xlu0 %v5637, 127
        %v5704 = vpop.permute.xlu0 %5703
        %5705 = vrot.lane.b32.xlu0 %v5638, 127
        %v5706 = vpop.permute.xlu0 %5705
        %5707 = vrot.lane.b32.xlu0 %v5639, 127
        %v5708 = vpop.permute.xlu0 %5707
        %5709 = vrot.lane.b32.xlu0 %v5640, 127
        %v5710 = vpop.permute.xlu0 %5709
        %5711 = vrot.lane.b32.xlu0 %v5641, 127
        %v5712 = vpop.permute.xlu0 %5711
        %5713 = vrot.lane.b32.xlu0 %v5642, 127
        %v5714 = vpop.permute.xlu0 %5713
        %5715 = vrot.lane.b32.xlu0 %v5643, 127
        %v5716 = vpop.permute.xlu0 %5715
        %5717 = vrot.lane.b32.xlu0 %v5644, 127
        %v5718 = vpop.permute.xlu0 %5717
        %5719 = vrot.lane.b32.xlu0 %v5645, 127
        %v5720 = vpop.permute.xlu0 %5719
        %5721 = vrot.lane.b32.xlu0 %v5646, 127
        %v5722 = vpop.permute.xlu0 %5721
        %5723 = vrot.lane.b32.xlu0 %v5647, 127
        %v5724 = vpop.permute.xlu0 %5723
        %5725 = vrot.lane.b32.xlu0 %v5648, 127
        %v5726 = vpop.permute.xlu0 %5725
        %5727 = vrot.lane.b32.xlu0 %v5649, 127
        %v5728 = vpop.permute.xlu0 %5727
        %5729 = vrot.lane.b32.xlu0 %v5650, 127
        %v5730 = vpop.permute.xlu0 %5729
        %5731 = vrot.lane.b32.xlu0 %v5651, 127
        %v5732 = vpop.permute.xlu0 %5731
        %5733 = vrot.lane.b32.xlu0 %v5652, 127
        %v5734 = vpop.permute.xlu0 %5733
        %5735 = vrot.lane.b32.xlu0 %v5653, 127
        %v5736 = vpop.permute.xlu0 %5735
        %5737 = vrot.lane.b32.xlu0 %v5654, 127
        %v5738 = vpop.permute.xlu0 %5737
        %5739 = vrot.lane.b32.xlu0 %v5655, 127
        %v5740 = vpop.permute.xlu0 %5739
        %5741 = vrot.lane.b32.xlu0 %v5656, 127
        %v5742 = vpop.permute.xlu0 %5741
        %5743 = vrot.lane.b32.xlu0 %v5657, 127
        %v5744 = vpop.permute.xlu0 %5743
        %5745 = vrot.lane.b32.xlu0 %v5658, 127
        %v5746 = vpop.permute.xlu0 %5745
        %5747 = vrot.lane.b32.xlu0 %v5659, 127
        %v5748 = vpop.permute.xlu0 %5747
        %5749 = vrot.lane.b32.xlu0 %v5660, 127
        %v5750 = vpop.permute.xlu0 %5749
        %5751 = vrot.lane.b32.xlu0 %v5661, 127
        %v5752 = vpop.permute.xlu0 %5751
        %5753 = vrot.lane.b32.xlu0 %v5662, 127
        %v5754 = vpop.permute.xlu0 %5753
        %5755 = vrot.lane.b32.xlu0 %v5663, 127
        %v5756 = vpop.permute.xlu0 %5755
        %5757 = vrot.lane.b32.xlu0 %v5664, 127
        %v5758 = vpop.permute.xlu0 %5757
        %5759 = vrot.lane.b32.xlu0 %v5665, 127
        %v5760 = vpop.permute.xlu0 %5759
        %5761 = vrot.lane.b32.xlu0 %v5666, 127
        %v5762 = vpop.permute.xlu0 %5761
        %v5795 = vadd.f32 %v5571, %v5700
        %v5796 = vadd.f32 %v5572, %v5702
        %v5797 = vadd.f32 %v5573, %v5704
        %v5798 = vadd.f32 %v5574, %v5706
        %v5799 = vadd.f32 %v5575, %v5708
        %v5800 = vadd.f32 %v5576, %v5710
        %v5801 = vadd.f32 %v5577, %v5712
        %v5802 = vadd.f32 %v5578, %v5714
        %v5803 = vadd.f32 %v5579, %v5716
        %v5804 = vadd.f32 %v5580, %v5718
        %v5805 = vadd.f32 %v5581, %v5720
        %v5806 = vadd.f32 %v5582, %v5722
        %v5807 = vadd.f32 %v5583, %v5724
        %v5808 = vadd.f32 %v5584, %v5726
        %v5809 = vadd.f32 %v5585, %v5728
        %v5810 = vadd.f32 %v5586, %v5730
        %v5811 = vadd.f32 %v5587, %v5732
        %v5812 = vadd.f32 %v5588, %v5734
        %v5813 = vadd.f32 %v5589, %v5736
        %v5814 = vadd.f32 %v5590, %v5738
        %v5815 = vadd.f32 %v5591, %v5740
        %v5816 = vadd.f32 %v5592, %v5742
        %v5817 = vadd.f32 %v5593, %v5744
        %v5818 = vadd.f32 %v5594, %v5746
        %v5819 = vadd.f32 %v5595, %v5748
        %v5820 = vadd.f32 %v5596, %v5750
        %v5821 = vadd.f32 %v5597, %v5752
        %v5822 = vadd.f32 %v5598, %v5754
        %v5823 = vadd.f32 %v5599, %v5756
        %v5824 = vadd.f32 %v5600, %v5758
        %v5825 = vadd.f32 %v5601, %v5760
        %v5826 = vadd.f32 %v5602, %v5762
        %5827 = vset.pattern.permute.xlu0 17
        %5828 = vperm.xlu0 %5827, %v2998
        %v5829 = vpop.permute.xlu0 %5828
        %5831 = vset.pattern.permute.xlu0 17
        %5832 = vperm.xlu0 %5831, %v3002
        %v5833 = vpop.permute.xlu0 %5832
        %5835 = vset.pattern.permute.xlu0 17
        %5836 = vperm.xlu0 %5835, %v3006
        %v5837 = vpop.permute.xlu0 %5836
        %5839 = vset.pattern.permute.xlu0 17
        %5840 = vperm.xlu0 %5839, %v3010
        %v5841 = vpop.permute.xlu0 %5840
        %5843 = vset.pattern.permute.xlu0 17
        %5844 = vperm.xlu0 %5843, %v3014
        %v5845 = vpop.permute.xlu0 %5844
        %5847 = vset.pattern.permute.xlu0 17
        %5848 = vperm.xlu0 %5847, %v3018
        %v5849 = vpop.permute.xlu0 %5848
        %5851 = vset.pattern.permute.xlu0 17
        %5852 = vperm.xlu0 %5851, %v3022
        %v5853 = vpop.permute.xlu0 %5852
        %5855 = vset.pattern.permute.xlu0 17
        %5856 = vperm.xlu0 %5855, %v3026
        %v5857 = vpop.permute.xlu0 %5856
        %v5859 = vmul.f32 %v5829, %v5207
        %v5860 = vmul.f32 %v5829, %v5208
        %v5861 = vmul.f32 %v5829, %v5209
        %v5862 = vmul.f32 %v5829, %v5210
        %v5863 = vmul.f32 %v5833, %v5207
        %v5864 = vmul.f32 %v5833, %v5208
        %v5865 = vmul.f32 %v5833, %v5209
        %v5866 = vmul.f32 %v5833, %v5210
        %v5867 = vmul.f32 %v5837, %v5207
        %v5868 = vmul.f32 %v5837, %v5208
        %v5869 = vmul.f32 %v5837, %v5209
        %v5870 = vmul.f32 %v5837, %v5210
        %v5871 = vmul.f32 %v5841, %v5207
        %v5872 = vmul.f32 %v5841, %v5208
        %v5873 = vmul.f32 %v5841, %v5209
        %v5874 = vmul.f32 %v5841, %v5210
        %v5875 = vmul.f32 %v5845, %v5207
        %v5876 = vmul.f32 %v5845, %v5208
        %v5877 = vmul.f32 %v5845, %v5209
        %v5878 = vmul.f32 %v5845, %v5210
        %v5879 = vmul.f32 %v5849, %v5207
        %v5880 = vmul.f32 %v5849, %v5208
        %v5881 = vmul.f32 %v5849, %v5209
        %v5882 = vmul.f32 %v5849, %v5210
        %v5883 = vmul.f32 %v5853, %v5207
        %v5884 = vmul.f32 %v5853, %v5208
        %v5885 = vmul.f32 %v5853, %v5209
        %v5886 = vmul.f32 %v5853, %v5210
        %v5887 = vmul.f32 %v5857, %v5207
        %v5888 = vmul.f32 %v5857, %v5208
        %v5889 = vmul.f32 %v5857, %v5209
        %v5890 = vmul.f32 %v5857, %v5210
        %5923 = vrot.lane.b32.xlu0 %v5859, 127
        %v5924 = vpop.permute.xlu0 %5923
        %5925 = vrot.lane.b32.xlu0 %v5860, 127
        %v5926 = vpop.permute.xlu0 %5925
        %5927 = vrot.lane.b32.xlu0 %v5861, 127
        %v5928 = vpop.permute.xlu0 %5927
        %5929 = vrot.lane.b32.xlu0 %v5862, 127
        %v5930 = vpop.permute.xlu0 %5929
        %5931 = vrot.lane.b32.xlu0 %v5863, 127
        %v5932 = vpop.permute.xlu0 %5931
        %5933 = vrot.lane.b32.xlu0 %v5864, 127
        %v5934 = vpop.permute.xlu0 %5933
        %5935 = vrot.lane.b32.xlu0 %v5865, 127
        %v5936 = vpop.permute.xlu0 %5935
        %5937 = vrot.lane.b32.xlu0 %v5866, 127
        %v5938 = vpop.permute.xlu0 %5937
        %5939 = vrot.lane.b32.xlu0 %v5867, 127
        %v5940 = vpop.permute.xlu0 %5939
        %5941 = vrot.lane.b32.xlu0 %v5868, 127
        %v5942 = vpop.permute.xlu0 %5941
        %5943 = vrot.lane.b32.xlu0 %v5869, 127
        %v5944 = vpop.permute.xlu0 %5943
        %5945 = vrot.lane.b32.xlu0 %v5870, 127
        %v5946 = vpop.permute.xlu0 %5945
        %5947 = vrot.lane.b32.xlu0 %v5871, 127
        %v5948 = vpop.permute.xlu0 %5947
        %5949 = vrot.lane.b32.xlu0 %v5872, 127
        %v5950 = vpop.permute.xlu0 %5949
        %5951 = vrot.lane.b32.xlu0 %v5873, 127
        %v5952 = vpop.permute.xlu0 %5951
        %5953 = vrot.lane.b32.xlu0 %v5874, 127
        %v5954 = vpop.permute.xlu0 %5953
        %5955 = vrot.lane.b32.xlu0 %v5875, 127
        %v5956 = vpop.permute.xlu0 %5955
        %5957 = vrot.lane.b32.xlu0 %v5876, 127
        %v5958 = vpop.permute.xlu0 %5957
        %5959 = vrot.lane.b32.xlu0 %v5877, 127
        %v5960 = vpop.permute.xlu0 %5959
        %5961 = vrot.lane.b32.xlu0 %v5878, 127
        %v5962 = vpop.permute.xlu0 %5961
        %5963 = vrot.lane.b32.xlu0 %v5879, 127
        %v5964 = vpop.permute.xlu0 %5963
        %5965 = vrot.lane.b32.xlu0 %v5880, 127
        %v5966 = vpop.permute.xlu0 %5965
        %5967 = vrot.lane.b32.xlu0 %v5881, 127
        %v5968 = vpop.permute.xlu0 %5967
        %5969 = vrot.lane.b32.xlu0 %v5882, 127
        %v5970 = vpop.permute.xlu0 %5969
        %5971 = vrot.lane.b32.xlu0 %v5883, 127
        %v5972 = vpop.permute.xlu0 %5971
        %5973 = vrot.lane.b32.xlu0 %v5884, 127
        %v5974 = vpop.permute.xlu0 %5973
        %5975 = vrot.lane.b32.xlu0 %v5885, 127
        %v5976 = vpop.permute.xlu0 %5975
        %5977 = vrot.lane.b32.xlu0 %v5886, 127
        %v5978 = vpop.permute.xlu0 %5977
        %5979 = vrot.lane.b32.xlu0 %v5887, 127
        %v5980 = vpop.permute.xlu0 %5979
        %5981 = vrot.lane.b32.xlu0 %v5888, 127
        %v5982 = vpop.permute.xlu0 %5981
        %5983 = vrot.lane.b32.xlu0 %v5889, 127
        %v5984 = vpop.permute.xlu0 %5983
        %5985 = vrot.lane.b32.xlu0 %v5890, 127
        %v5986 = vpop.permute.xlu0 %5985
        %v6019 = vadd.f32 %v5795, %v5924
        %v6020 = vadd.f32 %v5796, %v5926
        %v6021 = vadd.f32 %v5797, %v5928
        %v6022 = vadd.f32 %v5798, %v5930
        %v6023 = vadd.f32 %v5799, %v5932
        %v6024 = vadd.f32 %v5800, %v5934
        %v6025 = vadd.f32 %v5801, %v5936
        %v6026 = vadd.f32 %v5802, %v5938
        %v6027 = vadd.f32 %v5803, %v5940
        %v6028 = vadd.f32 %v5804, %v5942
        %v6029 = vadd.f32 %v5805, %v5944
        %v6030 = vadd.f32 %v5806, %v5946
        %v6031 = vadd.f32 %v5807, %v5948
        %v6032 = vadd.f32 %v5808, %v5950
        %v6033 = vadd.f32 %v5809, %v5952
        %v6034 = vadd.f32 %v5810, %v5954
        %v6035 = vadd.f32 %v5811, %v5956
        %v6036 = vadd.f32 %v5812, %v5958
        %v6037 = vadd.f32 %v5813, %v5960
        %v6038 = vadd.f32 %v5814, %v5962
        %v6039 = vadd.f32 %v5815, %v5964
        %v6040 = vadd.f32 %v5816, %v5966
        %v6041 = vadd.f32 %v5817, %v5968
        %v6042 = vadd.f32 %v5818, %v5970
        %v6043 = vadd.f32 %v5819, %v5972
        %v6044 = vadd.f32 %v5820, %v5974
        %v6045 = vadd.f32 %v5821, %v5976
        %v6046 = vadd.f32 %v5822, %v5978
        %v6047 = vadd.f32 %v5823, %v5980
        %v6048 = vadd.f32 %v5824, %v5982
        %v6049 = vadd.f32 %v5825, %v5984
        %v6050 = vadd.f32 %v5826, %v5986
        %6051 = vset.pattern.permute.xlu0 18
        %6052 = vperm.xlu0 %6051, %v2998
        %v6053 = vpop.permute.xlu0 %6052
        %6055 = vset.pattern.permute.xlu0 18
        %6056 = vperm.xlu0 %6055, %v3002
        %v6057 = vpop.permute.xlu0 %6056
        %6059 = vset.pattern.permute.xlu0 18
        %6060 = vperm.xlu0 %6059, %v3006
        %v6061 = vpop.permute.xlu0 %6060
        %6063 = vset.pattern.permute.xlu0 18
        %6064 = vperm.xlu0 %6063, %v3010
        %v6065 = vpop.permute.xlu0 %6064
        %6067 = vset.pattern.permute.xlu0 18
        %6068 = vperm.xlu0 %6067, %v3014
        %v6069 = vpop.permute.xlu0 %6068
        %6071 = vset.pattern.permute.xlu0 18
        %6072 = vperm.xlu0 %6071, %v3018
        %v6073 = vpop.permute.xlu0 %6072
        %6075 = vset.pattern.permute.xlu0 18
        %6076 = vperm.xlu0 %6075, %v3022
        %v6077 = vpop.permute.xlu0 %6076
        %6079 = vset.pattern.permute.xlu0 18
        %6080 = vperm.xlu0 %6079, %v3026
        %v6081 = vpop.permute.xlu0 %6080
        %v6083 = vmul.f32 %v6053, %v5211
        %v6084 = vmul.f32 %v6053, %v5212
        %v6085 = vmul.f32 %v6053, %v5213
        %v6086 = vmul.f32 %v6053, %v5214
        %v6087 = vmul.f32 %v6057, %v5211
        %v6088 = vmul.f32 %v6057, %v5212
        %v6089 = vmul.f32 %v6057, %v5213
        %v6090 = vmul.f32 %v6057, %v5214
        %v6091 = vmul.f32 %v6061, %v5211
        %v6092 = vmul.f32 %v6061, %v5212
        %v6093 = vmul.f32 %v6061, %v5213
        %v6094 = vmul.f32 %v6061, %v5214
        %v6095 = vmul.f32 %v6065, %v5211
        %v6096 = vmul.f32 %v6065, %v5212
        %v6097 = vmul.f32 %v6065, %v5213
        %v6098 = vmul.f32 %v6065, %v5214
        %v6099 = vmul.f32 %v6069, %v5211
        %v6100 = vmul.f32 %v6069, %v5212
        %v6101 = vmul.f32 %v6069, %v5213
        %v6102 = vmul.f32 %v6069, %v5214
        %v6103 = vmul.f32 %v6073, %v5211
        %v6104 = vmul.f32 %v6073, %v5212
        %v6105 = vmul.f32 %v6073, %v5213
        %v6106 = vmul.f32 %v6073, %v5214
        %v6107 = vmul.f32 %v6077, %v5211
        %v6108 = vmul.f32 %v6077, %v5212
        %v6109 = vmul.f32 %v6077, %v5213
        %v6110 = vmul.f32 %v6077, %v5214
        %v6111 = vmul.f32 %v6081, %v5211
        %v6112 = vmul.f32 %v6081, %v5212
        %v6113 = vmul.f32 %v6081, %v5213
        %v6114 = vmul.f32 %v6081, %v5214
        %6147 = vrot.lane.b32.xlu0 %v6083, 127
        %v6148 = vpop.permute.xlu0 %6147
        %6149 = vrot.lane.b32.xlu0 %v6084, 127
        %v6150 = vpop.permute.xlu0 %6149
        %6151 = vrot.lane.b32.xlu0 %v6085, 127
        %v6152 = vpop.permute.xlu0 %6151
        %6153 = vrot.lane.b32.xlu0 %v6086, 127
        %v6154 = vpop.permute.xlu0 %6153
        %6155 = vrot.lane.b32.xlu0 %v6087, 127
        %v6156 = vpop.permute.xlu0 %6155
        %6157 = vrot.lane.b32.xlu0 %v6088, 127
        %v6158 = vpop.permute.xlu0 %6157
        %6159 = vrot.lane.b32.xlu0 %v6089, 127
        %v6160 = vpop.permute.xlu0 %6159
        %6161 = vrot.lane.b32.xlu0 %v6090, 127
        %v6162 = vpop.permute.xlu0 %6161
        %6163 = vrot.lane.b32.xlu0 %v6091, 127
        %v6164 = vpop.permute.xlu0 %6163
        %6165 = vrot.lane.b32.xlu0 %v6092, 127
        %v6166 = vpop.permute.xlu0 %6165
        %6167 = vrot.lane.b32.xlu0 %v6093, 127
        %v6168 = vpop.permute.xlu0 %6167
        %6169 = vrot.lane.b32.xlu0 %v6094, 127
        %v6170 = vpop.permute.xlu0 %6169
        %6171 = vrot.lane.b32.xlu0 %v6095, 127
        %v6172 = vpop.permute.xlu0 %6171
        %6173 = vrot.lane.b32.xlu0 %v6096, 127
        %v6174 = vpop.permute.xlu0 %6173
        %6175 = vrot.lane.b32.xlu0 %v6097, 127
        %v6176 = vpop.permute.xlu0 %6175
        %6177 = vrot.lane.b32.xlu0 %v6098, 127
        %v6178 = vpop.permute.xlu0 %6177
        %6179 = vrot.lane.b32.xlu0 %v6099, 127
        %v6180 = vpop.permute.xlu0 %6179
        %6181 = vrot.lane.b32.xlu0 %v6100, 127
        %v6182 = vpop.permute.xlu0 %6181
        %6183 = vrot.lane.b32.xlu0 %v6101, 127
        %v6184 = vpop.permute.xlu0 %6183
        %6185 = vrot.lane.b32.xlu0 %v6102, 127
        %v6186 = vpop.permute.xlu0 %6185
        %6187 = vrot.lane.b32.xlu0 %v6103, 127
        %v6188 = vpop.permute.xlu0 %6187
        %6189 = vrot.lane.b32.xlu0 %v6104, 127
        %v6190 = vpop.permute.xlu0 %6189
        %6191 = vrot.lane.b32.xlu0 %v6105, 127
        %v6192 = vpop.permute.xlu0 %6191
        %6193 = vrot.lane.b32.xlu0 %v6106, 127
        %v6194 = vpop.permute.xlu0 %6193
        %6195 = vrot.lane.b32.xlu0 %v6107, 127
        %v6196 = vpop.permute.xlu0 %6195
        %6197 = vrot.lane.b32.xlu0 %v6108, 127
        %v6198 = vpop.permute.xlu0 %6197
        %6199 = vrot.lane.b32.xlu0 %v6109, 127
        %v6200 = vpop.permute.xlu0 %6199
        %6201 = vrot.lane.b32.xlu0 %v6110, 127
        %v6202 = vpop.permute.xlu0 %6201
        %6203 = vrot.lane.b32.xlu0 %v6111, 127
        %v6204 = vpop.permute.xlu0 %6203
        %6205 = vrot.lane.b32.xlu0 %v6112, 127
        %v6206 = vpop.permute.xlu0 %6205
        %6207 = vrot.lane.b32.xlu0 %v6113, 127
        %v6208 = vpop.permute.xlu0 %6207
        %6209 = vrot.lane.b32.xlu0 %v6114, 127
        %v6210 = vpop.permute.xlu0 %6209
        %v6243 = vadd.f32 %v6019, %v6148
        %v6244 = vadd.f32 %v6020, %v6150
        %v6245 = vadd.f32 %v6021, %v6152
        %v6246 = vadd.f32 %v6022, %v6154
        %v6247 = vadd.f32 %v6023, %v6156
        %v6248 = vadd.f32 %v6024, %v6158
        %v6249 = vadd.f32 %v6025, %v6160
        %v6250 = vadd.f32 %v6026, %v6162
        %v6251 = vadd.f32 %v6027, %v6164
        %v6252 = vadd.f32 %v6028, %v6166
        %v6253 = vadd.f32 %v6029, %v6168
        %v6254 = vadd.f32 %v6030, %v6170
        %v6255 = vadd.f32 %v6031, %v6172
        %v6256 = vadd.f32 %v6032, %v6174
        %v6257 = vadd.f32 %v6033, %v6176
        %v6258 = vadd.f32 %v6034, %v6178
        %v6259 = vadd.f32 %v6035, %v6180
        %v6260 = vadd.f32 %v6036, %v6182
        %v6261 = vadd.f32 %v6037, %v6184
        %v6262 = vadd.f32 %v6038, %v6186
        %v6263 = vadd.f32 %v6039, %v6188
        %v6264 = vadd.f32 %v6040, %v6190
        %v6265 = vadd.f32 %v6041, %v6192
        %v6266 = vadd.f32 %v6042, %v6194
        %v6267 = vadd.f32 %v6043, %v6196
        %v6268 = vadd.f32 %v6044, %v6198
        %v6269 = vadd.f32 %v6045, %v6200
        %v6270 = vadd.f32 %v6046, %v6202
        %v6271 = vadd.f32 %v6047, %v6204
        %v6272 = vadd.f32 %v6048, %v6206
        %v6273 = vadd.f32 %v6049, %v6208
        %v6274 = vadd.f32 %v6050, %v6210
        %6275 = vset.pattern.permute.xlu0 19
        %6276 = vperm.xlu0 %6275, %v2998
        %v6277 = vpop.permute.xlu0 %6276
        %6279 = vset.pattern.permute.xlu0 19
        %6280 = vperm.xlu0 %6279, %v3002
        %v6281 = vpop.permute.xlu0 %6280
        %6283 = vset.pattern.permute.xlu0 19
        %6284 = vperm.xlu0 %6283, %v3006
        %v6285 = vpop.permute.xlu0 %6284
        %6287 = vset.pattern.permute.xlu0 19
        %6288 = vperm.xlu0 %6287, %v3010
        %v6289 = vpop.permute.xlu0 %6288
        %6291 = vset.pattern.permute.xlu0 19
        %6292 = vperm.xlu0 %6291, %v3014
        %v6293 = vpop.permute.xlu0 %6292
        %6295 = vset.pattern.permute.xlu0 19
        %6296 = vperm.xlu0 %6295, %v3018
        %v6297 = vpop.permute.xlu0 %6296
        %6299 = vset.pattern.permute.xlu0 19
        %6300 = vperm.xlu0 %6299, %v3022
        %v6301 = vpop.permute.xlu0 %6300
        %6303 = vset.pattern.permute.xlu0 19
        %6304 = vperm.xlu0 %6303, %v3026
        %v6305 = vpop.permute.xlu0 %6304
        %v6307 = vmul.f32 %v6277, %v5215
        %v6308 = vmul.f32 %v6277, %v5216
        %v6309 = vmul.f32 %v6277, %v5217
        %v6310 = vmul.f32 %v6277, %v5218
        %v6311 = vmul.f32 %v6281, %v5215
        %v6312 = vmul.f32 %v6281, %v5216
        %v6313 = vmul.f32 %v6281, %v5217
        %v6314 = vmul.f32 %v6281, %v5218
        %v6315 = vmul.f32 %v6285, %v5215
        %v6316 = vmul.f32 %v6285, %v5216
        %v6317 = vmul.f32 %v6285, %v5217
        %v6318 = vmul.f32 %v6285, %v5218
        %v6319 = vmul.f32 %v6289, %v5215
        %v6320 = vmul.f32 %v6289, %v5216
        %v6321 = vmul.f32 %v6289, %v5217
        %v6322 = vmul.f32 %v6289, %v5218
        %v6323 = vmul.f32 %v6293, %v5215
        %v6324 = vmul.f32 %v6293, %v5216
        %v6325 = vmul.f32 %v6293, %v5217
        %v6326 = vmul.f32 %v6293, %v5218
        %v6327 = vmul.f32 %v6297, %v5215
        %v6328 = vmul.f32 %v6297, %v5216
        %v6329 = vmul.f32 %v6297, %v5217
        %v6330 = vmul.f32 %v6297, %v5218
        %v6331 = vmul.f32 %v6301, %v5215
        %v6332 = vmul.f32 %v6301, %v5216
        %v6333 = vmul.f32 %v6301, %v5217
        %v6334 = vmul.f32 %v6301, %v5218
        %v6335 = vmul.f32 %v6305, %v5215
        %v6336 = vmul.f32 %v6305, %v5216
        %v6337 = vmul.f32 %v6305, %v5217
        %v6338 = vmul.f32 %v6305, %v5218
        %6371 = vrot.lane.b32.xlu0 %v6307, 127
        %v6372 = vpop.permute.xlu0 %6371
        %6373 = vrot.lane.b32.xlu0 %v6308, 127
        %v6374 = vpop.permute.xlu0 %6373
        %6375 = vrot.lane.b32.xlu0 %v6309, 127
        %v6376 = vpop.permute.xlu0 %6375
        %6377 = vrot.lane.b32.xlu0 %v6310, 127
        %v6378 = vpop.permute.xlu0 %6377
        %6379 = vrot.lane.b32.xlu0 %v6311, 127
        %v6380 = vpop.permute.xlu0 %6379
        %6381 = vrot.lane.b32.xlu0 %v6312, 127
        %v6382 = vpop.permute.xlu0 %6381
        %6383 = vrot.lane.b32.xlu0 %v6313, 127
        %v6384 = vpop.permute.xlu0 %6383
        %6385 = vrot.lane.b32.xlu0 %v6314, 127
        %v6386 = vpop.permute.xlu0 %6385
        %6387 = vrot.lane.b32.xlu0 %v6315, 127
        %v6388 = vpop.permute.xlu0 %6387
        %6389 = vrot.lane.b32.xlu0 %v6316, 127
        %v6390 = vpop.permute.xlu0 %6389
        %6391 = vrot.lane.b32.xlu0 %v6317, 127
        %v6392 = vpop.permute.xlu0 %6391
        %6393 = vrot.lane.b32.xlu0 %v6318, 127
        %v6394 = vpop.permute.xlu0 %6393
        %6395 = vrot.lane.b32.xlu0 %v6319, 127
        %v6396 = vpop.permute.xlu0 %6395
        %6397 = vrot.lane.b32.xlu0 %v6320, 127
        %v6398 = vpop.permute.xlu0 %6397
        %6399 = vrot.lane.b32.xlu0 %v6321, 127
        %v6400 = vpop.permute.xlu0 %6399
        %6401 = vrot.lane.b32.xlu0 %v6322, 127
        %v6402 = vpop.permute.xlu0 %6401
        %6403 = vrot.lane.b32.xlu0 %v6323, 127
        %v6404 = vpop.permute.xlu0 %6403
        %6405 = vrot.lane.b32.xlu0 %v6324, 127
        %v6406 = vpop.permute.xlu0 %6405
        %6407 = vrot.lane.b32.xlu0 %v6325, 127
        %v6408 = vpop.permute.xlu0 %6407
        %6409 = vrot.lane.b32.xlu0 %v6326, 127
        %v6410 = vpop.permute.xlu0 %6409
        %6411 = vrot.lane.b32.xlu0 %v6327, 127
        %v6412 = vpop.permute.xlu0 %6411
        %6413 = vrot.lane.b32.xlu0 %v6328, 127
        %v6414 = vpop.permute.xlu0 %6413
        %6415 = vrot.lane.b32.xlu0 %v6329, 127
        %v6416 = vpop.permute.xlu0 %6415
        %6417 = vrot.lane.b32.xlu0 %v6330, 127
        %v6418 = vpop.permute.xlu0 %6417
        %6419 = vrot.lane.b32.xlu0 %v6331, 127
        %v6420 = vpop.permute.xlu0 %6419
        %6421 = vrot.lane.b32.xlu0 %v6332, 127
        %v6422 = vpop.permute.xlu0 %6421
        %6423 = vrot.lane.b32.xlu0 %v6333, 127
        %v6424 = vpop.permute.xlu0 %6423
        %6425 = vrot.lane.b32.xlu0 %v6334, 127
        %v6426 = vpop.permute.xlu0 %6425
        %6427 = vrot.lane.b32.xlu0 %v6335, 127
        %v6428 = vpop.permute.xlu0 %6427
        %6429 = vrot.lane.b32.xlu0 %v6336, 127
        %v6430 = vpop.permute.xlu0 %6429
        %6431 = vrot.lane.b32.xlu0 %v6337, 127
        %v6432 = vpop.permute.xlu0 %6431
        %6433 = vrot.lane.b32.xlu0 %v6338, 127
        %v6434 = vpop.permute.xlu0 %6433
        %v6467 = vadd.f32 %v6243, %v6372
        %v6468 = vadd.f32 %v6244, %v6374
        %v6469 = vadd.f32 %v6245, %v6376
        %v6470 = vadd.f32 %v6246, %v6378
        %v6471 = vadd.f32 %v6247, %v6380
        %v6472 = vadd.f32 %v6248, %v6382
        %v6473 = vadd.f32 %v6249, %v6384
        %v6474 = vadd.f32 %v6250, %v6386
        %v6475 = vadd.f32 %v6251, %v6388
        %v6476 = vadd.f32 %v6252, %v6390
        %v6477 = vadd.f32 %v6253, %v6392
        %v6478 = vadd.f32 %v6254, %v6394
        %v6479 = vadd.f32 %v6255, %v6396
        %v6480 = vadd.f32 %v6256, %v6398
        %v6481 = vadd.f32 %v6257, %v6400
        %v6482 = vadd.f32 %v6258, %v6402
        %v6483 = vadd.f32 %v6259, %v6404
        %v6484 = vadd.f32 %v6260, %v6406
        %v6485 = vadd.f32 %v6261, %v6408
        %v6486 = vadd.f32 %v6262, %v6410
        %v6487 = vadd.f32 %v6263, %v6412
        %v6488 = vadd.f32 %v6264, %v6414
        %v6489 = vadd.f32 %v6265, %v6416
        %v6490 = vadd.f32 %v6266, %v6418
        %v6491 = vadd.f32 %v6267, %v6420
        %v6492 = vadd.f32 %v6268, %v6422
        %v6493 = vadd.f32 %v6269, %v6424
        %v6494 = vadd.f32 %v6270, %v6426
        %v6495 = vadd.f32 %v6271, %v6428
        %v6496 = vadd.f32 %v6272, %v6430
        %v6497 = vadd.f32 %v6273, %v6432
        %v6498 = vadd.f32 %v6274, %v6434
        %6499 = vset.pattern.permute.xlu0 20
        %6500 = vperm.xlu0 %6499, %v2998
        %v6501 = vpop.permute.xlu0 %6500
        %6503 = vset.pattern.permute.xlu0 20
        %6504 = vperm.xlu0 %6503, %v3002
        %v6505 = vpop.permute.xlu0 %6504
        %6507 = vset.pattern.permute.xlu0 20
        %6508 = vperm.xlu0 %6507, %v3006
        %v6509 = vpop.permute.xlu0 %6508
        %6511 = vset.pattern.permute.xlu0 20
        %6512 = vperm.xlu0 %6511, %v3010
        %v6513 = vpop.permute.xlu0 %6512
        %6515 = vset.pattern.permute.xlu0 20
        %6516 = vperm.xlu0 %6515, %v3014
        %v6517 = vpop.permute.xlu0 %6516
        %6519 = vset.pattern.permute.xlu0 20
        %6520 = vperm.xlu0 %6519, %v3018
        %v6521 = vpop.permute.xlu0 %6520
        %6523 = vset.pattern.permute.xlu0 20
        %6524 = vperm.xlu0 %6523, %v3022
        %v6525 = vpop.permute.xlu0 %6524
        %6527 = vset.pattern.permute.xlu0 20
        %6528 = vperm.xlu0 %6527, %v3026
        %v6529 = vpop.permute.xlu0 %6528
        %v6531 = vmul.f32 %v6501, %v5203
        %v6532 = vmul.f32 %v6501, %v5204
        %v6533 = vmul.f32 %v6501, %v5205
        %v6534 = vmul.f32 %v6501, %v5206
        %v6535 = vmul.f32 %v6505, %v5203
        %v6536 = vmul.f32 %v6505, %v5204
        %v6537 = vmul.f32 %v6505, %v5205
        %v6538 = vmul.f32 %v6505, %v5206
        %v6539 = vmul.f32 %v6509, %v5203
        %v6540 = vmul.f32 %v6509, %v5204
        %v6541 = vmul.f32 %v6509, %v5205
        %v6542 = vmul.f32 %v6509, %v5206
        %v6543 = vmul.f32 %v6513, %v5203
        %v6544 = vmul.f32 %v6513, %v5204
        %v6545 = vmul.f32 %v6513, %v5205
        %v6546 = vmul.f32 %v6513, %v5206
        %v6547 = vmul.f32 %v6517, %v5203
        %v6548 = vmul.f32 %v6517, %v5204
        %v6549 = vmul.f32 %v6517, %v5205
        %v6550 = vmul.f32 %v6517, %v5206
        %v6551 = vmul.f32 %v6521, %v5203
        %v6552 = vmul.f32 %v6521, %v5204
        %v6553 = vmul.f32 %v6521, %v5205
        %v6554 = vmul.f32 %v6521, %v5206
        %v6555 = vmul.f32 %v6525, %v5203
        %v6556 = vmul.f32 %v6525, %v5204
        %v6557 = vmul.f32 %v6525, %v5205
        %v6558 = vmul.f32 %v6525, %v5206
        %v6559 = vmul.f32 %v6529, %v5203
        %v6560 = vmul.f32 %v6529, %v5204
        %v6561 = vmul.f32 %v6529, %v5205
        %v6562 = vmul.f32 %v6529, %v5206
        %6595 = vrot.lane.b32.xlu0 %v6531, 126
        %v6596 = vpop.permute.xlu0 %6595
        %6597 = vrot.lane.b32.xlu0 %v6532, 126
        %v6598 = vpop.permute.xlu0 %6597
        %6599 = vrot.lane.b32.xlu0 %v6533, 126
        %v6600 = vpop.permute.xlu0 %6599
        %6601 = vrot.lane.b32.xlu0 %v6534, 126
        %v6602 = vpop.permute.xlu0 %6601
        %6603 = vrot.lane.b32.xlu0 %v6535, 126
        %v6604 = vpop.permute.xlu0 %6603
        %6605 = vrot.lane.b32.xlu0 %v6536, 126
        %v6606 = vpop.permute.xlu0 %6605
        %6607 = vrot.lane.b32.xlu0 %v6537, 126
        %v6608 = vpop.permute.xlu0 %6607
        %6609 = vrot.lane.b32.xlu0 %v6538, 126
        %v6610 = vpop.permute.xlu0 %6609
        %6611 = vrot.lane.b32.xlu0 %v6539, 126
        %v6612 = vpop.permute.xlu0 %6611
        %6613 = vrot.lane.b32.xlu0 %v6540, 126
        %v6614 = vpop.permute.xlu0 %6613
        %6615 = vrot.lane.b32.xlu0 %v6541, 126
        %v6616 = vpop.permute.xlu0 %6615
        %6617 = vrot.lane.b32.xlu0 %v6542, 126
        %v6618 = vpop.permute.xlu0 %6617
        %6619 = vrot.lane.b32.xlu0 %v6543, 126
        %v6620 = vpop.permute.xlu0 %6619
        %6621 = vrot.lane.b32.xlu0 %v6544, 126
        %v6622 = vpop.permute.xlu0 %6621
        %6623 = vrot.lane.b32.xlu0 %v6545, 126
        %v6624 = vpop.permute.xlu0 %6623
        %6625 = vrot.lane.b32.xlu0 %v6546, 126
        %v6626 = vpop.permute.xlu0 %6625
        %6627 = vrot.lane.b32.xlu0 %v6547, 126
        %v6628 = vpop.permute.xlu0 %6627
        %6629 = vrot.lane.b32.xlu0 %v6548, 126
        %v6630 = vpop.permute.xlu0 %6629
        %6631 = vrot.lane.b32.xlu0 %v6549, 126
        %v6632 = vpop.permute.xlu0 %6631
        %6633 = vrot.lane.b32.xlu0 %v6550, 126
        %v6634 = vpop.permute.xlu0 %6633
        %6635 = vrot.lane.b32.xlu0 %v6551, 126
        %v6636 = vpop.permute.xlu0 %6635
        %6637 = vrot.lane.b32.xlu0 %v6552, 126
        %v6638 = vpop.permute.xlu0 %6637
        %6639 = vrot.lane.b32.xlu0 %v6553, 126
        %v6640 = vpop.permute.xlu0 %6639
        %6641 = vrot.lane.b32.xlu0 %v6554, 126
        %v6642 = vpop.permute.xlu0 %6641
        %6643 = vrot.lane.b32.xlu0 %v6555, 126
        %v6644 = vpop.permute.xlu0 %6643
        %6645 = vrot.lane.b32.xlu0 %v6556, 126
        %v6646 = vpop.permute.xlu0 %6645
        %6647 = vrot.lane.b32.xlu0 %v6557, 126
        %v6648 = vpop.permute.xlu0 %6647
        %6649 = vrot.lane.b32.xlu0 %v6558, 126
        %v6650 = vpop.permute.xlu0 %6649
        %6651 = vrot.lane.b32.xlu0 %v6559, 126
        %v6652 = vpop.permute.xlu0 %6651
        %6653 = vrot.lane.b32.xlu0 %v6560, 126
        %v6654 = vpop.permute.xlu0 %6653
        %6655 = vrot.lane.b32.xlu0 %v6561, 126
        %v6656 = vpop.permute.xlu0 %6655
        %6657 = vrot.lane.b32.xlu0 %v6562, 126
        %v6658 = vpop.permute.xlu0 %6657
        %v6691 = vadd.f32 %v6467, %v6596
        %v6692 = vadd.f32 %v6468, %v6598
        %v6693 = vadd.f32 %v6469, %v6600
        %v6694 = vadd.f32 %v6470, %v6602
        %v6695 = vadd.f32 %v6471, %v6604
        %v6696 = vadd.f32 %v6472, %v6606
        %v6697 = vadd.f32 %v6473, %v6608
        %v6698 = vadd.f32 %v6474, %v6610
        %v6699 = vadd.f32 %v6475, %v6612
        %v6700 = vadd.f32 %v6476, %v6614
        %v6701 = vadd.f32 %v6477, %v6616
        %v6702 = vadd.f32 %v6478, %v6618
        %v6703 = vadd.f32 %v6479, %v6620
        %v6704 = vadd.f32 %v6480, %v6622
        %v6705 = vadd.f32 %v6481, %v6624
        %v6706 = vadd.f32 %v6482, %v6626
        %v6707 = vadd.f32 %v6483, %v6628
        %v6708 = vadd.f32 %v6484, %v6630
        %v6709 = vadd.f32 %v6485, %v6632
        %v6710 = vadd.f32 %v6486, %v6634
        %v6711 = vadd.f32 %v6487, %v6636
        %v6712 = vadd.f32 %v6488, %v6638
        %v6713 = vadd.f32 %v6489, %v6640
        %v6714 = vadd.f32 %v6490, %v6642
        %v6715 = vadd.f32 %v6491, %v6644
        %v6716 = vadd.f32 %v6492, %v6646
        %v6717 = vadd.f32 %v6493, %v6648
        %v6718 = vadd.f32 %v6494, %v6650
        %v6719 = vadd.f32 %v6495, %v6652
        %v6720 = vadd.f32 %v6496, %v6654
        %v6721 = vadd.f32 %v6497, %v6656
        %v6722 = vadd.f32 %v6498, %v6658
        %6723 = vset.pattern.permute.xlu0 21
        %6724 = vperm.xlu0 %6723, %v2998
        %v6725 = vpop.permute.xlu0 %6724
        %6727 = vset.pattern.permute.xlu0 21
        %6728 = vperm.xlu0 %6727, %v3002
        %v6729 = vpop.permute.xlu0 %6728
        %6731 = vset.pattern.permute.xlu0 21
        %6732 = vperm.xlu0 %6731, %v3006
        %v6733 = vpop.permute.xlu0 %6732
        %6735 = vset.pattern.permute.xlu0 21
        %6736 = vperm.xlu0 %6735, %v3010
        %v6737 = vpop.permute.xlu0 %6736
        %6739 = vset.pattern.permute.xlu0 21
        %6740 = vperm.xlu0 %6739, %v3014
        %v6741 = vpop.permute.xlu0 %6740
        %6743 = vset.pattern.permute.xlu0 21
        %6744 = vperm.xlu0 %6743, %v3018
        %v6745 = vpop.permute.xlu0 %6744
        %6747 = vset.pattern.permute.xlu0 21
        %6748 = vperm.xlu0 %6747, %v3022
        %v6749 = vpop.permute.xlu0 %6748
        %6751 = vset.pattern.permute.xlu0 21
        %6752 = vperm.xlu0 %6751, %v3026
        %v6753 = vpop.permute.xlu0 %6752
        %v6755 = vmul.f32 %v6725, %v5207
        %v6756 = vmul.f32 %v6725, %v5208
        %v6757 = vmul.f32 %v6725, %v5209
        %v6758 = vmul.f32 %v6725, %v5210
        %v6759 = vmul.f32 %v6729, %v5207
        %v6760 = vmul.f32 %v6729, %v5208
        %v6761 = vmul.f32 %v6729, %v5209
        %v6762 = vmul.f32 %v6729, %v5210
        %v6763 = vmul.f32 %v6733, %v5207
        %v6764 = vmul.f32 %v6733, %v5208
        %v6765 = vmul.f32 %v6733, %v5209
        %v6766 = vmul.f32 %v6733, %v5210
        %v6767 = vmul.f32 %v6737, %v5207
        %v6768 = vmul.f32 %v6737, %v5208
        %v6769 = vmul.f32 %v6737, %v5209
        %v6770 = vmul.f32 %v6737, %v5210
        %v6771 = vmul.f32 %v6741, %v5207
        %v6772 = vmul.f32 %v6741, %v5208
        %v6773 = vmul.f32 %v6741, %v5209
        %v6774 = vmul.f32 %v6741, %v5210
        %v6775 = vmul.f32 %v6745, %v5207
        %v6776 = vmul.f32 %v6745, %v5208
        %v6777 = vmul.f32 %v6745, %v5209
        %v6778 = vmul.f32 %v6745, %v5210
        %v6779 = vmul.f32 %v6749, %v5207
        %v6780 = vmul.f32 %v6749, %v5208
        %v6781 = vmul.f32 %v6749, %v5209
        %v6782 = vmul.f32 %v6749, %v5210
        %v6783 = vmul.f32 %v6753, %v5207
        %v6784 = vmul.f32 %v6753, %v5208
        %v6785 = vmul.f32 %v6753, %v5209
        %v6786 = vmul.f32 %v6753, %v5210
        %6819 = vrot.lane.b32.xlu0 %v6755, 126
        %v6820 = vpop.permute.xlu0 %6819
        %6821 = vrot.lane.b32.xlu0 %v6756, 126
        %v6822 = vpop.permute.xlu0 %6821
        %6823 = vrot.lane.b32.xlu0 %v6757, 126
        %v6824 = vpop.permute.xlu0 %6823
        %6825 = vrot.lane.b32.xlu0 %v6758, 126
        %v6826 = vpop.permute.xlu0 %6825
        %6827 = vrot.lane.b32.xlu0 %v6759, 126
        %v6828 = vpop.permute.xlu0 %6827
        %6829 = vrot.lane.b32.xlu0 %v6760, 126
        %v6830 = vpop.permute.xlu0 %6829
        %6831 = vrot.lane.b32.xlu0 %v6761, 126
        %v6832 = vpop.permute.xlu0 %6831
        %6833 = vrot.lane.b32.xlu0 %v6762, 126
        %v6834 = vpop.permute.xlu0 %6833
        %6835 = vrot.lane.b32.xlu0 %v6763, 126
        %v6836 = vpop.permute.xlu0 %6835
        %6837 = vrot.lane.b32.xlu0 %v6764, 126
        %v6838 = vpop.permute.xlu0 %6837
        %6839 = vrot.lane.b32.xlu0 %v6765, 126
        %v6840 = vpop.permute.xlu0 %6839
        %6841 = vrot.lane.b32.xlu0 %v6766, 126
        %v6842 = vpop.permute.xlu0 %6841
        %6843 = vrot.lane.b32.xlu0 %v6767, 126
        %v6844 = vpop.permute.xlu0 %6843
        %6845 = vrot.lane.b32.xlu0 %v6768, 126
        %v6846 = vpop.permute.xlu0 %6845
        %6847 = vrot.lane.b32.xlu0 %v6769, 126
        %v6848 = vpop.permute.xlu0 %6847
        %6849 = vrot.lane.b32.xlu0 %v6770, 126
        %v6850 = vpop.permute.xlu0 %6849
        %6851 = vrot.lane.b32.xlu0 %v6771, 126
        %v6852 = vpop.permute.xlu0 %6851
        %6853 = vrot.lane.b32.xlu0 %v6772, 126
        %v6854 = vpop.permute.xlu0 %6853
        %6855 = vrot.lane.b32.xlu0 %v6773, 126
        %v6856 = vpop.permute.xlu0 %6855
        %6857 = vrot.lane.b32.xlu0 %v6774, 126
        %v6858 = vpop.permute.xlu0 %6857
        %6859 = vrot.lane.b32.xlu0 %v6775, 126
        %v6860 = vpop.permute.xlu0 %6859
        %6861 = vrot.lane.b32.xlu0 %v6776, 126
        %v6862 = vpop.permute.xlu0 %6861
        %6863 = vrot.lane.b32.xlu0 %v6777, 126
        %v6864 = vpop.permute.xlu0 %6863
        %6865 = vrot.lane.b32.xlu0 %v6778, 126
        %v6866 = vpop.permute.xlu0 %6865
        %6867 = vrot.lane.b32.xlu0 %v6779, 126
        %v6868 = vpop.permute.xlu0 %6867
        %6869 = vrot.lane.b32.xlu0 %v6780, 126
        %v6870 = vpop.permute.xlu0 %6869
        %6871 = vrot.lane.b32.xlu0 %v6781, 126
        %v6872 = vpop.permute.xlu0 %6871
        %6873 = vrot.lane.b32.xlu0 %v6782, 126
        %v6874 = vpop.permute.xlu0 %6873
        %6875 = vrot.lane.b32.xlu0 %v6783, 126
        %v6876 = vpop.permute.xlu0 %6875
        %6877 = vrot.lane.b32.xlu0 %v6784, 126
        %v6878 = vpop.permute.xlu0 %6877
        %6879 = vrot.lane.b32.xlu0 %v6785, 126
        %v6880 = vpop.permute.xlu0 %6879
        %6881 = vrot.lane.b32.xlu0 %v6786, 126
        %v6882 = vpop.permute.xlu0 %6881
        %v6915 = vadd.f32 %v6691, %v6820
        %v6916 = vadd.f32 %v6692, %v6822
        %v6917 = vadd.f32 %v6693, %v6824
        %v6918 = vadd.f32 %v6694, %v6826
        %v6919 = vadd.f32 %v6695, %v6828
        %v6920 = vadd.f32 %v6696, %v6830
        %v6921 = vadd.f32 %v6697, %v6832
        %v6922 = vadd.f32 %v6698, %v6834
        %v6923 = vadd.f32 %v6699, %v6836
        %v6924 = vadd.f32 %v6700, %v6838
        %v6925 = vadd.f32 %v6701, %v6840
        %v6926 = vadd.f32 %v6702, %v6842
        %v6927 = vadd.f32 %v6703, %v6844
        %v6928 = vadd.f32 %v6704, %v6846
        %v6929 = vadd.f32 %v6705, %v6848
        %v6930 = vadd.f32 %v6706, %v6850
        %v6931 = vadd.f32 %v6707, %v6852
        %v6932 = vadd.f32 %v6708, %v6854
        %v6933 = vadd.f32 %v6709, %v6856
        %v6934 = vadd.f32 %v6710, %v6858
        %v6935 = vadd.f32 %v6711, %v6860
        %v6936 = vadd.f32 %v6712, %v6862
        %v6937 = vadd.f32 %v6713, %v6864
        %v6938 = vadd.f32 %v6714, %v6866
        %v6939 = vadd.f32 %v6715, %v6868
        %v6940 = vadd.f32 %v6716, %v6870
        %v6941 = vadd.f32 %v6717, %v6872
        %v6942 = vadd.f32 %v6718, %v6874
        %v6943 = vadd.f32 %v6719, %v6876
        %v6944 = vadd.f32 %v6720, %v6878
        %v6945 = vadd.f32 %v6721, %v6880
        %v6946 = vadd.f32 %v6722, %v6882
        %6947 = vset.pattern.permute.xlu0 22
        %6948 = vperm.xlu0 %6947, %v2998
        %v6949 = vpop.permute.xlu0 %6948
        %6951 = vset.pattern.permute.xlu0 22
        %6952 = vperm.xlu0 %6951, %v3002
        %v6953 = vpop.permute.xlu0 %6952
        %6955 = vset.pattern.permute.xlu0 22
        %6956 = vperm.xlu0 %6955, %v3006
        %v6957 = vpop.permute.xlu0 %6956
        %6959 = vset.pattern.permute.xlu0 22
        %6960 = vperm.xlu0 %6959, %v3010
        %v6961 = vpop.permute.xlu0 %6960
        %6963 = vset.pattern.permute.xlu0 22
        %6964 = vperm.xlu0 %6963, %v3014
        %v6965 = vpop.permute.xlu0 %6964
        %6967 = vset.pattern.permute.xlu0 22
        %6968 = vperm.xlu0 %6967, %v3018
        %v6969 = vpop.permute.xlu0 %6968
        %6971 = vset.pattern.permute.xlu0 22
        %6972 = vperm.xlu0 %6971, %v3022
        %v6973 = vpop.permute.xlu0 %6972
        %6975 = vset.pattern.permute.xlu0 22
        %6976 = vperm.xlu0 %6975, %v3026
        %v6977 = vpop.permute.xlu0 %6976
        %v6979 = vmul.f32 %v6949, %v5211
        %v6980 = vmul.f32 %v6949, %v5212
        %v6981 = vmul.f32 %v6949, %v5213
        %v6982 = vmul.f32 %v6949, %v5214
        %v6983 = vmul.f32 %v6953, %v5211
        %v6984 = vmul.f32 %v6953, %v5212
        %v6985 = vmul.f32 %v6953, %v5213
        %v6986 = vmul.f32 %v6953, %v5214
        %v6987 = vmul.f32 %v6957, %v5211
        %v6988 = vmul.f32 %v6957, %v5212
        %v6989 = vmul.f32 %v6957, %v5213
        %v6990 = vmul.f32 %v6957, %v5214
        %v6991 = vmul.f32 %v6961, %v5211
        %v6992 = vmul.f32 %v6961, %v5212
        %v6993 = vmul.f32 %v6961, %v5213
        %v6994 = vmul.f32 %v6961, %v5214
        %v6995 = vmul.f32 %v6965, %v5211
        %v6996 = vmul.f32 %v6965, %v5212
        %v6997 = vmul.f32 %v6965, %v5213
        %v6998 = vmul.f32 %v6965, %v5214
        %v6999 = vmul.f32 %v6969, %v5211
        %v7000 = vmul.f32 %v6969, %v5212
        %v7001 = vmul.f32 %v6969, %v5213
        %v7002 = vmul.f32 %v6969, %v5214
        %v7003 = vmul.f32 %v6973, %v5211
        %v7004 = vmul.f32 %v6973, %v5212
        %v7005 = vmul.f32 %v6973, %v5213
        %v7006 = vmul.f32 %v6973, %v5214
        %v7007 = vmul.f32 %v6977, %v5211
        %v7008 = vmul.f32 %v6977, %v5212
        %v7009 = vmul.f32 %v6977, %v5213
        %v7010 = vmul.f32 %v6977, %v5214
        %7043 = vrot.lane.b32.xlu0 %v6979, 126
        %v7044 = vpop.permute.xlu0 %7043
        %7045 = vrot.lane.b32.xlu0 %v6980, 126
        %v7046 = vpop.permute.xlu0 %7045
        %7047 = vrot.lane.b32.xlu0 %v6981, 126
        %v7048 = vpop.permute.xlu0 %7047
        %7049 = vrot.lane.b32.xlu0 %v6982, 126
        %v7050 = vpop.permute.xlu0 %7049
        %7051 = vrot.lane.b32.xlu0 %v6983, 126
        %v7052 = vpop.permute.xlu0 %7051
        %7053 = vrot.lane.b32.xlu0 %v6984, 126
        %v7054 = vpop.permute.xlu0 %7053
        %7055 = vrot.lane.b32.xlu0 %v6985, 126
        %v7056 = vpop.permute.xlu0 %7055
        %7057 = vrot.lane.b32.xlu0 %v6986, 126
        %v7058 = vpop.permute.xlu0 %7057
        %7059 = vrot.lane.b32.xlu0 %v6987, 126
        %v7060 = vpop.permute.xlu0 %7059
        %7061 = vrot.lane.b32.xlu0 %v6988, 126
        %v7062 = vpop.permute.xlu0 %7061
        %7063 = vrot.lane.b32.xlu0 %v6989, 126
        %v7064 = vpop.permute.xlu0 %7063
        %7065 = vrot.lane.b32.xlu0 %v6990, 126
        %v7066 = vpop.permute.xlu0 %7065
        %7067 = vrot.lane.b32.xlu0 %v6991, 126
        %v7068 = vpop.permute.xlu0 %7067
        %7069 = vrot.lane.b32.xlu0 %v6992, 126
        %v7070 = vpop.permute.xlu0 %7069
        %7071 = vrot.lane.b32.xlu0 %v6993, 126
        %v7072 = vpop.permute.xlu0 %7071
        %7073 = vrot.lane.b32.xlu0 %v6994, 126
        %v7074 = vpop.permute.xlu0 %7073
        %7075 = vrot.lane.b32.xlu0 %v6995, 126
        %v7076 = vpop.permute.xlu0 %7075
        %7077 = vrot.lane.b32.xlu0 %v6996, 126
        %v7078 = vpop.permute.xlu0 %7077
        %7079 = vrot.lane.b32.xlu0 %v6997, 126
        %v7080 = vpop.permute.xlu0 %7079
        %7081 = vrot.lane.b32.xlu0 %v6998, 126
        %v7082 = vpop.permute.xlu0 %7081
        %7083 = vrot.lane.b32.xlu0 %v6999, 126
        %v7084 = vpop.permute.xlu0 %7083
        %7085 = vrot.lane.b32.xlu0 %v7000, 126
        %v7086 = vpop.permute.xlu0 %7085
        %7087 = vrot.lane.b32.xlu0 %v7001, 126
        %v7088 = vpop.permute.xlu0 %7087
        %7089 = vrot.lane.b32.xlu0 %v7002, 126
        %v7090 = vpop.permute.xlu0 %7089
        %7091 = vrot.lane.b32.xlu0 %v7003, 126
        %v7092 = vpop.permute.xlu0 %7091
        %7093 = vrot.lane.b32.xlu0 %v7004, 126
        %v7094 = vpop.permute.xlu0 %7093
        %7095 = vrot.lane.b32.xlu0 %v7005, 126
        %v7096 = vpop.permute.xlu0 %7095
        %7097 = vrot.lane.b32.xlu0 %v7006, 126
        %v7098 = vpop.permute.xlu0 %7097
        %7099 = vrot.lane.b32.xlu0 %v7007, 126
        %v7100 = vpop.permute.xlu0 %7099
        %7101 = vrot.lane.b32.xlu0 %v7008, 126
        %v7102 = vpop.permute.xlu0 %7101
        %7103 = vrot.lane.b32.xlu0 %v7009, 126
        %v7104 = vpop.permute.xlu0 %7103
        %7105 = vrot.lane.b32.xlu0 %v7010, 126
        %v7106 = vpop.permute.xlu0 %7105
        %v7139 = vadd.f32 %v6915, %v7044
        %v7140 = vadd.f32 %v6916, %v7046
        %v7141 = vadd.f32 %v6917, %v7048
        %v7142 = vadd.f32 %v6918, %v7050
        %v7143 = vadd.f32 %v6919, %v7052
        %v7144 = vadd.f32 %v6920, %v7054
        %v7145 = vadd.f32 %v6921, %v7056
        %v7146 = vadd.f32 %v6922, %v7058
        %v7147 = vadd.f32 %v6923, %v7060
        %v7148 = vadd.f32 %v6924, %v7062
        %v7149 = vadd.f32 %v6925, %v7064
        %v7150 = vadd.f32 %v6926, %v7066
        %v7151 = vadd.f32 %v6927, %v7068
        %v7152 = vadd.f32 %v6928, %v7070
        %v7153 = vadd.f32 %v6929, %v7072
        %v7154 = vadd.f32 %v6930, %v7074
        %v7155 = vadd.f32 %v6931, %v7076
        %v7156 = vadd.f32 %v6932, %v7078
        %v7157 = vadd.f32 %v6933, %v7080
        %v7158 = vadd.f32 %v6934, %v7082
        %v7159 = vadd.f32 %v6935, %v7084
        %v7160 = vadd.f32 %v6936, %v7086
        %v7161 = vadd.f32 %v6937, %v7088
        %v7162 = vadd.f32 %v6938, %v7090
        %v7163 = vadd.f32 %v6939, %v7092
        %v7164 = vadd.f32 %v6940, %v7094
        %v7165 = vadd.f32 %v6941, %v7096
        %v7166 = vadd.f32 %v6942, %v7098
        %v7167 = vadd.f32 %v6943, %v7100
        %v7168 = vadd.f32 %v6944, %v7102
        %v7169 = vadd.f32 %v6945, %v7104
        %v7170 = vadd.f32 %v6946, %v7106
        %7171 = vset.pattern.permute.xlu0 23
        %7172 = vperm.xlu0 %7171, %v2998
        %v7173 = vpop.permute.xlu0 %7172
        %7175 = vset.pattern.permute.xlu0 23
        %7176 = vperm.xlu0 %7175, %v3002
        %v7177 = vpop.permute.xlu0 %7176
        %7179 = vset.pattern.permute.xlu0 23
        %7180 = vperm.xlu0 %7179, %v3006
        %v7181 = vpop.permute.xlu0 %7180
        %7183 = vset.pattern.permute.xlu0 23
        %7184 = vperm.xlu0 %7183, %v3010
        %v7185 = vpop.permute.xlu0 %7184
        %7187 = vset.pattern.permute.xlu0 23
        %7188 = vperm.xlu0 %7187, %v3014
        %v7189 = vpop.permute.xlu0 %7188
        %7191 = vset.pattern.permute.xlu0 23
        %7192 = vperm.xlu0 %7191, %v3018
        %v7193 = vpop.permute.xlu0 %7192
        %7195 = vset.pattern.permute.xlu0 23
        %7196 = vperm.xlu0 %7195, %v3022
        %v7197 = vpop.permute.xlu0 %7196
        %7199 = vset.pattern.permute.xlu0 23
        %7200 = vperm.xlu0 %7199, %v3026
        %v7201 = vpop.permute.xlu0 %7200
        %v7203 = vmul.f32 %v7173, %v5215
        %v7204 = vmul.f32 %v7173, %v5216
        %v7205 = vmul.f32 %v7173, %v5217
        %v7206 = vmul.f32 %v7173, %v5218
        %v7207 = vmul.f32 %v7177, %v5215
        %v7208 = vmul.f32 %v7177, %v5216
        %v7209 = vmul.f32 %v7177, %v5217
        %v7210 = vmul.f32 %v7177, %v5218
        %v7211 = vmul.f32 %v7181, %v5215
        %v7212 = vmul.f32 %v7181, %v5216
        %v7213 = vmul.f32 %v7181, %v5217
        %v7214 = vmul.f32 %v7181, %v5218
        %v7215 = vmul.f32 %v7185, %v5215
        %v7216 = vmul.f32 %v7185, %v5216
        %v7217 = vmul.f32 %v7185, %v5217
        %v7218 = vmul.f32 %v7185, %v5218
        %v7219 = vmul.f32 %v7189, %v5215
        %v7220 = vmul.f32 %v7189, %v5216
        %v7221 = vmul.f32 %v7189, %v5217
        %v7222 = vmul.f32 %v7189, %v5218
        %v7223 = vmul.f32 %v7193, %v5215
        %v7224 = vmul.f32 %v7193, %v5216
        %v7225 = vmul.f32 %v7193, %v5217
        %v7226 = vmul.f32 %v7193, %v5218
        %v7227 = vmul.f32 %v7197, %v5215
        %v7228 = vmul.f32 %v7197, %v5216
        %v7229 = vmul.f32 %v7197, %v5217
        %v7230 = vmul.f32 %v7197, %v5218
        %v7231 = vmul.f32 %v7201, %v5215
        %v7232 = vmul.f32 %v7201, %v5216
        %v7233 = vmul.f32 %v7201, %v5217
        %v7234 = vmul.f32 %v7201, %v5218
        %7267 = vrot.lane.b32.xlu0 %v7203, 126
        %v7268 = vpop.permute.xlu0 %7267
        %7269 = vrot.lane.b32.xlu0 %v7204, 126
        %v7270 = vpop.permute.xlu0 %7269
        %7271 = vrot.lane.b32.xlu0 %v7205, 126
        %v7272 = vpop.permute.xlu0 %7271
        %7273 = vrot.lane.b32.xlu0 %v7206, 126
        %v7274 = vpop.permute.xlu0 %7273
        %7275 = vrot.lane.b32.xlu0 %v7207, 126
        %v7276 = vpop.permute.xlu0 %7275
        %7277 = vrot.lane.b32.xlu0 %v7208, 126
        %v7278 = vpop.permute.xlu0 %7277
        %7279 = vrot.lane.b32.xlu0 %v7209, 126
        %v7280 = vpop.permute.xlu0 %7279
        %7281 = vrot.lane.b32.xlu0 %v7210, 126
        %v7282 = vpop.permute.xlu0 %7281
        %7283 = vrot.lane.b32.xlu0 %v7211, 126
        %v7284 = vpop.permute.xlu0 %7283
        %7285 = vrot.lane.b32.xlu0 %v7212, 126
        %v7286 = vpop.permute.xlu0 %7285
        %7287 = vrot.lane.b32.xlu0 %v7213, 126
        %v7288 = vpop.permute.xlu0 %7287
        %7289 = vrot.lane.b32.xlu0 %v7214, 126
        %v7290 = vpop.permute.xlu0 %7289
        %7291 = vrot.lane.b32.xlu0 %v7215, 126
        %v7292 = vpop.permute.xlu0 %7291
        %7293 = vrot.lane.b32.xlu0 %v7216, 126
        %v7294 = vpop.permute.xlu0 %7293
        %7295 = vrot.lane.b32.xlu0 %v7217, 126
        %v7296 = vpop.permute.xlu0 %7295
        %7297 = vrot.lane.b32.xlu0 %v7218, 126
        %v7298 = vpop.permute.xlu0 %7297
        %7299 = vrot.lane.b32.xlu0 %v7219, 126
        %v7300 = vpop.permute.xlu0 %7299
        %7301 = vrot.lane.b32.xlu0 %v7220, 126
        %v7302 = vpop.permute.xlu0 %7301
        %7303 = vrot.lane.b32.xlu0 %v7221, 126
        %v7304 = vpop.permute.xlu0 %7303
        %7305 = vrot.lane.b32.xlu0 %v7222, 126
        %v7306 = vpop.permute.xlu0 %7305
        %7307 = vrot.lane.b32.xlu0 %v7223, 126
        %v7308 = vpop.permute.xlu0 %7307
        %7309 = vrot.lane.b32.xlu0 %v7224, 126
        %v7310 = vpop.permute.xlu0 %7309
        %7311 = vrot.lane.b32.xlu0 %v7225, 126
        %v7312 = vpop.permute.xlu0 %7311
        %7313 = vrot.lane.b32.xlu0 %v7226, 126
        %v7314 = vpop.permute.xlu0 %7313
        %7315 = vrot.lane.b32.xlu0 %v7227, 126
        %v7316 = vpop.permute.xlu0 %7315
        %7317 = vrot.lane.b32.xlu0 %v7228, 126
        %v7318 = vpop.permute.xlu0 %7317
        %7319 = vrot.lane.b32.xlu0 %v7229, 126
        %v7320 = vpop.permute.xlu0 %7319
        %7321 = vrot.lane.b32.xlu0 %v7230, 126
        %v7322 = vpop.permute.xlu0 %7321
        %7323 = vrot.lane.b32.xlu0 %v7231, 126
        %v7324 = vpop.permute.xlu0 %7323
        %7325 = vrot.lane.b32.xlu0 %v7232, 126
        %v7326 = vpop.permute.xlu0 %7325
        %7327 = vrot.lane.b32.xlu0 %v7233, 126
        %v7328 = vpop.permute.xlu0 %7327
        %7329 = vrot.lane.b32.xlu0 %v7234, 126
        %v7330 = vpop.permute.xlu0 %7329
        %v7363 = vadd.f32 %v7139, %v7268
        %v7364 = vadd.f32 %v7140, %v7270
        %v7365 = vadd.f32 %v7141, %v7272
        %v7366 = vadd.f32 %v7142, %v7274
        %v7367 = vadd.f32 %v7143, %v7276
        %v7368 = vadd.f32 %v7144, %v7278
        %v7369 = vadd.f32 %v7145, %v7280
        %v7370 = vadd.f32 %v7146, %v7282
        %v7371 = vadd.f32 %v7147, %v7284
        %v7372 = vadd.f32 %v7148, %v7286
        %v7373 = vadd.f32 %v7149, %v7288
        %v7374 = vadd.f32 %v7150, %v7290
        %v7375 = vadd.f32 %v7151, %v7292
        %v7376 = vadd.f32 %v7152, %v7294
        %v7377 = vadd.f32 %v7153, %v7296
        %v7378 = vadd.f32 %v7154, %v7298
        %v7379 = vadd.f32 %v7155, %v7300
        %v7380 = vadd.f32 %v7156, %v7302
        %v7381 = vadd.f32 %v7157, %v7304
        %v7382 = vadd.f32 %v7158, %v7306
        %v7383 = vadd.f32 %v7159, %v7308
        %v7384 = vadd.f32 %v7160, %v7310
        %v7385 = vadd.f32 %v7161, %v7312
        %v7386 = vadd.f32 %v7162, %v7314
        %v7387 = vadd.f32 %v7163, %v7316
        %v7388 = vadd.f32 %v7164, %v7318
        %v7389 = vadd.f32 %v7165, %v7320
        %v7390 = vadd.f32 %v7166, %v7322
        %v7391 = vadd.f32 %v7167, %v7324
        %v7392 = vadd.f32 %v7168, %v7326
        %v7393 = vadd.f32 %v7169, %v7328
        %v7394 = vadd.f32 %v7170, %v7330
        %v7395 = vld [vmem:[#allocation2 + $0x2] sm:$0xff]
        %v7396 = vld [vmem:[#allocation2 + $0xa] sm:$0xff]
        %v7397 = vld [vmem:[#allocation2 + $0x12] sm:$0xff]
        %v7398 = vld [vmem:[#allocation2 + $0x1a] sm:$0xff]
        %v7399 = vld [vmem:[#allocation2 + $0x2a] sm:$0xff]
        %v7400 = vld [vmem:[#allocation2 + $0x32] sm:$0xff]
        %v7401 = vld [vmem:[#allocation2 + $0x3a] sm:$0xff]
        %v7402 = vld [vmem:[#allocation2 + $0x42] sm:$0xff]
        %v7403 = vld [vmem:[#allocation2 + $0x52] sm:$0xff]
        %v7404 = vld [vmem:[#allocation2 + $0x5a] sm:$0xff]
        %v7405 = vld [vmem:[#allocation2 + $0x62] sm:$0xff]
        %v7406 = vld [vmem:[#allocation2 + $0x6a] sm:$0xff]
        %v7407 = vld [vmem:[#allocation2 + $0x7a] sm:$0xff]
        %v7408 = vld [vmem:[#allocation2 + $0x82] sm:$0xff]
        %v7409 = vld [vmem:[#allocation2 + $0x8a] sm:$0xff]
        %v7410 = vld [vmem:[#allocation2 + $0x92] sm:$0xff]
        %7411 = vset.pattern.permute.xlu0 24
        %7412 = vperm.xlu0 %7411, %v2998
        %v7413 = vpop.permute.xlu0 %7412
        %7415 = vset.pattern.permute.xlu0 24
        %7416 = vperm.xlu0 %7415, %v3002
        %v7417 = vpop.permute.xlu0 %7416
        %7419 = vset.pattern.permute.xlu0 24
        %7420 = vperm.xlu0 %7419, %v3006
        %v7421 = vpop.permute.xlu0 %7420
        %7423 = vset.pattern.permute.xlu0 24
        %7424 = vperm.xlu0 %7423, %v3010
        %v7425 = vpop.permute.xlu0 %7424
        %7427 = vset.pattern.permute.xlu0 24
        %7428 = vperm.xlu0 %7427, %v3014
        %v7429 = vpop.permute.xlu0 %7428
        %7431 = vset.pattern.permute.xlu0 24
        %7432 = vperm.xlu0 %7431, %v3018
        %v7433 = vpop.permute.xlu0 %7432
        %7435 = vset.pattern.permute.xlu0 24
        %7436 = vperm.xlu0 %7435, %v3022
        %v7437 = vpop.permute.xlu0 %7436
        %7439 = vset.pattern.permute.xlu0 24
        %7440 = vperm.xlu0 %7439, %v3026
        %v7441 = vpop.permute.xlu0 %7440
        %v7443 = vmul.f32 %v7413, %v7395
        %v7444 = vmul.f32 %v7413, %v7396
        %v7445 = vmul.f32 %v7413, %v7397
        %v7446 = vmul.f32 %v7413, %v7398
        %v7447 = vmul.f32 %v7417, %v7395
        %v7448 = vmul.f32 %v7417, %v7396
        %v7449 = vmul.f32 %v7417, %v7397
        %v7450 = vmul.f32 %v7417, %v7398
        %v7451 = vmul.f32 %v7421, %v7395
        %v7452 = vmul.f32 %v7421, %v7396
        %v7453 = vmul.f32 %v7421, %v7397
        %v7454 = vmul.f32 %v7421, %v7398
        %v7455 = vmul.f32 %v7425, %v7395
        %v7456 = vmul.f32 %v7425, %v7396
        %v7457 = vmul.f32 %v7425, %v7397
        %v7458 = vmul.f32 %v7425, %v7398
        %v7459 = vmul.f32 %v7429, %v7395
        %v7460 = vmul.f32 %v7429, %v7396
        %v7461 = vmul.f32 %v7429, %v7397
        %v7462 = vmul.f32 %v7429, %v7398
        %v7463 = vmul.f32 %v7433, %v7395
        %v7464 = vmul.f32 %v7433, %v7396
        %v7465 = vmul.f32 %v7433, %v7397
        %v7466 = vmul.f32 %v7433, %v7398
        %v7467 = vmul.f32 %v7437, %v7395
        %v7468 = vmul.f32 %v7437, %v7396
        %v7469 = vmul.f32 %v7437, %v7397
        %v7470 = vmul.f32 %v7437, %v7398
        %v7471 = vmul.f32 %v7441, %v7395
        %v7472 = vmul.f32 %v7441, %v7396
        %v7473 = vmul.f32 %v7441, %v7397
        %v7474 = vmul.f32 %v7441, %v7398
        %v7475 = vadd.f32 %v7363, %v7443
        %v7476 = vadd.f32 %v7364, %v7444
        %v7477 = vadd.f32 %v7365, %v7445
        %v7478 = vadd.f32 %v7366, %v7446
        %v7479 = vadd.f32 %v7367, %v7447
        %v7480 = vadd.f32 %v7368, %v7448
        %v7481 = vadd.f32 %v7369, %v7449
        %v7482 = vadd.f32 %v7370, %v7450
        %v7483 = vadd.f32 %v7371, %v7451
        %v7484 = vadd.f32 %v7372, %v7452
        %v7485 = vadd.f32 %v7373, %v7453
        %v7486 = vadd.f32 %v7374, %v7454
        %v7487 = vadd.f32 %v7375, %v7455
        %v7488 = vadd.f32 %v7376, %v7456
        %v7489 = vadd.f32 %v7377, %v7457
        %v7490 = vadd.f32 %v7378, %v7458
        %v7491 = vadd.f32 %v7379, %v7459
        %v7492 = vadd.f32 %v7380, %v7460
        %v7493 = vadd.f32 %v7381, %v7461
        %v7494 = vadd.f32 %v7382, %v7462
        %v7495 = vadd.f32 %v7383, %v7463
        %v7496 = vadd.f32 %v7384, %v7464
        %v7497 = vadd.f32 %v7385, %v7465
        %v7498 = vadd.f32 %v7386, %v7466
        %v7499 = vadd.f32 %v7387, %v7467
        %v7500 = vadd.f32 %v7388, %v7468
        %v7501 = vadd.f32 %v7389, %v7469
        %v7502 = vadd.f32 %v7390, %v7470
        %v7503 = vadd.f32 %v7391, %v7471
        %v7504 = vadd.f32 %v7392, %v7472
        %v7505 = vadd.f32 %v7393, %v7473
        %v7506 = vadd.f32 %v7394, %v7474
        %7507 = vset.pattern.permute.xlu0 25
        %7508 = vperm.xlu0 %7507, %v2998
        %v7509 = vpop.permute.xlu0 %7508
        %7511 = vset.pattern.permute.xlu0 25
        %7512 = vperm.xlu0 %7511, %v3002
        %v7513 = vpop.permute.xlu0 %7512
        %7515 = vset.pattern.permute.xlu0 25
        %7516 = vperm.xlu0 %7515, %v3006
        %v7517 = vpop.permute.xlu0 %7516
        %7519 = vset.pattern.permute.xlu0 25
        %7520 = vperm.xlu0 %7519, %v3010
        %v7521 = vpop.permute.xlu0 %7520
        %7523 = vset.pattern.permute.xlu0 25
        %7524 = vperm.xlu0 %7523, %v3014
        %v7525 = vpop.permute.xlu0 %7524
        %7527 = vset.pattern.permute.xlu0 25
        %7528 = vperm.xlu0 %7527, %v3018
        %v7529 = vpop.permute.xlu0 %7528
        %7531 = vset.pattern.permute.xlu0 25
        %7532 = vperm.xlu0 %7531, %v3022
        %v7533 = vpop.permute.xlu0 %7532
        %7535 = vset.pattern.permute.xlu0 25
        %7536 = vperm.xlu0 %7535, %v3026
        %v7537 = vpop.permute.xlu0 %7536
        %v7539 = vmul.f32 %v7509, %v7399
        %v7540 = vmul.f32 %v7509, %v7400
        %v7541 = vmul.f32 %v7509, %v7401
        %v7542 = vmul.f32 %v7509, %v7402
        %v7543 = vmul.f32 %v7513, %v7399
        %v7544 = vmul.f32 %v7513, %v7400
        %v7545 = vmul.f32 %v7513, %v7401
        %v7546 = vmul.f32 %v7513, %v7402
        %v7547 = vmul.f32 %v7517, %v7399
        %v7548 = vmul.f32 %v7517, %v7400
        %v7549 = vmul.f32 %v7517, %v7401
        %v7550 = vmul.f32 %v7517, %v7402
        %v7551 = vmul.f32 %v7521, %v7399
        %v7552 = vmul.f32 %v7521, %v7400
        %v7553 = vmul.f32 %v7521, %v7401
        %v7554 = vmul.f32 %v7521, %v7402
        %v7555 = vmul.f32 %v7525, %v7399
        %v7556 = vmul.f32 %v7525, %v7400
        %v7557 = vmul.f32 %v7525, %v7401
        %v7558 = vmul.f32 %v7525, %v7402
        %v7559 = vmul.f32 %v7529, %v7399
        %v7560 = vmul.f32 %v7529, %v7400
        %v7561 = vmul.f32 %v7529, %v7401
        %v7562 = vmul.f32 %v7529, %v7402
        %v7563 = vmul.f32 %v7533, %v7399
        %v7564 = vmul.f32 %v7533, %v7400
        %v7565 = vmul.f32 %v7533, %v7401
        %v7566 = vmul.f32 %v7533, %v7402
        %v7567 = vmul.f32 %v7537, %v7399
        %v7568 = vmul.f32 %v7537, %v7400
        %v7569 = vmul.f32 %v7537, %v7401
        %v7570 = vmul.f32 %v7537, %v7402
        %v7571 = vadd.f32 %v7475, %v7539
        %v7572 = vadd.f32 %v7476, %v7540
        %v7573 = vadd.f32 %v7477, %v7541
        %v7574 = vadd.f32 %v7478, %v7542
        %v7575 = vadd.f32 %v7479, %v7543
        %v7576 = vadd.f32 %v7480, %v7544
        %v7577 = vadd.f32 %v7481, %v7545
        %v7578 = vadd.f32 %v7482, %v7546
        %v7579 = vadd.f32 %v7483, %v7547
        %v7580 = vadd.f32 %v7484, %v7548
        %v7581 = vadd.f32 %v7485, %v7549
        %v7582 = vadd.f32 %v7486, %v7550
        %v7583 = vadd.f32 %v7487, %v7551
        %v7584 = vadd.f32 %v7488, %v7552
        %v7585 = vadd.f32 %v7489, %v7553
        %v7586 = vadd.f32 %v7490, %v7554
        %v7587 = vadd.f32 %v7491, %v7555
        %v7588 = vadd.f32 %v7492, %v7556
        %v7589 = vadd.f32 %v7493, %v7557
        %v7590 = vadd.f32 %v7494, %v7558
        %v7591 = vadd.f32 %v7495, %v7559
        %v7592 = vadd.f32 %v7496, %v7560
        %v7593 = vadd.f32 %v7497, %v7561
        %v7594 = vadd.f32 %v7498, %v7562
        %v7595 = vadd.f32 %v7499, %v7563
        %v7596 = vadd.f32 %v7500, %v7564
        %v7597 = vadd.f32 %v7501, %v7565
        %v7598 = vadd.f32 %v7502, %v7566
        %v7599 = vadd.f32 %v7503, %v7567
        %v7600 = vadd.f32 %v7504, %v7568
        %v7601 = vadd.f32 %v7505, %v7569
        %v7602 = vadd.f32 %v7506, %v7570
        %7603 = vset.pattern.permute.xlu0 26
        %7604 = vperm.xlu0 %7603, %v2998
        %v7605 = vpop.permute.xlu0 %7604
        %7607 = vset.pattern.permute.xlu0 26
        %7608 = vperm.xlu0 %7607, %v3002
        %v7609 = vpop.permute.xlu0 %7608
        %7611 = vset.pattern.permute.xlu0 26
        %7612 = vperm.xlu0 %7611, %v3006
        %v7613 = vpop.permute.xlu0 %7612
        %7615 = vset.pattern.permute.xlu0 26
        %7616 = vperm.xlu0 %7615, %v3010
        %v7617 = vpop.permute.xlu0 %7616
        %7619 = vset.pattern.permute.xlu0 26
        %7620 = vperm.xlu0 %7619, %v3014
        %v7621 = vpop.permute.xlu0 %7620
        %7623 = vset.pattern.permute.xlu0 26
        %7624 = vperm.xlu0 %7623, %v3018
        %v7625 = vpop.permute.xlu0 %7624
        %7627 = vset.pattern.permute.xlu0 26
        %7628 = vperm.xlu0 %7627, %v3022
        %v7629 = vpop.permute.xlu0 %7628
        %7631 = vset.pattern.permute.xlu0 26
        %7632 = vperm.xlu0 %7631, %v3026
        %v7633 = vpop.permute.xlu0 %7632
        %v7635 = vmul.f32 %v7605, %v7403
        %v7636 = vmul.f32 %v7605, %v7404
        %v7637 = vmul.f32 %v7605, %v7405
        %v7638 = vmul.f32 %v7605, %v7406
        %v7639 = vmul.f32 %v7609, %v7403
        %v7640 = vmul.f32 %v7609, %v7404
        %v7641 = vmul.f32 %v7609, %v7405
        %v7642 = vmul.f32 %v7609, %v7406
        %v7643 = vmul.f32 %v7613, %v7403
        %v7644 = vmul.f32 %v7613, %v7404
        %v7645 = vmul.f32 %v7613, %v7405
        %v7646 = vmul.f32 %v7613, %v7406
        %v7647 = vmul.f32 %v7617, %v7403
        %v7648 = vmul.f32 %v7617, %v7404
        %v7649 = vmul.f32 %v7617, %v7405
        %v7650 = vmul.f32 %v7617, %v7406
        %v7651 = vmul.f32 %v7621, %v7403
        %v7652 = vmul.f32 %v7621, %v7404
        %v7653 = vmul.f32 %v7621, %v7405
        %v7654 = vmul.f32 %v7621, %v7406
        %v7655 = vmul.f32 %v7625, %v7403
        %v7656 = vmul.f32 %v7625, %v7404
        %v7657 = vmul.f32 %v7625, %v7405
        %v7658 = vmul.f32 %v7625, %v7406
        %v7659 = vmul.f32 %v7629, %v7403
        %v7660 = vmul.f32 %v7629, %v7404
        %v7661 = vmul.f32 %v7629, %v7405
        %v7662 = vmul.f32 %v7629, %v7406
        %v7663 = vmul.f32 %v7633, %v7403
        %v7664 = vmul.f32 %v7633, %v7404
        %v7665 = vmul.f32 %v7633, %v7405
        %v7666 = vmul.f32 %v7633, %v7406
        %v7667 = vadd.f32 %v7571, %v7635
        %v7668 = vadd.f32 %v7572, %v7636
        %v7669 = vadd.f32 %v7573, %v7637
        %v7670 = vadd.f32 %v7574, %v7638
        %v7671 = vadd.f32 %v7575, %v7639
        %v7672 = vadd.f32 %v7576, %v7640
        %v7673 = vadd.f32 %v7577, %v7641
        %v7674 = vadd.f32 %v7578, %v7642
        %v7675 = vadd.f32 %v7579, %v7643
        %v7676 = vadd.f32 %v7580, %v7644
        %v7677 = vadd.f32 %v7581, %v7645
        %v7678 = vadd.f32 %v7582, %v7646
        %v7679 = vadd.f32 %v7583, %v7647
        %v7680 = vadd.f32 %v7584, %v7648
        %v7681 = vadd.f32 %v7585, %v7649
        %v7682 = vadd.f32 %v7586, %v7650
        %v7683 = vadd.f32 %v7587, %v7651
        %v7684 = vadd.f32 %v7588, %v7652
        %v7685 = vadd.f32 %v7589, %v7653
        %v7686 = vadd.f32 %v7590, %v7654
        %v7687 = vadd.f32 %v7591, %v7655
        %v7688 = vadd.f32 %v7592, %v7656
        %v7689 = vadd.f32 %v7593, %v7657
        %v7690 = vadd.f32 %v7594, %v7658
        %v7691 = vadd.f32 %v7595, %v7659
        %v7692 = vadd.f32 %v7596, %v7660
        %v7693 = vadd.f32 %v7597, %v7661
        %v7694 = vadd.f32 %v7598, %v7662
        %v7695 = vadd.f32 %v7599, %v7663
        %v7696 = vadd.f32 %v7600, %v7664
        %v7697 = vadd.f32 %v7601, %v7665
        %v7698 = vadd.f32 %v7602, %v7666
        %7699 = vset.pattern.permute.xlu0 27
        %7700 = vperm.xlu0 %7699, %v2998
        %v7701 = vpop.permute.xlu0 %7700
        %7703 = vset.pattern.permute.xlu0 27
        %7704 = vperm.xlu0 %7703, %v3002
        %v7705 = vpop.permute.xlu0 %7704
        %7707 = vset.pattern.permute.xlu0 27
        %7708 = vperm.xlu0 %7707, %v3006
        %v7709 = vpop.permute.xlu0 %7708
        %7711 = vset.pattern.permute.xlu0 27
        %7712 = vperm.xlu0 %7711, %v3010
        %v7713 = vpop.permute.xlu0 %7712
        %7715 = vset.pattern.permute.xlu0 27
        %7716 = vperm.xlu0 %7715, %v3014
        %v7717 = vpop.permute.xlu0 %7716
        %7719 = vset.pattern.permute.xlu0 27
        %7720 = vperm.xlu0 %7719, %v3018
        %v7721 = vpop.permute.xlu0 %7720
        %7723 = vset.pattern.permute.xlu0 27
        %7724 = vperm.xlu0 %7723, %v3022
        %v7725 = vpop.permute.xlu0 %7724
        %7727 = vset.pattern.permute.xlu0 27
        %7728 = vperm.xlu0 %7727, %v3026
        %v7729 = vpop.permute.xlu0 %7728
        %v7731 = vmul.f32 %v7701, %v7407
        %v7732 = vmul.f32 %v7701, %v7408
        %v7733 = vmul.f32 %v7701, %v7409
        %v7734 = vmul.f32 %v7701, %v7410
        %v7735 = vmul.f32 %v7705, %v7407
        %v7736 = vmul.f32 %v7705, %v7408
        %v7737 = vmul.f32 %v7705, %v7409
        %v7738 = vmul.f32 %v7705, %v7410
        %v7739 = vmul.f32 %v7709, %v7407
        %v7740 = vmul.f32 %v7709, %v7408
        %v7741 = vmul.f32 %v7709, %v7409
        %v7742 = vmul.f32 %v7709, %v7410
        %v7743 = vmul.f32 %v7713, %v7407
        %v7744 = vmul.f32 %v7713, %v7408
        %v7745 = vmul.f32 %v7713, %v7409
        %v7746 = vmul.f32 %v7713, %v7410
        %v7747 = vmul.f32 %v7717, %v7407
        %v7748 = vmul.f32 %v7717, %v7408
        %v7749 = vmul.f32 %v7717, %v7409
        %v7750 = vmul.f32 %v7717, %v7410
        %v7751 = vmul.f32 %v7721, %v7407
        %v7752 = vmul.f32 %v7721, %v7408
        %v7753 = vmul.f32 %v7721, %v7409
        %v7754 = vmul.f32 %v7721, %v7410
        %v7755 = vmul.f32 %v7725, %v7407
        %v7756 = vmul.f32 %v7725, %v7408
        %v7757 = vmul.f32 %v7725, %v7409
        %v7758 = vmul.f32 %v7725, %v7410
        %v7759 = vmul.f32 %v7729, %v7407
        %v7760 = vmul.f32 %v7729, %v7408
        %v7761 = vmul.f32 %v7729, %v7409
        %v7762 = vmul.f32 %v7729, %v7410
        %v7763 = vadd.f32 %v7667, %v7731
        %v7764 = vadd.f32 %v7668, %v7732
        %v7765 = vadd.f32 %v7669, %v7733
        %v7766 = vadd.f32 %v7670, %v7734
        %v7767 = vadd.f32 %v7671, %v7735
        %v7768 = vadd.f32 %v7672, %v7736
        %v7769 = vadd.f32 %v7673, %v7737
        %v7770 = vadd.f32 %v7674, %v7738
        %v7771 = vadd.f32 %v7675, %v7739
        %v7772 = vadd.f32 %v7676, %v7740
        %v7773 = vadd.f32 %v7677, %v7741
        %v7774 = vadd.f32 %v7678, %v7742
        %v7775 = vadd.f32 %v7679, %v7743
        %v7776 = vadd.f32 %v7680, %v7744
        %v7777 = vadd.f32 %v7681, %v7745
        %v7778 = vadd.f32 %v7682, %v7746
        %v7779 = vadd.f32 %v7683, %v7747
        %v7780 = vadd.f32 %v7684, %v7748
        %v7781 = vadd.f32 %v7685, %v7749
        %v7782 = vadd.f32 %v7686, %v7750
        %v7783 = vadd.f32 %v7687, %v7751
        %v7784 = vadd.f32 %v7688, %v7752
        %v7785 = vadd.f32 %v7689, %v7753
        %v7786 = vadd.f32 %v7690, %v7754
        %v7787 = vadd.f32 %v7691, %v7755
        %v7788 = vadd.f32 %v7692, %v7756
        %v7789 = vadd.f32 %v7693, %v7757
        %v7790 = vadd.f32 %v7694, %v7758
        %v7791 = vadd.f32 %v7695, %v7759
        %v7792 = vadd.f32 %v7696, %v7760
        %v7793 = vadd.f32 %v7697, %v7761
        %v7794 = vadd.f32 %v7698, %v7762
        %7795 = vset.pattern.permute.xlu0 28
        %7796 = vperm.xlu0 %7795, %v2998
        %v7797 = vpop.permute.xlu0 %7796
        %7799 = vset.pattern.permute.xlu0 28
        %7800 = vperm.xlu0 %7799, %v3002
        %v7801 = vpop.permute.xlu0 %7800
        %7803 = vset.pattern.permute.xlu0 28
        %7804 = vperm.xlu0 %7803, %v3006
        %v7805 = vpop.permute.xlu0 %7804
        %7807 = vset.pattern.permute.xlu0 28
        %7808 = vperm.xlu0 %7807, %v3010
        %v7809 = vpop.permute.xlu0 %7808
        %7811 = vset.pattern.permute.xlu0 28
        %7812 = vperm.xlu0 %7811, %v3014
        %v7813 = vpop.permute.xlu0 %7812
        %7815 = vset.pattern.permute.xlu0 28
        %7816 = vperm.xlu0 %7815, %v3018
        %v7817 = vpop.permute.xlu0 %7816
        %7819 = vset.pattern.permute.xlu0 28
        %7820 = vperm.xlu0 %7819, %v3022
        %v7821 = vpop.permute.xlu0 %7820
        %7823 = vset.pattern.permute.xlu0 28
        %7824 = vperm.xlu0 %7823, %v3026
        %v7825 = vpop.permute.xlu0 %7824
        %v7827 = vmul.f32 %v7797, %v7395
        %v7828 = vmul.f32 %v7797, %v7396
        %v7829 = vmul.f32 %v7797, %v7397
        %v7830 = vmul.f32 %v7797, %v7398
        %v7831 = vmul.f32 %v7801, %v7395
        %v7832 = vmul.f32 %v7801, %v7396
        %v7833 = vmul.f32 %v7801, %v7397
        %v7834 = vmul.f32 %v7801, %v7398
        %v7835 = vmul.f32 %v7805, %v7395
        %v7836 = vmul.f32 %v7805, %v7396
        %v7837 = vmul.f32 %v7805, %v7397
        %v7838 = vmul.f32 %v7805, %v7398
        %v7839 = vmul.f32 %v7809, %v7395
        %v7840 = vmul.f32 %v7809, %v7396
        %v7841 = vmul.f32 %v7809, %v7397
        %v7842 = vmul.f32 %v7809, %v7398
        %v7843 = vmul.f32 %v7813, %v7395
        %v7844 = vmul.f32 %v7813, %v7396
        %v7845 = vmul.f32 %v7813, %v7397
        %v7846 = vmul.f32 %v7813, %v7398
        %v7847 = vmul.f32 %v7817, %v7395
        %v7848 = vmul.f32 %v7817, %v7396
        %v7849 = vmul.f32 %v7817, %v7397
        %v7850 = vmul.f32 %v7817, %v7398
        %v7851 = vmul.f32 %v7821, %v7395
        %v7852 = vmul.f32 %v7821, %v7396
        %v7853 = vmul.f32 %v7821, %v7397
        %v7854 = vmul.f32 %v7821, %v7398
        %v7855 = vmul.f32 %v7825, %v7395
        %v7856 = vmul.f32 %v7825, %v7396
        %v7857 = vmul.f32 %v7825, %v7397
        %v7858 = vmul.f32 %v7825, %v7398
        %7891 = vrot.lane.b32.xlu0 %v7827, 127
        %v7892 = vpop.permute.xlu0 %7891
        %7893 = vrot.lane.b32.xlu0 %v7828, 127
        %v7894 = vpop.permute.xlu0 %7893
        %7895 = vrot.lane.b32.xlu0 %v7829, 127
        %v7896 = vpop.permute.xlu0 %7895
        %7897 = vrot.lane.b32.xlu0 %v7830, 127
        %v7898 = vpop.permute.xlu0 %7897
        %7899 = vrot.lane.b32.xlu0 %v7831, 127
        %v7900 = vpop.permute.xlu0 %7899
        %7901 = vrot.lane.b32.xlu0 %v7832, 127
        %v7902 = vpop.permute.xlu0 %7901
        %7903 = vrot.lane.b32.xlu0 %v7833, 127
        %v7904 = vpop.permute.xlu0 %7903
        %7905 = vrot.lane.b32.xlu0 %v7834, 127
        %v7906 = vpop.permute.xlu0 %7905
        %7907 = vrot.lane.b32.xlu0 %v7835, 127
        %v7908 = vpop.permute.xlu0 %7907
        %7909 = vrot.lane.b32.xlu0 %v7836, 127
        %v7910 = vpop.permute.xlu0 %7909
        %7911 = vrot.lane.b32.xlu0 %v7837, 127
        %v7912 = vpop.permute.xlu0 %7911
        %7913 = vrot.lane.b32.xlu0 %v7838, 127
        %v7914 = vpop.permute.xlu0 %7913
        %7915 = vrot.lane.b32.xlu0 %v7839, 127
        %v7916 = vpop.permute.xlu0 %7915
        %7917 = vrot.lane.b32.xlu0 %v7840, 127
        %v7918 = vpop.permute.xlu0 %7917
        %7919 = vrot.lane.b32.xlu0 %v7841, 127
        %v7920 = vpop.permute.xlu0 %7919
        %7921 = vrot.lane.b32.xlu0 %v7842, 127
        %v7922 = vpop.permute.xlu0 %7921
        %7923 = vrot.lane.b32.xlu0 %v7843, 127
        %v7924 = vpop.permute.xlu0 %7923
        %7925 = vrot.lane.b32.xlu0 %v7844, 127
        %v7926 = vpop.permute.xlu0 %7925
        %7927 = vrot.lane.b32.xlu0 %v7845, 127
        %v7928 = vpop.permute.xlu0 %7927
        %7929 = vrot.lane.b32.xlu0 %v7846, 127
        %v7930 = vpop.permute.xlu0 %7929
        %7931 = vrot.lane.b32.xlu0 %v7847, 127
        %v7932 = vpop.permute.xlu0 %7931
        %7933 = vrot.lane.b32.xlu0 %v7848, 127
        %v7934 = vpop.permute.xlu0 %7933
        %7935 = vrot.lane.b32.xlu0 %v7849, 127
        %v7936 = vpop.permute.xlu0 %7935
        %7937 = vrot.lane.b32.xlu0 %v7850, 127
        %v7938 = vpop.permute.xlu0 %7937
        %7939 = vrot.lane.b32.xlu0 %v7851, 127
        %v7940 = vpop.permute.xlu0 %7939
        %7941 = vrot.lane.b32.xlu0 %v7852, 127
        %v7942 = vpop.permute.xlu0 %7941
        %7943 = vrot.lane.b32.xlu0 %v7853, 127
        %v7944 = vpop.permute.xlu0 %7943
        %7945 = vrot.lane.b32.xlu0 %v7854, 127
        %v7946 = vpop.permute.xlu0 %7945
        %7947 = vrot.lane.b32.xlu0 %v7855, 127
        %v7948 = vpop.permute.xlu0 %7947
        %7949 = vrot.lane.b32.xlu0 %v7856, 127
        %v7950 = vpop.permute.xlu0 %7949
        %7951 = vrot.lane.b32.xlu0 %v7857, 127
        %v7952 = vpop.permute.xlu0 %7951
        %7953 = vrot.lane.b32.xlu0 %v7858, 127
        %v7954 = vpop.permute.xlu0 %7953
        %v7987 = vadd.f32 %v7763, %v7892
        %v7988 = vadd.f32 %v7764, %v7894
        %v7989 = vadd.f32 %v7765, %v7896
        %v7990 = vadd.f32 %v7766, %v7898
        %v7991 = vadd.f32 %v7767, %v7900
        %v7992 = vadd.f32 %v7768, %v7902
        %v7993 = vadd.f32 %v7769, %v7904
        %v7994 = vadd.f32 %v7770, %v7906
        %v7995 = vadd.f32 %v7771, %v7908
        %v7996 = vadd.f32 %v7772, %v7910
        %v7997 = vadd.f32 %v7773, %v7912
        %v7998 = vadd.f32 %v7774, %v7914
        %v7999 = vadd.f32 %v7775, %v7916
        %v8000 = vadd.f32 %v7776, %v7918
        %v8001 = vadd.f32 %v7777, %v7920
        %v8002 = vadd.f32 %v7778, %v7922
        %v8003 = vadd.f32 %v7779, %v7924
        %v8004 = vadd.f32 %v7780, %v7926
        %v8005 = vadd.f32 %v7781, %v7928
        %v8006 = vadd.f32 %v7782, %v7930
        %v8007 = vadd.f32 %v7783, %v7932
        %v8008 = vadd.f32 %v7784, %v7934
        %v8009 = vadd.f32 %v7785, %v7936
        %v8010 = vadd.f32 %v7786, %v7938
        %v8011 = vadd.f32 %v7787, %v7940
        %v8012 = vadd.f32 %v7788, %v7942
        %v8013 = vadd.f32 %v7789, %v7944
        %v8014 = vadd.f32 %v7790, %v7946
        %v8015 = vadd.f32 %v7791, %v7948
        %v8016 = vadd.f32 %v7792, %v7950
        %v8017 = vadd.f32 %v7793, %v7952
        %v8018 = vadd.f32 %v7794, %v7954
        %8019 = vset.pattern.permute.xlu0 29
        %8020 = vperm.xlu0 %8019, %v2998
        %v8021 = vpop.permute.xlu0 %8020
        %8023 = vset.pattern.permute.xlu0 29
        %8024 = vperm.xlu0 %8023, %v3002
        %v8025 = vpop.permute.xlu0 %8024
        %8027 = vset.pattern.permute.xlu0 29
        %8028 = vperm.xlu0 %8027, %v3006
        %v8029 = vpop.permute.xlu0 %8028
        %8031 = vset.pattern.permute.xlu0 29
        %8032 = vperm.xlu0 %8031, %v3010
        %v8033 = vpop.permute.xlu0 %8032
        %8035 = vset.pattern.permute.xlu0 29
        %8036 = vperm.xlu0 %8035, %v3014
        %v8037 = vpop.permute.xlu0 %8036
        %8039 = vset.pattern.permute.xlu0 29
        %8040 = vperm.xlu0 %8039, %v3018
        %v8041 = vpop.permute.xlu0 %8040
        %8043 = vset.pattern.permute.xlu0 29
        %8044 = vperm.xlu0 %8043, %v3022
        %v8045 = vpop.permute.xlu0 %8044
        %8047 = vset.pattern.permute.xlu0 29
        %8048 = vperm.xlu0 %8047, %v3026
        %v8049 = vpop.permute.xlu0 %8048
        %v8051 = vmul.f32 %v8021, %v7399
        %v8052 = vmul.f32 %v8021, %v7400
        %v8053 = vmul.f32 %v8021, %v7401
        %v8054 = vmul.f32 %v8021, %v7402
        %v8055 = vmul.f32 %v8025, %v7399
        %v8056 = vmul.f32 %v8025, %v7400
        %v8057 = vmul.f32 %v8025, %v7401
        %v8058 = vmul.f32 %v8025, %v7402
        %v8059 = vmul.f32 %v8029, %v7399
        %v8060 = vmul.f32 %v8029, %v7400
        %v8061 = vmul.f32 %v8029, %v7401
        %v8062 = vmul.f32 %v8029, %v7402
        %v8063 = vmul.f32 %v8033, %v7399
        %v8064 = vmul.f32 %v8033, %v7400
        %v8065 = vmul.f32 %v8033, %v7401
        %v8066 = vmul.f32 %v8033, %v7402
        %v8067 = vmul.f32 %v8037, %v7399
        %v8068 = vmul.f32 %v8037, %v7400
        %v8069 = vmul.f32 %v8037, %v7401
        %v8070 = vmul.f32 %v8037, %v7402
        %v8071 = vmul.f32 %v8041, %v7399
        %v8072 = vmul.f32 %v8041, %v7400
        %v8073 = vmul.f32 %v8041, %v7401
        %v8074 = vmul.f32 %v8041, %v7402
        %v8075 = vmul.f32 %v8045, %v7399
        %v8076 = vmul.f32 %v8045, %v7400
        %v8077 = vmul.f32 %v8045, %v7401
        %v8078 = vmul.f32 %v8045, %v7402
        %v8079 = vmul.f32 %v8049, %v7399
        %v8080 = vmul.f32 %v8049, %v7400
        %v8081 = vmul.f32 %v8049, %v7401
        %v8082 = vmul.f32 %v8049, %v7402
        %8115 = vrot.lane.b32.xlu0 %v8051, 127
        %v8116 = vpop.permute.xlu0 %8115
        %8117 = vrot.lane.b32.xlu0 %v8052, 127
        %v8118 = vpop.permute.xlu0 %8117
        %8119 = vrot.lane.b32.xlu0 %v8053, 127
        %v8120 = vpop.permute.xlu0 %8119
        %8121 = vrot.lane.b32.xlu0 %v8054, 127
        %v8122 = vpop.permute.xlu0 %8121
        %8123 = vrot.lane.b32.xlu0 %v8055, 127
        %v8124 = vpop.permute.xlu0 %8123
        %8125 = vrot.lane.b32.xlu0 %v8056, 127
        %v8126 = vpop.permute.xlu0 %8125
        %8127 = vrot.lane.b32.xlu0 %v8057, 127
        %v8128 = vpop.permute.xlu0 %8127
        %8129 = vrot.lane.b32.xlu0 %v8058, 127
        %v8130 = vpop.permute.xlu0 %8129
        %8131 = vrot.lane.b32.xlu0 %v8059, 127
        %v8132 = vpop.permute.xlu0 %8131
        %8133 = vrot.lane.b32.xlu0 %v8060, 127
        %v8134 = vpop.permute.xlu0 %8133
        %8135 = vrot.lane.b32.xlu0 %v8061, 127
        %v8136 = vpop.permute.xlu0 %8135
        %8137 = vrot.lane.b32.xlu0 %v8062, 127
        %v8138 = vpop.permute.xlu0 %8137
        %8139 = vrot.lane.b32.xlu0 %v8063, 127
        %v8140 = vpop.permute.xlu0 %8139
        %8141 = vrot.lane.b32.xlu0 %v8064, 127
        %v8142 = vpop.permute.xlu0 %8141
        %8143 = vrot.lane.b32.xlu0 %v8065, 127
        %v8144 = vpop.permute.xlu0 %8143
        %8145 = vrot.lane.b32.xlu0 %v8066, 127
        %v8146 = vpop.permute.xlu0 %8145
        %8147 = vrot.lane.b32.xlu0 %v8067, 127
        %v8148 = vpop.permute.xlu0 %8147
        %8149 = vrot.lane.b32.xlu0 %v8068, 127
        %v8150 = vpop.permute.xlu0 %8149
        %8151 = vrot.lane.b32.xlu0 %v8069, 127
        %v8152 = vpop.permute.xlu0 %8151
        %8153 = vrot.lane.b32.xlu0 %v8070, 127
        %v8154 = vpop.permute.xlu0 %8153
        %8155 = vrot.lane.b32.xlu0 %v8071, 127
        %v8156 = vpop.permute.xlu0 %8155
        %8157 = vrot.lane.b32.xlu0 %v8072, 127
        %v8158 = vpop.permute.xlu0 %8157
        %8159 = vrot.lane.b32.xlu0 %v8073, 127
        %v8160 = vpop.permute.xlu0 %8159
        %8161 = vrot.lane.b32.xlu0 %v8074, 127
        %v8162 = vpop.permute.xlu0 %8161
        %8163 = vrot.lane.b32.xlu0 %v8075, 127
        %v8164 = vpop.permute.xlu0 %8163
        %8165 = vrot.lane.b32.xlu0 %v8076, 127
        %v8166 = vpop.permute.xlu0 %8165
        %8167 = vrot.lane.b32.xlu0 %v8077, 127
        %v8168 = vpop.permute.xlu0 %8167
        %8169 = vrot.lane.b32.xlu0 %v8078, 127
        %v8170 = vpop.permute.xlu0 %8169
        %8171 = vrot.lane.b32.xlu0 %v8079, 127
        %v8172 = vpop.permute.xlu0 %8171
        %8173 = vrot.lane.b32.xlu0 %v8080, 127
        %v8174 = vpop.permute.xlu0 %8173
        %8175 = vrot.lane.b32.xlu0 %v8081, 127
        %v8176 = vpop.permute.xlu0 %8175
        %8177 = vrot.lane.b32.xlu0 %v8082, 127
        %v8178 = vpop.permute.xlu0 %8177
        %v8211 = vadd.f32 %v7987, %v8116
        %v8212 = vadd.f32 %v7988, %v8118
        %v8213 = vadd.f32 %v7989, %v8120
        %v8214 = vadd.f32 %v7990, %v8122
        %v8215 = vadd.f32 %v7991, %v8124
        %v8216 = vadd.f32 %v7992, %v8126
        %v8217 = vadd.f32 %v7993, %v8128
        %v8218 = vadd.f32 %v7994, %v8130
        %v8219 = vadd.f32 %v7995, %v8132
        %v8220 = vadd.f32 %v7996, %v8134
        %v8221 = vadd.f32 %v7997, %v8136
        %v8222 = vadd.f32 %v7998, %v8138
        %v8223 = vadd.f32 %v7999, %v8140
        %v8224 = vadd.f32 %v8000, %v8142
        %v8225 = vadd.f32 %v8001, %v8144
        %v8226 = vadd.f32 %v8002, %v8146
        %v8227 = vadd.f32 %v8003, %v8148
        %v8228 = vadd.f32 %v8004, %v8150
        %v8229 = vadd.f32 %v8005, %v8152
        %v8230 = vadd.f32 %v8006, %v8154
        %v8231 = vadd.f32 %v8007, %v8156
        %v8232 = vadd.f32 %v8008, %v8158
        %v8233 = vadd.f32 %v8009, %v8160
        %v8234 = vadd.f32 %v8010, %v8162
        %v8235 = vadd.f32 %v8011, %v8164
        %v8236 = vadd.f32 %v8012, %v8166
        %v8237 = vadd.f32 %v8013, %v8168
        %v8238 = vadd.f32 %v8014, %v8170
        %v8239 = vadd.f32 %v8015, %v8172
        %v8240 = vadd.f32 %v8016, %v8174
        %v8241 = vadd.f32 %v8017, %v8176
        %v8242 = vadd.f32 %v8018, %v8178
        %8243 = vset.pattern.permute.xlu0 30
        %8244 = vperm.xlu0 %8243, %v2998
        %v8245 = vpop.permute.xlu0 %8244
        %8247 = vset.pattern.permute.xlu0 30
        %8248 = vperm.xlu0 %8247, %v3002
        %v8249 = vpop.permute.xlu0 %8248
        %8251 = vset.pattern.permute.xlu0 30
        %8252 = vperm.xlu0 %8251, %v3006
        %v8253 = vpop.permute.xlu0 %8252
        %8255 = vset.pattern.permute.xlu0 30
        %8256 = vperm.xlu0 %8255, %v3010
        %v8257 = vpop.permute.xlu0 %8256
        %8259 = vset.pattern.permute.xlu0 30
        %8260 = vperm.xlu0 %8259, %v3014
        %v8261 = vpop.permute.xlu0 %8260
        %8263 = vset.pattern.permute.xlu0 30
        %8264 = vperm.xlu0 %8263, %v3018
        %v8265 = vpop.permute.xlu0 %8264
        %8267 = vset.pattern.permute.xlu0 30
        %8268 = vperm.xlu0 %8267, %v3022
        %v8269 = vpop.permute.xlu0 %8268
        %8271 = vset.pattern.permute.xlu0 30
        %8272 = vperm.xlu0 %8271, %v3026
        %v8273 = vpop.permute.xlu0 %8272
        %v8275 = vmul.f32 %v8245, %v7403
        %v8276 = vmul.f32 %v8245, %v7404
        %v8277 = vmul.f32 %v8245, %v7405
        %v8278 = vmul.f32 %v8245, %v7406
        %v8279 = vmul.f32 %v8249, %v7403
        %v8280 = vmul.f32 %v8249, %v7404
        %v8281 = vmul.f32 %v8249, %v7405
        %v8282 = vmul.f32 %v8249, %v7406
        %v8283 = vmul.f32 %v8253, %v7403
        %v8284 = vmul.f32 %v8253, %v7404
        %v8285 = vmul.f32 %v8253, %v7405
        %v8286 = vmul.f32 %v8253, %v7406
        %v8287 = vmul.f32 %v8257, %v7403
        %v8288 = vmul.f32 %v8257, %v7404
        %v8289 = vmul.f32 %v8257, %v7405
        %v8290 = vmul.f32 %v8257, %v7406
        %v8291 = vmul.f32 %v8261, %v7403
        %v8292 = vmul.f32 %v8261, %v7404
        %v8293 = vmul.f32 %v8261, %v7405
        %v8294 = vmul.f32 %v8261, %v7406
        %v8295 = vmul.f32 %v8265, %v7403
        %v8296 = vmul.f32 %v8265, %v7404
        %v8297 = vmul.f32 %v8265, %v7405
        %v8298 = vmul.f32 %v8265, %v7406
        %v8299 = vmul.f32 %v8269, %v7403
        %v8300 = vmul.f32 %v8269, %v7404
        %v8301 = vmul.f32 %v8269, %v7405
        %v8302 = vmul.f32 %v8269, %v7406
        %v8303 = vmul.f32 %v8273, %v7403
        %v8304 = vmul.f32 %v8273, %v7404
        %v8305 = vmul.f32 %v8273, %v7405
        %v8306 = vmul.f32 %v8273, %v7406
        %8339 = vrot.lane.b32.xlu0 %v8275, 127
        %v8340 = vpop.permute.xlu0 %8339
        %8341 = vrot.lane.b32.xlu0 %v8276, 127
        %v8342 = vpop.permute.xlu0 %8341
        %8343 = vrot.lane.b32.xlu0 %v8277, 127
        %v8344 = vpop.permute.xlu0 %8343
        %8345 = vrot.lane.b32.xlu0 %v8278, 127
        %v8346 = vpop.permute.xlu0 %8345
        %8347 = vrot.lane.b32.xlu0 %v8279, 127
        %v8348 = vpop.permute.xlu0 %8347
        %8349 = vrot.lane.b32.xlu0 %v8280, 127
        %v8350 = vpop.permute.xlu0 %8349
        %8351 = vrot.lane.b32.xlu0 %v8281, 127
        %v8352 = vpop.permute.xlu0 %8351
        %8353 = vrot.lane.b32.xlu0 %v8282, 127
        %v8354 = vpop.permute.xlu0 %8353
        %8355 = vrot.lane.b32.xlu0 %v8283, 127
        %v8356 = vpop.permute.xlu0 %8355
        %8357 = vrot.lane.b32.xlu0 %v8284, 127
        %v8358 = vpop.permute.xlu0 %8357
        %8359 = vrot.lane.b32.xlu0 %v8285, 127
        %v8360 = vpop.permute.xlu0 %8359
        %8361 = vrot.lane.b32.xlu0 %v8286, 127
        %v8362 = vpop.permute.xlu0 %8361
        %8363 = vrot.lane.b32.xlu0 %v8287, 127
        %v8364 = vpop.permute.xlu0 %8363
        %8365 = vrot.lane.b32.xlu0 %v8288, 127
        %v8366 = vpop.permute.xlu0 %8365
        %8367 = vrot.lane.b32.xlu0 %v8289, 127
        %v8368 = vpop.permute.xlu0 %8367
        %8369 = vrot.lane.b32.xlu0 %v8290, 127
        %v8370 = vpop.permute.xlu0 %8369
        %8371 = vrot.lane.b32.xlu0 %v8291, 127
        %v8372 = vpop.permute.xlu0 %8371
        %8373 = vrot.lane.b32.xlu0 %v8292, 127
        %v8374 = vpop.permute.xlu0 %8373
        %8375 = vrot.lane.b32.xlu0 %v8293, 127
        %v8376 = vpop.permute.xlu0 %8375
        %8377 = vrot.lane.b32.xlu0 %v8294, 127
        %v8378 = vpop.permute.xlu0 %8377
        %8379 = vrot.lane.b32.xlu0 %v8295, 127
        %v8380 = vpop.permute.xlu0 %8379
        %8381 = vrot.lane.b32.xlu0 %v8296, 127
        %v8382 = vpop.permute.xlu0 %8381
        %8383 = vrot.lane.b32.xlu0 %v8297, 127
        %v8384 = vpop.permute.xlu0 %8383
        %8385 = vrot.lane.b32.xlu0 %v8298, 127
        %v8386 = vpop.permute.xlu0 %8385
        %8387 = vrot.lane.b32.xlu0 %v8299, 127
        %v8388 = vpop.permute.xlu0 %8387
        %8389 = vrot.lane.b32.xlu0 %v8300, 127
        %v8390 = vpop.permute.xlu0 %8389
        %8391 = vrot.lane.b32.xlu0 %v8301, 127
        %v8392 = vpop.permute.xlu0 %8391
        %8393 = vrot.lane.b32.xlu0 %v8302, 127
        %v8394 = vpop.permute.xlu0 %8393
        %8395 = vrot.lane.b32.xlu0 %v8303, 127
        %v8396 = vpop.permute.xlu0 %8395
        %8397 = vrot.lane.b32.xlu0 %v8304, 127
        %v8398 = vpop.permute.xlu0 %8397
        %8399 = vrot.lane.b32.xlu0 %v8305, 127
        %v8400 = vpop.permute.xlu0 %8399
        %8401 = vrot.lane.b32.xlu0 %v8306, 127
        %v8402 = vpop.permute.xlu0 %8401
        %v8435 = vadd.f32 %v8211, %v8340
        %v8436 = vadd.f32 %v8212, %v8342
        %v8437 = vadd.f32 %v8213, %v8344
        %v8438 = vadd.f32 %v8214, %v8346
        %v8439 = vadd.f32 %v8215, %v8348
        %v8440 = vadd.f32 %v8216, %v8350
        %v8441 = vadd.f32 %v8217, %v8352
        %v8442 = vadd.f32 %v8218, %v8354
        %v8443 = vadd.f32 %v8219, %v8356
        %v8444 = vadd.f32 %v8220, %v8358
        %v8445 = vadd.f32 %v8221, %v8360
        %v8446 = vadd.f32 %v8222, %v8362
        %v8447 = vadd.f32 %v8223, %v8364
        %v8448 = vadd.f32 %v8224, %v8366
        %v8449 = vadd.f32 %v8225, %v8368
        %v8450 = vadd.f32 %v8226, %v8370
        %v8451 = vadd.f32 %v8227, %v8372
        %v8452 = vadd.f32 %v8228, %v8374
        %v8453 = vadd.f32 %v8229, %v8376
        %v8454 = vadd.f32 %v8230, %v8378
        %v8455 = vadd.f32 %v8231, %v8380
        %v8456 = vadd.f32 %v8232, %v8382
        %v8457 = vadd.f32 %v8233, %v8384
        %v8458 = vadd.f32 %v8234, %v8386
        %v8459 = vadd.f32 %v8235, %v8388
        %v8460 = vadd.f32 %v8236, %v8390
        %v8461 = vadd.f32 %v8237, %v8392
        %v8462 = vadd.f32 %v8238, %v8394
        %v8463 = vadd.f32 %v8239, %v8396
        %v8464 = vadd.f32 %v8240, %v8398
        %v8465 = vadd.f32 %v8241, %v8400
        %v8466 = vadd.f32 %v8242, %v8402
        %8467 = vset.pattern.permute.xlu0 31
        %8468 = vperm.xlu0 %8467, %v2998
        %v8469 = vpop.permute.xlu0 %8468
        %8471 = vset.pattern.permute.xlu0 31
        %8472 = vperm.xlu0 %8471, %v3002
        %v8473 = vpop.permute.xlu0 %8472
        %8475 = vset.pattern.permute.xlu0 31
        %8476 = vperm.xlu0 %8475, %v3006
        %v8477 = vpop.permute.xlu0 %8476
        %8479 = vset.pattern.permute.xlu0 31
        %8480 = vperm.xlu0 %8479, %v3010
        %v8481 = vpop.permute.xlu0 %8480
        %8483 = vset.pattern.permute.xlu0 31
        %8484 = vperm.xlu0 %8483, %v3014
        %v8485 = vpop.permute.xlu0 %8484
        %8487 = vset.pattern.permute.xlu0 31
        %8488 = vperm.xlu0 %8487, %v3018
        %v8489 = vpop.permute.xlu0 %8488
        %8491 = vset.pattern.permute.xlu0 31
        %8492 = vperm.xlu0 %8491, %v3022
        %v8493 = vpop.permute.xlu0 %8492
        %8495 = vset.pattern.permute.xlu0 31
        %8496 = vperm.xlu0 %8495, %v3026
        %v8497 = vpop.permute.xlu0 %8496
        %v8499 = vmul.f32 %v8469, %v7407
        %v8500 = vmul.f32 %v8469, %v7408
        %v8501 = vmul.f32 %v8469, %v7409
        %v8502 = vmul.f32 %v8469, %v7410
        %v8503 = vmul.f32 %v8473, %v7407
        %v8504 = vmul.f32 %v8473, %v7408
        %v8505 = vmul.f32 %v8473, %v7409
        %v8506 = vmul.f32 %v8473, %v7410
        %v8507 = vmul.f32 %v8477, %v7407
        %v8508 = vmul.f32 %v8477, %v7408
        %v8509 = vmul.f32 %v8477, %v7409
        %v8510 = vmul.f32 %v8477, %v7410
        %v8511 = vmul.f32 %v8481, %v7407
        %v8512 = vmul.f32 %v8481, %v7408
        %v8513 = vmul.f32 %v8481, %v7409
        %v8514 = vmul.f32 %v8481, %v7410
        %v8515 = vmul.f32 %v8485, %v7407
        %v8516 = vmul.f32 %v8485, %v7408
        %v8517 = vmul.f32 %v8485, %v7409
        %v8518 = vmul.f32 %v8485, %v7410
        %v8519 = vmul.f32 %v8489, %v7407
        %v8520 = vmul.f32 %v8489, %v7408
        %v8521 = vmul.f32 %v8489, %v7409
        %v8522 = vmul.f32 %v8489, %v7410
        %v8523 = vmul.f32 %v8493, %v7407
        %v8524 = vmul.f32 %v8493, %v7408
        %v8525 = vmul.f32 %v8493, %v7409
        %v8526 = vmul.f32 %v8493, %v7410
        %v8527 = vmul.f32 %v8497, %v7407
        %v8528 = vmul.f32 %v8497, %v7408
        %v8529 = vmul.f32 %v8497, %v7409
        %v8530 = vmul.f32 %v8497, %v7410
        %8563 = vrot.lane.b32.xlu0 %v8499, 127
        %v8564 = vpop.permute.xlu0 %8563
        %8565 = vrot.lane.b32.xlu0 %v8500, 127
        %v8566 = vpop.permute.xlu0 %8565
        %8567 = vrot.lane.b32.xlu0 %v8501, 127
        %v8568 = vpop.permute.xlu0 %8567
        %8569 = vrot.lane.b32.xlu0 %v8502, 127
        %v8570 = vpop.permute.xlu0 %8569
        %8571 = vrot.lane.b32.xlu0 %v8503, 127
        %v8572 = vpop.permute.xlu0 %8571
        %8573 = vrot.lane.b32.xlu0 %v8504, 127
        %v8574 = vpop.permute.xlu0 %8573
        %8575 = vrot.lane.b32.xlu0 %v8505, 127
        %v8576 = vpop.permute.xlu0 %8575
        %8577 = vrot.lane.b32.xlu0 %v8506, 127
        %v8578 = vpop.permute.xlu0 %8577
        %8579 = vrot.lane.b32.xlu0 %v8507, 127
        %v8580 = vpop.permute.xlu0 %8579
        %8581 = vrot.lane.b32.xlu0 %v8508, 127
        %v8582 = vpop.permute.xlu0 %8581
        %8583 = vrot.lane.b32.xlu0 %v8509, 127
        %v8584 = vpop.permute.xlu0 %8583
        %8585 = vrot.lane.b32.xlu0 %v8510, 127
        %v8586 = vpop.permute.xlu0 %8585
        %8587 = vrot.lane.b32.xlu0 %v8511, 127
        %v8588 = vpop.permute.xlu0 %8587
        %8589 = vrot.lane.b32.xlu0 %v8512, 127
        %v8590 = vpop.permute.xlu0 %8589
        %8591 = vrot.lane.b32.xlu0 %v8513, 127
        %v8592 = vpop.permute.xlu0 %8591
        %8593 = vrot.lane.b32.xlu0 %v8514, 127
        %v8594 = vpop.permute.xlu0 %8593
        %8595 = vrot.lane.b32.xlu0 %v8515, 127
        %v8596 = vpop.permute.xlu0 %8595
        %8597 = vrot.lane.b32.xlu0 %v8516, 127
        %v8598 = vpop.permute.xlu0 %8597
        %8599 = vrot.lane.b32.xlu0 %v8517, 127
        %v8600 = vpop.permute.xlu0 %8599
        %8601 = vrot.lane.b32.xlu0 %v8518, 127
        %v8602 = vpop.permute.xlu0 %8601
        %8603 = vrot.lane.b32.xlu0 %v8519, 127
        %v8604 = vpop.permute.xlu0 %8603
        %8605 = vrot.lane.b32.xlu0 %v8520, 127
        %v8606 = vpop.permute.xlu0 %8605
        %8607 = vrot.lane.b32.xlu0 %v8521, 127
        %v8608 = vpop.permute.xlu0 %8607
        %8609 = vrot.lane.b32.xlu0 %v8522, 127
        %v8610 = vpop.permute.xlu0 %8609
        %8611 = vrot.lane.b32.xlu0 %v8523, 127
        %v8612 = vpop.permute.xlu0 %8611
        %8613 = vrot.lane.b32.xlu0 %v8524, 127
        %v8614 = vpop.permute.xlu0 %8613
        %8615 = vrot.lane.b32.xlu0 %v8525, 127
        %v8616 = vpop.permute.xlu0 %8615
        %8617 = vrot.lane.b32.xlu0 %v8526, 127
        %v8618 = vpop.permute.xlu0 %8617
        %8619 = vrot.lane.b32.xlu0 %v8527, 127
        %v8620 = vpop.permute.xlu0 %8619
        %8621 = vrot.lane.b32.xlu0 %v8528, 127
        %v8622 = vpop.permute.xlu0 %8621
        %8623 = vrot.lane.b32.xlu0 %v8529, 127
        %v8624 = vpop.permute.xlu0 %8623
        %8625 = vrot.lane.b32.xlu0 %v8530, 127
        %v8626 = vpop.permute.xlu0 %8625
        %v8659 = vadd.f32 %v8435, %v8564
        %v8660 = vadd.f32 %v8436, %v8566
        %v8661 = vadd.f32 %v8437, %v8568
        %v8662 = vadd.f32 %v8438, %v8570
        %v8663 = vadd.f32 %v8439, %v8572
        %v8664 = vadd.f32 %v8440, %v8574
        %v8665 = vadd.f32 %v8441, %v8576
        %v8666 = vadd.f32 %v8442, %v8578
        %v8667 = vadd.f32 %v8443, %v8580
        %v8668 = vadd.f32 %v8444, %v8582
        %v8669 = vadd.f32 %v8445, %v8584
        %v8670 = vadd.f32 %v8446, %v8586
        %v8671 = vadd.f32 %v8447, %v8588
        %v8672 = vadd.f32 %v8448, %v8590
        %v8673 = vadd.f32 %v8449, %v8592
        %v8674 = vadd.f32 %v8450, %v8594
        %v8675 = vadd.f32 %v8451, %v8596
        %v8676 = vadd.f32 %v8452, %v8598
        %v8677 = vadd.f32 %v8453, %v8600
        %v8678 = vadd.f32 %v8454, %v8602
        %v8679 = vadd.f32 %v8455, %v8604
        %v8680 = vadd.f32 %v8456, %v8606
        %v8681 = vadd.f32 %v8457, %v8608
        %v8682 = vadd.f32 %v8458, %v8610
        %v8683 = vadd.f32 %v8459, %v8612
        %v8684 = vadd.f32 %v8460, %v8614
        %v8685 = vadd.f32 %v8461, %v8616
        %v8686 = vadd.f32 %v8462, %v8618
        %v8687 = vadd.f32 %v8463, %v8620
        %v8688 = vadd.f32 %v8464, %v8622
        %v8689 = vadd.f32 %v8465, %v8624
        %v8690 = vadd.f32 %v8466, %v8626
        %8691 = vset.pattern.permute.xlu0 32
        %8692 = vperm.xlu0 %8691, %v2998
        %v8693 = vpop.permute.xlu0 %8692
        %8695 = vset.pattern.permute.xlu0 32
        %8696 = vperm.xlu0 %8695, %v3002
        %v8697 = vpop.permute.xlu0 %8696
        %8699 = vset.pattern.permute.xlu0 32
        %8700 = vperm.xlu0 %8699, %v3006
        %v8701 = vpop.permute.xlu0 %8700
        %8703 = vset.pattern.permute.xlu0 32
        %8704 = vperm.xlu0 %8703, %v3010
        %v8705 = vpop.permute.xlu0 %8704
        %8707 = vset.pattern.permute.xlu0 32
        %8708 = vperm.xlu0 %8707, %v3014
        %v8709 = vpop.permute.xlu0 %8708
        %8711 = vset.pattern.permute.xlu0 32
        %8712 = vperm.xlu0 %8711, %v3018
        %v8713 = vpop.permute.xlu0 %8712
        %8715 = vset.pattern.permute.xlu0 32
        %8716 = vperm.xlu0 %8715, %v3022
        %v8717 = vpop.permute.xlu0 %8716
        %8719 = vset.pattern.permute.xlu0 32
        %8720 = vperm.xlu0 %8719, %v3026
        %v8721 = vpop.permute.xlu0 %8720
        %v8723 = vmul.f32 %v8693, %v7395
        %v8724 = vmul.f32 %v8693, %v7396
        %v8725 = vmul.f32 %v8693, %v7397
        %v8726 = vmul.f32 %v8693, %v7398
        %v8727 = vmul.f32 %v8697, %v7395
        %v8728 = vmul.f32 %v8697, %v7396
        %v8729 = vmul.f32 %v8697, %v7397
        %v8730 = vmul.f32 %v8697, %v7398
        %v8731 = vmul.f32 %v8701, %v7395
        %v8732 = vmul.f32 %v8701, %v7396
        %v8733 = vmul.f32 %v8701, %v7397
        %v8734 = vmul.f32 %v8701, %v7398
        %v8735 = vmul.f32 %v8705, %v7395
        %v8736 = vmul.f32 %v8705, %v7396
        %v8737 = vmul.f32 %v8705, %v7397
        %v8738 = vmul.f32 %v8705, %v7398
        %v8739 = vmul.f32 %v8709, %v7395
        %v8740 = vmul.f32 %v8709, %v7396
        %v8741 = vmul.f32 %v8709, %v7397
        %v8742 = vmul.f32 %v8709, %v7398
        %v8743 = vmul.f32 %v8713, %v7395
        %v8744 = vmul.f32 %v8713, %v7396
        %v8745 = vmul.f32 %v8713, %v7397
        %v8746 = vmul.f32 %v8713, %v7398
        %v8747 = vmul.f32 %v8717, %v7395
        %v8748 = vmul.f32 %v8717, %v7396
        %v8749 = vmul.f32 %v8717, %v7397
        %v8750 = vmul.f32 %v8717, %v7398
        %v8751 = vmul.f32 %v8721, %v7395
        %v8752 = vmul.f32 %v8721, %v7396
        %v8753 = vmul.f32 %v8721, %v7397
        %v8754 = vmul.f32 %v8721, %v7398
        %8787 = vrot.lane.b32.xlu0 %v8723, 126
        %v8788 = vpop.permute.xlu0 %8787
        %8789 = vrot.lane.b32.xlu0 %v8724, 126
        %v8790 = vpop.permute.xlu0 %8789
        %8791 = vrot.lane.b32.xlu0 %v8725, 126
        %v8792 = vpop.permute.xlu0 %8791
        %8793 = vrot.lane.b32.xlu0 %v8726, 126
        %v8794 = vpop.permute.xlu0 %8793
        %8795 = vrot.lane.b32.xlu0 %v8727, 126
        %v8796 = vpop.permute.xlu0 %8795
        %8797 = vrot.lane.b32.xlu0 %v8728, 126
        %v8798 = vpop.permute.xlu0 %8797
        %8799 = vrot.lane.b32.xlu0 %v8729, 126
        %v8800 = vpop.permute.xlu0 %8799
        %8801 = vrot.lane.b32.xlu0 %v8730, 126
        %v8802 = vpop.permute.xlu0 %8801
        %8803 = vrot.lane.b32.xlu0 %v8731, 126
        %v8804 = vpop.permute.xlu0 %8803
        %8805 = vrot.lane.b32.xlu0 %v8732, 126
        %v8806 = vpop.permute.xlu0 %8805
        %8807 = vrot.lane.b32.xlu0 %v8733, 126
        %v8808 = vpop.permute.xlu0 %8807
        %8809 = vrot.lane.b32.xlu0 %v8734, 126
        %v8810 = vpop.permute.xlu0 %8809
        %8811 = vrot.lane.b32.xlu0 %v8735, 126
        %v8812 = vpop.permute.xlu0 %8811
        %8813 = vrot.lane.b32.xlu0 %v8736, 126
        %v8814 = vpop.permute.xlu0 %8813
        %8815 = vrot.lane.b32.xlu0 %v8737, 126
        %v8816 = vpop.permute.xlu0 %8815
        %8817 = vrot.lane.b32.xlu0 %v8738, 126
        %v8818 = vpop.permute.xlu0 %8817
        %8819 = vrot.lane.b32.xlu0 %v8739, 126
        %v8820 = vpop.permute.xlu0 %8819
        %8821 = vrot.lane.b32.xlu0 %v8740, 126
        %v8822 = vpop.permute.xlu0 %8821
        %8823 = vrot.lane.b32.xlu0 %v8741, 126
        %v8824 = vpop.permute.xlu0 %8823
        %8825 = vrot.lane.b32.xlu0 %v8742, 126
        %v8826 = vpop.permute.xlu0 %8825
        %8827 = vrot.lane.b32.xlu0 %v8743, 126
        %v8828 = vpop.permute.xlu0 %8827
        %8829 = vrot.lane.b32.xlu0 %v8744, 126
        %v8830 = vpop.permute.xlu0 %8829
        %8831 = vrot.lane.b32.xlu0 %v8745, 126
        %v8832 = vpop.permute.xlu0 %8831
        %8833 = vrot.lane.b32.xlu0 %v8746, 126
        %v8834 = vpop.permute.xlu0 %8833
        %8835 = vrot.lane.b32.xlu0 %v8747, 126
        %v8836 = vpop.permute.xlu0 %8835
        %8837 = vrot.lane.b32.xlu0 %v8748, 126
        %v8838 = vpop.permute.xlu0 %8837
        %8839 = vrot.lane.b32.xlu0 %v8749, 126
        %v8840 = vpop.permute.xlu0 %8839
        %8841 = vrot.lane.b32.xlu0 %v8750, 126
        %v8842 = vpop.permute.xlu0 %8841
        %8843 = vrot.lane.b32.xlu0 %v8751, 126
        %v8844 = vpop.permute.xlu0 %8843
        %8845 = vrot.lane.b32.xlu0 %v8752, 126
        %v8846 = vpop.permute.xlu0 %8845
        %8847 = vrot.lane.b32.xlu0 %v8753, 126
        %v8848 = vpop.permute.xlu0 %8847
        %8849 = vrot.lane.b32.xlu0 %v8754, 126
        %v8850 = vpop.permute.xlu0 %8849
        %v8883 = vadd.f32 %v8659, %v8788
        %v8884 = vadd.f32 %v8660, %v8790
        %v8885 = vadd.f32 %v8661, %v8792
        %v8886 = vadd.f32 %v8662, %v8794
        %v8887 = vadd.f32 %v8663, %v8796
        %v8888 = vadd.f32 %v8664, %v8798
        %v8889 = vadd.f32 %v8665, %v8800
        %v8890 = vadd.f32 %v8666, %v8802
        %v8891 = vadd.f32 %v8667, %v8804
        %v8892 = vadd.f32 %v8668, %v8806
        %v8893 = vadd.f32 %v8669, %v8808
        %v8894 = vadd.f32 %v8670, %v8810
        %v8895 = vadd.f32 %v8671, %v8812
        %v8896 = vadd.f32 %v8672, %v8814
        %v8897 = vadd.f32 %v8673, %v8816
        %v8898 = vadd.f32 %v8674, %v8818
        %v8899 = vadd.f32 %v8675, %v8820
        %v8900 = vadd.f32 %v8676, %v8822
        %v8901 = vadd.f32 %v8677, %v8824
        %v8902 = vadd.f32 %v8678, %v8826
        %v8903 = vadd.f32 %v8679, %v8828
        %v8904 = vadd.f32 %v8680, %v8830
        %v8905 = vadd.f32 %v8681, %v8832
        %v8906 = vadd.f32 %v8682, %v8834
        %v8907 = vadd.f32 %v8683, %v8836
        %v8908 = vadd.f32 %v8684, %v8838
        %v8909 = vadd.f32 %v8685, %v8840
        %v8910 = vadd.f32 %v8686, %v8842
        %v8911 = vadd.f32 %v8687, %v8844
        %v8912 = vadd.f32 %v8688, %v8846
        %v8913 = vadd.f32 %v8689, %v8848
        %v8914 = vadd.f32 %v8690, %v8850
        %8915 = vset.pattern.permute.xlu0 33
        %8916 = vperm.xlu0 %8915, %v2998
        %v8917 = vpop.permute.xlu0 %8916
        %8919 = vset.pattern.permute.xlu0 33
        %8920 = vperm.xlu0 %8919, %v3002
        %v8921 = vpop.permute.xlu0 %8920
        %8923 = vset.pattern.permute.xlu0 33
        %8924 = vperm.xlu0 %8923, %v3006
        %v8925 = vpop.permute.xlu0 %8924
        %8927 = vset.pattern.permute.xlu0 33
        %8928 = vperm.xlu0 %8927, %v3010
        %v8929 = vpop.permute.xlu0 %8928
        %8931 = vset.pattern.permute.xlu0 33
        %8932 = vperm.xlu0 %8931, %v3014
        %v8933 = vpop.permute.xlu0 %8932
        %8935 = vset.pattern.permute.xlu0 33
        %8936 = vperm.xlu0 %8935, %v3018
        %v8937 = vpop.permute.xlu0 %8936
        %8939 = vset.pattern.permute.xlu0 33
        %8940 = vperm.xlu0 %8939, %v3022
        %v8941 = vpop.permute.xlu0 %8940
        %8943 = vset.pattern.permute.xlu0 33
        %8944 = vperm.xlu0 %8943, %v3026
        %v8945 = vpop.permute.xlu0 %8944
        %v8947 = vmul.f32 %v8917, %v7399
        %v8948 = vmul.f32 %v8917, %v7400
        %v8949 = vmul.f32 %v8917, %v7401
        %v8950 = vmul.f32 %v8917, %v7402
        %v8951 = vmul.f32 %v8921, %v7399
        %v8952 = vmul.f32 %v8921, %v7400
        %v8953 = vmul.f32 %v8921, %v7401
        %v8954 = vmul.f32 %v8921, %v7402
        %v8955 = vmul.f32 %v8925, %v7399
        %v8956 = vmul.f32 %v8925, %v7400
        %v8957 = vmul.f32 %v8925, %v7401
        %v8958 = vmul.f32 %v8925, %v7402
        %v8959 = vmul.f32 %v8929, %v7399
        %v8960 = vmul.f32 %v8929, %v7400
        %v8961 = vmul.f32 %v8929, %v7401
        %v8962 = vmul.f32 %v8929, %v7402
        %v8963 = vmul.f32 %v8933, %v7399
        %v8964 = vmul.f32 %v8933, %v7400
        %v8965 = vmul.f32 %v8933, %v7401
        %v8966 = vmul.f32 %v8933, %v7402
        %v8967 = vmul.f32 %v8937, %v7399
        %v8968 = vmul.f32 %v8937, %v7400
        %v8969 = vmul.f32 %v8937, %v7401
        %v8970 = vmul.f32 %v8937, %v7402
        %v8971 = vmul.f32 %v8941, %v7399
        %v8972 = vmul.f32 %v8941, %v7400
        %v8973 = vmul.f32 %v8941, %v7401
        %v8974 = vmul.f32 %v8941, %v7402
        %v8975 = vmul.f32 %v8945, %v7399
        %v8976 = vmul.f32 %v8945, %v7400
        %v8977 = vmul.f32 %v8945, %v7401
        %v8978 = vmul.f32 %v8945, %v7402
        %9011 = vrot.lane.b32.xlu0 %v8947, 126
        %v9012 = vpop.permute.xlu0 %9011
        %9013 = vrot.lane.b32.xlu0 %v8948, 126
        %v9014 = vpop.permute.xlu0 %9013
        %9015 = vrot.lane.b32.xlu0 %v8949, 126
        %v9016 = vpop.permute.xlu0 %9015
        %9017 = vrot.lane.b32.xlu0 %v8950, 126
        %v9018 = vpop.permute.xlu0 %9017
        %9019 = vrot.lane.b32.xlu0 %v8951, 126
        %v9020 = vpop.permute.xlu0 %9019
        %9021 = vrot.lane.b32.xlu0 %v8952, 126
        %v9022 = vpop.permute.xlu0 %9021
        %9023 = vrot.lane.b32.xlu0 %v8953, 126
        %v9024 = vpop.permute.xlu0 %9023
        %9025 = vrot.lane.b32.xlu0 %v8954, 126
        %v9026 = vpop.permute.xlu0 %9025
        %9027 = vrot.lane.b32.xlu0 %v8955, 126
        %v9028 = vpop.permute.xlu0 %9027
        %9029 = vrot.lane.b32.xlu0 %v8956, 126
        %v9030 = vpop.permute.xlu0 %9029
        %9031 = vrot.lane.b32.xlu0 %v8957, 126
        %v9032 = vpop.permute.xlu0 %9031
        %9033 = vrot.lane.b32.xlu0 %v8958, 126
        %v9034 = vpop.permute.xlu0 %9033
        %9035 = vrot.lane.b32.xlu0 %v8959, 126
        %v9036 = vpop.permute.xlu0 %9035
        %9037 = vrot.lane.b32.xlu0 %v8960, 126
        %v9038 = vpop.permute.xlu0 %9037
        %9039 = vrot.lane.b32.xlu0 %v8961, 126
        %v9040 = vpop.permute.xlu0 %9039
        %9041 = vrot.lane.b32.xlu0 %v8962, 126
        %v9042 = vpop.permute.xlu0 %9041
        %9043 = vrot.lane.b32.xlu0 %v8963, 126
        %v9044 = vpop.permute.xlu0 %9043
        %9045 = vrot.lane.b32.xlu0 %v8964, 126
        %v9046 = vpop.permute.xlu0 %9045
        %9047 = vrot.lane.b32.xlu0 %v8965, 126
        %v9048 = vpop.permute.xlu0 %9047
        %9049 = vrot.lane.b32.xlu0 %v8966, 126
        %v9050 = vpop.permute.xlu0 %9049
        %9051 = vrot.lane.b32.xlu0 %v8967, 126
        %v9052 = vpop.permute.xlu0 %9051
        %9053 = vrot.lane.b32.xlu0 %v8968, 126
        %v9054 = vpop.permute.xlu0 %9053
        %9055 = vrot.lane.b32.xlu0 %v8969, 126
        %v9056 = vpop.permute.xlu0 %9055
        %9057 = vrot.lane.b32.xlu0 %v8970, 126
        %v9058 = vpop.permute.xlu0 %9057
        %9059 = vrot.lane.b32.xlu0 %v8971, 126
        %v9060 = vpop.permute.xlu0 %9059
        %9061 = vrot.lane.b32.xlu0 %v8972, 126
        %v9062 = vpop.permute.xlu0 %9061
        %9063 = vrot.lane.b32.xlu0 %v8973, 126
        %v9064 = vpop.permute.xlu0 %9063
        %9065 = vrot.lane.b32.xlu0 %v8974, 126
        %v9066 = vpop.permute.xlu0 %9065
        %9067 = vrot.lane.b32.xlu0 %v8975, 126
        %v9068 = vpop.permute.xlu0 %9067
        %9069 = vrot.lane.b32.xlu0 %v8976, 126
        %v9070 = vpop.permute.xlu0 %9069
        %9071 = vrot.lane.b32.xlu0 %v8977, 126
        %v9072 = vpop.permute.xlu0 %9071
        %9073 = vrot.lane.b32.xlu0 %v8978, 126
        %v9074 = vpop.permute.xlu0 %9073
        %v9107 = vadd.f32 %v8883, %v9012
        %v9108 = vadd.f32 %v8884, %v9014
        %v9109 = vadd.f32 %v8885, %v9016
        %v9110 = vadd.f32 %v8886, %v9018
        %v9111 = vadd.f32 %v8887, %v9020
        %v9112 = vadd.f32 %v8888, %v9022
        %v9113 = vadd.f32 %v8889, %v9024
        %v9114 = vadd.f32 %v8890, %v9026
        %v9115 = vadd.f32 %v8891, %v9028
        %v9116 = vadd.f32 %v8892, %v9030
        %v9117 = vadd.f32 %v8893, %v9032
        %v9118 = vadd.f32 %v8894, %v9034
        %v9119 = vadd.f32 %v8895, %v9036
        %v9120 = vadd.f32 %v8896, %v9038
        %v9121 = vadd.f32 %v8897, %v9040
        %v9122 = vadd.f32 %v8898, %v9042
        %v9123 = vadd.f32 %v8899, %v9044
        %v9124 = vadd.f32 %v8900, %v9046
        %v9125 = vadd.f32 %v8901, %v9048
        %v9126 = vadd.f32 %v8902, %v9050
        %v9127 = vadd.f32 %v8903, %v9052
        %v9128 = vadd.f32 %v8904, %v9054
        %v9129 = vadd.f32 %v8905, %v9056
        %v9130 = vadd.f32 %v8906, %v9058
        %v9131 = vadd.f32 %v8907, %v9060
        %v9132 = vadd.f32 %v8908, %v9062
        %v9133 = vadd.f32 %v8909, %v9064
        %v9134 = vadd.f32 %v8910, %v9066
        %v9135 = vadd.f32 %v8911, %v9068
        %v9136 = vadd.f32 %v8912, %v9070
        %v9137 = vadd.f32 %v8913, %v9072
        %v9138 = vadd.f32 %v8914, %v9074
        %9139 = vset.pattern.permute.xlu0 34
        %9140 = vperm.xlu0 %9139, %v2998
        %v9141 = vpop.permute.xlu0 %9140
        %9143 = vset.pattern.permute.xlu0 34
        %9144 = vperm.xlu0 %9143, %v3002
        %v9145 = vpop.permute.xlu0 %9144
        %9147 = vset.pattern.permute.xlu0 34
        %9148 = vperm.xlu0 %9147, %v3006
        %v9149 = vpop.permute.xlu0 %9148
        %9151 = vset.pattern.permute.xlu0 34
        %9152 = vperm.xlu0 %9151, %v3010
        %v9153 = vpop.permute.xlu0 %9152
        %9155 = vset.pattern.permute.xlu0 34
        %9156 = vperm.xlu0 %9155, %v3014
        %v9157 = vpop.permute.xlu0 %9156
        %9159 = vset.pattern.permute.xlu0 34
        %9160 = vperm.xlu0 %9159, %v3018
        %v9161 = vpop.permute.xlu0 %9160
        %9163 = vset.pattern.permute.xlu0 34
        %9164 = vperm.xlu0 %9163, %v3022
        %v9165 = vpop.permute.xlu0 %9164
        %9167 = vset.pattern.permute.xlu0 34
        %9168 = vperm.xlu0 %9167, %v3026
        %v9169 = vpop.permute.xlu0 %9168
        %v9171 = vmul.f32 %v9141, %v7403
        %v9172 = vmul.f32 %v9141, %v7404
        %v9173 = vmul.f32 %v9141, %v7405
        %v9174 = vmul.f32 %v9141, %v7406
        %v9175 = vmul.f32 %v9145, %v7403
        %v9176 = vmul.f32 %v9145, %v7404
        %v9177 = vmul.f32 %v9145, %v7405
        %v9178 = vmul.f32 %v9145, %v7406
        %v9179 = vmul.f32 %v9149, %v7403
        %v9180 = vmul.f32 %v9149, %v7404
        %v9181 = vmul.f32 %v9149, %v7405
        %v9182 = vmul.f32 %v9149, %v7406
        %v9183 = vmul.f32 %v9153, %v7403
        %v9184 = vmul.f32 %v9153, %v7404
        %v9185 = vmul.f32 %v9153, %v7405
        %v9186 = vmul.f32 %v9153, %v7406
        %v9187 = vmul.f32 %v9157, %v7403
        %v9188 = vmul.f32 %v9157, %v7404
        %v9189 = vmul.f32 %v9157, %v7405
        %v9190 = vmul.f32 %v9157, %v7406
        %v9191 = vmul.f32 %v9161, %v7403
        %v9192 = vmul.f32 %v9161, %v7404
        %v9193 = vmul.f32 %v9161, %v7405
        %v9194 = vmul.f32 %v9161, %v7406
        %v9195 = vmul.f32 %v9165, %v7403
        %v9196 = vmul.f32 %v9165, %v7404
        %v9197 = vmul.f32 %v9165, %v7405
        %v9198 = vmul.f32 %v9165, %v7406
        %v9199 = vmul.f32 %v9169, %v7403
        %v9200 = vmul.f32 %v9169, %v7404
        %v9201 = vmul.f32 %v9169, %v7405
        %v9202 = vmul.f32 %v9169, %v7406
        %9235 = vrot.lane.b32.xlu0 %v9171, 126
        %v9236 = vpop.permute.xlu0 %9235
        %9237 = vrot.lane.b32.xlu0 %v9172, 126
        %v9238 = vpop.permute.xlu0 %9237
        %9239 = vrot.lane.b32.xlu0 %v9173, 126
        %v9240 = vpop.permute.xlu0 %9239
        %9241 = vrot.lane.b32.xlu0 %v9174, 126
        %v9242 = vpop.permute.xlu0 %9241
        %9243 = vrot.lane.b32.xlu0 %v9175, 126
        %v9244 = vpop.permute.xlu0 %9243
        %9245 = vrot.lane.b32.xlu0 %v9176, 126
        %v9246 = vpop.permute.xlu0 %9245
        %9247 = vrot.lane.b32.xlu0 %v9177, 126
        %v9248 = vpop.permute.xlu0 %9247
        %9249 = vrot.lane.b32.xlu0 %v9178, 126
        %v9250 = vpop.permute.xlu0 %9249
        %9251 = vrot.lane.b32.xlu0 %v9179, 126
        %v9252 = vpop.permute.xlu0 %9251
        %9253 = vrot.lane.b32.xlu0 %v9180, 126
        %v9254 = vpop.permute.xlu0 %9253
        %9255 = vrot.lane.b32.xlu0 %v9181, 126
        %v9256 = vpop.permute.xlu0 %9255
        %9257 = vrot.lane.b32.xlu0 %v9182, 126
        %v9258 = vpop.permute.xlu0 %9257
        %9259 = vrot.lane.b32.xlu0 %v9183, 126
        %v9260 = vpop.permute.xlu0 %9259
        %9261 = vrot.lane.b32.xlu0 %v9184, 126
        %v9262 = vpop.permute.xlu0 %9261
        %9263 = vrot.lane.b32.xlu0 %v9185, 126
        %v9264 = vpop.permute.xlu0 %9263
        %9265 = vrot.lane.b32.xlu0 %v9186, 126
        %v9266 = vpop.permute.xlu0 %9265
        %9267 = vrot.lane.b32.xlu0 %v9187, 126
        %v9268 = vpop.permute.xlu0 %9267
        %9269 = vrot.lane.b32.xlu0 %v9188, 126
        %v9270 = vpop.permute.xlu0 %9269
        %9271 = vrot.lane.b32.xlu0 %v9189, 126
        %v9272 = vpop.permute.xlu0 %9271
        %9273 = vrot.lane.b32.xlu0 %v9190, 126
        %v9274 = vpop.permute.xlu0 %9273
        %9275 = vrot.lane.b32.xlu0 %v9191, 126
        %v9276 = vpop.permute.xlu0 %9275
        %9277 = vrot.lane.b32.xlu0 %v9192, 126
        %v9278 = vpop.permute.xlu0 %9277
        %9279 = vrot.lane.b32.xlu0 %v9193, 126
        %v9280 = vpop.permute.xlu0 %9279
        %9281 = vrot.lane.b32.xlu0 %v9194, 126
        %v9282 = vpop.permute.xlu0 %9281
        %9283 = vrot.lane.b32.xlu0 %v9195, 126
        %v9284 = vpop.permute.xlu0 %9283
        %9285 = vrot.lane.b32.xlu0 %v9196, 126
        %v9286 = vpop.permute.xlu0 %9285
        %9287 = vrot.lane.b32.xlu0 %v9197, 126
        %v9288 = vpop.permute.xlu0 %9287
        %9289 = vrot.lane.b32.xlu0 %v9198, 126
        %v9290 = vpop.permute.xlu0 %9289
        %9291 = vrot.lane.b32.xlu0 %v9199, 126
        %v9292 = vpop.permute.xlu0 %9291
        %9293 = vrot.lane.b32.xlu0 %v9200, 126
        %v9294 = vpop.permute.xlu0 %9293
        %9295 = vrot.lane.b32.xlu0 %v9201, 126
        %v9296 = vpop.permute.xlu0 %9295
        %9297 = vrot.lane.b32.xlu0 %v9202, 126
        %v9298 = vpop.permute.xlu0 %9297
        %v9331 = vadd.f32 %v9107, %v9236
        %v9332 = vadd.f32 %v9108, %v9238
        %v9333 = vadd.f32 %v9109, %v9240
        %v9334 = vadd.f32 %v9110, %v9242
        %v9335 = vadd.f32 %v9111, %v9244
        %v9336 = vadd.f32 %v9112, %v9246
        %v9337 = vadd.f32 %v9113, %v9248
        %v9338 = vadd.f32 %v9114, %v9250
        %v9339 = vadd.f32 %v9115, %v9252
        %v9340 = vadd.f32 %v9116, %v9254
        %v9341 = vadd.f32 %v9117, %v9256
        %v9342 = vadd.f32 %v9118, %v9258
        %v9343 = vadd.f32 %v9119, %v9260
        %v9344 = vadd.f32 %v9120, %v9262
        %v9345 = vadd.f32 %v9121, %v9264
        %v9346 = vadd.f32 %v9122, %v9266
        %v9347 = vadd.f32 %v9123, %v9268
        %v9348 = vadd.f32 %v9124, %v9270
        %v9349 = vadd.f32 %v9125, %v9272
        %v9350 = vadd.f32 %v9126, %v9274
        %v9351 = vadd.f32 %v9127, %v9276
        %v9352 = vadd.f32 %v9128, %v9278
        %v9353 = vadd.f32 %v9129, %v9280
        %v9354 = vadd.f32 %v9130, %v9282
        %v9355 = vadd.f32 %v9131, %v9284
        %v9356 = vadd.f32 %v9132, %v9286
        %v9357 = vadd.f32 %v9133, %v9288
        %v9358 = vadd.f32 %v9134, %v9290
        %v9359 = vadd.f32 %v9135, %v9292
        %v9360 = vadd.f32 %v9136, %v9294
        %v9361 = vadd.f32 %v9137, %v9296
        %v9362 = vadd.f32 %v9138, %v9298
        %9363 = vset.pattern.permute.xlu0 35
        %9364 = vperm.xlu0 %9363, %v2998
        %v9365 = vpop.permute.xlu0 %9364
        %9367 = vset.pattern.permute.xlu0 35
        %9368 = vperm.xlu0 %9367, %v3002
        %v9369 = vpop.permute.xlu0 %9368
        %9371 = vset.pattern.permute.xlu0 35
        %9372 = vperm.xlu0 %9371, %v3006
        %v9373 = vpop.permute.xlu0 %9372
        %9375 = vset.pattern.permute.xlu0 35
        %9376 = vperm.xlu0 %9375, %v3010
        %v9377 = vpop.permute.xlu0 %9376
        %9379 = vset.pattern.permute.xlu0 35
        %9380 = vperm.xlu0 %9379, %v3014
        %v9381 = vpop.permute.xlu0 %9380
        %9383 = vset.pattern.permute.xlu0 35
        %9384 = vperm.xlu0 %9383, %v3018
        %v9385 = vpop.permute.xlu0 %9384
        %9387 = vset.pattern.permute.xlu0 35
        %9388 = vperm.xlu0 %9387, %v3022
        %v9389 = vpop.permute.xlu0 %9388
        %9391 = vset.pattern.permute.xlu0 35
        %9392 = vperm.xlu0 %9391, %v3026
        %v9393 = vpop.permute.xlu0 %9392
        %v9395 = vmul.f32 %v9365, %v7407
        %v9396 = vmul.f32 %v9365, %v7408
        %v9397 = vmul.f32 %v9365, %v7409
        %v9398 = vmul.f32 %v9365, %v7410
        %v9399 = vmul.f32 %v9369, %v7407
        %v9400 = vmul.f32 %v9369, %v7408
        %v9401 = vmul.f32 %v9369, %v7409
        %v9402 = vmul.f32 %v9369, %v7410
        %v9403 = vmul.f32 %v9373, %v7407
        %v9404 = vmul.f32 %v9373, %v7408
        %v9405 = vmul.f32 %v9373, %v7409
        %v9406 = vmul.f32 %v9373, %v7410
        %v9407 = vmul.f32 %v9377, %v7407
        %v9408 = vmul.f32 %v9377, %v7408
        %v9409 = vmul.f32 %v9377, %v7409
        %v9410 = vmul.f32 %v9377, %v7410
        %v9411 = vmul.f32 %v9381, %v7407
        %v9412 = vmul.f32 %v9381, %v7408
        %v9413 = vmul.f32 %v9381, %v7409
        %v9414 = vmul.f32 %v9381, %v7410
        %v9415 = vmul.f32 %v9385, %v7407
        %v9416 = vmul.f32 %v9385, %v7408
        %v9417 = vmul.f32 %v9385, %v7409
        %v9418 = vmul.f32 %v9385, %v7410
        %v9419 = vmul.f32 %v9389, %v7407
        %v9420 = vmul.f32 %v9389, %v7408
        %v9421 = vmul.f32 %v9389, %v7409
        %v9422 = vmul.f32 %v9389, %v7410
        %v9423 = vmul.f32 %v9393, %v7407
        %v9424 = vmul.f32 %v9393, %v7408
        %v9425 = vmul.f32 %v9393, %v7409
        %v9426 = vmul.f32 %v9393, %v7410
        %9459 = vrot.lane.b32.xlu0 %v9395, 126
        %v9460 = vpop.permute.xlu0 %9459
        %9461 = vrot.lane.b32.xlu0 %v9396, 126
        %v9462 = vpop.permute.xlu0 %9461
        %9463 = vrot.lane.b32.xlu0 %v9397, 126
        %v9464 = vpop.permute.xlu0 %9463
        %9465 = vrot.lane.b32.xlu0 %v9398, 126
        %v9466 = vpop.permute.xlu0 %9465
        %9467 = vrot.lane.b32.xlu0 %v9399, 126
        %v9468 = vpop.permute.xlu0 %9467
        %9469 = vrot.lane.b32.xlu0 %v9400, 126
        %v9470 = vpop.permute.xlu0 %9469
        %9471 = vrot.lane.b32.xlu0 %v9401, 126
        %v9472 = vpop.permute.xlu0 %9471
        %9473 = vrot.lane.b32.xlu0 %v9402, 126
        %v9474 = vpop.permute.xlu0 %9473
        %9475 = vrot.lane.b32.xlu0 %v9403, 126
        %v9476 = vpop.permute.xlu0 %9475
        %9477 = vrot.lane.b32.xlu0 %v9404, 126
        %v9478 = vpop.permute.xlu0 %9477
        %9479 = vrot.lane.b32.xlu0 %v9405, 126
        %v9480 = vpop.permute.xlu0 %9479
        %9481 = vrot.lane.b32.xlu0 %v9406, 126
        %v9482 = vpop.permute.xlu0 %9481
        %9483 = vrot.lane.b32.xlu0 %v9407, 126
        %v9484 = vpop.permute.xlu0 %9483
        %9485 = vrot.lane.b32.xlu0 %v9408, 126
        %v9486 = vpop.permute.xlu0 %9485
        %9487 = vrot.lane.b32.xlu0 %v9409, 126
        %v9488 = vpop.permute.xlu0 %9487
        %9489 = vrot.lane.b32.xlu0 %v9410, 126
        %v9490 = vpop.permute.xlu0 %9489
        %9491 = vrot.lane.b32.xlu0 %v9411, 126
        %v9492 = vpop.permute.xlu0 %9491
        %9493 = vrot.lane.b32.xlu0 %v9412, 126
        %v9494 = vpop.permute.xlu0 %9493
        %9495 = vrot.lane.b32.xlu0 %v9413, 126
        %v9496 = vpop.permute.xlu0 %9495
        %9497 = vrot.lane.b32.xlu0 %v9414, 126
        %v9498 = vpop.permute.xlu0 %9497
        %9499 = vrot.lane.b32.xlu0 %v9415, 126
        %v9500 = vpop.permute.xlu0 %9499
        %9501 = vrot.lane.b32.xlu0 %v9416, 126
        %v9502 = vpop.permute.xlu0 %9501
        %9503 = vrot.lane.b32.xlu0 %v9417, 126
        %v9504 = vpop.permute.xlu0 %9503
        %9505 = vrot.lane.b32.xlu0 %v9418, 126
        %v9506 = vpop.permute.xlu0 %9505
        %9507 = vrot.lane.b32.xlu0 %v9419, 126
        %v9508 = vpop.permute.xlu0 %9507
        %9509 = vrot.lane.b32.xlu0 %v9420, 126
        %v9510 = vpop.permute.xlu0 %9509
        %9511 = vrot.lane.b32.xlu0 %v9421, 126
        %v9512 = vpop.permute.xlu0 %9511
        %9513 = vrot.lane.b32.xlu0 %v9422, 126
        %v9514 = vpop.permute.xlu0 %9513
        %9515 = vrot.lane.b32.xlu0 %v9423, 126
        %v9516 = vpop.permute.xlu0 %9515
        %9517 = vrot.lane.b32.xlu0 %v9424, 126
        %v9518 = vpop.permute.xlu0 %9517
        %9519 = vrot.lane.b32.xlu0 %v9425, 126
        %v9520 = vpop.permute.xlu0 %9519
        %9521 = vrot.lane.b32.xlu0 %v9426, 126
        %v9522 = vpop.permute.xlu0 %9521
        %v9555 = vadd.f32 %v9331, %v9460
        %v9556 = vadd.f32 %v9332, %v9462
        %v9557 = vadd.f32 %v9333, %v9464
        %v9558 = vadd.f32 %v9334, %v9466
        %v9559 = vadd.f32 %v9335, %v9468
        %v9560 = vadd.f32 %v9336, %v9470
        %v9561 = vadd.f32 %v9337, %v9472
        %v9562 = vadd.f32 %v9338, %v9474
        %v9563 = vadd.f32 %v9339, %v9476
        %v9564 = vadd.f32 %v9340, %v9478
        %v9565 = vadd.f32 %v9341, %v9480
        %v9566 = vadd.f32 %v9342, %v9482
        %v9567 = vadd.f32 %v9343, %v9484
        %v9568 = vadd.f32 %v9344, %v9486
        %v9569 = vadd.f32 %v9345, %v9488
        %v9570 = vadd.f32 %v9346, %v9490
        %v9571 = vadd.f32 %v9347, %v9492
        %v9572 = vadd.f32 %v9348, %v9494
        %v9573 = vadd.f32 %v9349, %v9496
        %v9574 = vadd.f32 %v9350, %v9498
        %v9575 = vadd.f32 %v9351, %v9500
        %v9576 = vadd.f32 %v9352, %v9502
        %v9577 = vadd.f32 %v9353, %v9504
        %v9578 = vadd.f32 %v9354, %v9506
        %v9579 = vadd.f32 %v9355, %v9508
        %v9580 = vadd.f32 %v9356, %v9510
        %v9581 = vadd.f32 %v9357, %v9512
        %v9582 = vadd.f32 %v9358, %v9514
        %v9583 = vadd.f32 %v9359, %v9516
        %v9584 = vadd.f32 %v9360, %v9518
        %v9585 = vadd.f32 %v9361, %v9520
        %v9586 = vadd.f32 %v9362, %v9522
        %v9587 = vcombine.low %v9555, %v9563
        %v9588 = vcombine.high %v9555, %v9563
        %v9590 = vunpack.c.l.s4 1983009808
        %v9591 = vunpack.c.0.s8 %v9590
        %v9592 = vlaneseq
        %v9593 = vshrl.u32 %v9592, 7
        %v9594 = vsub.s32 %v9591, %v9593
        %v9595 = vrot.slane %v9587, %v9594
        %v9597 = vunpack.c.l.s4 1983009808
        %v9598 = vunpack.c.0.s8 %v9597
        %v9599 = vlaneseq
        %v9600 = vshrl.u32 %v9599, 7
        %v9601 = vsub.s32 %v9598, %v9600
        %v9602 = vrot.slane %v9588, %v9601
        %v9603 = vcombine.low %v9559, %v9567
        %v9604 = vcombine.high %v9559, %v9567
        %v9606 = vunpack.c.l.s4 1983009808
        %v9607 = vunpack.c.0.s8 %v9606
        %v9608 = vlaneseq
        %v9609 = vshrl.u32 %v9608, 7
        %v9610 = vsub.s32 %v9607, %v9609
        %v9611 = vrot.slane %v9603, %v9610
        %v9613 = vunpack.c.l.s4 1983009808
        %v9614 = vunpack.c.0.s8 %v9613
        %v9615 = vlaneseq
        %v9616 = vshrl.u32 %v9615, 7
        %v9617 = vsub.s32 %v9614, %v9616
        %v9618 = vrot.slane %v9604, %v9617
        %v9619 = vcombine.low %v9571, %v9579
        %v9620 = vcombine.high %v9571, %v9579
        %v9622 = vunpack.c.l.s4 1983009808
        %v9623 = vunpack.c.0.s8 %v9622
        %v9624 = vlaneseq
        %v9625 = vshrl.u32 %v9624, 7
        %v9626 = vsub.s32 %v9623, %v9625
        %v9627 = vrot.slane %v9619, %v9626
        %v9629 = vunpack.c.l.s4 1983009808
        %v9630 = vunpack.c.0.s8 %v9629
        %v9631 = vlaneseq
        %v9632 = vshrl.u32 %v9631, 7
        %v9633 = vsub.s32 %v9630, %v9632
        %v9634 = vrot.slane %v9620, %v9633
        %v9635 = vcombine.low %v9575, %v9583
        %v9636 = vcombine.high %v9575, %v9583
        %v9638 = vunpack.c.l.s4 1983009808
        %v9639 = vunpack.c.0.s8 %v9638
        %v9640 = vlaneseq
        %v9641 = vshrl.u32 %v9640, 7
        %v9642 = vsub.s32 %v9639, %v9641
        %v9643 = vrot.slane %v9635, %v9642
        %v9645 = vunpack.c.l.s4 1983009808
        %v9646 = vunpack.c.0.s8 %v9645
        %v9647 = vlaneseq
        %v9648 = vshrl.u32 %v9647, 7
        %v9649 = vsub.s32 %v9646, %v9648
        %v9650 = vrot.slane %v9636, %v9649
        %v9651 = vcombine.low %v9595, %v9611
        %v9652 = vcombine.high %v9595, %v9611
        %v9654 = vunpack.c.l.s4 1934713408
        %v9655 = vunpack.c.0.s8 %v9654
        %v9656 = vlaneseq
        %v9657 = vshrl.u32 %v9656, 7
        %v9658 = vsub.s32 %v9655, %v9657
        %v9659 = vrot.slane %v9651, %v9658
        %v9661 = vunpack.c.l.s4 1934713408
        %v9662 = vunpack.c.0.s8 %v9661
        %v9663 = vlaneseq
        %v9664 = vshrl.u32 %v9663, 7
        %v9665 = vsub.s32 %v9662, %v9664
        %v9666 = vrot.slane %v9652, %v9665
        %v9667 = vcombine.low %v9602, %v9618
        %v9668 = vcombine.high %v9602, %v9618
        %v9670 = vunpack.c.l.s4 1934713408
        %v9671 = vunpack.c.0.s8 %v9670
        %v9672 = vlaneseq
        %v9673 = vshrl.u32 %v9672, 7
        %v9674 = vsub.s32 %v9671, %v9673
        %v9675 = vrot.slane %v9667, %v9674
        %v9677 = vunpack.c.l.s4 1934713408
        %v9678 = vunpack.c.0.s8 %v9677
        %v9679 = vlaneseq
        %v9680 = vshrl.u32 %v9679, 7
        %v9681 = vsub.s32 %v9678, %v9680
        %v9682 = vrot.slane %v9668, %v9681
        %v9683 = vcombine.low %v9627, %v9643
        %v9684 = vcombine.high %v9627, %v9643
        %v9686 = vunpack.c.l.s4 1934713408
        %v9687 = vunpack.c.0.s8 %v9686
        %v9688 = vlaneseq
        %v9689 = vshrl.u32 %v9688, 7
        %v9690 = vsub.s32 %v9687, %v9689
        %v9691 = vrot.slane %v9683, %v9690
        %v9693 = vunpack.c.l.s4 1934713408
        %v9694 = vunpack.c.0.s8 %v9693
        %v9695 = vlaneseq
        %v9696 = vshrl.u32 %v9695, 7
        %v9697 = vsub.s32 %v9694, %v9696
        %v9698 = vrot.slane %v9684, %v9697
        %v9699 = vcombine.low %v9634, %v9650
        %v9700 = vcombine.high %v9634, %v9650
        %v9702 = vunpack.c.l.s4 1934713408
        %v9703 = vunpack.c.0.s8 %v9702
        %v9704 = vlaneseq
        %v9705 = vshrl.u32 %v9704, 7
        %v9706 = vsub.s32 %v9703, %v9705
        %v9707 = vrot.slane %v9699, %v9706
        %v9709 = vunpack.c.l.s4 1934713408
        %v9710 = vunpack.c.0.s8 %v9709
        %v9711 = vlaneseq
        %v9712 = vshrl.u32 %v9711, 7
        %v9713 = vsub.s32 %v9710, %v9712
        %v9714 = vrot.slane %v9700, %v9713
        %v9715 = vcombine.low %v9659, %v9691
        %v9716 = vcombine.high %v9659, %v9691
        %v9717 = vcombine.low %v9666, %v9698
        %v9718 = vcombine.high %v9666, %v9698
        %v9719 = vcombine.low %v9675, %v9707
        %v9720 = vcombine.high %v9675, %v9707
        %v9721 = vcombine.low %v9682, %v9714
        %v9722 = vcombine.high %v9682, %v9714
        %v9723 = vcombine.low %v9556, %v9564
        %v9724 = vcombine.high %v9556, %v9564
        %v9726 = vunpack.c.l.s4 1983009808
        %v9727 = vunpack.c.0.s8 %v9726
        %v9728 = vlaneseq
        %v9729 = vshrl.u32 %v9728, 7
        %v9730 = vsub.s32 %v9727, %v9729
        %v9731 = vrot.slane %v9723, %v9730
        %v9733 = vunpack.c.l.s4 1983009808
        %v9734 = vunpack.c.0.s8 %v9733
        %v9735 = vlaneseq
        %v9736 = vshrl.u32 %v9735, 7
        %v9737 = vsub.s32 %v9734, %v9736
        %v9738 = vrot.slane %v9724, %v9737
        %v9739 = vcombine.low %v9560, %v9568
        %v9740 = vcombine.high %v9560, %v9568
        %v9742 = vunpack.c.l.s4 1983009808
        %v9743 = vunpack.c.0.s8 %v9742
        %v9744 = vlaneseq
        %v9745 = vshrl.u32 %v9744, 7
        %v9746 = vsub.s32 %v9743, %v9745
        %v9747 = vrot.slane %v9739, %v9746
        %v9749 = vunpack.c.l.s4 1983009808
        %v9750 = vunpack.c.0.s8 %v9749
        %v9751 = vlaneseq
        %v9752 = vshrl.u32 %v9751, 7
        %v9753 = vsub.s32 %v9750, %v9752
        %v9754 = vrot.slane %v9740, %v9753
        %v9755 = vcombine.low %v9572, %v9580
        %v9756 = vcombine.high %v9572, %v9580
        %v9758 = vunpack.c.l.s4 1983009808
        %v9759 = vunpack.c.0.s8 %v9758
        %v9760 = vlaneseq
        %v9761 = vshrl.u32 %v9760, 7
        %v9762 = vsub.s32 %v9759, %v9761
        %v9763 = vrot.slane %v9755, %v9762
        %v9765 = vunpack.c.l.s4 1983009808
        %v9766 = vunpack.c.0.s8 %v9765
        %v9767 = vlaneseq
        %v9768 = vshrl.u32 %v9767, 7
        %v9769 = vsub.s32 %v9766, %v9768
        %v9770 = vrot.slane %v9756, %v9769
        %v9771 = vcombine.low %v9576, %v9584
        %v9772 = vcombine.high %v9576, %v9584
        %v9774 = vunpack.c.l.s4 1983009808
        %v9775 = vunpack.c.0.s8 %v9774
        %v9776 = vlaneseq
        %v9777 = vshrl.u32 %v9776, 7
        %v9778 = vsub.s32 %v9775, %v9777
        %v9779 = vrot.slane %v9771, %v9778
        %v9781 = vunpack.c.l.s4 1983009808
        %v9782 = vunpack.c.0.s8 %v9781
        %v9783 = vlaneseq
        %v9784 = vshrl.u32 %v9783, 7
        %v9785 = vsub.s32 %v9782, %v9784
        %v9786 = vrot.slane %v9772, %v9785
        %v9787 = vcombine.low %v9731, %v9747
        %v9788 = vcombine.high %v9731, %v9747
        %v9790 = vunpack.c.l.s4 1934713408
        %v9791 = vunpack.c.0.s8 %v9790
        %v9792 = vlaneseq
        %v9793 = vshrl.u32 %v9792, 7
        %v9794 = vsub.s32 %v9791, %v9793
        %v9795 = vrot.slane %v9787, %v9794
        %v9797 = vunpack.c.l.s4 1934713408
        %v9798 = vunpack.c.0.s8 %v9797
        %v9799 = vlaneseq
        %v9800 = vshrl.u32 %v9799, 7
        %v9801 = vsub.s32 %v9798, %v9800
        %v9802 = vrot.slane %v9788, %v9801
        %v9803 = vcombine.low %v9738, %v9754
        %v9804 = vcombine.high %v9738, %v9754
        %v9806 = vunpack.c.l.s4 1934713408
        %v9807 = vunpack.c.0.s8 %v9806
        %v9808 = vlaneseq
        %v9809 = vshrl.u32 %v9808, 7
        %v9810 = vsub.s32 %v9807, %v9809
        %v9811 = vrot.slane %v9803, %v9810
        %v9813 = vunpack.c.l.s4 1934713408
        %v9814 = vunpack.c.0.s8 %v9813
        %v9815 = vlaneseq
        %v9816 = vshrl.u32 %v9815, 7
        %v9817 = vsub.s32 %v9814, %v9816
        %v9818 = vrot.slane %v9804, %v9817
        %v9819 = vcombine.low %v9763, %v9779
        %v9820 = vcombine.high %v9763, %v9779
        %v9822 = vunpack.c.l.s4 1934713408
        %v9823 = vunpack.c.0.s8 %v9822
        %v9824 = vlaneseq
        %v9825 = vshrl.u32 %v9824, 7
        %v9826 = vsub.s32 %v9823, %v9825
        %v9827 = vrot.slane %v9819, %v9826
        %v9829 = vunpack.c.l.s4 1934713408
        %v9830 = vunpack.c.0.s8 %v9829
        %v9831 = vlaneseq
        %v9832 = vshrl.u32 %v9831, 7
        %v9833 = vsub.s32 %v9830, %v9832
        %v9834 = vrot.slane %v9820, %v9833
        %v9835 = vcombine.low %v9770, %v9786
        %v9836 = vcombine.high %v9770, %v9786
        %v9838 = vunpack.c.l.s4 1934713408
        %v9839 = vunpack.c.0.s8 %v9838
        %v9840 = vlaneseq
        %v9841 = vshrl.u32 %v9840, 7
        %v9842 = vsub.s32 %v9839, %v9841
        %v9843 = vrot.slane %v9835, %v9842
        %v9845 = vunpack.c.l.s4 1934713408
        %v9846 = vunpack.c.0.s8 %v9845
        %v9847 = vlaneseq
        %v9848 = vshrl.u32 %v9847, 7
        %v9849 = vsub.s32 %v9846, %v9848
        %v9850 = vrot.slane %v9836, %v9849
        %v9851 = vcombine.low %v9795, %v9827
        %v9852 = vcombine.high %v9795, %v9827
        %v9853 = vcombine.low %v9802, %v9834
        %v9854 = vcombine.high %v9802, %v9834
        %v9855 = vcombine.low %v9811, %v9843
        %v9856 = vcombine.high %v9811, %v9843
        %v9857 = vcombine.low %v9818, %v9850
        %v9858 = vcombine.high %v9818, %v9850
        %v9859 = vcombine.low %v9557, %v9565
        %v9860 = vcombine.high %v9557, %v9565
        %v9862 = vunpack.c.l.s4 1983009808
        %v9863 = vunpack.c.0.s8 %v9862
        %v9864 = vlaneseq
        %v9865 = vshrl.u32 %v9864, 7
        %v9866 = vsub.s32 %v9863, %v9865
        %v9867 = vrot.slane %v9859, %v9866
        %v9869 = vunpack.c.l.s4 1983009808
        %v9870 = vunpack.c.0.s8 %v9869
        %v9871 = vlaneseq
        %v9872 = vshrl.u32 %v9871, 7
        %v9873 = vsub.s32 %v9870, %v9872
        %v9874 = vrot.slane %v9860, %v9873
        %v9875 = vcombine.low %v9561, %v9569
        %v9876 = vcombine.high %v9561, %v9569
        %v9878 = vunpack.c.l.s4 1983009808
        %v9879 = vunpack.c.0.s8 %v9878
        %v9880 = vlaneseq
        %v9881 = vshrl.u32 %v9880, 7
        %v9882 = vsub.s32 %v9879, %v9881
        %v9883 = vrot.slane %v9875, %v9882
        %v9885 = vunpack.c.l.s4 1983009808
        %v9886 = vunpack.c.0.s8 %v9885
        %v9887 = vlaneseq
        %v9888 = vshrl.u32 %v9887, 7
        %v9889 = vsub.s32 %v9886, %v9888
        %v9890 = vrot.slane %v9876, %v9889
        %v9891 = vcombine.low %v9573, %v9581
        %v9892 = vcombine.high %v9573, %v9581
        %v9894 = vunpack.c.l.s4 1983009808
        %v9895 = vunpack.c.0.s8 %v9894
        %v9896 = vlaneseq
        %v9897 = vshrl.u32 %v9896, 7
        %v9898 = vsub.s32 %v9895, %v9897
        %v9899 = vrot.slane %v9891, %v9898
        %v9901 = vunpack.c.l.s4 1983009808
        %v9902 = vunpack.c.0.s8 %v9901
        %v9903 = vlaneseq
        %v9904 = vshrl.u32 %v9903, 7
        %v9905 = vsub.s32 %v9902, %v9904
        %v9906 = vrot.slane %v9892, %v9905
        %v9907 = vcombine.low %v9577, %v9585
        %v9908 = vcombine.high %v9577, %v9585
        %v9910 = vunpack.c.l.s4 1983009808
        %v9911 = vunpack.c.0.s8 %v9910
        %v9912 = vlaneseq
        %v9913 = vshrl.u32 %v9912, 7
        %v9914 = vsub.s32 %v9911, %v9913
        %v9915 = vrot.slane %v9907, %v9914
        %v9917 = vunpack.c.l.s4 1983009808
        %v9918 = vunpack.c.0.s8 %v9917
        %v9919 = vlaneseq
        %v9920 = vshrl.u32 %v9919, 7
        %v9921 = vsub.s32 %v9918, %v9920
        %v9922 = vrot.slane %v9908, %v9921
        %v9923 = vcombine.low %v9867, %v9883
        %v9924 = vcombine.high %v9867, %v9883
        %v9926 = vunpack.c.l.s4 1934713408
        %v9927 = vunpack.c.0.s8 %v9926
        %v9928 = vlaneseq
        %v9929 = vshrl.u32 %v9928, 7
        %v9930 = vsub.s32 %v9927, %v9929
        %v9931 = vrot.slane %v9923, %v9930
        %v9933 = vunpack.c.l.s4 1934713408
        %v9934 = vunpack.c.0.s8 %v9933
        %v9935 = vlaneseq
        %v9936 = vshrl.u32 %v9935, 7
        %v9937 = vsub.s32 %v9934, %v9936
        %v9938 = vrot.slane %v9924, %v9937
        %v9939 = vcombine.low %v9874, %v9890
        %v9940 = vcombine.high %v9874, %v9890
        %v9942 = vunpack.c.l.s4 1934713408
        %v9943 = vunpack.c.0.s8 %v9942
        %v9944 = vlaneseq
        %v9945 = vshrl.u32 %v9944, 7
        %v9946 = vsub.s32 %v9943, %v9945
        %v9947 = vrot.slane %v9939, %v9946
        %v9949 = vunpack.c.l.s4 1934713408
        %v9950 = vunpack.c.0.s8 %v9949
        %v9951 = vlaneseq
        %v9952 = vshrl.u32 %v9951, 7
        %v9953 = vsub.s32 %v9950, %v9952
        %v9954 = vrot.slane %v9940, %v9953
        %v9955 = vcombine.low %v9899, %v9915
        %v9956 = vcombine.high %v9899, %v9915
        %v9958 = vunpack.c.l.s4 1934713408
        %v9959 = vunpack.c.0.s8 %v9958
        %v9960 = vlaneseq
        %v9961 = vshrl.u32 %v9960, 7
        %v9962 = vsub.s32 %v9959, %v9961
        %v9963 = vrot.slane %v9955, %v9962
        %v9965 = vunpack.c.l.s4 1934713408
        %v9966 = vunpack.c.0.s8 %v9965
        %v9967 = vlaneseq
        %v9968 = vshrl.u32 %v9967, 7
        %v9969 = vsub.s32 %v9966, %v9968
        %v9970 = vrot.slane %v9956, %v9969
        %v9971 = vcombine.low %v9906, %v9922
        %v9972 = vcombine.high %v9906, %v9922
        %v9974 = vunpack.c.l.s4 1934713408
        %v9975 = vunpack.c.0.s8 %v9974
        %v9976 = vlaneseq
        %v9977 = vshrl.u32 %v9976, 7
        %v9978 = vsub.s32 %v9975, %v9977
        %v9979 = vrot.slane %v9971, %v9978
        %v9981 = vunpack.c.l.s4 1934713408
        %v9982 = vunpack.c.0.s8 %v9981
        %v9983 = vlaneseq
        %v9984 = vshrl.u32 %v9983, 7
        %v9985 = vsub.s32 %v9982, %v9984
        %v9986 = vrot.slane %v9972, %v9985
        %v9987 = vcombine.low %v9931, %v9963
        %v9988 = vcombine.high %v9931, %v9963
        %v9989 = vcombine.low %v9938, %v9970
        %v9990 = vcombine.high %v9938, %v9970
        %v9991 = vcombine.low %v9947, %v9979
        %v9992 = vcombine.high %v9947, %v9979
        %v9993 = vcombine.low %v9954, %v9986
        %v9994 = vcombine.high %v9954, %v9986
        %v9995 = vcombine.low %v9558, %v9566
        %v9996 = vcombine.high %v9558, %v9566
        %v9998 = vunpack.c.l.s4 1983009808
        %v9999 = vunpack.c.0.s8 %v9998
        %v10000 = vlaneseq
        %v10001 = vshrl.u32 %v10000, 7
        %v10002 = vsub.s32 %v9999, %v10001
        %v10003 = vrot.slane %v9995, %v10002
        %v10005 = vunpack.c.l.s4 1983009808
        %v10006 = vunpack.c.0.s8 %v10005
        %v10007 = vlaneseq
        %v10008 = vshrl.u32 %v10007, 7
        %v10009 = vsub.s32 %v10006, %v10008
        %v10010 = vrot.slane %v9996, %v10009
        %v10011 = vcombine.low %v9562, %v9570
        %v10012 = vcombine.high %v9562, %v9570
        %v10014 = vunpack.c.l.s4 1983009808
        %v10015 = vunpack.c.0.s8 %v10014
        %v10016 = vlaneseq
        %v10017 = vshrl.u32 %v10016, 7
        %v10018 = vsub.s32 %v10015, %v10017
        %v10019 = vrot.slane %v10011, %v10018
        %v10021 = vunpack.c.l.s4 1983009808
        %v10022 = vunpack.c.0.s8 %v10021
        %v10023 = vlaneseq
        %v10024 = vshrl.u32 %v10023, 7
        %v10025 = vsub.s32 %v10022, %v10024
        %v10026 = vrot.slane %v10012, %v10025
        %v10027 = vcombine.low %v9574, %v9582
        %v10028 = vcombine.high %v9574, %v9582
        %v10030 = vunpack.c.l.s4 1983009808
        %v10031 = vunpack.c.0.s8 %v10030
        %v10032 = vlaneseq
        %v10033 = vshrl.u32 %v10032, 7
        %v10034 = vsub.s32 %v10031, %v10033
        %v10035 = vrot.slane %v10027, %v10034
        %v10037 = vunpack.c.l.s4 1983009808
        %v10038 = vunpack.c.0.s8 %v10037
        %v10039 = vlaneseq
        %v10040 = vshrl.u32 %v10039, 7
        %v10041 = vsub.s32 %v10038, %v10040
        %v10042 = vrot.slane %v10028, %v10041
        %v10043 = vcombine.low %v9578, %v9586
        %v10044 = vcombine.high %v9578, %v9586
        %v10046 = vunpack.c.l.s4 1983009808
        %v10047 = vunpack.c.0.s8 %v10046
        %v10048 = vlaneseq
        %v10049 = vshrl.u32 %v10048, 7
        %v10050 = vsub.s32 %v10047, %v10049
        %v10051 = vrot.slane %v10043, %v10050
        %v10053 = vunpack.c.l.s4 1983009808
        %v10054 = vunpack.c.0.s8 %v10053
        %v10055 = vlaneseq
        %v10056 = vshrl.u32 %v10055, 7
        %v10057 = vsub.s32 %v10054, %v10056
        %v10058 = vrot.slane %v10044, %v10057
        %v10059 = vcombine.low %v10003, %v10019
        %v10060 = vcombine.high %v10003, %v10019
        %v10062 = vunpack.c.l.s4 1934713408
        %v10063 = vunpack.c.0.s8 %v10062
        %v10064 = vlaneseq
        %v10065 = vshrl.u32 %v10064, 7
        %v10066 = vsub.s32 %v10063, %v10065
        %v10067 = vrot.slane %v10059, %v10066
        %v10069 = vunpack.c.l.s4 1934713408
        %v10070 = vunpack.c.0.s8 %v10069
        %v10071 = vlaneseq
        %v10072 = vshrl.u32 %v10071, 7
        %v10073 = vsub.s32 %v10070, %v10072
        %v10074 = vrot.slane %v10060, %v10073
        %v10075 = vcombine.low %v10010, %v10026
        %v10076 = vcombine.high %v10010, %v10026
        %v10078 = vunpack.c.l.s4 1934713408
        %v10079 = vunpack.c.0.s8 %v10078
        %v10080 = vlaneseq
        %v10081 = vshrl.u32 %v10080, 7
        %v10082 = vsub.s32 %v10079, %v10081
        %v10083 = vrot.slane %v10075, %v10082
        %v10085 = vunpack.c.l.s4 1934713408
        %v10086 = vunpack.c.0.s8 %v10085
        %v10087 = vlaneseq
        %v10088 = vshrl.u32 %v10087, 7
        %v10089 = vsub.s32 %v10086, %v10088
        %v10090 = vrot.slane %v10076, %v10089
        %v10091 = vcombine.low %v10035, %v10051
        %v10092 = vcombine.high %v10035, %v10051
        %v10094 = vunpack.c.l.s4 1934713408
        %v10095 = vunpack.c.0.s8 %v10094
        %v10096 = vlaneseq
        %v10097 = vshrl.u32 %v10096, 7
        %v10098 = vsub.s32 %v10095, %v10097
        %v10099 = vrot.slane %v10091, %v10098
        %v10101 = vunpack.c.l.s4 1934713408
        %v10102 = vunpack.c.0.s8 %v10101
        %v10103 = vlaneseq
        %v10104 = vshrl.u32 %v10103, 7
        %v10105 = vsub.s32 %v10102, %v10104
        %v10106 = vrot.slane %v10092, %v10105
        %v10107 = vcombine.low %v10042, %v10058
        %v10108 = vcombine.high %v10042, %v10058
        %v10110 = vunpack.c.l.s4 1934713408
        %v10111 = vunpack.c.0.s8 %v10110
        %v10112 = vlaneseq
        %v10113 = vshrl.u32 %v10112, 7
        %v10114 = vsub.s32 %v10111, %v10113
        %v10115 = vrot.slane %v10107, %v10114
        %v10117 = vunpack.c.l.s4 1934713408
        %v10118 = vunpack.c.0.s8 %v10117
        %v10119 = vlaneseq
        %v10120 = vshrl.u32 %v10119, 7
        %v10121 = vsub.s32 %v10118, %v10120
        %v10122 = vrot.slane %v10108, %v10121
        %v10123 = vcombine.low %v10067, %v10099
        %v10124 = vcombine.high %v10067, %v10099
        %v10125 = vcombine.low %v10074, %v10106
        %v10126 = vcombine.high %v10074, %v10106
        %v10127 = vcombine.low %v10083, %v10115
        %v10128 = vcombine.high %v10083, %v10115
        %v10129 = vcombine.low %v10090, %v10122
        %v10130 = vcombine.high %v10090, %v10122
        %10132 = vrot.lane.b32.xlu0 %v9716, 32
        %v10133 = vpop.permute.xlu0 %10132
        %10136 = vrot.lane.b32.xlu0 %v9717, 64
        %v10137 = vpop.permute.xlu0 %10136
        %10140 = vrot.lane.b32.xlu0 %v9718, 96
        %v10141 = vpop.permute.xlu0 %10140
        %10144 = vrot.lane.b32.xlu0 %v9720, 32
        %v10145 = vpop.permute.xlu0 %10144
        %10148 = vrot.lane.b32.xlu0 %v9721, 64
        %v10149 = vpop.permute.xlu0 %10148
        %10152 = vrot.lane.b32.xlu0 %v9722, 96
        %v10153 = vpop.permute.xlu0 %10152
        %10156 = vrot.lane.b32.xlu0 %v9852, 32
        %v10157 = vpop.permute.xlu0 %10156
        %10160 = vrot.lane.b32.xlu0 %v9853, 64
        %v10161 = vpop.permute.xlu0 %10160
        %10164 = vrot.lane.b32.xlu0 %v9854, 96
        %v10165 = vpop.permute.xlu0 %10164
        %10168 = vrot.lane.b32.xlu0 %v9856, 32
        %v10169 = vpop.permute.xlu0 %10168
        %10172 = vrot.lane.b32.xlu0 %v9857, 64
        %v10173 = vpop.permute.xlu0 %10172
        %10176 = vrot.lane.b32.xlu0 %v9858, 96
        %v10177 = vpop.permute.xlu0 %10176
        %10180 = vrot.lane.b32.xlu0 %v9988, 32
        %v10181 = vpop.permute.xlu0 %10180
        %10184 = vrot.lane.b32.xlu0 %v9989, 64
        %v10185 = vpop.permute.xlu0 %10184
        %10188 = vrot.lane.b32.xlu0 %v9990, 96
        %v10189 = vpop.permute.xlu0 %10188
        %10192 = vrot.lane.b32.xlu0 %v9992, 32
        %v10193 = vpop.permute.xlu0 %10192
        %10196 = vrot.lane.b32.xlu0 %v9993, 64
        %v10197 = vpop.permute.xlu0 %10196
        %10200 = vrot.lane.b32.xlu0 %v9994, 96
        %v10201 = vpop.permute.xlu0 %10200
        %10204 = vrot.lane.b32.xlu0 %v10124, 32
        %v10205 = vpop.permute.xlu0 %10204
        %10208 = vrot.lane.b32.xlu0 %v10125, 64
        %v10209 = vpop.permute.xlu0 %10208
        %10212 = vrot.lane.b32.xlu0 %v10126, 96
        %v10213 = vpop.permute.xlu0 %10212
        %10216 = vrot.lane.b32.xlu0 %v10128, 32
        %v10217 = vpop.permute.xlu0 %10216
        %10220 = vrot.lane.b32.xlu0 %v10129, 64
        %v10221 = vpop.permute.xlu0 %10220
        %10224 = vrot.lane.b32.xlu0 %v10130, 96
        %v10225 = vpop.permute.xlu0 %10224
        %vm10227 = vcmask 261120
        %v10228 = vsel %vm10227, %v9715, %v10133
        %vm10229 = vcmask 523264
        %v10230 = vsel %vm10229, %v10228, %v10137
        %vm10231 = vcmask 785408
        %v10232 = vsel %vm10231, %v10230, %v10141
        %v10233 = vsel %vm10227, %v9719, %v10145
        %v10234 = vsel %vm10229, %v10233, %v10149
        %v10235 = vsel %vm10231, %v10234, %v10153
        %v10236 = vsel %vm10227, %v9851, %v10157
        %v10237 = vsel %vm10229, %v10236, %v10161
        %v10238 = vsel %vm10231, %v10237, %v10165
        %v10239 = vsel %vm10227, %v9855, %v10169
        %v10240 = vsel %vm10229, %v10239, %v10173
        %v10241 = vsel %vm10231, %v10240, %v10177
        %v10242 = vsel %vm10227, %v9987, %v10181
        %v10243 = vsel %vm10229, %v10242, %v10185
        %v10244 = vsel %vm10231, %v10243, %v10189
        %v10245 = vsel %vm10227, %v9991, %v10193
        %v10246 = vsel %vm10229, %v10245, %v10197
        %v10247 = vsel %vm10231, %v10246, %v10201
        %v10248 = vsel %vm10227, %v10123, %v10205
        %v10249 = vsel %vm10229, %v10248, %v10209
        %v10250 = vsel %vm10231, %v10249, %v10213
        %v10251 = vsel %vm10227, %v10127, %v10217
        %v10252 = vsel %vm10229, %v10251, %v10221
        %v10253 = vsel %vm10231, %v10252, %v10225
        %v10254 = vld [vmem:[%s3] sm:$0xff]
        %10256 = vset.pattern.permute.xlu0 0
        %10257 = vperm.xlu0 %10256, %v10254
        %v10258 = vpop.permute.xlu0 %10257
        %v10260 = vmul.f32 %v10232, %v10258
        %v10261 = vmul.f32 %v10235, %v10258
        %v10262 = vmul.f32 %v10238, %v10258
        %v10263 = vmul.f32 %v10241, %v10258
        %v10264 = vmul.f32 %v10244, %v10258
        %v10265 = vmul.f32 %v10247, %v10258
        %v10266 = vmul.f32 %v10250, %v10258
        %v10267 = vmul.f32 %v10253, %v10258
        %10268 = vset.pattern.permute.xlu0 1
        %10269 = vperm.xlu0 %10268, %v10254
        %v10270 = vpop.permute.xlu0 %10269
        %v10272 = vadd.f32 %v10260, %v10270
        %v10273 = vadd.f32 %v10261, %v10270
        %v10274 = vadd.f32 %v10262, %v10270
        %v10275 = vadd.f32 %v10263, %v10270
        %v10276 = vadd.f32 %v10264, %v10270
        %v10277 = vadd.f32 %v10265, %v10270
        %v10278 = vadd.f32 %v10266, %v10270
        %v10279 = vadd.f32 %v10267, %v10270
        %vm10280 = vcmp.ge.f32.partialorder %v10272, 0.0
        %vm10281 = vcmp.ge.f32.partialorder %v10273, 0.0
        %vm10282 = vcmp.ge.f32.partialorder %v10274, 0.0
        %vm10283 = vcmp.ge.f32.partialorder %v10275, 0.0
        %vm10284 = vcmp.ge.f32.partialorder %v10276, 0.0
        %vm10285 = vcmp.ge.f32.partialorder %v10277, 0.0
        %vm10286 = vcmp.ge.f32.partialorder %v10278, 0.0
        %vm10287 = vcmp.ge.f32.partialorder %v10279, 0.0
        %10288 = vset.pattern.permute.xlu0 2
        %10289 = vperm.xlu0 %10288, %v10254
        %v10290 = vpop.permute.xlu0 %10289
        %v10292 = vmul.f32 %v10290, %v10272
        %v10293 = vmul.f32 %v10290, %v10273
        %v10294 = vmul.f32 %v10290, %v10274
        %v10295 = vmul.f32 %v10290, %v10275
        %v10296 = vmul.f32 %v10290, %v10276
        %v10297 = vmul.f32 %v10290, %v10277
        %v10298 = vmul.f32 %v10290, %v10278
        %v10299 = vmul.f32 %v10290, %v10279
        %v10300 = vsel %vm10280, %v10272, %v10292
        %v10301 = vsel %vm10281, %v10273, %v10293
        %v10302 = vsel %vm10282, %v10274, %v10294
        %v10303 = vsel %vm10283, %v10275, %v10295
        %v10304 = vsel %vm10284, %v10276, %v10296
        %v10305 = vsel %vm10285, %v10277, %v10297
        %v10306 = vsel %vm10286, %v10278, %v10298
        %v10307 = vsel %vm10287, %v10279, %v10299
        %10308 = vst [vmem:[%s204] sm:$0xff] %v10300
        %10309 = vst [vmem:[%s204 + $0x8] sm:$0xff] %v10301
        %10310 = vst [vmem:[%s204 + $0x10] sm:$0xff] %v10302
        %10311 = vst [vmem:[%s204 + $0x18] sm:$0xff] %v10303
        %10312 = vst [vmem:[%s204 + $0x20] sm:$0xff] %v10304
        %10313 = vst [vmem:[%s204 + $0x28] sm:$0xff] %v10305
        %10314 = vst [vmem:[%s204 + $0x30] sm:$0xff] %v10306
        %10315 = vst [vmem:[%s204 + $0x38] sm:$0xff] %v10307
        %s10316 = sand.u32 %s129, 1
        %s10317 = scalar_lea.sflag [#allocation4], %s10316
        %s10318 = sand.u32 %s129, 1
        %s10319 = smul.addr %s10318, 64
        %s10320 = scalar_lea.vmem [#allocation3], %s10319
        // Predicated region
        $region41: #{tpu_custom_call.1} parent=35 // pred_check
          %p10321 = pneg %p139
        $region42: #{tpu_custom_call.1} parent=35 // pred_check_branch
          %10323 = sbr.rel (%p10321) target = $region44
        $region43: #{tpu_custom_call.1} parent=35 // pred_region
          %s10324 = smul.u32 8, %s23
          %s10326 = ssub.s32 1024, 1024
          %10327 = vsyncadd %s10317, %s10326
          %s10328 = smul.addr %s22, 8
          %s10329 = sadd.s32 %s10324, %s10328
          %s10330 = smul.addr %s10329, 128
          %s10331 = scalar_lea.hbm %s4, %s10330
          %s10333 = sshll.u32 %s10320, 4
          %s10334 = int_to_ptr.vmem [resolvable:$true] %s10333
          %10336 = dma.vmem_to_hbm [thread:$0]  %s10334, 1024, %s10331, %s10317
        $region44: #{tpu_custom_call.1} parent=35 // pred_fallthru
          _
      $region36: #{tpu_custom_call.1} parent=5 // pred_fallthru
        _
      %p10337 = scmp.le.s32.totalorder 2, %s13
      // Predicated region
      $region45: #{tpu_custom_call.1} parent=5 // pred_check
        %p10338 = pneg %p10337
      $region46: #{tpu_custom_call.1} parent=5 // pred_check_branch
        %10340 = sbr.rel (%p10338) target = $region48
      $region47: #{tpu_custom_call.1} parent=5 // pred_region
        %s10341 = ssub.s32 %s13, 2
        // Predicated region
        $region49: #{tpu_custom_call.1} parent=47 // pred_check
          %p10342 = pneg %p145
        $region50: #{tpu_custom_call.1} parent=47 // pred_check_branch
          %10344 = sbr.rel (%p10342) target = $region52
        $region51: #{tpu_custom_call.1} parent=47 // pred_region
          %s10345 = sand.u32 %s130, 1
          %s10346 = scalar_lea.sflag [#allocation4], %s10345
          %s10347 = sand.u32 %s130, 1
          %s10348 = smul.addr %s10347, 64
          %s10349 = scalar_lea.vmem [#allocation3], %s10348
          %10350 = dma.done %s10346, 1024
        $region52: #{tpu_custom_call.1} parent=47 // pred_fallthru
          _
      $region48: #{tpu_custom_call.1} parent=5 // pred_fallthru
        _
    $region6: #{tpu_custom_call.1} parent=1 // loop_footer
      %s17 = sadd.s32 1, %s13
    $region7: #{tpu_custom_call.1} parent=1 // loop_footer_branch
      %12 = sbr.rel target = $region3
    $region8: #{tpu_custom_call.1} parent=1 // loop_exit
      _
    %10351 = vsyncpa [#allocation4], 1
    %s10352 = scalar_lea.sflag [#allocation4], 1
    %10353 = vsyncpa %s10352, 1

</llo_original>
